<compile_context>
chip_gen: v5e
topology: v5e:2x2
jax: 0.10.0
libtpu: 0.0.40
codegen_flags: <defaults>
</compile_context>

<pallas_src>
import functools

import jax
import jax.numpy as jnp
from jax.experimental import pallas as pl
from jax.experimental.pallas import tpu as pltpu


def _layernorm(x, gamma, beta, eps=1e-5):
    mu = jnp.mean(x, axis=-1, keepdims=True)
    var = jnp.mean(jnp.square(x - mu), axis=-1, keepdims=True)
    return (x - mu) * jax.lax.rsqrt(var + eps) * gamma + beta


def _encoder_kernel(x_ref,
                    wqkv_ref, bqkv_ref, wo_ref, bo_ref,
                    w1_ref, b1_ref, w2_ref, b2_ref,
                    g1_ref, be1_ref, g2_ref, be2_ref,
                    gf_ref, bf_ref,
                    o_ref, *, nhead):
    """Full Encoder (all layers + final norm) for one batch element's (S, D) slab."""
    x = x_ref[...].astype(jnp.float32)                      # (S, D), f32
    S, D = x.shape
    hd = D // nhead
    scale = float(hd) ** -0.5
    num_layers = wqkv_ref.shape[0]

    for l in range(num_layers):                             # static unroll (small L)
        # ---- fused QKV projection: bf16 MXU operands, f32 accumulate ----
        qkv = jnp.dot(x.astype(jnp.bfloat16), wqkv_ref[l],
                      preferred_element_type=jnp.float32) + bqkv_ref[l]   # (S, 3D) f32
        qkvb = qkv.astype(jnp.bfloat16)
        q = qkvb[:, 0 * D:1 * D]                            # 256-lane aligned slices
        k = qkvb[:, 1 * D:2 * D]
        v = qkvb[:, 2 * D:3 * D]

        # head-major stacks (nhead, S, hd) -> single batched matmuls over heads
        qh = jnp.stack([q[:, h * hd:(h + 1) * hd] for h in range(nhead)], axis=0)
        kh = jnp.stack([k[:, h * hd:(h + 1) * hd] for h in range(nhead)], axis=0)
        vh = jnp.stack([v[:, h * hd:(h + 1) * hd] for h in range(nhead)], axis=0)

        # ---- scaled-dot-product attention (softmax in f32) ----
        s = jnp.einsum('hqd,hkd->hqk', qh, kh,
                       preferred_element_type=jnp.float32) * scale        # (nhead,S,S)
        s = s - jnp.max(s, axis=-1, keepdims=True)
        p = jnp.exp(s)
        p = p * pl.reciprocal(jnp.sum(p, axis=-1, keepdims=True), approx=True)

        av = jnp.einsum('hqk,hkd->hqd', p.astype(jnp.bfloat16), vh,
                        preferred_element_type=jnp.float32)               # (nhead,S,hd)

        # merge heads back to (S, D) and apply one out-projection matmul
        attn = jnp.concatenate([av[h] for h in range(nhead)], axis=-1)    # (S, D)
        attn = jnp.dot(attn.astype(jnp.bfloat16), wo_ref[l],
                       preferred_element_type=jnp.float32) + bo_ref[l]

        # residual + norm1  (dropout1 = identity at inference)
        x = _layernorm(x + attn, g1_ref[l], be1_ref[l])

        # ---- feed-forward: relu(x @ W1 + b1) @ W2 + b2 ----
        hid = jnp.dot(x.astype(jnp.bfloat16), w1_ref[l],
                      preferred_element_type=jnp.float32) + b1_ref[l]
        hid = jnp.maximum(hid, 0.0)
        ff = jnp.dot(hid.astype(jnp.bfloat16), w2_ref[l],
                     preferred_element_type=jnp.float32) + b2_ref[l]

        # residual + norm2  (dropout2 = identity at inference)
        x = _layernorm(x + ff, g2_ref[l], be2_ref[l])

    # encoder-level final LayerNorm
    x = _layernorm(x, gf_ref[...], bf_ref[...])
    o_ref[...] = x.astype(o_ref.dtype)


_PARAM_ORDER = ("wqkv", "bqkv", "wo", "bo", "w1", "b1", "w2", "b2",
                "g1", "be1", "g2", "be2", "gf", "bf")


def encoder_forward(src, params, *, nhead):
    """src: (S, B, D) seq-first like PyTorch. Returns (S, B, D)."""
    S, B, D = src.shape
    assert D % nhead == 0

    # free view: (S, B, D) -> (S, B*D); batch b occupies lanes [b*D, (b+1)*D)
    x2 = src.reshape(S, B * D)

    weights = [params[n] for n in _PARAM_ORDER]

    def full_spec(a):
        nd = a.ndim
        return pl.BlockSpec(a.shape, lambda b, _nd=nd: (0,) * _nd)

    in_specs = [pl.BlockSpec((S, D), lambda b: (0, b))] + [full_spec(w) for w in weights]
    out_spec = pl.BlockSpec((S, D), lambda b: (0, b))

    out = pl.pallas_call(
        functools.partial(_encoder_kernel, nhead=nhead),
        out_shape=jax.ShapeDtypeStruct((S, B * D), src.dtype),
        grid=(B,),
        in_specs=in_specs,
        out_specs=out_spec,
        compiler_params=pltpu.CompilerParams(
            dimension_semantics=("parallel",),
            vmem_limit_bytes=48 * 1024 * 1024,   # plenty of headroom, < v7x 64 MiB
        ),
    )(x2, *weights)

    return out.reshape(S, B, D)


def init_params(key, num_layers, d_model, dim_feedforward):
    """Synthetic parameters matching nn.TransformerEncoderLayer shapes.

    Matrix weights are stored pre-transposed ((in, out)) and in bf16 (MXU
    operands); biases / LayerNorm params stay f32. Per-layer tensors are stacked
    along a leading layer axis so the whole stack lives in one VMEM block.
    """
    D, FF = d_model, dim_feedforward

    def nrm(k, shape, dtype, scale=0.05):
        return (jax.random.normal(k, shape, jnp.float32) * scale).astype(dtype)

    acc = {n: [] for n in _PARAM_ORDER if n not in ("gf", "bf")}
    for _ in range(num_layers):
        key, *ks = jax.random.split(key, 9)
        acc["wqkv"].append(nrm(ks[0], (D, 3 * D), jnp.bfloat16))   # in_proj_weight.T
        acc["bqkv"].append(nrm(ks[1], (1, 3 * D), jnp.float32))    # in_proj_bias
        acc["wo"].append(nrm(ks[2], (D, D), jnp.bfloat16))         # out_proj.weight.T
        acc["bo"].append(nrm(ks[3], (1, D), jnp.float32))
        acc["w1"].append(nrm(ks[4], (D, FF), jnp.bfloat16))        # linear1.weight.T
        acc["b1"].append(nrm(ks[5], (1, FF), jnp.float32))
        acc["w2"].append(nrm(ks[6], (FF, D), jnp.bfloat16))        # linear2.weight.T
        acc["b2"].append(nrm(ks[7], (1, D), jnp.float32))
        acc["g1"].append(jnp.ones((1, D), jnp.float32))
        acc["be1"].append(jnp.zeros((1, D), jnp.float32))
        acc["g2"].append(jnp.ones((1, D), jnp.float32))
        acc["be2"].append(jnp.zeros((1, D), jnp.float32))

    params = {k: jnp.stack(v, axis=0) for k, v in acc.items()}
    params["gf"] = jnp.ones((1, D), jnp.float32)
    params["bf"] = jnp.zeros((1, D), jnp.float32)
    return params


if __name__ == "__main__":
    # Module-implied model dims (d_model=256, nhead=8, dim_feedforward=1024),
    # small seq/batch/layer counts.
    SEQ, BATCH = 8, 2
    D_MODEL, NHEAD, DIM_FF, NUM_LAYERS = 256, 8, 1024, 2

    key = jax.random.PRNGKey(0)
    kx, kp = jax.random.split(key)
    src = jax.random.normal(kx, (SEQ, BATCH, D_MODEL), jnp.float32)   # seq-first

    params = init_params(kp, NUM_LAYERS, D_MODEL, DIM_FF)

    fwd = jax.jit(functools.partial(encoder_forward, nhead=NHEAD))
    out = jax.block_until_ready(fwd(src, params))

    assert out.shape == (SEQ, BATCH, D_MODEL)
    assert bool(jnp.all(jnp.isfinite(out)))
    # TODO(synk): dropout (p=0.1) is identity (inference mode); optional src_mask /
    # src_key_padding_mask are not supported.
    print("KERNEL_OK")
</pallas_src>

<mosaic_0001>
module attributes {stable_mosaic.version = 11 : i64} {
  func.func @_encoder_kernel(%arg0: i32, %arg1: memref<8x256xf32, #tpu.memory_space<vmem>>, %arg2: memref<2x256x768xbf16, #tpu.memory_space<vmem>>, %arg3: memref<2x1x768xf32, #tpu.memory_space<vmem>>, %arg4: memref<2x256x256xbf16, #tpu.memory_space<vmem>>, %arg5: memref<2x1x256xf32, #tpu.memory_space<vmem>>, %arg6: memref<2x256x1024xbf16, #tpu.memory_space<vmem>>, %arg7: memref<2x1x1024xf32, #tpu.memory_space<vmem>>, %arg8: memref<2x1024x256xbf16, #tpu.memory_space<vmem>>, %arg9: memref<2x1x256xf32, #tpu.memory_space<vmem>>, %arg10: memref<2x1x256xf32, #tpu.memory_space<vmem>>, %arg11: memref<2x1x256xf32, #tpu.memory_space<vmem>>, %arg12: memref<2x1x256xf32, #tpu.memory_space<vmem>>, %arg13: memref<2x1x256xf32, #tpu.memory_space<vmem>>, %arg14: memref<1x256xf32, #tpu.memory_space<vmem>>, %arg15: memref<1x256xf32, #tpu.memory_space<vmem>>, %arg16: memref<8x256xf32, #tpu.memory_space<vmem>>) attributes {dimension_semantics = [#tpu.dimension_semantics<parallel>], iteration_bounds = array<i64: 2>, scalar_prefetch = 0 : i64, scratch_operands = 0 : i64, tpu.core_type = #tpu.core_type<tc>, window_params = [{transform_indices = @transform_0, window_bounds = array<i64: 8, 256>}, {pipeline_mode = #tpu.pipeline_mode<synchronous>, transform_indices = @transform_1, window_bounds = array<i64: 2, 256, 768>}, {pipeline_mode = #tpu.pipeline_mode<synchronous>, transform_indices = @transform_2, window_bounds = array<i64: 2, 1, 768>}, {pipeline_mode = #tpu.pipeline_mode<synchronous>, transform_indices = @transform_3, window_bounds = array<i64: 2, 256, 256>}, {pipeline_mode = #tpu.pipeline_mode<synchronous>, transform_indices = @transform_4, window_bounds = array<i64: 2, 1, 256>}, {pipeline_mode = #tpu.pipeline_mode<synchronous>, transform_indices = @transform_5, window_bounds = array<i64: 2, 256, 1024>}, {pipeline_mode = #tpu.pipeline_mode<synchronous>, transform_indices = @transform_6, window_bounds = array<i64: 2, 1, 1024>}, {pipeline_mode = #tpu.pipeline_mode<synchronous>, transform_indices = @transform_7, window_bounds = array<i64: 2, 1024, 256>}, {pipeline_mode = #tpu.pipeline_mode<synchronous>, transform_indices = @transform_8, window_bounds = array<i64: 2, 1, 256>}, {pipeline_mode = #tpu.pipeline_mode<synchronous>, transform_indices = @transform_9, window_bounds = array<i64: 2, 1, 256>}, {pipeline_mode = #tpu.pipeline_mode<synchronous>, transform_indices = @transform_10, window_bounds = array<i64: 2, 1, 256>}, {pipeline_mode = #tpu.pipeline_mode<synchronous>, transform_indices = @transform_11, window_bounds = array<i64: 2, 1, 256>}, {pipeline_mode = #tpu.pipeline_mode<synchronous>, transform_indices = @transform_12, window_bounds = array<i64: 2, 1, 256>}, {pipeline_mode = #tpu.pipeline_mode<synchronous>, transform_indices = @transform_13, window_bounds = array<i64: 1, 256>}, {pipeline_mode = #tpu.pipeline_mode<synchronous>, transform_indices = @transform_14, window_bounds = array<i64: 1, 256>}, {transform_indices = @transform_15, window_bounds = array<i64: 8, 256>}]} {
    %c0 = arith.constant 0 : index
    %c0_0 = arith.constant 0 : index
    %0 = vector.load %arg1[%c0, %c0_0] : memref<8x256xf32, #tpu.memory_space<vmem>>, vector<8x256xf32>
    %1 = arith.truncf %0 : vector<8x256xf32> to vector<8x256xbf16>
    %c0_1 = arith.constant 0 : index
    %c0_2 = arith.constant 0 : index
    %c0_3 = arith.constant 0 : index
    %2 = vector.load %arg2[%c0_1, %c0_2, %c0_3] : memref<2x256x768xbf16, #tpu.memory_space<vmem>>, vector<1x256x768xbf16>
    %3 = vector.shape_cast %2 : vector<1x256x768xbf16> to vector<256x768xbf16>
    %cst = arith.constant dense<0.000000e+00> : vector<8x768xf32>
    %4 = tpu.matmul %1, %3, %cst {dimension_numbers = #tpu.dot_dimension_numbers<[1], [0], [0], [1], [0, 0, 1, 1], [], []>} : vector<8x256xbf16>, vector<256x768xbf16>, vector<8x768xf32> -> vector<8x768xf32>
    %c0_4 = arith.constant 0 : index
    %c0_5 = arith.constant 0 : index
    %c0_6 = arith.constant 0 : index
    %5 = vector.load %arg3[%c0_4, %c0_5, %c0_6] : memref<2x1x768xf32, #tpu.memory_space<vmem>>, vector<1x1x768xf32>
    %6 = vector.shape_cast %5 : vector<1x1x768xf32> to vector<1x768xf32>
    %7 = vector.broadcast %6 : vector<1x768xf32> to vector<8x768xf32>
    %8 = arith.addf %4, %7 : vector<8x768xf32>
    %9 = arith.truncf %8 : vector<8x768xf32> to vector<8x768xbf16>
    %10 = vector.extract_strided_slice %9 {offsets = [0, 0], sizes = [8, 256], strides = [1, 1]} : vector<8x768xbf16> to vector<8x256xbf16>
    %11 = vector.extract_strided_slice %9 {offsets = [0, 256], sizes = [8, 256], strides = [1, 1]} : vector<8x768xbf16> to vector<8x256xbf16>
    %12 = vector.extract_strided_slice %9 {offsets = [0, 512], sizes = [8, 256], strides = [1, 1]} : vector<8x768xbf16> to vector<8x256xbf16>
    %13 = vector.extract_strided_slice %10 {offsets = [0, 0], sizes = [8, 32], strides = [1, 1]} : vector<8x256xbf16> to vector<8x32xbf16>
    %14 = vector.extract_strided_slice %10 {offsets = [0, 32], sizes = [8, 32], strides = [1, 1]} : vector<8x256xbf16> to vector<8x32xbf16>
    %15 = vector.extract_strided_slice %10 {offsets = [0, 64], sizes = [8, 32], strides = [1, 1]} : vector<8x256xbf16> to vector<8x32xbf16>
    %16 = vector.extract_strided_slice %10 {offsets = [0, 96], sizes = [8, 32], strides = [1, 1]} : vector<8x256xbf16> to vector<8x32xbf16>
    %17 = vector.extract_strided_slice %10 {offsets = [0, 128], sizes = [8, 32], strides = [1, 1]} : vector<8x256xbf16> to vector<8x32xbf16>
    %18 = vector.extract_strided_slice %10 {offsets = [0, 160], sizes = [8, 32], strides = [1, 1]} : vector<8x256xbf16> to vector<8x32xbf16>
    %19 = vector.extract_strided_slice %10 {offsets = [0, 192], sizes = [8, 32], strides = [1, 1]} : vector<8x256xbf16> to vector<8x32xbf16>
    %20 = vector.extract_strided_slice %10 {offsets = [0, 224], sizes = [8, 32], strides = [1, 1]} : vector<8x256xbf16> to vector<8x32xbf16>
    %21 = vector.shape_cast %13 : vector<8x32xbf16> to vector<1x8x32xbf16>
    %22 = vector.shape_cast %14 : vector<8x32xbf16> to vector<1x8x32xbf16>
    %23 = vector.shape_cast %15 : vector<8x32xbf16> to vector<1x8x32xbf16>
    %24 = vector.shape_cast %16 : vector<8x32xbf16> to vector<1x8x32xbf16>
    %25 = vector.shape_cast %17 : vector<8x32xbf16> to vector<1x8x32xbf16>
    %26 = vector.shape_cast %18 : vector<8x32xbf16> to vector<1x8x32xbf16>
    %27 = vector.shape_cast %19 : vector<8x32xbf16> to vector<1x8x32xbf16>
    %28 = vector.shape_cast %20 : vector<8x32xbf16> to vector<1x8x32xbf16>
    %29 = tpu.concatenate %21, %22, %23, %24, %25, %26, %27, %28 in 0 : vector<1x8x32xbf16>, vector<1x8x32xbf16>, vector<1x8x32xbf16>, vector<1x8x32xbf16>, vector<1x8x32xbf16>, vector<1x8x32xbf16>, vector<1x8x32xbf16>, vector<1x8x32xbf16> -> vector<8x8x32xbf16>
    %30 = vector.extract_strided_slice %11 {offsets = [0, 0], sizes = [8, 32], strides = [1, 1]} : vector<8x256xbf16> to vector<8x32xbf16>
    %31 = vector.extract_strided_slice %11 {offsets = [0, 32], sizes = [8, 32], strides = [1, 1]} : vector<8x256xbf16> to vector<8x32xbf16>
    %32 = vector.extract_strided_slice %11 {offsets = [0, 64], sizes = [8, 32], strides = [1, 1]} : vector<8x256xbf16> to vector<8x32xbf16>
    %33 = vector.extract_strided_slice %11 {offsets = [0, 96], sizes = [8, 32], strides = [1, 1]} : vector<8x256xbf16> to vector<8x32xbf16>
    %34 = vector.extract_strided_slice %11 {offsets = [0, 128], sizes = [8, 32], strides = [1, 1]} : vector<8x256xbf16> to vector<8x32xbf16>
    %35 = vector.extract_strided_slice %11 {offsets = [0, 160], sizes = [8, 32], strides = [1, 1]} : vector<8x256xbf16> to vector<8x32xbf16>
    %36 = vector.extract_strided_slice %11 {offsets = [0, 192], sizes = [8, 32], strides = [1, 1]} : vector<8x256xbf16> to vector<8x32xbf16>
    %37 = vector.extract_strided_slice %11 {offsets = [0, 224], sizes = [8, 32], strides = [1, 1]} : vector<8x256xbf16> to vector<8x32xbf16>
    %38 = vector.shape_cast %30 : vector<8x32xbf16> to vector<1x8x32xbf16>
    %39 = vector.shape_cast %31 : vector<8x32xbf16> to vector<1x8x32xbf16>
    %40 = vector.shape_cast %32 : vector<8x32xbf16> to vector<1x8x32xbf16>
    %41 = vector.shape_cast %33 : vector<8x32xbf16> to vector<1x8x32xbf16>
    %42 = vector.shape_cast %34 : vector<8x32xbf16> to vector<1x8x32xbf16>
    %43 = vector.shape_cast %35 : vector<8x32xbf16> to vector<1x8x32xbf16>
    %44 = vector.shape_cast %36 : vector<8x32xbf16> to vector<1x8x32xbf16>
    %45 = vector.shape_cast %37 : vector<8x32xbf16> to vector<1x8x32xbf16>
    %46 = tpu.concatenate %38, %39, %40, %41, %42, %43, %44, %45 in 0 : vector<1x8x32xbf16>, vector<1x8x32xbf16>, vector<1x8x32xbf16>, vector<1x8x32xbf16>, vector<1x8x32xbf16>, vector<1x8x32xbf16>, vector<1x8x32xbf16>, vector<1x8x32xbf16> -> vector<8x8x32xbf16>
    %47 = vector.extract_strided_slice %12 {offsets = [0, 0], sizes = [8, 32], strides = [1, 1]} : vector<8x256xbf16> to vector<8x32xbf16>
    %48 = vector.extract_strided_slice %12 {offsets = [0, 32], sizes = [8, 32], strides = [1, 1]} : vector<8x256xbf16> to vector<8x32xbf16>
    %49 = vector.extract_strided_slice %12 {offsets = [0, 64], sizes = [8, 32], strides = [1, 1]} : vector<8x256xbf16> to vector<8x32xbf16>
    %50 = vector.extract_strided_slice %12 {offsets = [0, 96], sizes = [8, 32], strides = [1, 1]} : vector<8x256xbf16> to vector<8x32xbf16>
    %51 = vector.extract_strided_slice %12 {offsets = [0, 128], sizes = [8, 32], strides = [1, 1]} : vector<8x256xbf16> to vector<8x32xbf16>
    %52 = vector.extract_strided_slice %12 {offsets = [0, 160], sizes = [8, 32], strides = [1, 1]} : vector<8x256xbf16> to vector<8x32xbf16>
    %53 = vector.extract_strided_slice %12 {offsets = [0, 192], sizes = [8, 32], strides = [1, 1]} : vector<8x256xbf16> to vector<8x32xbf16>
    %54 = vector.extract_strided_slice %12 {offsets = [0, 224], sizes = [8, 32], strides = [1, 1]} : vector<8x256xbf16> to vector<8x32xbf16>
    %55 = vector.shape_cast %47 : vector<8x32xbf16> to vector<1x8x32xbf16>
    %56 = vector.shape_cast %48 : vector<8x32xbf16> to vector<1x8x32xbf16>
    %57 = vector.shape_cast %49 : vector<8x32xbf16> to vector<1x8x32xbf16>
    %58 = vector.shape_cast %50 : vector<8x32xbf16> to vector<1x8x32xbf16>
    %59 = vector.shape_cast %51 : vector<8x32xbf16> to vector<1x8x32xbf16>
    %60 = vector.shape_cast %52 : vector<8x32xbf16> to vector<1x8x32xbf16>
    %61 = vector.shape_cast %53 : vector<8x32xbf16> to vector<1x8x32xbf16>
    %62 = vector.shape_cast %54 : vector<8x32xbf16> to vector<1x8x32xbf16>
    %63 = tpu.concatenate %55, %56, %57, %58, %59, %60, %61, %62 in 0 : vector<1x8x32xbf16>, vector<1x8x32xbf16>, vector<1x8x32xbf16>, vector<1x8x32xbf16>, vector<1x8x32xbf16>, vector<1x8x32xbf16>, vector<1x8x32xbf16>, vector<1x8x32xbf16> -> vector<8x8x32xbf16>
    "tpu.trace_start"() <{level = 10 : i32, message = "hqd,hkd->hqk"}> : () -> ()
    %cst_7 = arith.constant dense<0.000000e+00> : vector<8x8x8xf32>
    %64 = tpu.matmul %29, %46, %cst_7 {dimension_numbers = #tpu.dot_dimension_numbers<[2], [2], [1], [1], [0, 0, 0, 1, 1, 1], [0], [0]>} : vector<8x8x32xbf16>, vector<8x8x32xbf16>, vector<8x8x8xf32> -> vector<8x8x8xf32>
    "tpu.trace_stop"() : () -> ()
    %cst_8 = arith.constant 0.176776692 : f32
    %65 = vector.broadcast %cst_8 : f32 to vector<8x8x8xf32>
    %66 = arith.mulf %64, %65 : vector<8x8x8xf32>
    %cst_9 = arith.constant dense<0xFF800000> : vector<8x8xf32>
    %67 = vector.multi_reduction <maximumf>, %66, %cst_9 [2] : vector<8x8x8xf32> to vector<8x8xf32>
    %68 = vector.shape_cast %67 : vector<8x8xf32> to vector<8x8x1xf32>
    %69 = vector.broadcast %68 : vector<8x8x1xf32> to vector<8x8x8xf32>
    %70 = arith.subf %66, %69 : vector<8x8x8xf32>
    %71 = math.exp %70 : vector<8x8x8xf32>
    %cst_10 = arith.constant dense<0.000000e+00> : vector<8x8xf32>
    %72 = vector.multi_reduction <add>, %71, %cst_10 [2] : vector<8x8x8xf32> to vector<8x8xf32>
    %73 = vector.shape_cast %72 : vector<8x8xf32> to vector<8x8x1xf32>
    %74 = tpu.reciprocal %73 {approx = true} : vector<8x8x1xf32> -> vector<8x8x1xf32>
    %75 = vector.broadcast %74 : vector<8x8x1xf32> to vector<8x8x8xf32>
    %76 = arith.mulf %71, %75 : vector<8x8x8xf32>
    %77 = arith.truncf %76 : vector<8x8x8xf32> to vector<8x8x8xbf16>
    "tpu.trace_start"() <{level = 10 : i32, message = "hqk,hkd->hqd"}> : () -> ()
    %cst_11 = arith.constant dense<0.000000e+00> : vector<8x8x32xf32>
    %78 = tpu.matmul %77, %63, %cst_11 {dimension_numbers = #tpu.dot_dimension_numbers<[2], [1], [1], [2], [0, 0, 0, 1, 1, 2], [0], [0]>} : vector<8x8x8xbf16>, vector<8x8x32xbf16>, vector<8x8x32xf32> -> vector<8x8x32xf32>
    "tpu.trace_stop"() : () -> ()
    %79 = vector.extract_strided_slice %78 {offsets = [0, 0, 0], sizes = [1, 8, 32], strides = [1, 1, 1]} : vector<8x8x32xf32> to vector<1x8x32xf32>
    %80 = vector.shape_cast %79 : vector<1x8x32xf32> to vector<8x32xf32>
    %81 = vector.extract_strided_slice %78 {offsets = [1, 0, 0], sizes = [1, 8, 32], strides = [1, 1, 1]} : vector<8x8x32xf32> to vector<1x8x32xf32>
    %82 = vector.shape_cast %81 : vector<1x8x32xf32> to vector<8x32xf32>
    %83 = vector.extract_strided_slice %78 {offsets = [2, 0, 0], sizes = [1, 8, 32], strides = [1, 1, 1]} : vector<8x8x32xf32> to vector<1x8x32xf32>
    %84 = vector.shape_cast %83 : vector<1x8x32xf32> to vector<8x32xf32>
    %85 = vector.extract_strided_slice %78 {offsets = [3, 0, 0], sizes = [1, 8, 32], strides = [1, 1, 1]} : vector<8x8x32xf32> to vector<1x8x32xf32>
    %86 = vector.shape_cast %85 : vector<1x8x32xf32> to vector<8x32xf32>
    %87 = vector.extract_strided_slice %78 {offsets = [4, 0, 0], sizes = [1, 8, 32], strides = [1, 1, 1]} : vector<8x8x32xf32> to vector<1x8x32xf32>
    %88 = vector.shape_cast %87 : vector<1x8x32xf32> to vector<8x32xf32>
    %89 = vector.extract_strided_slice %78 {offsets = [5, 0, 0], sizes = [1, 8, 32], strides = [1, 1, 1]} : vector<8x8x32xf32> to vector<1x8x32xf32>
    %90 = vector.shape_cast %89 : vector<1x8x32xf32> to vector<8x32xf32>
    %91 = vector.extract_strided_slice %78 {offsets = [6, 0, 0], sizes = [1, 8, 32], strides = [1, 1, 1]} : vector<8x8x32xf32> to vector<1x8x32xf32>
    %92 = vector.shape_cast %91 : vector<1x8x32xf32> to vector<8x32xf32>
    %93 = vector.extract_strided_slice %78 {offsets = [7, 0, 0], sizes = [1, 8, 32], strides = [1, 1, 1]} : vector<8x8x32xf32> to vector<1x8x32xf32>
    %94 = vector.shape_cast %93 : vector<1x8x32xf32> to vector<8x32xf32>
    %95 = tpu.concatenate %80, %82, %84, %86, %88, %90, %92, %94 in 1 : vector<8x32xf32>, vector<8x32xf32>, vector<8x32xf32>, vector<8x32xf32>, vector<8x32xf32>, vector<8x32xf32>, vector<8x32xf32>, vector<8x32xf32> -> vector<8x256xf32>
    %96 = arith.truncf %95 : vector<8x256xf32> to vector<8x256xbf16>
    %c0_12 = arith.constant 0 : index
    %c0_13 = arith.constant 0 : index
    %c0_14 = arith.constant 0 : index
    %97 = vector.load %arg4[%c0_12, %c0_13, %c0_14] : memref<2x256x256xbf16, #tpu.memory_space<vmem>>, vector<1x256x256xbf16>
    %98 = vector.shape_cast %97 : vector<1x256x256xbf16> to vector<256x256xbf16>
    %cst_15 = arith.constant dense<0.000000e+00> : vector<8x256xf32>
    %99 = tpu.matmul %96, %98, %cst_15 {dimension_numbers = #tpu.dot_dimension_numbers<[1], [0], [0], [1], [0, 0, 1, 1], [], []>} : vector<8x256xbf16>, vector<256x256xbf16>, vector<8x256xf32> -> vector<8x256xf32>
    %c0_16 = arith.constant 0 : index
    %c0_17 = arith.constant 0 : index
    %c0_18 = arith.constant 0 : index
    %100 = vector.load %arg5[%c0_16, %c0_17, %c0_18] : memref<2x1x256xf32, #tpu.memory_space<vmem>>, vector<1x1x256xf32>
    %101 = vector.shape_cast %100 : vector<1x1x256xf32> to vector<1x256xf32>
    %102 = vector.broadcast %101 : vector<1x256xf32> to vector<8x256xf32>
    %103 = arith.addf %99, %102 : vector<8x256xf32>
    %104 = arith.addf %0, %103 : vector<8x256xf32>
    %c0_19 = arith.constant 0 : index
    %c0_20 = arith.constant 0 : index
    %c0_21 = arith.constant 0 : index
    %105 = vector.load %arg10[%c0_19, %c0_20, %c0_21] : memref<2x1x256xf32, #tpu.memory_space<vmem>>, vector<1x1x256xf32>
    %106 = vector.shape_cast %105 : vector<1x1x256xf32> to vector<1x256xf32>
    %c0_22 = arith.constant 0 : index
    %c0_23 = arith.constant 0 : index
    %c0_24 = arith.constant 0 : index
    %107 = vector.load %arg11[%c0_22, %c0_23, %c0_24] : memref<2x1x256xf32, #tpu.memory_space<vmem>>, vector<1x1x256xf32>
    %108 = vector.shape_cast %107 : vector<1x1x256xf32> to vector<1x256xf32>
    %cst_25 = arith.constant dense<0.000000e+00> : vector<8xf32>
    %109 = vector.multi_reduction <add>, %104, %cst_25 [1] : vector<8x256xf32> to vector<8xf32>
    %110 = vector.shape_cast %109 : vector<8xf32> to vector<8x1xf32>
    %cst_26 = arith.constant 2.560000e+02 : f32
    %111 = vector.broadcast %cst_26 : f32 to vector<8x1xf32>
    %112 = arith.divf %110, %111 : vector<8x1xf32>
    %113 = vector.broadcast %112 : vector<8x1xf32> to vector<8x256xf32>
    %114 = arith.subf %104, %113 : vector<8x256xf32>
    %115 = arith.mulf %114, %114 : vector<8x256xf32>
    %cst_27 = arith.constant dense<0.000000e+00> : vector<8xf32>
    %116 = vector.multi_reduction <add>, %115, %cst_27 [1] : vector<8x256xf32> to vector<8xf32>
    %117 = vector.shape_cast %116 : vector<8xf32> to vector<8x1xf32>
    %cst_28 = arith.constant 2.560000e+02 : f32
    %118 = vector.broadcast %cst_28 : f32 to vector<8x1xf32>
    %119 = arith.divf %117, %118 : vector<8x1xf32>
    %120 = vector.broadcast %112 : vector<8x1xf32> to vector<8x256xf32>
    %121 = arith.subf %104, %120 : vector<8x256xf32>
    %cst_29 = arith.constant 9.99999974E-6 : f32
    %122 = vector.broadcast %cst_29 : f32 to vector<8x1xf32>
    %123 = arith.addf %119, %122 : vector<8x1xf32>
    %124 = math.rsqrt %123 : vector<8x1xf32>
    %125 = vector.broadcast %124 : vector<8x1xf32> to vector<8x256xf32>
    %126 = arith.mulf %121, %125 : vector<8x256xf32>
    %127 = vector.broadcast %106 : vector<1x256xf32> to vector<8x256xf32>
    %128 = arith.mulf %126, %127 : vector<8x256xf32>
    %129 = vector.broadcast %108 : vector<1x256xf32> to vector<8x256xf32>
    %130 = arith.addf %128, %129 : vector<8x256xf32>
    %131 = arith.truncf %130 : vector<8x256xf32> to vector<8x256xbf16>
    %c0_30 = arith.constant 0 : index
    %c0_31 = arith.constant 0 : index
    %c0_32 = arith.constant 0 : index
    %132 = vector.load %arg6[%c0_30, %c0_31, %c0_32] : memref<2x256x1024xbf16, #tpu.memory_space<vmem>>, vector<1x256x1024xbf16>
    %133 = vector.shape_cast %132 : vector<1x256x1024xbf16> to vector<256x1024xbf16>
    %cst_33 = arith.constant dense<0.000000e+00> : vector<8x1024xf32>
    %134 = tpu.matmul %131, %133, %cst_33 {dimension_numbers = #tpu.dot_dimension_numbers<[1], [0], [0], [1], [0, 0, 1, 1], [], []>} : vector<8x256xbf16>, vector<256x1024xbf16>, vector<8x1024xf32> -> vector<8x1024xf32>
    %c0_34 = arith.constant 0 : index
    %c0_35 = arith.constant 0 : index
    %c0_36 = arith.constant 0 : index
    %135 = vector.load %arg7[%c0_34, %c0_35, %c0_36] : memref<2x1x1024xf32, #tpu.memory_space<vmem>>, vector<1x1x1024xf32>
    %136 = vector.shape_cast %135 : vector<1x1x1024xf32> to vector<1x1024xf32>
    %137 = vector.broadcast %136 : vector<1x1024xf32> to vector<8x1024xf32>
    %138 = arith.addf %134, %137 : vector<8x1024xf32>
    %cst_37 = arith.constant 0.000000e+00 : f32
    %139 = vector.broadcast %cst_37 : f32 to vector<8x1024xf32>
    %140 = arith.maximumf %138, %139 : vector<8x1024xf32>
    %141 = arith.truncf %140 : vector<8x1024xf32> to vector<8x1024xbf16>
    %c0_38 = arith.constant 0 : index
    %c0_39 = arith.constant 0 : index
    %c0_40 = arith.constant 0 : index
    %142 = vector.load %arg8[%c0_38, %c0_39, %c0_40] : memref<2x1024x256xbf16, #tpu.memory_space<vmem>>, vector<1x1024x256xbf16>
    %143 = vector.shape_cast %142 : vector<1x1024x256xbf16> to vector<1024x256xbf16>
    %cst_41 = arith.constant dense<0.000000e+00> : vector<8x256xf32>
    %144 = tpu.matmul %141, %143, %cst_41 {dimension_numbers = #tpu.dot_dimension_numbers<[1], [0], [0], [1], [0, 0, 1, 1], [], []>} : vector<8x1024xbf16>, vector<1024x256xbf16>, vector<8x256xf32> -> vector<8x256xf32>
    %c0_42 = arith.constant 0 : index
    %c0_43 = arith.constant 0 : index
    %c0_44 = arith.constant 0 : index
    %145 = vector.load %arg9[%c0_42, %c0_43, %c0_44] : memref<2x1x256xf32, #tpu.memory_space<vmem>>, vector<1x1x256xf32>
    %146 = vector.shape_cast %145 : vector<1x1x256xf32> to vector<1x256xf32>
    %147 = vector.broadcast %146 : vector<1x256xf32> to vector<8x256xf32>
    %148 = arith.addf %144, %147 : vector<8x256xf32>
    %149 = arith.addf %130, %148 : vector<8x256xf32>
    %c0_45 = arith.constant 0 : index
    %c0_46 = arith.constant 0 : index
    %c0_47 = arith.constant 0 : index
    %150 = vector.load %arg12[%c0_45, %c0_46, %c0_47] : memref<2x1x256xf32, #tpu.memory_space<vmem>>, vector<1x1x256xf32>
    %151 = vector.shape_cast %150 : vector<1x1x256xf32> to vector<1x256xf32>
    %c0_48 = arith.constant 0 : index
    %c0_49 = arith.constant 0 : index
    %c0_50 = arith.constant 0 : index
    %152 = vector.load %arg13[%c0_48, %c0_49, %c0_50] : memref<2x1x256xf32, #tpu.memory_space<vmem>>, vector<1x1x256xf32>
    %153 = vector.shape_cast %152 : vector<1x1x256xf32> to vector<1x256xf32>
    %cst_51 = arith.constant dense<0.000000e+00> : vector<8xf32>
    %154 = vector.multi_reduction <add>, %149, %cst_51 [1] : vector<8x256xf32> to vector<8xf32>
    %155 = vector.shape_cast %154 : vector<8xf32> to vector<8x1xf32>
    %cst_52 = arith.constant 2.560000e+02 : f32
    %156 = vector.broadcast %cst_52 : f32 to vector<8x1xf32>
    %157 = arith.divf %155, %156 : vector<8x1xf32>
    %158 = vector.broadcast %157 : vector<8x1xf32> to vector<8x256xf32>
    %159 = arith.subf %149, %158 : vector<8x256xf32>
    %160 = arith.mulf %159, %159 : vector<8x256xf32>
    %cst_53 = arith.constant dense<0.000000e+00> : vector<8xf32>
    %161 = vector.multi_reduction <add>, %160, %cst_53 [1] : vector<8x256xf32> to vector<8xf32>
    %162 = vector.shape_cast %161 : vector<8xf32> to vector<8x1xf32>
    %cst_54 = arith.constant 2.560000e+02 : f32
    %163 = vector.broadcast %cst_54 : f32 to vector<8x1xf32>
    %164 = arith.divf %162, %163 : vector<8x1xf32>
    %165 = vector.broadcast %157 : vector<8x1xf32> to vector<8x256xf32>
    %166 = arith.subf %149, %165 : vector<8x256xf32>
    %cst_55 = arith.constant 9.99999974E-6 : f32
    %167 = vector.broadcast %cst_55 : f32 to vector<8x1xf32>
    %168 = arith.addf %164, %167 : vector<8x1xf32>
    %169 = math.rsqrt %168 : vector<8x1xf32>
    %170 = vector.broadcast %169 : vector<8x1xf32> to vector<8x256xf32>
    %171 = arith.mulf %166, %170 : vector<8x256xf32>
    %172 = vector.broadcast %151 : vector<1x256xf32> to vector<8x256xf32>
    %173 = arith.mulf %171, %172 : vector<8x256xf32>
    %174 = vector.broadcast %153 : vector<1x256xf32> to vector<8x256xf32>
    %175 = arith.addf %173, %174 : vector<8x256xf32>
    %176 = arith.truncf %175 : vector<8x256xf32> to vector<8x256xbf16>
    %c1 = arith.constant 1 : index
    %c0_56 = arith.constant 0 : index
    %c0_57 = arith.constant 0 : index
    %177 = vector.load %arg2[%c1, %c0_56, %c0_57] : memref<2x256x768xbf16, #tpu.memory_space<vmem>>, vector<1x256x768xbf16>
    %178 = vector.shape_cast %177 : vector<1x256x768xbf16> to vector<256x768xbf16>
    %cst_58 = arith.constant dense<0.000000e+00> : vector<8x768xf32>
    %179 = tpu.matmul %176, %178, %cst_58 {dimension_numbers = #tpu.dot_dimension_numbers<[1], [0], [0], [1], [0, 0, 1, 1], [], []>} : vector<8x256xbf16>, vector<256x768xbf16>, vector<8x768xf32> -> vector<8x768xf32>
    %c1_59 = arith.constant 1 : index
    %c0_60 = arith.constant 0 : index
    %c0_61 = arith.constant 0 : index
    %180 = vector.load %arg3[%c1_59, %c0_60, %c0_61] : memref<2x1x768xf32, #tpu.memory_space<vmem>>, vector<1x1x768xf32>
    %181 = vector.shape_cast %180 : vector<1x1x768xf32> to vector<1x768xf32>
    %182 = vector.broadcast %181 : vector<1x768xf32> to vector<8x768xf32>
    %183 = arith.addf %179, %182 : vector<8x768xf32>
    %184 = arith.truncf %183 : vector<8x768xf32> to vector<8x768xbf16>
    %185 = vector.extract_strided_slice %184 {offsets = [0, 0], sizes = [8, 256], strides = [1, 1]} : vector<8x768xbf16> to vector<8x256xbf16>
    %186 = vector.extract_strided_slice %184 {offsets = [0, 256], sizes = [8, 256], strides = [1, 1]} : vector<8x768xbf16> to vector<8x256xbf16>
    %187 = vector.extract_strided_slice %184 {offsets = [0, 512], sizes = [8, 256], strides = [1, 1]} : vector<8x768xbf16> to vector<8x256xbf16>
    %188 = vector.extract_strided_slice %185 {offsets = [0, 0], sizes = [8, 32], strides = [1, 1]} : vector<8x256xbf16> to vector<8x32xbf16>
    %189 = vector.extract_strided_slice %185 {offsets = [0, 32], sizes = [8, 32], strides = [1, 1]} : vector<8x256xbf16> to vector<8x32xbf16>
    %190 = vector.extract_strided_slice %185 {offsets = [0, 64], sizes = [8, 32], strides = [1, 1]} : vector<8x256xbf16> to vector<8x32xbf16>
    %191 = vector.extract_strided_slice %185 {offsets = [0, 96], sizes = [8, 32], strides = [1, 1]} : vector<8x256xbf16> to vector<8x32xbf16>
    %192 = vector.extract_strided_slice %185 {offsets = [0, 128], sizes = [8, 32], strides = [1, 1]} : vector<8x256xbf16> to vector<8x32xbf16>
    %193 = vector.extract_strided_slice %185 {offsets = [0, 160], sizes = [8, 32], strides = [1, 1]} : vector<8x256xbf16> to vector<8x32xbf16>
    %194 = vector.extract_strided_slice %185 {offsets = [0, 192], sizes = [8, 32], strides = [1, 1]} : vector<8x256xbf16> to vector<8x32xbf16>
    %195 = vector.extract_strided_slice %185 {offsets = [0, 224], sizes = [8, 32], strides = [1, 1]} : vector<8x256xbf16> to vector<8x32xbf16>
    %196 = vector.shape_cast %188 : vector<8x32xbf16> to vector<1x8x32xbf16>
    %197 = vector.shape_cast %189 : vector<8x32xbf16> to vector<1x8x32xbf16>
    %198 = vector.shape_cast %190 : vector<8x32xbf16> to vector<1x8x32xbf16>
    %199 = vector.shape_cast %191 : vector<8x32xbf16> to vector<1x8x32xbf16>
    %200 = vector.shape_cast %192 : vector<8x32xbf16> to vector<1x8x32xbf16>
    %201 = vector.shape_cast %193 : vector<8x32xbf16> to vector<1x8x32xbf16>
    %202 = vector.shape_cast %194 : vector<8x32xbf16> to vector<1x8x32xbf16>
    %203 = vector.shape_cast %195 : vector<8x32xbf16> to vector<1x8x32xbf16>
    %204 = tpu.concatenate %196, %197, %198, %199, %200, %201, %202, %203 in 0 : vector<1x8x32xbf16>, vector<1x8x32xbf16>, vector<1x8x32xbf16>, vector<1x8x32xbf16>, vector<1x8x32xbf16>, vector<1x8x32xbf16>, vector<1x8x32xbf16>, vector<1x8x32xbf16> -> vector<8x8x32xbf16>
    %205 = vector.extract_strided_slice %186 {offsets = [0, 0], sizes = [8, 32], strides = [1, 1]} : vector<8x256xbf16> to vector<8x32xbf16>
    %206 = vector.extract_strided_slice %186 {offsets = [0, 32], sizes = [8, 32], strides = [1, 1]} : vector<8x256xbf16> to vector<8x32xbf16>
    %207 = vector.extract_strided_slice %186 {offsets = [0, 64], sizes = [8, 32], strides = [1, 1]} : vector<8x256xbf16> to vector<8x32xbf16>
    %208 = vector.extract_strided_slice %186 {offsets = [0, 96], sizes = [8, 32], strides = [1, 1]} : vector<8x256xbf16> to vector<8x32xbf16>
    %209 = vector.extract_strided_slice %186 {offsets = [0, 128], sizes = [8, 32], strides = [1, 1]} : vector<8x256xbf16> to vector<8x32xbf16>
    %210 = vector.extract_strided_slice %186 {offsets = [0, 160], sizes = [8, 32], strides = [1, 1]} : vector<8x256xbf16> to vector<8x32xbf16>
    %211 = vector.extract_strided_slice %186 {offsets = [0, 192], sizes = [8, 32], strides = [1, 1]} : vector<8x256xbf16> to vector<8x32xbf16>
    %212 = vector.extract_strided_slice %186 {offsets = [0, 224], sizes = [8, 32], strides = [1, 1]} : vector<8x256xbf16> to vector<8x32xbf16>
    %213 = vector.shape_cast %205 : vector<8x32xbf16> to vector<1x8x32xbf16>
    %214 = vector.shape_cast %206 : vector<8x32xbf16> to vector<1x8x32xbf16>
    %215 = vector.shape_cast %207 : vector<8x32xbf16> to vector<1x8x32xbf16>
    %216 = vector.shape_cast %208 : vector<8x32xbf16> to vector<1x8x32xbf16>
    %217 = vector.shape_cast %209 : vector<8x32xbf16> to vector<1x8x32xbf16>
    %218 = vector.shape_cast %210 : vector<8x32xbf16> to vector<1x8x32xbf16>
    %219 = vector.shape_cast %211 : vector<8x32xbf16> to vector<1x8x32xbf16>
    %220 = vector.shape_cast %212 : vector<8x32xbf16> to vector<1x8x32xbf16>
    %221 = tpu.concatenate %213, %214, %215, %216, %217, %218, %219, %220 in 0 : vector<1x8x32xbf16>, vector<1x8x32xbf16>, vector<1x8x32xbf16>, vector<1x8x32xbf16>, vector<1x8x32xbf16>, vector<1x8x32xbf16>, vector<1x8x32xbf16>, vector<1x8x32xbf16> -> vector<8x8x32xbf16>
    %222 = vector.extract_strided_slice %187 {offsets = [0, 0], sizes = [8, 32], strides = [1, 1]} : vector<8x256xbf16> to vector<8x32xbf16>
    %223 = vector.extract_strided_slice %187 {offsets = [0, 32], sizes = [8, 32], strides = [1, 1]} : vector<8x256xbf16> to vector<8x32xbf16>
    %224 = vector.extract_strided_slice %187 {offsets = [0, 64], sizes = [8, 32], strides = [1, 1]} : vector<8x256xbf16> to vector<8x32xbf16>
    %225 = vector.extract_strided_slice %187 {offsets = [0, 96], sizes = [8, 32], strides = [1, 1]} : vector<8x256xbf16> to vector<8x32xbf16>
    %226 = vector.extract_strided_slice %187 {offsets = [0, 128], sizes = [8, 32], strides = [1, 1]} : vector<8x256xbf16> to vector<8x32xbf16>
    %227 = vector.extract_strided_slice %187 {offsets = [0, 160], sizes = [8, 32], strides = [1, 1]} : vector<8x256xbf16> to vector<8x32xbf16>
    %228 = vector.extract_strided_slice %187 {offsets = [0, 192], sizes = [8, 32], strides = [1, 1]} : vector<8x256xbf16> to vector<8x32xbf16>
    %229 = vector.extract_strided_slice %187 {offsets = [0, 224], sizes = [8, 32], strides = [1, 1]} : vector<8x256xbf16> to vector<8x32xbf16>
    %230 = vector.shape_cast %222 : vector<8x32xbf16> to vector<1x8x32xbf16>
    %231 = vector.shape_cast %223 : vector<8x32xbf16> to vector<1x8x32xbf16>
    %232 = vector.shape_cast %224 : vector<8x32xbf16> to vector<1x8x32xbf16>
    %233 = vector.shape_cast %225 : vector<8x32xbf16> to vector<1x8x32xbf16>
    %234 = vector.shape_cast %226 : vector<8x32xbf16> to vector<1x8x32xbf16>
    %235 = vector.shape_cast %227 : vector<8x32xbf16> to vector<1x8x32xbf16>
    %236 = vector.shape_cast %228 : vector<8x32xbf16> to vector<1x8x32xbf16>
    %237 = vector.shape_cast %229 : vector<8x32xbf16> to vector<1x8x32xbf16>
    %238 = tpu.concatenate %230, %231, %232, %233, %234, %235, %236, %237 in 0 : vector<1x8x32xbf16>, vector<1x8x32xbf16>, vector<1x8x32xbf16>, vector<1x8x32xbf16>, vector<1x8x32xbf16>, vector<1x8x32xbf16>, vector<1x8x32xbf16>, vector<1x8x32xbf16> -> vector<8x8x32xbf16>
    "tpu.trace_start"() <{level = 10 : i32, message = "hqd,hkd->hqk"}> : () -> ()
    %cst_62 = arith.constant dense<0.000000e+00> : vector<8x8x8xf32>
    %239 = tpu.matmul %204, %221, %cst_62 {dimension_numbers = #tpu.dot_dimension_numbers<[2], [2], [1], [1], [0, 0, 0, 1, 1, 1], [0], [0]>} : vector<8x8x32xbf16>, vector<8x8x32xbf16>, vector<8x8x8xf32> -> vector<8x8x8xf32>
    "tpu.trace_stop"() : () -> ()
    %cst_63 = arith.constant 0.176776692 : f32
    %240 = vector.broadcast %cst_63 : f32 to vector<8x8x8xf32>
    %241 = arith.mulf %239, %240 : vector<8x8x8xf32>
    %cst_64 = arith.constant dense<0xFF800000> : vector<8x8xf32>
    %242 = vector.multi_reduction <maximumf>, %241, %cst_64 [2] : vector<8x8x8xf32> to vector<8x8xf32>
    %243 = vector.shape_cast %242 : vector<8x8xf32> to vector<8x8x1xf32>
    %244 = vector.broadcast %243 : vector<8x8x1xf32> to vector<8x8x8xf32>
    %245 = arith.subf %241, %244 : vector<8x8x8xf32>
    %246 = math.exp %245 : vector<8x8x8xf32>
    %cst_65 = arith.constant dense<0.000000e+00> : vector<8x8xf32>
    %247 = vector.multi_reduction <add>, %246, %cst_65 [2] : vector<8x8x8xf32> to vector<8x8xf32>
    %248 = vector.shape_cast %247 : vector<8x8xf32> to vector<8x8x1xf32>
    %249 = tpu.reciprocal %248 {approx = true} : vector<8x8x1xf32> -> vector<8x8x1xf32>
    %250 = vector.broadcast %249 : vector<8x8x1xf32> to vector<8x8x8xf32>
    %251 = arith.mulf %246, %250 : vector<8x8x8xf32>
    %252 = arith.truncf %251 : vector<8x8x8xf32> to vector<8x8x8xbf16>
    "tpu.trace_start"() <{level = 10 : i32, message = "hqk,hkd->hqd"}> : () -> ()
    %cst_66 = arith.constant dense<0.000000e+00> : vector<8x8x32xf32>
    %253 = tpu.matmul %252, %238, %cst_66 {dimension_numbers = #tpu.dot_dimension_numbers<[2], [1], [1], [2], [0, 0, 0, 1, 1, 2], [0], [0]>} : vector<8x8x8xbf16>, vector<8x8x32xbf16>, vector<8x8x32xf32> -> vector<8x8x32xf32>
    "tpu.trace_stop"() : () -> ()
    %254 = vector.extract_strided_slice %253 {offsets = [0, 0, 0], sizes = [1, 8, 32], strides = [1, 1, 1]} : vector<8x8x32xf32> to vector<1x8x32xf32>
    %255 = vector.shape_cast %254 : vector<1x8x32xf32> to vector<8x32xf32>
    %256 = vector.extract_strided_slice %253 {offsets = [1, 0, 0], sizes = [1, 8, 32], strides = [1, 1, 1]} : vector<8x8x32xf32> to vector<1x8x32xf32>
    %257 = vector.shape_cast %256 : vector<1x8x32xf32> to vector<8x32xf32>
    %258 = vector.extract_strided_slice %253 {offsets = [2, 0, 0], sizes = [1, 8, 32], strides = [1, 1, 1]} : vector<8x8x32xf32> to vector<1x8x32xf32>
    %259 = vector.shape_cast %258 : vector<1x8x32xf32> to vector<8x32xf32>
    %260 = vector.extract_strided_slice %253 {offsets = [3, 0, 0], sizes = [1, 8, 32], strides = [1, 1, 1]} : vector<8x8x32xf32> to vector<1x8x32xf32>
    %261 = vector.shape_cast %260 : vector<1x8x32xf32> to vector<8x32xf32>
    %262 = vector.extract_strided_slice %253 {offsets = [4, 0, 0], sizes = [1, 8, 32], strides = [1, 1, 1]} : vector<8x8x32xf32> to vector<1x8x32xf32>
    %263 = vector.shape_cast %262 : vector<1x8x32xf32> to vector<8x32xf32>
    %264 = vector.extract_strided_slice %253 {offsets = [5, 0, 0], sizes = [1, 8, 32], strides = [1, 1, 1]} : vector<8x8x32xf32> to vector<1x8x32xf32>
    %265 = vector.shape_cast %264 : vector<1x8x32xf32> to vector<8x32xf32>
    %266 = vector.extract_strided_slice %253 {offsets = [6, 0, 0], sizes = [1, 8, 32], strides = [1, 1, 1]} : vector<8x8x32xf32> to vector<1x8x32xf32>
    %267 = vector.shape_cast %266 : vector<1x8x32xf32> to vector<8x32xf32>
    %268 = vector.extract_strided_slice %253 {offsets = [7, 0, 0], sizes = [1, 8, 32], strides = [1, 1, 1]} : vector<8x8x32xf32> to vector<1x8x32xf32>
    %269 = vector.shape_cast %268 : vector<1x8x32xf32> to vector<8x32xf32>
    %270 = tpu.concatenate %255, %257, %259, %261, %263, %265, %267, %269 in 1 : vector<8x32xf32>, vector<8x32xf32>, vector<8x32xf32>, vector<8x32xf32>, vector<8x32xf32>, vector<8x32xf32>, vector<8x32xf32>, vector<8x32xf32> -> vector<8x256xf32>
    %271 = arith.truncf %270 : vector<8x256xf32> to vector<8x256xbf16>
    %c1_67 = arith.constant 1 : index
    %c0_68 = arith.constant 0 : index
    %c0_69 = arith.constant 0 : index
    %272 = vector.load %arg4[%c1_67, %c0_68, %c0_69] : memref<2x256x256xbf16, #tpu.memory_space<vmem>>, vector<1x256x256xbf16>
    %273 = vector.shape_cast %272 : vector<1x256x256xbf16> to vector<256x256xbf16>
    %cst_70 = arith.constant dense<0.000000e+00> : vector<8x256xf32>
    %274 = tpu.matmul %271, %273, %cst_70 {dimension_numbers = #tpu.dot_dimension_numbers<[1], [0], [0], [1], [0, 0, 1, 1], [], []>} : vector<8x256xbf16>, vector<256x256xbf16>, vector<8x256xf32> -> vector<8x256xf32>
    %c1_71 = arith.constant 1 : index
    %c0_72 = arith.constant 0 : index
    %c0_73 = arith.constant 0 : index
    %275 = vector.load %arg5[%c1_71, %c0_72, %c0_73] : memref<2x1x256xf32, #tpu.memory_space<vmem>>, vector<1x1x256xf32>
    %276 = vector.shape_cast %275 : vector<1x1x256xf32> to vector<1x256xf32>
    %277 = vector.broadcast %276 : vector<1x256xf32> to vector<8x256xf32>
    %278 = arith.addf %274, %277 : vector<8x256xf32>
    %279 = arith.addf %175, %278 : vector<8x256xf32>
    %c1_74 = arith.constant 1 : index
    %c0_75 = arith.constant 0 : index
    %c0_76 = arith.constant 0 : index
    %280 = vector.load %arg10[%c1_74, %c0_75, %c0_76] : memref<2x1x256xf32, #tpu.memory_space<vmem>>, vector<1x1x256xf32>
    %281 = vector.shape_cast %280 : vector<1x1x256xf32> to vector<1x256xf32>
    %c1_77 = arith.constant 1 : index
    %c0_78 = arith.constant 0 : index
    %c0_79 = arith.constant 0 : index
    %282 = vector.load %arg11[%c1_77, %c0_78, %c0_79] : memref<2x1x256xf32, #tpu.memory_space<vmem>>, vector<1x1x256xf32>
    %283 = vector.shape_cast %282 : vector<1x1x256xf32> to vector<1x256xf32>
    %cst_80 = arith.constant dense<0.000000e+00> : vector<8xf32>
    %284 = vector.multi_reduction <add>, %279, %cst_80 [1] : vector<8x256xf32> to vector<8xf32>
    %285 = vector.shape_cast %284 : vector<8xf32> to vector<8x1xf32>
    %cst_81 = arith.constant 2.560000e+02 : f32
    %286 = vector.broadcast %cst_81 : f32 to vector<8x1xf32>
    %287 = arith.divf %285, %286 : vector<8x1xf32>
    %288 = vector.broadcast %287 : vector<8x1xf32> to vector<8x256xf32>
    %289 = arith.subf %279, %288 : vector<8x256xf32>
    %290 = arith.mulf %289, %289 : vector<8x256xf32>
    %cst_82 = arith.constant dense<0.000000e+00> : vector<8xf32>
    %291 = vector.multi_reduction <add>, %290, %cst_82 [1] : vector<8x256xf32> to vector<8xf32>
    %292 = vector.shape_cast %291 : vector<8xf32> to vector<8x1xf32>
    %cst_83 = arith.constant 2.560000e+02 : f32
    %293 = vector.broadcast %cst_83 : f32 to vector<8x1xf32>
    %294 = arith.divf %292, %293 : vector<8x1xf32>
    %295 = vector.broadcast %287 : vector<8x1xf32> to vector<8x256xf32>
    %296 = arith.subf %279, %295 : vector<8x256xf32>
    %cst_84 = arith.constant 9.99999974E-6 : f32
    %297 = vector.broadcast %cst_84 : f32 to vector<8x1xf32>
    %298 = arith.addf %294, %297 : vector<8x1xf32>
    %299 = math.rsqrt %298 : vector<8x1xf32>
    %300 = vector.broadcast %299 : vector<8x1xf32> to vector<8x256xf32>
    %301 = arith.mulf %296, %300 : vector<8x256xf32>
    %302 = vector.broadcast %281 : vector<1x256xf32> to vector<8x256xf32>
    %303 = arith.mulf %301, %302 : vector<8x256xf32>
    %304 = vector.broadcast %283 : vector<1x256xf32> to vector<8x256xf32>
    %305 = arith.addf %303, %304 : vector<8x256xf32>
    %306 = arith.truncf %305 : vector<8x256xf32> to vector<8x256xbf16>
    %c1_85 = arith.constant 1 : index
    %c0_86 = arith.constant 0 : index
    %c0_87 = arith.constant 0 : index
    %307 = vector.load %arg6[%c1_85, %c0_86, %c0_87] : memref<2x256x1024xbf16, #tpu.memory_space<vmem>>, vector<1x256x1024xbf16>
    %308 = vector.shape_cast %307 : vector<1x256x1024xbf16> to vector<256x1024xbf16>
    %cst_88 = arith.constant dense<0.000000e+00> : vector<8x1024xf32>
    %309 = tpu.matmul %306, %308, %cst_88 {dimension_numbers = #tpu.dot_dimension_numbers<[1], [0], [0], [1], [0, 0, 1, 1], [], []>} : vector<8x256xbf16>, vector<256x1024xbf16>, vector<8x1024xf32> -> vector<8x1024xf32>
    %c1_89 = arith.constant 1 : index
    %c0_90 = arith.constant 0 : index
    %c0_91 = arith.constant 0 : index
    %310 = vector.load %arg7[%c1_89, %c0_90, %c0_91] : memref<2x1x1024xf32, #tpu.memory_space<vmem>>, vector<1x1x1024xf32>
    %311 = vector.shape_cast %310 : vector<1x1x1024xf32> to vector<1x1024xf32>
    %312 = vector.broadcast %311 : vector<1x1024xf32> to vector<8x1024xf32>
    %313 = arith.addf %309, %312 : vector<8x1024xf32>
    %cst_92 = arith.constant 0.000000e+00 : f32
    %314 = vector.broadcast %cst_92 : f32 to vector<8x1024xf32>
    %315 = arith.maximumf %313, %314 : vector<8x1024xf32>
    %316 = arith.truncf %315 : vector<8x1024xf32> to vector<8x1024xbf16>
    %c1_93 = arith.constant 1 : index
    %c0_94 = arith.constant 0 : index
    %c0_95 = arith.constant 0 : index
    %317 = vector.load %arg8[%c1_93, %c0_94, %c0_95] : memref<2x1024x256xbf16, #tpu.memory_space<vmem>>, vector<1x1024x256xbf16>
    %318 = vector.shape_cast %317 : vector<1x1024x256xbf16> to vector<1024x256xbf16>
    %cst_96 = arith.constant dense<0.000000e+00> : vector<8x256xf32>
    %319 = tpu.matmul %316, %318, %cst_96 {dimension_numbers = #tpu.dot_dimension_numbers<[1], [0], [0], [1], [0, 0, 1, 1], [], []>} : vector<8x1024xbf16>, vector<1024x256xbf16>, vector<8x256xf32> -> vector<8x256xf32>
    %c1_97 = arith.constant 1 : index
    %c0_98 = arith.constant 0 : index
    %c0_99 = arith.constant 0 : index
    %320 = vector.load %arg9[%c1_97, %c0_98, %c0_99] : memref<2x1x256xf32, #tpu.memory_space<vmem>>, vector<1x1x256xf32>
    %321 = vector.shape_cast %320 : vector<1x1x256xf32> to vector<1x256xf32>
    %322 = vector.broadcast %321 : vector<1x256xf32> to vector<8x256xf32>
    %323 = arith.addf %319, %322 : vector<8x256xf32>
    %324 = arith.addf %305, %323 : vector<8x256xf32>
    %c1_100 = arith.constant 1 : index
    %c0_101 = arith.constant 0 : index
    %c0_102 = arith.constant 0 : index
    %325 = vector.load %arg12[%c1_100, %c0_101, %c0_102] : memref<2x1x256xf32, #tpu.memory_space<vmem>>, vector<1x1x256xf32>
    %326 = vector.shape_cast %325 : vector<1x1x256xf32> to vector<1x256xf32>
    %c1_103 = arith.constant 1 : index
    %c0_104 = arith.constant 0 : index
    %c0_105 = arith.constant 0 : index
    %327 = vector.load %arg13[%c1_103, %c0_104, %c0_105] : memref<2x1x256xf32, #tpu.memory_space<vmem>>, vector<1x1x256xf32>
    %328 = vector.shape_cast %327 : vector<1x1x256xf32> to vector<1x256xf32>
    %cst_106 = arith.constant dense<0.000000e+00> : vector<8xf32>
    %329 = vector.multi_reduction <add>, %324, %cst_106 [1] : vector<8x256xf32> to vector<8xf32>
    %330 = vector.shape_cast %329 : vector<8xf32> to vector<8x1xf32>
    %cst_107 = arith.constant 2.560000e+02 : f32
    %331 = vector.broadcast %cst_107 : f32 to vector<8x1xf32>
    %332 = arith.divf %330, %331 : vector<8x1xf32>
    %333 = vector.broadcast %332 : vector<8x1xf32> to vector<8x256xf32>
    %334 = arith.subf %324, %333 : vector<8x256xf32>
    %335 = arith.mulf %334, %334 : vector<8x256xf32>
    %cst_108 = arith.constant dense<0.000000e+00> : vector<8xf32>
    %336 = vector.multi_reduction <add>, %335, %cst_108 [1] : vector<8x256xf32> to vector<8xf32>
    %337 = vector.shape_cast %336 : vector<8xf32> to vector<8x1xf32>
    %cst_109 = arith.constant 2.560000e+02 : f32
    %338 = vector.broadcast %cst_109 : f32 to vector<8x1xf32>
    %339 = arith.divf %337, %338 : vector<8x1xf32>
    %340 = vector.broadcast %332 : vector<8x1xf32> to vector<8x256xf32>
    %341 = arith.subf %324, %340 : vector<8x256xf32>
    %cst_110 = arith.constant 9.99999974E-6 : f32
    %342 = vector.broadcast %cst_110 : f32 to vector<8x1xf32>
    %343 = arith.addf %339, %342 : vector<8x1xf32>
    %344 = math.rsqrt %343 : vector<8x1xf32>
    %345 = vector.broadcast %344 : vector<8x1xf32> to vector<8x256xf32>
    %346 = arith.mulf %341, %345 : vector<8x256xf32>
    %347 = vector.broadcast %326 : vector<1x256xf32> to vector<8x256xf32>
    %348 = arith.mulf %346, %347 : vector<8x256xf32>
    %349 = vector.broadcast %328 : vector<1x256xf32> to vector<8x256xf32>
    %350 = arith.addf %348, %349 : vector<8x256xf32>
    %c0_111 = arith.constant 0 : index
    %c0_112 = arith.constant 0 : index
    %351 = vector.load %arg14[%c0_111, %c0_112] : memref<1x256xf32, #tpu.memory_space<vmem>>, vector<1x256xf32>
    %c0_113 = arith.constant 0 : index
    %c0_114 = arith.constant 0 : index
    %352 = vector.load %arg15[%c0_113, %c0_114] : memref<1x256xf32, #tpu.memory_space<vmem>>, vector<1x256xf32>
    %cst_115 = arith.constant dense<0.000000e+00> : vector<8xf32>
    %353 = vector.multi_reduction <add>, %350, %cst_115 [1] : vector<8x256xf32> to vector<8xf32>
    %354 = vector.shape_cast %353 : vector<8xf32> to vector<8x1xf32>
    %cst_116 = arith.constant 2.560000e+02 : f32
    %355 = vector.broadcast %cst_116 : f32 to vector<8x1xf32>
    %356 = arith.divf %354, %355 : vector<8x1xf32>
    %357 = vector.broadcast %356 : vector<8x1xf32> to vector<8x256xf32>
    %358 = arith.subf %350, %357 : vector<8x256xf32>
    %359 = arith.mulf %358, %358 : vector<8x256xf32>
    %cst_117 = arith.constant dense<0.000000e+00> : vector<8xf32>
    %360 = vector.multi_reduction <add>, %359, %cst_117 [1] : vector<8x256xf32> to vector<8xf32>
    %361 = vector.shape_cast %360 : vector<8xf32> to vector<8x1xf32>
    %cst_118 = arith.constant 2.560000e+02 : f32
    %362 = vector.broadcast %cst_118 : f32 to vector<8x1xf32>
    %363 = arith.divf %361, %362 : vector<8x1xf32>
    %364 = vector.broadcast %356 : vector<8x1xf32> to vector<8x256xf32>
    %365 = arith.subf %350, %364 : vector<8x256xf32>
    %cst_119 = arith.constant 9.99999974E-6 : f32
    %366 = vector.broadcast %cst_119 : f32 to vector<8x1xf32>
    %367 = arith.addf %363, %366 : vector<8x1xf32>
    %368 = math.rsqrt %367 : vector<8x1xf32>
    %369 = vector.broadcast %368 : vector<8x1xf32> to vector<8x256xf32>
    %370 = arith.mulf %365, %369 : vector<8x256xf32>
    %371 = vector.broadcast %351 : vector<1x256xf32> to vector<8x256xf32>
    %372 = arith.mulf %370, %371 : vector<8x256xf32>
    %373 = vector.broadcast %352 : vector<1x256xf32> to vector<8x256xf32>
    %374 = arith.addf %372, %373 : vector<8x256xf32>
    %c0_120 = arith.constant 0 : index
    %c0_121 = arith.constant 0 : index
    %375 = vector.load %arg16[%c0_120, %c0_121] : memref<8x256xf32, #tpu.memory_space<vmem>>, vector<8x256xf32>
    tpu.vector_store %arg16[%c0_120, %c0_121], %374 {strides = array<i32>} : memref<8x256xf32, #tpu.memory_space<vmem>>, vector<8x256xf32>,
    return
  }
  func.func @transform_0(%arg0: i32) -> (i32, i32) {
    %c0_i32 = arith.constant 0 : i32
    %c0_i32_0 = arith.constant 0 : i32
    return %c0_i32, %arg0 : i32, i32
  }
  func.func @transform_1(%arg0: i32) -> (i32, i32, i32) {
    %c0_i32 = arith.constant 0 : i32
    %c0_i32_0 = arith.constant 0 : i32
    %c0_i32_1 = arith.constant 0 : i32
    %c0_i32_2 = arith.constant 0 : i32
    return %c0_i32, %c0_i32_0, %c0_i32_1 : i32, i32, i32
  }
  func.func @transform_2(%arg0: i32) -> (i32, i32, i32) {
    %c0_i32 = arith.constant 0 : i32
    %c0_i32_0 = arith.constant 0 : i32
    %c0_i32_1 = arith.constant 0 : i32
    %c0_i32_2 = arith.constant 0 : i32
    return %c0_i32, %c0_i32_0, %c0_i32_1 : i32, i32, i32
  }
  func.func @transform_3(%arg0: i32) -> (i32, i32, i32) {
    %c0_i32 = arith.constant 0 : i32
    %c0_i32_0 = arith.constant 0 : i32
    %c0_i32_1 = arith.constant 0 : i32
    %c0_i32_2 = arith.constant 0 : i32
    return %c0_i32, %c0_i32_0, %c0_i32_1 : i32, i32, i32
  }
  func.func @transform_4(%arg0: i32) -> (i32, i32, i32) {
    %c0_i32 = arith.constant 0 : i32
    %c0_i32_0 = arith.constant 0 : i32
    %c0_i32_1 = arith.constant 0 : i32
    %c0_i32_2 = arith.constant 0 : i32
    return %c0_i32, %c0_i32_0, %c0_i32_1 : i32, i32, i32
  }
  func.func @transform_5(%arg0: i32) -> (i32, i32, i32) {
    %c0_i32 = arith.constant 0 : i32
    %c0_i32_0 = arith.constant 0 : i32
    %c0_i32_1 = arith.constant 0 : i32
    %c0_i32_2 = arith.constant 0 : i32
    return %c0_i32, %c0_i32_0, %c0_i32_1 : i32, i32, i32
  }
  func.func @transform_6(%arg0: i32) -> (i32, i32, i32) {
    %c0_i32 = arith.constant 0 : i32
    %c0_i32_0 = arith.constant 0 : i32
    %c0_i32_1 = arith.constant 0 : i32
    %c0_i32_2 = arith.constant 0 : i32
    return %c0_i32, %c0_i32_0, %c0_i32_1 : i32, i32, i32
  }
  func.func @transform_7(%arg0: i32) -> (i32, i32, i32) {
    %c0_i32 = arith.constant 0 : i32
    %c0_i32_0 = arith.constant 0 : i32
    %c0_i32_1 = arith.constant 0 : i32
    %c0_i32_2 = arith.constant 0 : i32
    return %c0_i32, %c0_i32_0, %c0_i32_1 : i32, i32, i32
  }
  func.func @transform_8(%arg0: i32) -> (i32, i32, i32) {
    %c0_i32 = arith.constant 0 : i32
    %c0_i32_0 = arith.constant 0 : i32
    %c0_i32_1 = arith.constant 0 : i32
    %c0_i32_2 = arith.constant 0 : i32
    return %c0_i32, %c0_i32_0, %c0_i32_1 : i32, i32, i32
  }
  func.func @transform_9(%arg0: i32) -> (i32, i32, i32) {
    %c0_i32 = arith.constant 0 : i32
    %c0_i32_0 = arith.constant 0 : i32
    %c0_i32_1 = arith.constant 0 : i32
    %c0_i32_2 = arith.constant 0 : i32
    return %c0_i32, %c0_i32_0, %c0_i32_1 : i32, i32, i32
  }
  func.func @transform_10(%arg0: i32) -> (i32, i32, i32) {
    %c0_i32 = arith.constant 0 : i32
    %c0_i32_0 = arith.constant 0 : i32
    %c0_i32_1 = arith.constant 0 : i32
    %c0_i32_2 = arith.constant 0 : i32
    return %c0_i32, %c0_i32_0, %c0_i32_1 : i32, i32, i32
  }
  func.func @transform_11(%arg0: i32) -> (i32, i32, i32) {
    %c0_i32 = arith.constant 0 : i32
    %c0_i32_0 = arith.constant 0 : i32
    %c0_i32_1 = arith.constant 0 : i32
    %c0_i32_2 = arith.constant 0 : i32
    return %c0_i32, %c0_i32_0, %c0_i32_1 : i32, i32, i32
  }
  func.func @transform_12(%arg0: i32) -> (i32, i32, i32) {
    %c0_i32 = arith.constant 0 : i32
    %c0_i32_0 = arith.constant 0 : i32
    %c0_i32_1 = arith.constant 0 : i32
    %c0_i32_2 = arith.constant 0 : i32
    return %c0_i32, %c0_i32_0, %c0_i32_1 : i32, i32, i32
  }
  func.func @transform_13(%arg0: i32) -> (i32, i32) {
    %c0_i32 = arith.constant 0 : i32
    %c0_i32_0 = arith.constant 0 : i32
    %c0_i32_1 = arith.constant 0 : i32
    return %c0_i32, %c0_i32_0 : i32, i32
  }
  func.func @transform_14(%arg0: i32) -> (i32, i32) {
    %c0_i32 = arith.constant 0 : i32
    %c0_i32_0 = arith.constant 0 : i32
    %c0_i32_1 = arith.constant 0 : i32
    return %c0_i32, %c0_i32_0 : i32, i32
  }
  func.func @transform_15(%arg0: i32) -> (i32, i32) {
    %c0_i32 = arith.constant 0 : i32
    %c0_i32_0 = arith.constant 0 : i32
    return %c0_i32, %arg0 : i32, i32
  }
}

</mosaic_0001>

<llo_original>
// kernel: encoder_forward.1
$region0: #{encoder_forward.1}
  #allocation0 [shape = 'u32[]', space=smem, size = 0x4, offset = 0x4, fixed_abs, tag = 'smem constant byte address 0x4 - core index']
  #allocation1 [shape = 'u32[72,128]{1,0:T(1,128)}', space=vmem, size = 0x9000, scoped, tag = 'internal scratch']
  %s0 = inlined_call_operand.vmem [shape: f32[8,512], index: 0, kind: input, shape index: {}]
  %s1 = inlined_call_operand.hbm [shape: bf16[2,256,768], index: 1, kind: input, shape index: {}]
  %s2 = inlined_call_operand.vmem [shape: f32[2,1,768], index: 2, kind: input, shape index: {}]
  %s3 = inlined_call_operand.hbm [shape: bf16[2,256,256], index: 3, kind: input, shape index: {}]
  %s4 = inlined_call_operand.vmem [shape: f32[2,1,256], index: 4, kind: input, shape index: {}]
  %s5 = inlined_call_operand.hbm [shape: bf16[2,256,1024], index: 5, kind: input, shape index: {}]
  %s6 = inlined_call_operand.vmem [shape: f32[2,1,1024], index: 6, kind: input, shape index: {}]
  %s7 = inlined_call_operand.hbm [shape: bf16[2,1024,256], index: 7, kind: input, shape index: {}]
  %s8 = inlined_call_operand.vmem [shape: f32[2,1,256], index: 8, kind: input, shape index: {}]
  %s9 = inlined_call_operand.vmem [shape: f32[2,1,256], index: 9, kind: input, shape index: {}]
  %s10 = inlined_call_operand.vmem [shape: f32[2,1,256], index: 10, kind: input, shape index: {}]
  %s11 = inlined_call_operand.vmem [shape: f32[2,1,256], index: 11, kind: input, shape index: {}]
  %s12 = inlined_call_operand.vmem [shape: f32[2,1,256], index: 12, kind: input, shape index: {}]
  %s13 = inlined_call_operand.vmem [shape: f32[1,256], index: 13, kind: input, shape index: {}]
  %s14 = inlined_call_operand.vmem [shape: f32[1,256], index: 14, kind: input, shape index: {}]
  %s15 = inlined_call_operand.vmem [shape: f32[8,512], index: 15, kind: output, shape index: {}]
  %s16 = sld [smem:[#allocation0]]
  $region109: #{encoder_forward.1} parent=0
    _
  %s18 = ssub.s32 1, %s16
  %s19 = scalar_select 0, %s18, %s16
  $region1: #{encoder_forward.1} parent=0
    #allocation2 [shape = 'u8[786432]{0}', space=vmem, size = 0xc0000, scoped, tag = 'input window, operand 1, single buffered']
    #allocation3 [shape = 's32[2]{0}', space=sflag, size = 0x8, scoped, tag = 'scoped memory for encoder_forward.1']
    #allocation4 [shape = 'u8[262144]{0}', space=vmem, size = 0x40000, scoped, tag = 'input window, operand 3, single buffered']
    #allocation5 [shape = 's32[1]{0}', space=sflag, size = 0x4, scoped, tag = 'scoped memory for encoder_forward.1']
    #allocation6 [shape = 'u8[1048576]{0}', space=vmem, size = 0x100000, scoped, tag = 'input window, operand 5, single buffered']
    #allocation7 [shape = 'u8[1048576]{0}', space=vmem, size = 0x100000, scoped, tag = 'input window, operand 7, single buffered']
    #allocation8 [shape = 's32[1]{0}', space=sflag, size = 0x4, scoped, tag = 'scoped memory for encoder_forward.1']
    %20 = vsyncpa [#allocation3], 0
    %21 = vsyncpa [#allocation5], 0
    %22 = vsyncpa [#allocation8], 0
    loop: start=0, step=1, limit=4
    $region2: #{encoder_forward.1} parent=1 // loop_pre_header
      _
    $region3: #{encoder_forward.1} parent=1 // loop_header
      %s24 = sphi 0, %s28
      %p25 = scmp.ge.s32.totalorder %s24, 4
      %s34 = sphi 0, %s36
      %s37 = sphi 0, %s34
      %s38 = sphi 0, %s37
      %s54 = sphi 0, %s38
      %s58 = sphi 0, %s58
      %s60 = sphi 0, %s58
      %s61 = sphi 0, %s60
      %s75 = sphi 0, %s61
      %s79 = sphi 0, %s79
      %s81 = sphi 0, %s79
      %s82 = sphi 0, %s81
      %s96 = sphi 0, %s82
      %s100 = sphi 0, %s100
      %s102 = sphi 0, %s100
      %s103 = sphi 0, %s102
      %s117 = sphi 0, %s103
      %s121 = sphi 0, %s121
      %s123 = sphi 0, %s121
      %s124 = sphi 0, %s123
      %s138 = sphi 0, %s124
      %s142 = sphi 0, %s142
      %s144 = sphi 0, %s142
      %s145 = sphi 0, %s144
      %s159 = sphi 0, %s145
      %s163 = sphi 0, %s163
      %s165 = sphi 0, %s163
      %s166 = sphi 0, %s165
      %s180 = sphi 0, %s166
      %s184 = sphi 0, %s184
      %s186 = sphi 0, %s184
      %s187 = sphi 0, %s186
      %s201 = sphi 0, %s187
      %s205 = sphi 0, %s205
      %s207 = sphi 0, %s205
      %s208 = sphi 0, %s207
      %s222 = sphi 0, %s208
      %s226 = sphi 0, %s226
      %s228 = sphi 0, %s226
      %s229 = sphi 0, %s228
      %s243 = sphi 0, %s229
      %s247 = sphi 0, %s247
      %s249 = sphi 0, %s247
      %s250 = sphi 0, %s249
      %s264 = sphi 0, %s250
      %s268 = sphi 0, %s268
      %s270 = sphi 0, %s268
      %s271 = sphi 0, %s270
      %s285 = sphi 0, %s271
      %s289 = sphi 0, %s289
      %s291 = sphi 0, %s289
      %s292 = sphi 0, %s291
      %s306 = sphi 0, %s292
      %s310 = sphi 0, %s310
      %s312 = sphi 0, %s310
      %s313 = sphi 0, %s312
      %s327 = sphi 0, %s313
      %s331 = sphi 0, %s331
      %s333 = sphi 0, %s331
      %s334 = sphi 0, %s333
      %s348 = sphi 0, %s334
      %s354 = sphi 0, %s356
      %s357 = sphi 0, %s354
      %s358 = sphi 0, %s357
      %s374 = sphi 0, %s358
    $region4: #{encoder_forward.1} parent=1 // loop_header_branch
      %27 = sbr.rel (%p25) target = $region8
    $region5: #{encoder_forward.1} parent=1 // loop_body
      %s29 = ssub.s32 %s24, 1
      %s30 = ssub.s32 %s24, 2
      %s31 = sadd.s32 %s24, 1
      %s32 = ssub.s32 %s24, %s31
      %p33 = scmp.eq.s32.totalorder %s32, 0
      %s35 = sadd.s32 %s34, 1
      %s36 = scalar_select %p33, %s34, %s35
      %p39 = pneg %p33
      %p40 = scmp.eq.s32.totalorder %s24, 1
      %p41 = por %p39, %p40
      %p42 = scmp.ne.s32.totalorder %s34, %s37
      %p43 = scmp.eq.s32.totalorder %s24, 0
      %p44 = por %p42, %p43
      %p45 = scmp.ne.s32.totalorder %s34, %s37
      %p46 = scmp.eq.s32.totalorder %s29, 1
      %p47 = por %p45, %p46
      %p48 = scmp.ne.s32.totalorder %s37, %s38
      %p49 = scmp.eq.s32.totalorder %s29, 0
      %p50 = por %p48, %p49
      %p51 = scmp.ne.s32.totalorder %s37, %s38
      %p52 = scmp.eq.s32.totalorder %s30, 1
      %p53 = por %p51, %p52
      %p55 = scmp.ne.s32.totalorder %s38, %s54
      %p56 = scmp.eq.s32.totalorder %s30, 0
      %p57 = por %p55, %p56
      %s59 = sadd.s32 %s58, 1
      %p62 = scmp.eq.s32.totalorder %s24, 1
      %p63 = scmp.ne.s32.totalorder %s58, %s60
      %p64 = scmp.eq.s32.totalorder %s24, 0
      %p65 = por %p63, %p64
      %p66 = scmp.ne.s32.totalorder %s58, %s60
      %p67 = scmp.eq.s32.totalorder %s29, 1
      %p68 = por %p66, %p67
      %p69 = scmp.ne.s32.totalorder %s60, %s61
      %p70 = scmp.eq.s32.totalorder %s29, 0
      %p71 = por %p69, %p70
      %p72 = scmp.ne.s32.totalorder %s60, %s61
      %p73 = scmp.eq.s32.totalorder %s30, 1
      %p74 = por %p72, %p73
      %p76 = scmp.ne.s32.totalorder %s61, %s75
      %p77 = scmp.eq.s32.totalorder %s30, 0
      %p78 = por %p76, %p77
      %s80 = sadd.s32 %s79, 1
      %p83 = scmp.eq.s32.totalorder %s24, 1
      %p84 = scmp.ne.s32.totalorder %s79, %s81
      %p85 = scmp.eq.s32.totalorder %s24, 0
      %p86 = por %p84, %p85
      %p87 = scmp.ne.s32.totalorder %s79, %s81
      %p88 = scmp.eq.s32.totalorder %s29, 1
      %p89 = por %p87, %p88
      %p90 = scmp.ne.s32.totalorder %s81, %s82
      %p91 = scmp.eq.s32.totalorder %s29, 0
      %p92 = por %p90, %p91
      %p93 = scmp.ne.s32.totalorder %s81, %s82
      %p94 = scmp.eq.s32.totalorder %s30, 1
      %p95 = por %p93, %p94
      %p97 = scmp.ne.s32.totalorder %s82, %s96
      %p98 = scmp.eq.s32.totalorder %s30, 0
      %p99 = por %p97, %p98
      %s101 = sadd.s32 %s100, 1
      %p104 = scmp.eq.s32.totalorder %s24, 1
      %p105 = scmp.ne.s32.totalorder %s100, %s102
      %p106 = scmp.eq.s32.totalorder %s24, 0
      %p107 = por %p105, %p106
      %p108 = scmp.ne.s32.totalorder %s100, %s102
      %p109 = scmp.eq.s32.totalorder %s29, 1
      %p110 = por %p108, %p109
      %p111 = scmp.ne.s32.totalorder %s102, %s103
      %p112 = scmp.eq.s32.totalorder %s29, 0
      %p113 = por %p111, %p112
      %p114 = scmp.ne.s32.totalorder %s102, %s103
      %p115 = scmp.eq.s32.totalorder %s30, 1
      %p116 = por %p114, %p115
      %p118 = scmp.ne.s32.totalorder %s103, %s117
      %p119 = scmp.eq.s32.totalorder %s30, 0
      %p120 = por %p118, %p119
      %s122 = sadd.s32 %s121, 1
      %p125 = scmp.eq.s32.totalorder %s24, 1
      %p126 = scmp.ne.s32.totalorder %s121, %s123
      %p127 = scmp.eq.s32.totalorder %s24, 0
      %p128 = por %p126, %p127
      %p129 = scmp.ne.s32.totalorder %s121, %s123
      %p130 = scmp.eq.s32.totalorder %s29, 1
      %p131 = por %p129, %p130
      %p132 = scmp.ne.s32.totalorder %s123, %s124
      %p133 = scmp.eq.s32.totalorder %s29, 0
      %p134 = por %p132, %p133
      %p135 = scmp.ne.s32.totalorder %s123, %s124
      %p136 = scmp.eq.s32.totalorder %s30, 1
      %p137 = por %p135, %p136
      %p139 = scmp.ne.s32.totalorder %s124, %s138
      %p140 = scmp.eq.s32.totalorder %s30, 0
      %p141 = por %p139, %p140
      %s143 = sadd.s32 %s142, 1
      %p146 = scmp.eq.s32.totalorder %s24, 1
      %p147 = scmp.ne.s32.totalorder %s142, %s144
      %p148 = scmp.eq.s32.totalorder %s24, 0
      %p149 = por %p147, %p148
      %p150 = scmp.ne.s32.totalorder %s142, %s144
      %p151 = scmp.eq.s32.totalorder %s29, 1
      %p152 = por %p150, %p151
      %p153 = scmp.ne.s32.totalorder %s144, %s145
      %p154 = scmp.eq.s32.totalorder %s29, 0
      %p155 = por %p153, %p154
      %p156 = scmp.ne.s32.totalorder %s144, %s145
      %p157 = scmp.eq.s32.totalorder %s30, 1
      %p158 = por %p156, %p157
      %p160 = scmp.ne.s32.totalorder %s145, %s159
      %p161 = scmp.eq.s32.totalorder %s30, 0
      %p162 = por %p160, %p161
      %s164 = sadd.s32 %s163, 1
      %p167 = scmp.eq.s32.totalorder %s24, 1
      %p168 = scmp.ne.s32.totalorder %s163, %s165
      %p169 = scmp.eq.s32.totalorder %s24, 0
      %p170 = por %p168, %p169
      %p171 = scmp.ne.s32.totalorder %s163, %s165
      %p172 = scmp.eq.s32.totalorder %s29, 1
      %p173 = por %p171, %p172
      %p174 = scmp.ne.s32.totalorder %s165, %s166
      %p175 = scmp.eq.s32.totalorder %s29, 0
      %p176 = por %p174, %p175
      %p177 = scmp.ne.s32.totalorder %s165, %s166
      %p178 = scmp.eq.s32.totalorder %s30, 1
      %p179 = por %p177, %p178
      %p181 = scmp.ne.s32.totalorder %s166, %s180
      %p182 = scmp.eq.s32.totalorder %s30, 0
      %p183 = por %p181, %p182
      %s185 = sadd.s32 %s184, 1
      %p188 = scmp.eq.s32.totalorder %s24, 1
      %p189 = scmp.ne.s32.totalorder %s184, %s186
      %p190 = scmp.eq.s32.totalorder %s24, 0
      %p191 = por %p189, %p190
      %p192 = scmp.ne.s32.totalorder %s184, %s186
      %p193 = scmp.eq.s32.totalorder %s29, 1
      %p194 = por %p192, %p193
      %p195 = scmp.ne.s32.totalorder %s186, %s187
      %p196 = scmp.eq.s32.totalorder %s29, 0
      %p197 = por %p195, %p196
      %p198 = scmp.ne.s32.totalorder %s186, %s187
      %p199 = scmp.eq.s32.totalorder %s30, 1
      %p200 = por %p198, %p199
      %p202 = scmp.ne.s32.totalorder %s187, %s201
      %p203 = scmp.eq.s32.totalorder %s30, 0
      %p204 = por %p202, %p203
      %s206 = sadd.s32 %s205, 1
      %p209 = scmp.eq.s32.totalorder %s24, 1
      %p210 = scmp.ne.s32.totalorder %s205, %s207
      %p211 = scmp.eq.s32.totalorder %s24, 0
      %p212 = por %p210, %p211
      %p213 = scmp.ne.s32.totalorder %s205, %s207
      %p214 = scmp.eq.s32.totalorder %s29, 1
      %p215 = por %p213, %p214
      %p216 = scmp.ne.s32.totalorder %s207, %s208
      %p217 = scmp.eq.s32.totalorder %s29, 0
      %p218 = por %p216, %p217
      %p219 = scmp.ne.s32.totalorder %s207, %s208
      %p220 = scmp.eq.s32.totalorder %s30, 1
      %p221 = por %p219, %p220
      %p223 = scmp.ne.s32.totalorder %s208, %s222
      %p224 = scmp.eq.s32.totalorder %s30, 0
      %p225 = por %p223, %p224
      %s227 = sadd.s32 %s226, 1
      %p230 = scmp.eq.s32.totalorder %s24, 1
      %p231 = scmp.ne.s32.totalorder %s226, %s228
      %p232 = scmp.eq.s32.totalorder %s24, 0
      %p233 = por %p231, %p232
      %p234 = scmp.ne.s32.totalorder %s226, %s228
      %p235 = scmp.eq.s32.totalorder %s29, 1
      %p236 = por %p234, %p235
      %p237 = scmp.ne.s32.totalorder %s228, %s229
      %p238 = scmp.eq.s32.totalorder %s29, 0
      %p239 = por %p237, %p238
      %p240 = scmp.ne.s32.totalorder %s228, %s229
      %p241 = scmp.eq.s32.totalorder %s30, 1
      %p242 = por %p240, %p241
      %p244 = scmp.ne.s32.totalorder %s229, %s243
      %p245 = scmp.eq.s32.totalorder %s30, 0
      %p246 = por %p244, %p245
      %s248 = sadd.s32 %s247, 1
      %p251 = scmp.eq.s32.totalorder %s24, 1
      %p252 = scmp.ne.s32.totalorder %s247, %s249
      %p253 = scmp.eq.s32.totalorder %s24, 0
      %p254 = por %p252, %p253
      %p255 = scmp.ne.s32.totalorder %s247, %s249
      %p256 = scmp.eq.s32.totalorder %s29, 1
      %p257 = por %p255, %p256
      %p258 = scmp.ne.s32.totalorder %s249, %s250
      %p259 = scmp.eq.s32.totalorder %s29, 0
      %p260 = por %p258, %p259
      %p261 = scmp.ne.s32.totalorder %s249, %s250
      %p262 = scmp.eq.s32.totalorder %s30, 1
      %p263 = por %p261, %p262
      %p265 = scmp.ne.s32.totalorder %s250, %s264
      %p266 = scmp.eq.s32.totalorder %s30, 0
      %p267 = por %p265, %p266
      %s269 = sadd.s32 %s268, 1
      %p272 = scmp.eq.s32.totalorder %s24, 1
      %p273 = scmp.ne.s32.totalorder %s268, %s270
      %p274 = scmp.eq.s32.totalorder %s24, 0
      %p275 = por %p273, %p274
      %p276 = scmp.ne.s32.totalorder %s268, %s270
      %p277 = scmp.eq.s32.totalorder %s29, 1
      %p278 = por %p276, %p277
      %p279 = scmp.ne.s32.totalorder %s270, %s271
      %p280 = scmp.eq.s32.totalorder %s29, 0
      %p281 = por %p279, %p280
      %p282 = scmp.ne.s32.totalorder %s270, %s271
      %p283 = scmp.eq.s32.totalorder %s30, 1
      %p284 = por %p282, %p283
      %p286 = scmp.ne.s32.totalorder %s271, %s285
      %p287 = scmp.eq.s32.totalorder %s30, 0
      %p288 = por %p286, %p287
      %s290 = sadd.s32 %s289, 1
      %p293 = scmp.eq.s32.totalorder %s24, 1
      %p294 = scmp.ne.s32.totalorder %s289, %s291
      %p295 = scmp.eq.s32.totalorder %s24, 0
      %p296 = por %p294, %p295
      %p297 = scmp.ne.s32.totalorder %s289, %s291
      %p298 = scmp.eq.s32.totalorder %s29, 1
      %p299 = por %p297, %p298
      %p300 = scmp.ne.s32.totalorder %s291, %s292
      %p301 = scmp.eq.s32.totalorder %s29, 0
      %p302 = por %p300, %p301
      %p303 = scmp.ne.s32.totalorder %s291, %s292
      %p304 = scmp.eq.s32.totalorder %s30, 1
      %p305 = por %p303, %p304
      %p307 = scmp.ne.s32.totalorder %s292, %s306
      %p308 = scmp.eq.s32.totalorder %s30, 0
      %p309 = por %p307, %p308
      %s311 = sadd.s32 %s310, 1
      %p314 = scmp.eq.s32.totalorder %s24, 1
      %p315 = scmp.ne.s32.totalorder %s310, %s312
      %p316 = scmp.eq.s32.totalorder %s24, 0
      %p317 = por %p315, %p316
      %p318 = scmp.ne.s32.totalorder %s310, %s312
      %p319 = scmp.eq.s32.totalorder %s29, 1
      %p320 = por %p318, %p319
      %p321 = scmp.ne.s32.totalorder %s312, %s313
      %p322 = scmp.eq.s32.totalorder %s29, 0
      %p323 = por %p321, %p322
      %p324 = scmp.ne.s32.totalorder %s312, %s313
      %p325 = scmp.eq.s32.totalorder %s30, 1
      %p326 = por %p324, %p325
      %p328 = scmp.ne.s32.totalorder %s313, %s327
      %p329 = scmp.eq.s32.totalorder %s30, 0
      %p330 = por %p328, %p329
      %s332 = sadd.s32 %s331, 1
      %p335 = scmp.eq.s32.totalorder %s24, 1
      %p336 = scmp.ne.s32.totalorder %s331, %s333
      %p337 = scmp.eq.s32.totalorder %s24, 0
      %p338 = por %p336, %p337
      %p339 = scmp.ne.s32.totalorder %s331, %s333
      %p340 = scmp.eq.s32.totalorder %s29, 1
      %p341 = por %p339, %p340
      %p342 = scmp.ne.s32.totalorder %s333, %s334
      %p343 = scmp.eq.s32.totalorder %s29, 0
      %p344 = por %p342, %p343
      %p345 = scmp.ne.s32.totalorder %s333, %s334
      %p346 = scmp.eq.s32.totalorder %s30, 1
      %p347 = por %p345, %p346
      %p349 = scmp.ne.s32.totalorder %s334, %s348
      %p350 = scmp.eq.s32.totalorder %s30, 0
      %p351 = por %p349, %p350
      %s352 = ssub.s32 %s24, %s31
      %p353 = scmp.eq.s32.totalorder %s352, 0
      %s355 = sadd.s32 %s354, 1
      %s356 = scalar_select %p353, %s354, %s355
      %p359 = pneg %p353
      %p360 = scmp.eq.s32.totalorder %s24, 1
      %p361 = por %p359, %p360
      %p362 = scmp.ne.s32.totalorder %s354, %s357
      %p363 = scmp.eq.s32.totalorder %s24, 0
      %p364 = por %p362, %p363
      %p365 = scmp.ne.s32.totalorder %s354, %s357
      %p366 = scmp.eq.s32.totalorder %s29, 1
      %p367 = por %p365, %p366
      %p368 = scmp.ne.s32.totalorder %s357, %s358
      %p369 = scmp.eq.s32.totalorder %s29, 0
      %p370 = por %p368, %p369
      %p371 = scmp.ne.s32.totalorder %s357, %s358
      %p372 = scmp.eq.s32.totalorder %s30, 1
      %p373 = por %p371, %p372
      %p375 = scmp.ne.s32.totalorder %s358, %s374
      %p376 = scmp.eq.s32.totalorder %s30, 0
      %p377 = por %p375, %p376
      %p378 = scmp.le.s32.totalorder 1, %s24
      %p379 = scmp.lt.s32.totalorder %s24, 3
      %p380 = pnand %p378, %p379
      %p381 = pneg %p380
      // Predicated region
      $region9: #{encoder_forward.1} parent=5 // pred_check
        _
      $region10: #{encoder_forward.1} parent=5 // pred_check_branch
        %383 = sbr.rel (%p380) target = $region12
      $region11: #{encoder_forward.1} parent=5 // pred_region
        %s384 = ssub.s32 %s24, 1
        // Predicated region
        $region13: #{encoder_forward.1} parent=11 // pred_check
          %p385 = pneg %p71
        $region14: #{encoder_forward.1} parent=11 // pred_check_branch
          %387 = sbr.rel (%p385) target = $region16
        $region15: #{encoder_forward.1} parent=11 // pred_region
          %389 = vsyncadd [#allocation3], 0
          %s390 = sshll.u32 %s1, 4
          %s391 = int_to_ptr.hbm [resolvable:$true] %s390
          %s392 = sshll.u32 [#allocation2], 4
          %s393 = int_to_ptr.vmem [resolvable:$true] %s392
          %398 = dma.hbm_to_vmem [thread:$0]  %s391, 24576, %s393, [#allocation3], 384, 384, 24
        $region16: #{encoder_forward.1} parent=11 // pred_fallthru
          _
        // Predicated region
        $region17: #{encoder_forward.1} parent=11 // pred_check
          %p399 = pneg %p92
        $region18: #{encoder_forward.1} parent=11 // pred_check_branch
          %401 = sbr.rel (%p399) target = $region20
        $region19: #{encoder_forward.1} parent=11 // pred_region
          _
        $region20: #{encoder_forward.1} parent=11 // pred_fallthru
          _
        // Predicated region
        $region21: #{encoder_forward.1} parent=11 // pred_check
          %p402 = pneg %p113
        $region22: #{encoder_forward.1} parent=11 // pred_check_branch
          %404 = sbr.rel (%p402) target = $region24
        $region23: #{encoder_forward.1} parent=11 // pred_region
          %406 = vsyncadd [#allocation5], 0
          %s407 = sshll.u32 %s3, 4
          %s408 = int_to_ptr.hbm [resolvable:$true] %s407
          %s409 = sshll.u32 [#allocation4], 4
          %s410 = int_to_ptr.vmem [resolvable:$true] %s409
          %415 = dma.hbm_to_vmem [thread:$0]  %s408, 8192, %s410, [#allocation5], 128, 128, 8
        $region24: #{encoder_forward.1} parent=11 // pred_fallthru
          _
        // Predicated region
        $region25: #{encoder_forward.1} parent=11 // pred_check
          %p416 = pneg %p134
        $region26: #{encoder_forward.1} parent=11 // pred_check_branch
          %418 = sbr.rel (%p416) target = $region28
        $region27: #{encoder_forward.1} parent=11 // pred_region
          _
        $region28: #{encoder_forward.1} parent=11 // pred_fallthru
          _
        // Predicated region
        $region29: #{encoder_forward.1} parent=11 // pred_check
          %p419 = pneg %p155
        $region30: #{encoder_forward.1} parent=11 // pred_check_branch
          %421 = sbr.rel (%p419) target = $region32
        $region31: #{encoder_forward.1} parent=11 // pred_region
          %423 = vsyncadd [#allocation5], 0
          %s424 = sshll.u32 %s5, 4
          %s425 = int_to_ptr.hbm [resolvable:$true] %s424
          %s426 = sshll.u32 [#allocation6], 4
          %s427 = int_to_ptr.vmem [resolvable:$true] %s426
          %432 = dma.hbm_to_vmem [thread:$0]  %s425, 32768, %s427, [#allocation5], 512, 512, 32
        $region32: #{encoder_forward.1} parent=11 // pred_fallthru
          _
        // Predicated region
        $region33: #{encoder_forward.1} parent=11 // pred_check
          %p433 = pneg %p176
        $region34: #{encoder_forward.1} parent=11 // pred_check_branch
          %435 = sbr.rel (%p433) target = $region36
        $region35: #{encoder_forward.1} parent=11 // pred_region
          _
        $region36: #{encoder_forward.1} parent=11 // pred_fallthru
          _
        // Predicated region
        $region37: #{encoder_forward.1} parent=11 // pred_check
          %p436 = pneg %p197
        $region38: #{encoder_forward.1} parent=11 // pred_check_branch
          %438 = sbr.rel (%p436) target = $region40
        $region39: #{encoder_forward.1} parent=11 // pred_region
          %440 = vsyncadd [#allocation8], 0
          %s441 = sshll.u32 %s7, 4
          %s442 = int_to_ptr.hbm [resolvable:$true] %s441
          %s443 = sshll.u32 [#allocation7], 4
          %s444 = int_to_ptr.vmem [resolvable:$true] %s443
          %449 = dma.hbm_to_vmem [thread:$0]  %s442, 32768, %s444, [#allocation8], 128, 128, 8
        $region40: #{encoder_forward.1} parent=11 // pred_fallthru
          _
        // Predicated region
        $region41: #{encoder_forward.1} parent=11 // pred_check
          %p450 = pneg %p218
        $region42: #{encoder_forward.1} parent=11 // pred_check_branch
          %452 = sbr.rel (%p450) target = $region44
        $region43: #{encoder_forward.1} parent=11 // pred_region
          _
        $region44: #{encoder_forward.1} parent=11 // pred_fallthru
          _
        // Predicated region
        $region45: #{encoder_forward.1} parent=11 // pred_check
          %p453 = pneg %p239
        $region46: #{encoder_forward.1} parent=11 // pred_check_branch
          %455 = sbr.rel (%p453) target = $region48
        $region47: #{encoder_forward.1} parent=11 // pred_region
          _
        $region48: #{encoder_forward.1} parent=11 // pred_fallthru
          _
        // Predicated region
        $region49: #{encoder_forward.1} parent=11 // pred_check
          %p456 = pneg %p260
        $region50: #{encoder_forward.1} parent=11 // pred_check_branch
          %458 = sbr.rel (%p456) target = $region52
        $region51: #{encoder_forward.1} parent=11 // pred_region
          _
        $region52: #{encoder_forward.1} parent=11 // pred_fallthru
          _
        // Predicated region
        $region53: #{encoder_forward.1} parent=11 // pred_check
          %p459 = pneg %p281
        $region54: #{encoder_forward.1} parent=11 // pred_check_branch
          %461 = sbr.rel (%p459) target = $region56
        $region55: #{encoder_forward.1} parent=11 // pred_region
          _
        $region56: #{encoder_forward.1} parent=11 // pred_fallthru
          _
        // Predicated region
        $region57: #{encoder_forward.1} parent=11 // pred_check
          %p462 = pneg %p302
        $region58: #{encoder_forward.1} parent=11 // pred_check_branch
          %464 = sbr.rel (%p462) target = $region60
        $region59: #{encoder_forward.1} parent=11 // pred_region
          _
        $region60: #{encoder_forward.1} parent=11 // pred_fallthru
          _
        // Predicated region
        $region61: #{encoder_forward.1} parent=11 // pred_check
          %p465 = pneg %p323
        $region62: #{encoder_forward.1} parent=11 // pred_check_branch
          %467 = sbr.rel (%p465) target = $region64
        $region63: #{encoder_forward.1} parent=11 // pred_region
          _
        $region64: #{encoder_forward.1} parent=11 // pred_fallthru
          _
        // Predicated region
        $region65: #{encoder_forward.1} parent=11 // pred_check
          %p468 = pneg %p344
        $region66: #{encoder_forward.1} parent=11 // pred_check_branch
          %470 = sbr.rel (%p468) target = $region68
        $region67: #{encoder_forward.1} parent=11 // pred_region
          _
        $region68: #{encoder_forward.1} parent=11 // pred_fallthru
          _
      $region12: #{encoder_forward.1} parent=5 // pred_fallthru
        _
      %p471 = scmp.lt.s32.totalorder %s24, 2
      // Predicated region
      $region69: #{encoder_forward.1} parent=5 // pred_check
        %p472 = pneg %p471
      $region70: #{encoder_forward.1} parent=5 // pred_check_branch
        %474 = sbr.rel (%p472) target = $region72
      $region71: #{encoder_forward.1} parent=5 // pred_region
        // Predicated region
        $region73: #{encoder_forward.1} parent=71 // pred_check
          %p475 = pneg %p44
        $region74: #{encoder_forward.1} parent=71 // pred_check_branch
          %477 = sbr.rel (%p475) target = $region76
        $region75: #{encoder_forward.1} parent=71 // pred_region
          %s478 = smul.u32 2, %s24
          %p479 = scmp.lt.s32.totalorder %s478, 3
          %s480 = scalar_select %p479, %s478, 3
          %s481 = smul.addr %s480, 8
          %s482 = scalar_lea.vmem %s0, %s481
          %s483 = smul.u32 2, %s24
        $region76: #{encoder_forward.1} parent=71 // pred_fallthru
          _
      $region72: #{encoder_forward.1} parent=5 // pred_fallthru
        _
      %p484 = scmp.le.s32.totalorder 1, %s24
      %p485 = scmp.lt.s32.totalorder %s24, 3
      %p486 = pnand %p484, %p485
      %p487 = pneg %p486
      // Predicated region
      $region77: #{encoder_forward.1} parent=5 // pred_check
        _
      $region78: #{encoder_forward.1} parent=5 // pred_check_branch
        %489 = sbr.rel (%p486) target = $region80
      $region79: #{encoder_forward.1} parent=5 // pred_region
        %s490 = ssub.s32 %s24, 1
        // Predicated region
        $region81: #{encoder_forward.1} parent=79 // pred_check
          %p491 = pneg %p71
        $region82: #{encoder_forward.1} parent=79 // pred_check_branch
          %493 = sbr.rel (%p491) target = $region84
        $region83: #{encoder_forward.1} parent=79 // pred_region
          %495 = dma.done [#allocation3], 24576
        $region84: #{encoder_forward.1} parent=79 // pred_fallthru
          _
        // Predicated region
        $region85: #{encoder_forward.1} parent=79 // pred_check
          %p496 = pneg %p113
        $region86: #{encoder_forward.1} parent=79 // pred_check_branch
          %498 = sbr.rel (%p496) target = $region88
        $region87: #{encoder_forward.1} parent=79 // pred_region
          %500 = dma.done [#allocation5], 8192
        $region88: #{encoder_forward.1} parent=79 // pred_fallthru
          _
        // Predicated region
        $region89: #{encoder_forward.1} parent=79 // pred_check
          %p501 = pneg %p155
        $region90: #{encoder_forward.1} parent=79 // pred_check_branch
          %503 = sbr.rel (%p501) target = $region92
        $region91: #{encoder_forward.1} parent=79 // pred_region
          %505 = dma.done [#allocation5], 32768
        $region92: #{encoder_forward.1} parent=79 // pred_fallthru
          _
        // Predicated region
        $region93: #{encoder_forward.1} parent=79 // pred_check
          %p506 = pneg %p197
        $region94: #{encoder_forward.1} parent=79 // pred_check_branch
          %508 = sbr.rel (%p506) target = $region96
        $region95: #{encoder_forward.1} parent=79 // pred_region
          %510 = dma.done [#allocation8], 32768
        $region96: #{encoder_forward.1} parent=79 // pred_fallthru
          _
        %s511 = smul.u32 2, %s29
        %p512 = scmp.lt.s32.totalorder %s511, 3
        %s513 = scalar_select %p512, %s511, 3
        %s514 = smul.addr %s513, 8
        %s515 = scalar_lea.vmem %s0, %s514
        %p516 = pneg %p50
        %p517 = pneg %p47
        %p518 = pneg %p71
        %p519 = pneg %p68
        %p520 = pneg %p92
        %p521 = pneg %p89
        %p522 = pneg %p113
        %p523 = pneg %p110
        %p524 = pneg %p134
        %p525 = pneg %p131
        %p526 = pneg %p155
        %p527 = pneg %p152
        %p528 = pneg %p176
        %p529 = pneg %p173
        %p530 = pneg %p197
        %p531 = pneg %p194
        %p532 = pneg %p218
        %p533 = pneg %p215
        %p534 = pneg %p239
        %p535 = pneg %p236
        %p536 = pneg %p260
        %p537 = pneg %p257
        %p538 = pneg %p281
        %p539 = pneg %p278
        %p540 = pneg %p302
        %p541 = pneg %p299
        %p542 = pneg %p323
        %p543 = pneg %p320
        %p544 = pneg %p344
        %p545 = pneg %p341
        %p546 = pneg %p370
        %p547 = pneg %p367
        %s548 = smul.u32 2, %s29
        %p549 = scmp.lt.s32.totalorder %s548, 3
        %s550 = scalar_select %p549, %s548, 3
        %s551 = smul.addr %s550, 8
        %s552 = scalar_lea.vmem %s15, %s551
        %s553 = smul.u32 2, %s29
        %p554 = scmp.lt.s32.totalorder %s553, 3
        %s555 = scalar_select %p554, %s553, 3
        %s556 = smul.addr %s555, 8
        %s557 = scalar_lea.vmem %s0, %s556
        %s558 = smul.u32 2, %s29
        %s559 = smul.u32 2, %s29
        %p560 = scmp.lt.s32.totalorder %s559, 3
        %s561 = scalar_select %p560, %s559, 3
        %s562 = smul.addr %s561, 8
        %s563 = scalar_lea.vmem %s15, %s562
        %s564 = smul.u32 2, %s29
        %v566 = vld [vmem:[%s557] sm:$0xff]
        %v567 = vld [vmem:[%s557 + $0x8] sm:$0xff]
        %v568 = vpack.c.bf16 %v566, %v566
        %v569 = vpack.c.bf16 %v567, %v567
        %v570 = vld [vmem:[#allocation2] sm:$0xff]
        %v571 = vld [vmem:[#allocation2 + $0x8] sm:$0xff]
        %v572 = vld [vmem:[#allocation2 + $0x10] sm:$0xff]
        %v573 = vld [vmem:[#allocation2 + $0x18] sm:$0xff]
        %v574 = vld [vmem:[#allocation2 + $0x20] sm:$0xff]
        %v575 = vld [vmem:[#allocation2 + $0x28] sm:$0xff]
        %v576 = vld [vmem:[#allocation2 + $0x30] sm:$0xff]
        %v577 = vld [vmem:[#allocation2 + $0x38] sm:$0xff]
        %v578 = vld [vmem:[#allocation2 + $0x40] sm:$0xff]
        %v579 = vld [vmem:[#allocation2 + $0x48] sm:$0xff]
        %v580 = vld [vmem:[#allocation2 + $0x50] sm:$0xff]
        %v581 = vld [vmem:[#allocation2 + $0x58] sm:$0xff]
        %v582 = vld [vmem:[#allocation2 + $0x60] sm:$0xff]
        %v583 = vld [vmem:[#allocation2 + $0x68] sm:$0xff]
        %v584 = vld [vmem:[#allocation2 + $0x70] sm:$0xff]
        %v585 = vld [vmem:[#allocation2 + $0x78] sm:$0xff]
        %v586 = vld [vmem:[#allocation2 + $0x80] sm:$0xff]
        %v587 = vld [vmem:[#allocation2 + $0x88] sm:$0xff]
        %v588 = vld [vmem:[#allocation2 + $0x90] sm:$0xff]
        %v589 = vld [vmem:[#allocation2 + $0x98] sm:$0xff]
        %v590 = vld [vmem:[#allocation2 + $0xa0] sm:$0xff]
        %v591 = vld [vmem:[#allocation2 + $0xa8] sm:$0xff]
        %v592 = vld [vmem:[#allocation2 + $0xb0] sm:$0xff]
        %v593 = vld [vmem:[#allocation2 + $0xb8] sm:$0xff]
        %v594 = vld [vmem:[#allocation2 + $0xc0] sm:$0xff]
        %v595 = vld [vmem:[#allocation2 + $0xc8] sm:$0xff]
        %v596 = vld [vmem:[#allocation2 + $0xd0] sm:$0xff]
        %v597 = vld [vmem:[#allocation2 + $0xd8] sm:$0xff]
        %v598 = vld [vmem:[#allocation2 + $0xe0] sm:$0xff]
        %v599 = vld [vmem:[#allocation2 + $0xe8] sm:$0xff]
        %v600 = vld [vmem:[#allocation2 + $0xf0] sm:$0xff]
        %v601 = vld [vmem:[#allocation2 + $0xf8] sm:$0xff]
        %v602 = vld [vmem:[#allocation2 + $0x100] sm:$0xff]
        %v603 = vld [vmem:[#allocation2 + $0x108] sm:$0xff]
        %v604 = vld [vmem:[#allocation2 + $0x110] sm:$0xff]
        %v605 = vld [vmem:[#allocation2 + $0x118] sm:$0xff]
        %v606 = vld [vmem:[#allocation2 + $0x120] sm:$0xff]
        %v607 = vld [vmem:[#allocation2 + $0x128] sm:$0xff]
        %v608 = vld [vmem:[#allocation2 + $0x130] sm:$0xff]
        %v609 = vld [vmem:[#allocation2 + $0x138] sm:$0xff]
        %v610 = vld [vmem:[#allocation2 + $0x140] sm:$0xff]
        %v611 = vld [vmem:[#allocation2 + $0x148] sm:$0xff]
        %v612 = vld [vmem:[#allocation2 + $0x150] sm:$0xff]
        %v613 = vld [vmem:[#allocation2 + $0x158] sm:$0xff]
        %v614 = vld [vmem:[#allocation2 + $0x160] sm:$0xff]
        %v615 = vld [vmem:[#allocation2 + $0x168] sm:$0xff]
        %v616 = vld [vmem:[#allocation2 + $0x170] sm:$0xff]
        %v617 = vld [vmem:[#allocation2 + $0x178] sm:$0xff]
        %v618 = vld [vmem:[#allocation2 + $0x180] sm:$0xff]
        %v619 = vld [vmem:[#allocation2 + $0x188] sm:$0xff]
        %v620 = vld [vmem:[#allocation2 + $0x190] sm:$0xff]
        %v621 = vld [vmem:[#allocation2 + $0x198] sm:$0xff]
        %v622 = vld [vmem:[#allocation2 + $0x1a0] sm:$0xff]
        %v623 = vld [vmem:[#allocation2 + $0x1a8] sm:$0xff]
        %v624 = vld [vmem:[#allocation2 + $0x1b0] sm:$0xff]
        %v625 = vld [vmem:[#allocation2 + $0x1b8] sm:$0xff]
        %v626 = vld [vmem:[#allocation2 + $0x1c0] sm:$0xff]
        %v627 = vld [vmem:[#allocation2 + $0x1c8] sm:$0xff]
        %v628 = vld [vmem:[#allocation2 + $0x1d0] sm:$0xff]
        %v629 = vld [vmem:[#allocation2 + $0x1d8] sm:$0xff]
        %v630 = vld [vmem:[#allocation2 + $0x1e0] sm:$0xff]
        %v631 = vld [vmem:[#allocation2 + $0x1e8] sm:$0xff]
        %v632 = vld [vmem:[#allocation2 + $0x1f0] sm:$0xff]
        %v633 = vld [vmem:[#allocation2 + $0x1f8] sm:$0xff]
        %v634 = vld [vmem:[#allocation2 + $0x200] sm:$0xff]
        %v635 = vld [vmem:[#allocation2 + $0x208] sm:$0xff]
        %v636 = vld [vmem:[#allocation2 + $0x210] sm:$0xff]
        %v637 = vld [vmem:[#allocation2 + $0x218] sm:$0xff]
        %v638 = vld [vmem:[#allocation2 + $0x220] sm:$0xff]
        %v639 = vld [vmem:[#allocation2 + $0x228] sm:$0xff]
        %v640 = vld [vmem:[#allocation2 + $0x230] sm:$0xff]
        %v641 = vld [vmem:[#allocation2 + $0x238] sm:$0xff]
        %v642 = vld [vmem:[#allocation2 + $0x240] sm:$0xff]
        %v643 = vld [vmem:[#allocation2 + $0x248] sm:$0xff]
        %v644 = vld [vmem:[#allocation2 + $0x250] sm:$0xff]
        %v645 = vld [vmem:[#allocation2 + $0x258] sm:$0xff]
        %v646 = vld [vmem:[#allocation2 + $0x260] sm:$0xff]
        %v647 = vld [vmem:[#allocation2 + $0x268] sm:$0xff]
        %v648 = vld [vmem:[#allocation2 + $0x270] sm:$0xff]
        %v649 = vld [vmem:[#allocation2 + $0x278] sm:$0xff]
        %v650 = vld [vmem:[#allocation2 + $0x280] sm:$0xff]
        %v651 = vld [vmem:[#allocation2 + $0x288] sm:$0xff]
        %v652 = vld [vmem:[#allocation2 + $0x290] sm:$0xff]
        %v653 = vld [vmem:[#allocation2 + $0x298] sm:$0xff]
        %v654 = vld [vmem:[#allocation2 + $0x2a0] sm:$0xff]
        %v655 = vld [vmem:[#allocation2 + $0x2a8] sm:$0xff]
        %v656 = vld [vmem:[#allocation2 + $0x2b0] sm:$0xff]
        %v657 = vld [vmem:[#allocation2 + $0x2b8] sm:$0xff]
        %v658 = vld [vmem:[#allocation2 + $0x2c0] sm:$0xff]
        %v659 = vld [vmem:[#allocation2 + $0x2c8] sm:$0xff]
        %v660 = vld [vmem:[#allocation2 + $0x2d0] sm:$0xff]
        %v661 = vld [vmem:[#allocation2 + $0x2d8] sm:$0xff]
        %v662 = vld [vmem:[#allocation2 + $0x2e0] sm:$0xff]
        %v663 = vld [vmem:[#allocation2 + $0x2e8] sm:$0xff]
        %v664 = vld [vmem:[#allocation2 + $0x2f0] sm:$0xff]
        %v665 = vld [vmem:[#allocation2 + $0x2f8] sm:$0xff]
        %v666 = vld [vmem:[%s2] sm:$0x3f]
        %v668 = vperm.slane %v666, 0
        %v669 = vperm.slane %v666, 1
        %v670 = vperm.slane %v666, 2
        %v671 = vperm.slane %v666, 3
        %v672 = vperm.slane %v666, 4
        %v673 = vperm.slane %v666, 5
        %v776 = vunpack.c.l.b16 %v570
        %v777 = vunpack.c.h.b16 %v570
        %v778 = vunpack.c.l.b16 %v571
        %v779 = vunpack.c.h.b16 %v571
        %v780 = vunpack.c.l.b16 %v572
        %v781 = vunpack.c.h.b16 %v572
        %v782 = vunpack.c.l.b16 %v573
        %v783 = vunpack.c.h.b16 %v573
        %v784 = vunpack.c.l.b16 %v574
        %v785 = vunpack.c.h.b16 %v574
        %v786 = vunpack.c.l.b16 %v575
        %v787 = vunpack.c.h.b16 %v575
        %v788 = vunpack.c.l.b16 %v576
        %v789 = vunpack.c.h.b16 %v576
        %v790 = vunpack.c.l.b16 %v577
        %v791 = vunpack.c.h.b16 %v577
        %v792 = vunpack.c.l.b16 %v578
        %v793 = vunpack.c.h.b16 %v578
        %v794 = vunpack.c.l.b16 %v579
        %v795 = vunpack.c.h.b16 %v579
        %v796 = vunpack.c.l.b16 %v580
        %v797 = vunpack.c.h.b16 %v580
        %v798 = vunpack.c.l.b16 %v581
        %v799 = vunpack.c.h.b16 %v581
        %v800 = vunpack.c.l.b16 %v582
        %v801 = vunpack.c.h.b16 %v582
        %v802 = vunpack.c.l.b16 %v583
        %v803 = vunpack.c.h.b16 %v583
        %v804 = vunpack.c.l.b16 %v584
        %v805 = vunpack.c.h.b16 %v584
        %v806 = vunpack.c.l.b16 %v585
        %v807 = vunpack.c.h.b16 %v585
        %v808 = vunpack.c.l.b16 %v586
        %v809 = vunpack.c.h.b16 %v586
        %v810 = vunpack.c.l.b16 %v587
        %v811 = vunpack.c.h.b16 %v587
        %v812 = vunpack.c.l.b16 %v588
        %v813 = vunpack.c.h.b16 %v588
        %v814 = vunpack.c.l.b16 %v589
        %v815 = vunpack.c.h.b16 %v589
        %v816 = vunpack.c.l.b16 %v590
        %v817 = vunpack.c.h.b16 %v590
        %v818 = vunpack.c.l.b16 %v591
        %v819 = vunpack.c.h.b16 %v591
        %v820 = vunpack.c.l.b16 %v592
        %v821 = vunpack.c.h.b16 %v592
        %v822 = vunpack.c.l.b16 %v593
        %v823 = vunpack.c.h.b16 %v593
        %v824 = vunpack.c.l.b16 %v594
        %v825 = vunpack.c.h.b16 %v594
        %v826 = vunpack.c.l.b16 %v595
        %v827 = vunpack.c.h.b16 %v595
        %v828 = vunpack.c.l.b16 %v596
        %v829 = vunpack.c.h.b16 %v596
        %v830 = vunpack.c.l.b16 %v597
        %v831 = vunpack.c.h.b16 %v597
        %v832 = vunpack.c.l.b16 %v598
        %v833 = vunpack.c.h.b16 %v598
        %v834 = vunpack.c.l.b16 %v599
        %v835 = vunpack.c.h.b16 %v599
        %v836 = vunpack.c.l.b16 %v600
        %v837 = vunpack.c.h.b16 %v600
        %v838 = vunpack.c.l.b16 %v601
        %v839 = vunpack.c.h.b16 %v601
        %v840 = vunpack.c.l.b16 %v602
        %v841 = vunpack.c.h.b16 %v602
        %v842 = vunpack.c.l.b16 %v603
        %v843 = vunpack.c.h.b16 %v603
        %v844 = vunpack.c.l.b16 %v604
        %v845 = vunpack.c.h.b16 %v604
        %v846 = vunpack.c.l.b16 %v605
        %v847 = vunpack.c.h.b16 %v605
        %v848 = vunpack.c.l.b16 %v606
        %v849 = vunpack.c.h.b16 %v606
        %v850 = vunpack.c.l.b16 %v607
        %v851 = vunpack.c.h.b16 %v607
        %v852 = vunpack.c.l.b16 %v608
        %v853 = vunpack.c.h.b16 %v608
        %v854 = vunpack.c.l.b16 %v609
        %v855 = vunpack.c.h.b16 %v609
        %v856 = vunpack.c.l.b16 %v610
        %v857 = vunpack.c.h.b16 %v610
        %v858 = vunpack.c.l.b16 %v611
        %v859 = vunpack.c.h.b16 %v611
        %v860 = vunpack.c.l.b16 %v612
        %v861 = vunpack.c.h.b16 %v612
        %v862 = vunpack.c.l.b16 %v613
        %v863 = vunpack.c.h.b16 %v613
        %v864 = vunpack.c.l.b16 %v614
        %v865 = vunpack.c.h.b16 %v614
        %v866 = vunpack.c.l.b16 %v615
        %v867 = vunpack.c.h.b16 %v615
        %v868 = vunpack.c.l.b16 %v616
        %v869 = vunpack.c.h.b16 %v616
        %v870 = vunpack.c.l.b16 %v617
        %v871 = vunpack.c.h.b16 %v617
        %v872 = vunpack.c.l.b16 %v618
        %v873 = vunpack.c.h.b16 %v618
        %v874 = vunpack.c.l.b16 %v619
        %v875 = vunpack.c.h.b16 %v619
        %v876 = vunpack.c.l.b16 %v620
        %v877 = vunpack.c.h.b16 %v620
        %v878 = vunpack.c.l.b16 %v621
        %v879 = vunpack.c.h.b16 %v621
        %v880 = vunpack.c.l.b16 %v622
        %v881 = vunpack.c.h.b16 %v622
        %v882 = vunpack.c.l.b16 %v623
        %v883 = vunpack.c.h.b16 %v623
        %v884 = vunpack.c.l.b16 %v624
        %v885 = vunpack.c.h.b16 %v624
        %v886 = vunpack.c.l.b16 %v625
        %v887 = vunpack.c.h.b16 %v625
        %v888 = vunpack.c.l.b16 %v626
        %v889 = vunpack.c.h.b16 %v626
        %v890 = vunpack.c.l.b16 %v627
        %v891 = vunpack.c.h.b16 %v627
        %v892 = vunpack.c.l.b16 %v628
        %v893 = vunpack.c.h.b16 %v628
        %v894 = vunpack.c.l.b16 %v629
        %v895 = vunpack.c.h.b16 %v629
        %v896 = vunpack.c.l.b16 %v630
        %v897 = vunpack.c.h.b16 %v630
        %v898 = vunpack.c.l.b16 %v631
        %v899 = vunpack.c.h.b16 %v631
        %v900 = vunpack.c.l.b16 %v632
        %v901 = vunpack.c.h.b16 %v632
        %v902 = vunpack.c.l.b16 %v633
        %v903 = vunpack.c.h.b16 %v633
        %v904 = vunpack.c.l.b16 %v634
        %v905 = vunpack.c.h.b16 %v634
        %v906 = vunpack.c.l.b16 %v635
        %v907 = vunpack.c.h.b16 %v635
        %v908 = vunpack.c.l.b16 %v636
        %v909 = vunpack.c.h.b16 %v636
        %v910 = vunpack.c.l.b16 %v637
        %v911 = vunpack.c.h.b16 %v637
        %v912 = vunpack.c.l.b16 %v638
        %v913 = vunpack.c.h.b16 %v638
        %v914 = vunpack.c.l.b16 %v639
        %v915 = vunpack.c.h.b16 %v639
        %v916 = vunpack.c.l.b16 %v640
        %v917 = vunpack.c.h.b16 %v640
        %v918 = vunpack.c.l.b16 %v641
        %v919 = vunpack.c.h.b16 %v641
        %v920 = vunpack.c.l.b16 %v642
        %v921 = vunpack.c.h.b16 %v642
        %v922 = vunpack.c.l.b16 %v643
        %v923 = vunpack.c.h.b16 %v643
        %v924 = vunpack.c.l.b16 %v644
        %v925 = vunpack.c.h.b16 %v644
        %v926 = vunpack.c.l.b16 %v645
        %v927 = vunpack.c.h.b16 %v645
        %v928 = vunpack.c.l.b16 %v646
        %v929 = vunpack.c.h.b16 %v646
        %v930 = vunpack.c.l.b16 %v647
        %v931 = vunpack.c.h.b16 %v647
        %v932 = vunpack.c.l.b16 %v648
        %v933 = vunpack.c.h.b16 %v648
        %v934 = vunpack.c.l.b16 %v649
        %v935 = vunpack.c.h.b16 %v649
        %v936 = vunpack.c.l.b16 %v650
        %v937 = vunpack.c.h.b16 %v650
        %v938 = vunpack.c.l.b16 %v651
        %v939 = vunpack.c.h.b16 %v651
        %v940 = vunpack.c.l.b16 %v652
        %v941 = vunpack.c.h.b16 %v652
        %v942 = vunpack.c.l.b16 %v653
        %v943 = vunpack.c.h.b16 %v653
        %v944 = vunpack.c.l.b16 %v654
        %v945 = vunpack.c.h.b16 %v654
        %v946 = vunpack.c.l.b16 %v655
        %v947 = vunpack.c.h.b16 %v655
        %v948 = vunpack.c.l.b16 %v656
        %v949 = vunpack.c.h.b16 %v656
        %v950 = vunpack.c.l.b16 %v657
        %v951 = vunpack.c.h.b16 %v657
        %v952 = vunpack.c.l.b16 %v658
        %v953 = vunpack.c.h.b16 %v658
        %v954 = vunpack.c.l.b16 %v659
        %v955 = vunpack.c.h.b16 %v659
        %v956 = vunpack.c.l.b16 %v660
        %v957 = vunpack.c.h.b16 %v660
        %v958 = vunpack.c.l.b16 %v661
        %v959 = vunpack.c.h.b16 %v661
        %v960 = vunpack.c.l.b16 %v662
        %v961 = vunpack.c.h.b16 %v662
        %v962 = vunpack.c.l.b16 %v663
        %v963 = vunpack.c.h.b16 %v663
        %v964 = vunpack.c.l.b16 %v664
        %v965 = vunpack.c.h.b16 %v664
        %v966 = vunpack.c.l.b16 %v665
        %v967 = vunpack.c.h.b16 %v665
        %v968 = vpack.c.b16 %v782, %v776
        %v969 = vpack.c.b16 %v783, %v777
        %v970 = vpack.c.b16 %v784, %v778
        %v971 = vpack.c.b16 %v785, %v779
        %v972 = vpack.c.b16 %v786, %v780
        %v973 = vpack.c.b16 %v787, %v781
        %v974 = vpack.c.b16 %v794, %v788
        %v975 = vpack.c.b16 %v795, %v789
        %v976 = vpack.c.b16 %v796, %v790
        %v977 = vpack.c.b16 %v797, %v791
        %v978 = vpack.c.b16 %v798, %v792
        %v979 = vpack.c.b16 %v799, %v793
        %v980 = vpack.c.b16 %v806, %v800
        %v981 = vpack.c.b16 %v807, %v801
        %v982 = vpack.c.b16 %v808, %v802
        %v983 = vpack.c.b16 %v809, %v803
        %v984 = vpack.c.b16 %v810, %v804
        %v985 = vpack.c.b16 %v811, %v805
        %v986 = vpack.c.b16 %v818, %v812
        %v987 = vpack.c.b16 %v819, %v813
        %v988 = vpack.c.b16 %v820, %v814
        %v989 = vpack.c.b16 %v821, %v815
        %v990 = vpack.c.b16 %v822, %v816
        %v991 = vpack.c.b16 %v823, %v817
        %v992 = vpack.c.b16 %v830, %v824
        %v993 = vpack.c.b16 %v831, %v825
        %v994 = vpack.c.b16 %v832, %v826
        %v995 = vpack.c.b16 %v833, %v827
        %v996 = vpack.c.b16 %v834, %v828
        %v997 = vpack.c.b16 %v835, %v829
        %v998 = vpack.c.b16 %v842, %v836
        %v999 = vpack.c.b16 %v843, %v837
        %v1000 = vpack.c.b16 %v844, %v838
        %v1001 = vpack.c.b16 %v845, %v839
        %v1002 = vpack.c.b16 %v846, %v840
        %v1003 = vpack.c.b16 %v847, %v841
        %v1004 = vpack.c.b16 %v854, %v848
        %v1005 = vpack.c.b16 %v855, %v849
        %v1006 = vpack.c.b16 %v856, %v850
        %v1007 = vpack.c.b16 %v857, %v851
        %v1008 = vpack.c.b16 %v858, %v852
        %v1009 = vpack.c.b16 %v859, %v853
        %v1010 = vpack.c.b16 %v866, %v860
        %v1011 = vpack.c.b16 %v867, %v861
        %v1012 = vpack.c.b16 %v868, %v862
        %v1013 = vpack.c.b16 %v869, %v863
        %v1014 = vpack.c.b16 %v870, %v864
        %v1015 = vpack.c.b16 %v871, %v865
        %v1016 = vpack.c.b16 %v878, %v872
        %v1017 = vpack.c.b16 %v879, %v873
        %v1018 = vpack.c.b16 %v880, %v874
        %v1019 = vpack.c.b16 %v881, %v875
        %v1020 = vpack.c.b16 %v882, %v876
        %v1021 = vpack.c.b16 %v883, %v877
        %v1022 = vpack.c.b16 %v890, %v884
        %v1023 = vpack.c.b16 %v891, %v885
        %v1024 = vpack.c.b16 %v892, %v886
        %v1025 = vpack.c.b16 %v893, %v887
        %v1026 = vpack.c.b16 %v894, %v888
        %v1027 = vpack.c.b16 %v895, %v889
        %v1028 = vpack.c.b16 %v902, %v896
        %v1029 = vpack.c.b16 %v903, %v897
        %v1030 = vpack.c.b16 %v904, %v898
        %v1031 = vpack.c.b16 %v905, %v899
        %v1032 = vpack.c.b16 %v906, %v900
        %v1033 = vpack.c.b16 %v907, %v901
        %v1034 = vpack.c.b16 %v914, %v908
        %v1035 = vpack.c.b16 %v915, %v909
        %v1036 = vpack.c.b16 %v916, %v910
        %v1037 = vpack.c.b16 %v917, %v911
        %v1038 = vpack.c.b16 %v918, %v912
        %v1039 = vpack.c.b16 %v919, %v913
        %v1040 = vpack.c.b16 %v926, %v920
        %v1041 = vpack.c.b16 %v927, %v921
        %v1042 = vpack.c.b16 %v928, %v922
        %v1043 = vpack.c.b16 %v929, %v923
        %v1044 = vpack.c.b16 %v930, %v924
        %v1045 = vpack.c.b16 %v931, %v925
        %v1046 = vpack.c.b16 %v938, %v932
        %v1047 = vpack.c.b16 %v939, %v933
        %v1048 = vpack.c.b16 %v940, %v934
        %v1049 = vpack.c.b16 %v941, %v935
        %v1050 = vpack.c.b16 %v942, %v936
        %v1051 = vpack.c.b16 %v943, %v937
        %v1052 = vpack.c.b16 %v950, %v944
        %v1053 = vpack.c.b16 %v951, %v945
        %v1054 = vpack.c.b16 %v952, %v946
        %v1055 = vpack.c.b16 %v953, %v947
        %v1056 = vpack.c.b16 %v954, %v948
        %v1057 = vpack.c.b16 %v955, %v949
        %v1058 = vpack.c.b16 %v962, %v956
        %v1059 = vpack.c.b16 %v963, %v957
        %v1060 = vpack.c.b16 %v964, %v958
        %v1061 = vpack.c.b16 %v965, %v959
        %v1062 = vpack.c.b16 %v966, %v960
        %v1063 = vpack.c.b16 %v967, %v961
        %1160 = vmatpush.bf16.msra.mxu0 %v1010
        %1161 = vmatpush.bf16.msra.mxu0 %v1004
        %1162 = vmatpush.bf16.msra.mxu0 %v998
        %1163 = vmatpush.bf16.msra.mxu0 %v992
        %1164 = vmatpush.bf16.msra.mxu0 %v986
        %1165 = vmatpush.bf16.msra.mxu0 %v980
        %1166 = vmatpush.bf16.msra.mxu0 %v974
        %1167 = vmatpush.bf16.msra.mxu0 %v968
        %1168 = vmatmul.bf16.gmra.mxu0 %v568
        %v1169 = vpop.f32.mrf.mxu0
        %v1170 = vadd.f32 %v668, %v1169
        %v1171 = vpop.f32.mrf.mxu0
        %1172 = vdwg.mxu0
        %1173 = vmatpush.bf16.msra.mxu0 %v1058
        %1174 = vmatpush.bf16.msra.mxu0 %v1052
        %1175 = vmatpush.bf16.msra.mxu0 %v1046
        %1176 = vmatpush.bf16.msra.mxu0 %v1040
        %1177 = vmatpush.bf16.msra.mxu0 %v1034
        %1178 = vmatpush.bf16.msra.mxu0 %v1028
        %1179 = vmatpush.bf16.msra.mxu0 %v1022
        %1180 = vmatpush.bf16.msra.mxu0 %v1016
        %1181 = vmatmul.bf16.gmra.mxu0 %v569
        %v1182 = vpop.f32.mrf.mxu0
        %v1183 = vadd.f32 %v1170, %v1182
        %v1184 = vpop.f32.mrf.mxu0
        %1185 = vdwg.mxu0
        %1186 = vmatpush.bf16.msra.mxu0 %v1011
        %1187 = vmatpush.bf16.msra.mxu0 %v1005
        %1188 = vmatpush.bf16.msra.mxu0 %v999
        %1189 = vmatpush.bf16.msra.mxu0 %v993
        %1190 = vmatpush.bf16.msra.mxu0 %v987
        %1191 = vmatpush.bf16.msra.mxu0 %v981
        %1192 = vmatpush.bf16.msra.mxu0 %v975
        %1193 = vmatpush.bf16.msra.mxu0 %v969
        %1194 = vmatmul.bf16.gmra.mxu0 %v568
        %v1195 = vpop.f32.mrf.mxu0
        %v1196 = vadd.f32 %v669, %v1195
        %v1197 = vpop.f32.mrf.mxu0
        %1198 = vdwg.mxu0
        %1199 = vmatpush.bf16.msra.mxu0 %v1059
        %1200 = vmatpush.bf16.msra.mxu0 %v1053
        %1201 = vmatpush.bf16.msra.mxu0 %v1047
        %1202 = vmatpush.bf16.msra.mxu0 %v1041
        %1203 = vmatpush.bf16.msra.mxu0 %v1035
        %1204 = vmatpush.bf16.msra.mxu0 %v1029
        %1205 = vmatpush.bf16.msra.mxu0 %v1023
        %1206 = vmatpush.bf16.msra.mxu0 %v1017
        %1207 = vmatmul.bf16.gmra.mxu0 %v569
        %v1208 = vpop.f32.mrf.mxu0
        %v1209 = vadd.f32 %v1196, %v1208
        %v1210 = vpop.f32.mrf.mxu0
        %1211 = vdwg.mxu0
        %1212 = vmatpush.bf16.msra.mxu0 %v1012
        %1213 = vmatpush.bf16.msra.mxu0 %v1006
        %1214 = vmatpush.bf16.msra.mxu0 %v1000
        %1215 = vmatpush.bf16.msra.mxu0 %v994
        %1216 = vmatpush.bf16.msra.mxu0 %v988
        %1217 = vmatpush.bf16.msra.mxu0 %v982
        %1218 = vmatpush.bf16.msra.mxu0 %v976
        %1219 = vmatpush.bf16.msra.mxu0 %v970
        %1220 = vmatmul.bf16.gmra.mxu0 %v568
        %v1221 = vpop.f32.mrf.mxu0
        %v1222 = vadd.f32 %v670, %v1221
        %v1223 = vpop.f32.mrf.mxu0
        %1224 = vdwg.mxu0
        %1225 = vmatpush.bf16.msra.mxu0 %v1060
        %1226 = vmatpush.bf16.msra.mxu0 %v1054
        %1227 = vmatpush.bf16.msra.mxu0 %v1048
        %1228 = vmatpush.bf16.msra.mxu0 %v1042
        %1229 = vmatpush.bf16.msra.mxu0 %v1036
        %1230 = vmatpush.bf16.msra.mxu0 %v1030
        %1231 = vmatpush.bf16.msra.mxu0 %v1024
        %1232 = vmatpush.bf16.msra.mxu0 %v1018
        %1233 = vmatmul.bf16.gmra.mxu0 %v569
        %v1234 = vpop.f32.mrf.mxu0
        %v1235 = vadd.f32 %v1222, %v1234
        %v1236 = vpop.f32.mrf.mxu0
        %1237 = vdwg.mxu0
        %1238 = vmatpush.bf16.msra.mxu0 %v1013
        %1239 = vmatpush.bf16.msra.mxu0 %v1007
        %1240 = vmatpush.bf16.msra.mxu0 %v1001
        %1241 = vmatpush.bf16.msra.mxu0 %v995
        %1242 = vmatpush.bf16.msra.mxu0 %v989
        %1243 = vmatpush.bf16.msra.mxu0 %v983
        %1244 = vmatpush.bf16.msra.mxu0 %v977
        %1245 = vmatpush.bf16.msra.mxu0 %v971
        %1246 = vmatmul.bf16.gmra.mxu0 %v568
        %v1247 = vpop.f32.mrf.mxu0
        %v1248 = vadd.f32 %v671, %v1247
        %v1249 = vpop.f32.mrf.mxu0
        %1250 = vdwg.mxu0
        %1251 = vmatpush.bf16.msra.mxu0 %v1061
        %1252 = vmatpush.bf16.msra.mxu0 %v1055
        %1253 = vmatpush.bf16.msra.mxu0 %v1049
        %1254 = vmatpush.bf16.msra.mxu0 %v1043
        %1255 = vmatpush.bf16.msra.mxu0 %v1037
        %1256 = vmatpush.bf16.msra.mxu0 %v1031
        %1257 = vmatpush.bf16.msra.mxu0 %v1025
        %1258 = vmatpush.bf16.msra.mxu0 %v1019
        %1259 = vmatmul.bf16.gmra.mxu0 %v569
        %v1260 = vpop.f32.mrf.mxu0
        %v1261 = vadd.f32 %v1248, %v1260
        %v1262 = vpop.f32.mrf.mxu0
        %1263 = vdwg.mxu0
        %1264 = vmatpush.bf16.msra.mxu0 %v1014
        %1265 = vmatpush.bf16.msra.mxu0 %v1008
        %1266 = vmatpush.bf16.msra.mxu0 %v1002
        %1267 = vmatpush.bf16.msra.mxu0 %v996
        %1268 = vmatpush.bf16.msra.mxu0 %v990
        %1269 = vmatpush.bf16.msra.mxu0 %v984
        %1270 = vmatpush.bf16.msra.mxu0 %v978
        %1271 = vmatpush.bf16.msra.mxu0 %v972
        %1272 = vmatmul.bf16.gmra.mxu0 %v568
        %v1273 = vpop.f32.mrf.mxu0
        %v1274 = vadd.f32 %v672, %v1273
        %v1275 = vpop.f32.mrf.mxu0
        %1276 = vdwg.mxu0
        %1277 = vmatpush.bf16.msra.mxu0 %v1062
        %1278 = vmatpush.bf16.msra.mxu0 %v1056
        %1279 = vmatpush.bf16.msra.mxu0 %v1050
        %1280 = vmatpush.bf16.msra.mxu0 %v1044
        %1281 = vmatpush.bf16.msra.mxu0 %v1038
        %1282 = vmatpush.bf16.msra.mxu0 %v1032
        %1283 = vmatpush.bf16.msra.mxu0 %v1026
        %1284 = vmatpush.bf16.msra.mxu0 %v1020
        %1285 = vmatmul.bf16.gmra.mxu0 %v569
        %v1286 = vpop.f32.mrf.mxu0
        %v1287 = vadd.f32 %v1274, %v1286
        %v1288 = vpop.f32.mrf.mxu0
        %1289 = vdwg.mxu0
        %1290 = vmatpush.bf16.msra.mxu0 %v1015
        %1291 = vmatpush.bf16.msra.mxu0 %v1009
        %1292 = vmatpush.bf16.msra.mxu0 %v1003
        %1293 = vmatpush.bf16.msra.mxu0 %v997
        %1294 = vmatpush.bf16.msra.mxu0 %v991
        %1295 = vmatpush.bf16.msra.mxu0 %v985
        %1296 = vmatpush.bf16.msra.mxu0 %v979
        %1297 = vmatpush.bf16.msra.mxu0 %v973
        %1298 = vmatmul.bf16.gmra.mxu0 %v568
        %v1299 = vpop.f32.mrf.mxu0
        %v1300 = vadd.f32 %v673, %v1299
        %v1301 = vpop.f32.mrf.mxu0
        %1302 = vdwg.mxu0
        %1303 = vmatpush.bf16.msra.mxu0 %v1063
        %1304 = vmatpush.bf16.msra.mxu0 %v1057
        %1305 = vmatpush.bf16.msra.mxu0 %v1051
        %1306 = vmatpush.bf16.msra.mxu0 %v1045
        %1307 = vmatpush.bf16.msra.mxu0 %v1039
        %1308 = vmatpush.bf16.msra.mxu0 %v1033
        %1309 = vmatpush.bf16.msra.mxu0 %v1027
        %1310 = vmatpush.bf16.msra.mxu0 %v1021
        %1311 = vmatmul.bf16.gmra.mxu0 %v569
        %v1312 = vpop.f32.mrf.mxu0
        %v1313 = vadd.f32 %v1300, %v1312
        %v1314 = vpop.f32.mrf.mxu0
        %1315 = vdwg.mxu0
        %v1316 = vpack.c.bf16 %v1209, %v1183
        %v1317 = vpack.c.bf16 %v1261, %v1235
        %v1318 = vpack.c.bf16 %v1313, %v1287
        %v1320 = vrot.slane %v1316, 4
        %1321 = vrot.lane.b32.xlu0 %v1316, 96
        %v1322 = vpop.permute.xlu0 %1321
        %v1323 = vrot.slane %v1322, 4
        %1324 = vrot.lane.b32.xlu0 %v1316, 64
        %v1325 = vpop.permute.xlu0 %1324
        %v1326 = vrot.slane %v1325, 4
        %1327 = vrot.lane.b32.xlu0 %v1316, 32
        %v1328 = vpop.permute.xlu0 %1327
        %v1329 = vrot.slane %v1328, 4
        %v1331 = vrot.slane %v1317, 4
        %1332 = vrot.lane.b32.xlu0 %v1317, 96
        %v1333 = vpop.permute.xlu0 %1332
        %v1334 = vrot.slane %v1333, 4
        %1335 = vrot.lane.b32.xlu0 %v1317, 64
        %v1336 = vpop.permute.xlu0 %1335
        %v1337 = vrot.slane %v1336, 4
        %1338 = vrot.lane.b32.xlu0 %v1317, 32
        %v1339 = vpop.permute.xlu0 %1338
        %v1340 = vrot.slane %v1339, 4
        %v1342 = vrot.slane %v1318, 4
        %1343 = vrot.lane.b32.xlu0 %v1318, 96
        %v1344 = vpop.permute.xlu0 %1343
        %v1345 = vrot.slane %v1344, 4
        %1346 = vrot.lane.b32.xlu0 %v1318, 64
        %v1347 = vpop.permute.xlu0 %1346
        %v1348 = vrot.slane %v1347, 4
        %1349 = vrot.lane.b32.xlu0 %v1318, 32
        %v1350 = vpop.permute.xlu0 %1349
        %v1351 = vrot.slane %v1350, 4
        %vm1352 = vcmask 261120
        %v1354 = vsel %vm1352, %v1316, 0
        %v1357 = vsel %vm1352, %v1317, 0
        %1359 = vmatpush.bf16.xpose.msra.mxu0 0
        %1360 = vmatpush.bf16.xpose.msra.mxu0 0
        %1361 = vmatpush.bf16.xpose.msra.mxu0 0
        %1362 = vmatpush.bf16.xpose.msra.mxu0 0
        %1363 = vmatpush.bf16.xpose.msra.mxu0 0
        %1364 = vmatpush.bf16.xpose.msra.mxu0 0
        %1365 = vmatpush.bf16.xpose.msra.mxu0 0
        %1366 = vmatpush.bf16.xpose.msra.mxu0 %v1357
        %1367 = vmatmul.bf16.gmra.mxu0 %v1354
        %v1368 = vpop.f32.mrf.mxu0
        %v1369 = vadd.f32 0.0, %v1368
        %v1370 = vpop.f32.mrf.mxu0
        %1371 = vdwg.mxu0
        %v1373 = vsel %vm1352, %v1322, 0
        %v1376 = vsel %vm1352, %v1333, 0
        %1378 = vmatpush.bf16.xpose.msra.mxu0 0
        %1379 = vmatpush.bf16.xpose.msra.mxu0 0
        %1380 = vmatpush.bf16.xpose.msra.mxu0 0
        %1381 = vmatpush.bf16.xpose.msra.mxu0 0
        %1382 = vmatpush.bf16.xpose.msra.mxu0 0
        %1383 = vmatpush.bf16.xpose.msra.mxu0 0
        %1384 = vmatpush.bf16.xpose.msra.mxu0 0
        %1385 = vmatpush.bf16.xpose.msra.mxu0 %v1376
        %1386 = vmatmul.bf16.gmra.mxu0 %v1373
        %v1387 = vpop.f32.mrf.mxu0
        %v1388 = vadd.f32 0.0, %v1387
        %v1389 = vpop.f32.mrf.mxu0
        %1390 = vdwg.mxu0
        %v1392 = vsel %vm1352, %v1325, 0
        %v1395 = vsel %vm1352, %v1336, 0
        %1397 = vmatpush.bf16.xpose.msra.mxu0 0
        %1398 = vmatpush.bf16.xpose.msra.mxu0 0
        %1399 = vmatpush.bf16.xpose.msra.mxu0 0
        %1400 = vmatpush.bf16.xpose.msra.mxu0 0
        %1401 = vmatpush.bf16.xpose.msra.mxu0 0
        %1402 = vmatpush.bf16.xpose.msra.mxu0 0
        %1403 = vmatpush.bf16.xpose.msra.mxu0 0
        %1404 = vmatpush.bf16.xpose.msra.mxu0 %v1395
        %1405 = vmatmul.bf16.gmra.mxu0 %v1392
        %v1406 = vpop.f32.mrf.mxu0
        %v1407 = vadd.f32 0.0, %v1406
        %v1408 = vpop.f32.mrf.mxu0
        %1409 = vdwg.mxu0
        %v1411 = vsel %vm1352, %v1328, 0
        %v1414 = vsel %vm1352, %v1339, 0
        %1416 = vmatpush.bf16.xpose.msra.mxu0 0
        %1417 = vmatpush.bf16.xpose.msra.mxu0 0
        %1418 = vmatpush.bf16.xpose.msra.mxu0 0
        %1419 = vmatpush.bf16.xpose.msra.mxu0 0
        %1420 = vmatpush.bf16.xpose.msra.mxu0 0
        %1421 = vmatpush.bf16.xpose.msra.mxu0 0
        %1422 = vmatpush.bf16.xpose.msra.mxu0 0
        %1423 = vmatpush.bf16.xpose.msra.mxu0 %v1414
        %1424 = vmatmul.bf16.gmra.mxu0 %v1411
        %v1425 = vpop.f32.mrf.mxu0
        %v1426 = vadd.f32 0.0, %v1425
        %v1427 = vpop.f32.mrf.mxu0
        %1428 = vdwg.mxu0
        %v1430 = vsel %vm1352, %v1320, 0
        %v1433 = vsel %vm1352, %v1331, 0
        %1435 = vmatpush.bf16.xpose.msra.mxu0 0
        %1436 = vmatpush.bf16.xpose.msra.mxu0 0
        %1437 = vmatpush.bf16.xpose.msra.mxu0 0
        %1438 = vmatpush.bf16.xpose.msra.mxu0 0
        %1439 = vmatpush.bf16.xpose.msra.mxu0 0
        %1440 = vmatpush.bf16.xpose.msra.mxu0 0
        %1441 = vmatpush.bf16.xpose.msra.mxu0 0
        %1442 = vmatpush.bf16.xpose.msra.mxu0 %v1433
        %1443 = vmatmul.bf16.gmra.mxu0 %v1430
        %v1444 = vpop.f32.mrf.mxu0
        %v1445 = vadd.f32 0.0, %v1444
        %v1446 = vpop.f32.mrf.mxu0
        %1447 = vdwg.mxu0
        %v1449 = vsel %vm1352, %v1323, 0
        %v1452 = vsel %vm1352, %v1334, 0
        %1454 = vmatpush.bf16.xpose.msra.mxu0 0
        %1455 = vmatpush.bf16.xpose.msra.mxu0 0
        %1456 = vmatpush.bf16.xpose.msra.mxu0 0
        %1457 = vmatpush.bf16.xpose.msra.mxu0 0
        %1458 = vmatpush.bf16.xpose.msra.mxu0 0
        %1459 = vmatpush.bf16.xpose.msra.mxu0 0
        %1460 = vmatpush.bf16.xpose.msra.mxu0 0
        %1461 = vmatpush.bf16.xpose.msra.mxu0 %v1452
        %1462 = vmatmul.bf16.gmra.mxu0 %v1449
        %v1463 = vpop.f32.mrf.mxu0
        %v1464 = vadd.f32 0.0, %v1463
        %v1465 = vpop.f32.mrf.mxu0
        %1466 = vdwg.mxu0
        %v1468 = vsel %vm1352, %v1326, 0
        %v1471 = vsel %vm1352, %v1337, 0
        %1473 = vmatpush.bf16.xpose.msra.mxu0 0
        %1474 = vmatpush.bf16.xpose.msra.mxu0 0
        %1475 = vmatpush.bf16.xpose.msra.mxu0 0
        %1476 = vmatpush.bf16.xpose.msra.mxu0 0
        %1477 = vmatpush.bf16.xpose.msra.mxu0 0
        %1478 = vmatpush.bf16.xpose.msra.mxu0 0
        %1479 = vmatpush.bf16.xpose.msra.mxu0 0
        %1480 = vmatpush.bf16.xpose.msra.mxu0 %v1471
        %1481 = vmatmul.bf16.gmra.mxu0 %v1468
        %v1482 = vpop.f32.mrf.mxu0
        %v1483 = vadd.f32 0.0, %v1482
        %v1484 = vpop.f32.mrf.mxu0
        %1485 = vdwg.mxu0
        %v1487 = vsel %vm1352, %v1329, 0
        %v1490 = vsel %vm1352, %v1340, 0
        %1492 = vmatpush.bf16.xpose.msra.mxu0 0
        %1493 = vmatpush.bf16.xpose.msra.mxu0 0
        %1494 = vmatpush.bf16.xpose.msra.mxu0 0
        %1495 = vmatpush.bf16.xpose.msra.mxu0 0
        %1496 = vmatpush.bf16.xpose.msra.mxu0 0
        %1497 = vmatpush.bf16.xpose.msra.mxu0 0
        %1498 = vmatpush.bf16.xpose.msra.mxu0 0
        %1499 = vmatpush.bf16.xpose.msra.mxu0 %v1490
        %1500 = vmatmul.bf16.gmra.mxu0 %v1487
        %v1501 = vpop.f32.mrf.mxu0
        %v1502 = vadd.f32 0.0, %v1501
        %v1503 = vpop.f32.mrf.mxu0
        %1504 = vdwg.mxu0
        %v1505 = vmul.f32 %v1369, 0.17677669
        %v1506 = vmul.f32 %v1388, 0.17677669
        %v1507 = vmul.f32 %v1407, 0.17677669
        %v1508 = vmul.f32 %v1426, 0.17677669
        %v1509 = vmul.f32 %v1445, 0.17677669
        %v1510 = vmul.f32 %v1464, 0.17677669
        %v1511 = vmul.f32 %v1483, 0.17677669
        %v1512 = vmul.f32 %v1502, 0.17677669
        %vm1513 = vcmask 64512
        %v1514 = vsel %vm1513, %v1505, -inf
        %1515 = vmax.xlane.f32.xlu0 %v1514
        %v1516 = vpop.xlane.xlu0 %1515
        %v1517 = vsel %vm1513, %v1506, -inf
        %1518 = vmax.xlane.f32.xlu0 %v1517
        %v1519 = vpop.xlane.xlu0 %1518
        %v1520 = vsel %vm1513, %v1507, -inf
        %1521 = vmax.xlane.f32.xlu0 %v1520
        %v1522 = vpop.xlane.xlu0 %1521
        %v1523 = vsel %vm1513, %v1508, -inf
        %1524 = vmax.xlane.f32.xlu0 %v1523
        %v1525 = vpop.xlane.xlu0 %1524
        %v1526 = vsel %vm1513, %v1509, -inf
        %1527 = vmax.xlane.f32.xlu0 %v1526
        %v1528 = vpop.xlane.xlu0 %1527
        %v1529 = vsel %vm1513, %v1510, -inf
        %1530 = vmax.xlane.f32.xlu0 %v1529
        %v1531 = vpop.xlane.xlu0 %1530
        %v1532 = vsel %vm1513, %v1511, -inf
        %1533 = vmax.xlane.f32.xlu0 %v1532
        %v1534 = vpop.xlane.xlu0 %1533
        %v1535 = vsel %vm1513, %v1512, -inf
        %1536 = vmax.xlane.f32.xlu0 %v1535
        %v1537 = vpop.xlane.xlu0 %1536
        %v1538 = vsub.f32 %v1505, %v1516
        %v1539 = vsub.f32 %v1506, %v1519
        %v1540 = vsub.f32 %v1507, %v1522
        %v1541 = vsub.f32 %v1508, %v1525
        %v1542 = vsub.f32 %v1509, %v1528
        %v1543 = vsub.f32 %v1510, %v1531
        %v1544 = vsub.f32 %v1511, %v1534
        %v1545 = vsub.f32 %v1512, %v1537
        %v1546 = vmul.f32 %v1538, 1.442695
        %v1547 = vpow.pop %v1546
        %v1548 = vmul.f32 %v1539, 1.442695
        %v1549 = vpow.pop %v1548
        %v1550 = vmul.f32 %v1540, 1.442695
        %v1551 = vpow.pop %v1550
        %v1552 = vmul.f32 %v1541, 1.442695
        %v1553 = vpow.pop %v1552
        %v1554 = vmul.f32 %v1542, 1.442695
        %v1555 = vpow.pop %v1554
        %v1556 = vmul.f32 %v1543, 1.442695
        %v1557 = vpow.pop %v1556
        %v1558 = vmul.f32 %v1544, 1.442695
        %v1559 = vpow.pop %v1558
        %v1560 = vmul.f32 %v1545, 1.442695
        %v1561 = vpow.pop %v1560
        %v1562 = vsel %vm1513, %v1547, 0.0
        %1563 = vadd.xlane.f32.xlu0 %v1562
        %v1564 = vpop.xlane.xlu0 %1563
        %v1565 = vsel %vm1513, %v1549, 0.0
        %1566 = vadd.xlane.f32.xlu0 %v1565
        %v1567 = vpop.xlane.xlu0 %1566
        %v1568 = vsel %vm1513, %v1551, 0.0
        %1569 = vadd.xlane.f32.xlu0 %v1568
        %v1570 = vpop.xlane.xlu0 %1569
        %v1571 = vsel %vm1513, %v1553, 0.0
        %1572 = vadd.xlane.f32.xlu0 %v1571
        %v1573 = vpop.xlane.xlu0 %1572
        %v1574 = vsel %vm1513, %v1555, 0.0
        %1575 = vadd.xlane.f32.xlu0 %v1574
        %v1576 = vpop.xlane.xlu0 %1575
        %v1577 = vsel %vm1513, %v1557, 0.0
        %1578 = vadd.xlane.f32.xlu0 %v1577
        %v1579 = vpop.xlane.xlu0 %1578
        %v1580 = vsel %vm1513, %v1559, 0.0
        %1581 = vadd.xlane.f32.xlu0 %v1580
        %v1582 = vpop.xlane.xlu0 %1581
        %v1583 = vsel %vm1513, %v1561, 0.0
        %1584 = vadd.xlane.f32.xlu0 %v1583
        %v1585 = vpop.xlane.xlu0 %1584
        %v1586 = vrcp.pop %v1564
        %v1587 = vrcp.pop %v1567
        %v1588 = vrcp.pop %v1570
        %v1589 = vrcp.pop %v1573
        %v1590 = vrcp.pop %v1576
        %v1591 = vrcp.pop %v1579
        %v1592 = vrcp.pop %v1582
        %v1593 = vrcp.pop %v1585
        %v1594 = vmul.f32 %v1547, %v1586
        %v1595 = vmul.f32 %v1549, %v1587
        %v1596 = vmul.f32 %v1551, %v1588
        %v1597 = vmul.f32 %v1553, %v1589
        %v1598 = vmul.f32 %v1555, %v1590
        %v1599 = vmul.f32 %v1557, %v1591
        %v1600 = vmul.f32 %v1559, %v1592
        %v1601 = vmul.f32 %v1561, %v1593
        %v1602 = vpack.c.bf16 %v1594, %v1594
        %v1603 = vpack.c.bf16 %v1595, %v1595
        %v1604 = vpack.c.bf16 %v1596, %v1596
        %v1605 = vpack.c.bf16 %v1597, %v1597
        %v1606 = vpack.c.bf16 %v1598, %v1598
        %v1607 = vpack.c.bf16 %v1599, %v1599
        %v1608 = vpack.c.bf16 %v1600, %v1600
        %v1609 = vpack.c.bf16 %v1601, %v1601
        %v1611 = vsel %vm1513, %v1602, 0
        %vm1613 = vcmask 1043456
        %v1615 = vsel %vm1613, %v1318, 0
        %1617 = vmatpush.bf16.msra.mxu0 0
        %1618 = vmatpush.bf16.msra.mxu0 0
        %1619 = vmatpush.bf16.msra.mxu0 0
        %1620 = vmatpush.bf16.msra.mxu0 0
        %1621 = vmatpush.bf16.msra.mxu0 0
        %1622 = vmatpush.bf16.msra.mxu0 0
        %1623 = vmatpush.bf16.msra.mxu0 0
        %1624 = vmatpush.bf16.msra.mxu0 %v1615
        %1625 = vmatmul.bf16.gmra.mxu0 %v1611
        %v1626 = vpop.f32.mrf.mxu0
        %v1627 = vadd.f32 0.0, %v1626
        %v1628 = vpop.f32.mrf.mxu0
        %1629 = vdwg.mxu0
        %v1631 = vsel %vm1513, %v1603, 0
        %v1634 = vsel %vm1613, %v1344, 0
        %1636 = vmatpush.bf16.msra.mxu0 0
        %1637 = vmatpush.bf16.msra.mxu0 0
        %1638 = vmatpush.bf16.msra.mxu0 0
        %1639 = vmatpush.bf16.msra.mxu0 0
        %1640 = vmatpush.bf16.msra.mxu0 0
        %1641 = vmatpush.bf16.msra.mxu0 0
        %1642 = vmatpush.bf16.msra.mxu0 0
        %1643 = vmatpush.bf16.msra.mxu0 %v1634
        %1644 = vmatmul.bf16.gmra.mxu0 %v1631
        %v1645 = vpop.f32.mrf.mxu0
        %v1646 = vadd.f32 0.0, %v1645
        %v1647 = vpop.f32.mrf.mxu0
        %1648 = vdwg.mxu0
        %v1650 = vsel %vm1513, %v1604, 0
        %v1653 = vsel %vm1613, %v1347, 0
        %1655 = vmatpush.bf16.msra.mxu0 0
        %1656 = vmatpush.bf16.msra.mxu0 0
        %1657 = vmatpush.bf16.msra.mxu0 0
        %1658 = vmatpush.bf16.msra.mxu0 0
        %1659 = vmatpush.bf16.msra.mxu0 0
        %1660 = vmatpush.bf16.msra.mxu0 0
        %1661 = vmatpush.bf16.msra.mxu0 0
        %1662 = vmatpush.bf16.msra.mxu0 %v1653
        %1663 = vmatmul.bf16.gmra.mxu0 %v1650
        %v1664 = vpop.f32.mrf.mxu0
        %v1665 = vadd.f32 0.0, %v1664
        %v1666 = vpop.f32.mrf.mxu0
        %1667 = vdwg.mxu0
        %v1669 = vsel %vm1513, %v1605, 0
        %v1672 = vsel %vm1613, %v1350, 0
        %1674 = vmatpush.bf16.msra.mxu0 0
        %1675 = vmatpush.bf16.msra.mxu0 0
        %1676 = vmatpush.bf16.msra.mxu0 0
        %1677 = vmatpush.bf16.msra.mxu0 0
        %1678 = vmatpush.bf16.msra.mxu0 0
        %1679 = vmatpush.bf16.msra.mxu0 0
        %1680 = vmatpush.bf16.msra.mxu0 0
        %1681 = vmatpush.bf16.msra.mxu0 %v1672
        %1682 = vmatmul.bf16.gmra.mxu0 %v1669
        %v1683 = vpop.f32.mrf.mxu0
        %v1684 = vadd.f32 0.0, %v1683
        %v1685 = vpop.f32.mrf.mxu0
        %1686 = vdwg.mxu0
        %v1688 = vsel %vm1513, %v1606, 0
        %v1691 = vsel %vm1613, %v1342, 0
        %1693 = vmatpush.bf16.msra.mxu0 0
        %1694 = vmatpush.bf16.msra.mxu0 0
        %1695 = vmatpush.bf16.msra.mxu0 0
        %1696 = vmatpush.bf16.msra.mxu0 0
        %1697 = vmatpush.bf16.msra.mxu0 0
        %1698 = vmatpush.bf16.msra.mxu0 0
        %1699 = vmatpush.bf16.msra.mxu0 0
        %1700 = vmatpush.bf16.msra.mxu0 %v1691
        %1701 = vmatmul.bf16.gmra.mxu0 %v1688
        %v1702 = vpop.f32.mrf.mxu0
        %v1703 = vadd.f32 0.0, %v1702
        %v1704 = vpop.f32.mrf.mxu0
        %1705 = vdwg.mxu0
        %v1707 = vsel %vm1513, %v1607, 0
        %v1710 = vsel %vm1613, %v1345, 0
        %1712 = vmatpush.bf16.msra.mxu0 0
        %1713 = vmatpush.bf16.msra.mxu0 0
        %1714 = vmatpush.bf16.msra.mxu0 0
        %1715 = vmatpush.bf16.msra.mxu0 0
        %1716 = vmatpush.bf16.msra.mxu0 0
        %1717 = vmatpush.bf16.msra.mxu0 0
        %1718 = vmatpush.bf16.msra.mxu0 0
        %1719 = vmatpush.bf16.msra.mxu0 %v1710
        %1720 = vmatmul.bf16.gmra.mxu0 %v1707
        %v1721 = vpop.f32.mrf.mxu0
        %v1722 = vadd.f32 0.0, %v1721
        %v1723 = vpop.f32.mrf.mxu0
        %1724 = vdwg.mxu0
        %v1726 = vsel %vm1513, %v1608, 0
        %v1729 = vsel %vm1613, %v1348, 0
        %1731 = vmatpush.bf16.msra.mxu0 0
        %1732 = vmatpush.bf16.msra.mxu0 0
        %1733 = vmatpush.bf16.msra.mxu0 0
        %1734 = vmatpush.bf16.msra.mxu0 0
        %1735 = vmatpush.bf16.msra.mxu0 0
        %1736 = vmatpush.bf16.msra.mxu0 0
        %1737 = vmatpush.bf16.msra.mxu0 0
        %1738 = vmatpush.bf16.msra.mxu0 %v1729
        %1739 = vmatmul.bf16.gmra.mxu0 %v1726
        %v1740 = vpop.f32.mrf.mxu0
        %v1741 = vadd.f32 0.0, %v1740
        %v1742 = vpop.f32.mrf.mxu0
        %1743 = vdwg.mxu0
        %v1745 = vsel %vm1513, %v1609, 0
        %v1748 = vsel %vm1613, %v1351, 0
        %1750 = vmatpush.bf16.msra.mxu0 0
        %1751 = vmatpush.bf16.msra.mxu0 0
        %1752 = vmatpush.bf16.msra.mxu0 0
        %1753 = vmatpush.bf16.msra.mxu0 0
        %1754 = vmatpush.bf16.msra.mxu0 0
        %1755 = vmatpush.bf16.msra.mxu0 0
        %1756 = vmatpush.bf16.msra.mxu0 0
        %1757 = vmatpush.bf16.msra.mxu0 %v1748
        %1758 = vmatmul.bf16.gmra.mxu0 %v1745
        %v1759 = vpop.f32.mrf.mxu0
        %v1760 = vadd.f32 0.0, %v1759
        %v1761 = vpop.f32.mrf.mxu0
        %1762 = vdwg.mxu0
        %1764 = vrot.lane.b32.xlu0 %v1646, 32
        %v1765 = vpop.permute.xlu0 %1764
        %1768 = vrot.lane.b32.xlu0 %v1665, 64
        %v1769 = vpop.permute.xlu0 %1768
        %1772 = vrot.lane.b32.xlu0 %v1684, 96
        %v1773 = vpop.permute.xlu0 %1772
        %1776 = vrot.lane.b32.xlu0 %v1722, 32
        %v1777 = vpop.permute.xlu0 %1776
        %1780 = vrot.lane.b32.xlu0 %v1741, 64
        %v1781 = vpop.permute.xlu0 %1780
        %1784 = vrot.lane.b32.xlu0 %v1760, 96
        %v1785 = vpop.permute.xlu0 %1784
        %v1787 = vsel %vm1352, %v1627, %v1765
        %vm1788 = vcmask 523264
        %v1789 = vsel %vm1788, %v1787, %v1769
        %vm1790 = vcmask 785408
        %v1791 = vsel %vm1790, %v1789, %v1773
        %v1792 = vsel %vm1352, %v1703, %v1777
        %v1793 = vsel %vm1788, %v1792, %v1781
        %v1794 = vsel %vm1790, %v1793, %v1785
        %v1795 = vpack.c.bf16 %v1791, %v1791
        %v1796 = vpack.c.bf16 %v1794, %v1794
        %v1797 = vld [vmem:[#allocation4] sm:$0xff]
        %v1798 = vld [vmem:[#allocation4 + $0x8] sm:$0xff]
        %v1799 = vld [vmem:[#allocation4 + $0x10] sm:$0xff]
        %v1800 = vld [vmem:[#allocation4 + $0x18] sm:$0xff]
        %v1801 = vld [vmem:[#allocation4 + $0x20] sm:$0xff]
        %v1802 = vld [vmem:[#allocation4 + $0x28] sm:$0xff]
        %v1803 = vld [vmem:[#allocation4 + $0x30] sm:$0xff]
        %v1804 = vld [vmem:[#allocation4 + $0x38] sm:$0xff]
        %v1805 = vld [vmem:[#allocation4 + $0x40] sm:$0xff]
        %v1806 = vld [vmem:[#allocation4 + $0x48] sm:$0xff]
        %v1807 = vld [vmem:[#allocation4 + $0x50] sm:$0xff]
        %v1808 = vld [vmem:[#allocation4 + $0x58] sm:$0xff]
        %v1809 = vld [vmem:[#allocation4 + $0x60] sm:$0xff]
        %v1810 = vld [vmem:[#allocation4 + $0x68] sm:$0xff]
        %v1811 = vld [vmem:[#allocation4 + $0x70] sm:$0xff]
        %v1812 = vld [vmem:[#allocation4 + $0x78] sm:$0xff]
        %v1813 = vld [vmem:[#allocation4 + $0x80] sm:$0xff]
        %v1814 = vld [vmem:[#allocation4 + $0x88] sm:$0xff]
        %v1815 = vld [vmem:[#allocation4 + $0x90] sm:$0xff]
        %v1816 = vld [vmem:[#allocation4 + $0x98] sm:$0xff]
        %v1817 = vld [vmem:[#allocation4 + $0xa0] sm:$0xff]
        %v1818 = vld [vmem:[#allocation4 + $0xa8] sm:$0xff]
        %v1819 = vld [vmem:[#allocation4 + $0xb0] sm:$0xff]
        %v1820 = vld [vmem:[#allocation4 + $0xb8] sm:$0xff]
        %v1821 = vld [vmem:[#allocation4 + $0xc0] sm:$0xff]
        %v1822 = vld [vmem:[#allocation4 + $0xc8] sm:$0xff]
        %v1823 = vld [vmem:[#allocation4 + $0xd0] sm:$0xff]
        %v1824 = vld [vmem:[#allocation4 + $0xd8] sm:$0xff]
        %v1825 = vld [vmem:[#allocation4 + $0xe0] sm:$0xff]
        %v1826 = vld [vmem:[#allocation4 + $0xe8] sm:$0xff]
        %v1827 = vld [vmem:[#allocation4 + $0xf0] sm:$0xff]
        %v1828 = vld [vmem:[#allocation4 + $0xf8] sm:$0xff]
        %v1829 = vld [vmem:[%s4] sm:$0x3]
        %v1831 = vperm.slane %v1829, 0
        %v1832 = vperm.slane %v1829, 1
        %v1867 = vunpack.c.l.b16 %v1797
        %v1868 = vunpack.c.h.b16 %v1797
        %v1869 = vunpack.c.l.b16 %v1798
        %v1870 = vunpack.c.h.b16 %v1798
        %v1871 = vunpack.c.l.b16 %v1799
        %v1872 = vunpack.c.h.b16 %v1799
        %v1873 = vunpack.c.l.b16 %v1800
        %v1874 = vunpack.c.h.b16 %v1800
        %v1875 = vunpack.c.l.b16 %v1801
        %v1876 = vunpack.c.h.b16 %v1801
        %v1877 = vunpack.c.l.b16 %v1802
        %v1878 = vunpack.c.h.b16 %v1802
        %v1879 = vunpack.c.l.b16 %v1803
        %v1880 = vunpack.c.h.b16 %v1803
        %v1881 = vunpack.c.l.b16 %v1804
        %v1882 = vunpack.c.h.b16 %v1804
        %v1883 = vunpack.c.l.b16 %v1805
        %v1884 = vunpack.c.h.b16 %v1805
        %v1885 = vunpack.c.l.b16 %v1806
        %v1886 = vunpack.c.h.b16 %v1806
        %v1887 = vunpack.c.l.b16 %v1807
        %v1888 = vunpack.c.h.b16 %v1807
        %v1889 = vunpack.c.l.b16 %v1808
        %v1890 = vunpack.c.h.b16 %v1808
        %v1891 = vunpack.c.l.b16 %v1809
        %v1892 = vunpack.c.h.b16 %v1809
        %v1893 = vunpack.c.l.b16 %v1810
        %v1894 = vunpack.c.h.b16 %v1810
        %v1895 = vunpack.c.l.b16 %v1811
        %v1896 = vunpack.c.h.b16 %v1811
        %v1897 = vunpack.c.l.b16 %v1812
        %v1898 = vunpack.c.h.b16 %v1812
        %v1899 = vunpack.c.l.b16 %v1813
        %v1900 = vunpack.c.h.b16 %v1813
        %v1901 = vunpack.c.l.b16 %v1814
        %v1902 = vunpack.c.h.b16 %v1814
        %v1903 = vunpack.c.l.b16 %v1815
        %v1904 = vunpack.c.h.b16 %v1815
        %v1905 = vunpack.c.l.b16 %v1816
        %v1906 = vunpack.c.h.b16 %v1816
        %v1907 = vunpack.c.l.b16 %v1817
        %v1908 = vunpack.c.h.b16 %v1817
        %v1909 = vunpack.c.l.b16 %v1818
        %v1910 = vunpack.c.h.b16 %v1818
        %v1911 = vunpack.c.l.b16 %v1819
        %v1912 = vunpack.c.h.b16 %v1819
        %v1913 = vunpack.c.l.b16 %v1820
        %v1914 = vunpack.c.h.b16 %v1820
        %v1915 = vunpack.c.l.b16 %v1821
        %v1916 = vunpack.c.h.b16 %v1821
        %v1917 = vunpack.c.l.b16 %v1822
        %v1918 = vunpack.c.h.b16 %v1822
        %v1919 = vunpack.c.l.b16 %v1823
        %v1920 = vunpack.c.h.b16 %v1823
        %v1921 = vunpack.c.l.b16 %v1824
        %v1922 = vunpack.c.h.b16 %v1824
        %v1923 = vunpack.c.l.b16 %v1825
        %v1924 = vunpack.c.h.b16 %v1825
        %v1925 = vunpack.c.l.b16 %v1826
        %v1926 = vunpack.c.h.b16 %v1826
        %v1927 = vunpack.c.l.b16 %v1827
        %v1928 = vunpack.c.h.b16 %v1827
        %v1929 = vunpack.c.l.b16 %v1828
        %v1930 = vunpack.c.h.b16 %v1828
        %v1931 = vpack.c.b16 %v1869, %v1867
        %v1932 = vpack.c.b16 %v1870, %v1868
        %v1933 = vpack.c.b16 %v1873, %v1871
        %v1934 = vpack.c.b16 %v1874, %v1872
        %v1935 = vpack.c.b16 %v1877, %v1875
        %v1936 = vpack.c.b16 %v1878, %v1876
        %v1937 = vpack.c.b16 %v1881, %v1879
        %v1938 = vpack.c.b16 %v1882, %v1880
        %v1939 = vpack.c.b16 %v1885, %v1883
        %v1940 = vpack.c.b16 %v1886, %v1884
        %v1941 = vpack.c.b16 %v1889, %v1887
        %v1942 = vpack.c.b16 %v1890, %v1888
        %v1943 = vpack.c.b16 %v1893, %v1891
        %v1944 = vpack.c.b16 %v1894, %v1892
        %v1945 = vpack.c.b16 %v1897, %v1895
        %v1946 = vpack.c.b16 %v1898, %v1896
        %v1947 = vpack.c.b16 %v1901, %v1899
        %v1948 = vpack.c.b16 %v1902, %v1900
        %v1949 = vpack.c.b16 %v1905, %v1903
        %v1950 = vpack.c.b16 %v1906, %v1904
        %v1951 = vpack.c.b16 %v1909, %v1907
        %v1952 = vpack.c.b16 %v1910, %v1908
        %v1953 = vpack.c.b16 %v1913, %v1911
        %v1954 = vpack.c.b16 %v1914, %v1912
        %v1955 = vpack.c.b16 %v1917, %v1915
        %v1956 = vpack.c.b16 %v1918, %v1916
        %v1957 = vpack.c.b16 %v1921, %v1919
        %v1958 = vpack.c.b16 %v1922, %v1920
        %v1959 = vpack.c.b16 %v1925, %v1923
        %v1960 = vpack.c.b16 %v1926, %v1924
        %v1961 = vpack.c.b16 %v1929, %v1927
        %v1962 = vpack.c.b16 %v1930, %v1928
        %1995 = vmatpush.bf16.msra.mxu0 %v1945
        %1996 = vmatpush.bf16.msra.mxu0 %v1943
        %1997 = vmatpush.bf16.msra.mxu0 %v1941
        %1998 = vmatpush.bf16.msra.mxu0 %v1939
        %1999 = vmatpush.bf16.msra.mxu0 %v1937
        %2000 = vmatpush.bf16.msra.mxu0 %v1935
        %2001 = vmatpush.bf16.msra.mxu0 %v1933
        %2002 = vmatpush.bf16.msra.mxu0 %v1931
        %2003 = vmatmul.bf16.gmra.mxu0 %v1795
        %v2004 = vpop.f32.mrf.mxu0
        %v2005 = vadd.f32 %v1831, %v2004
        %v2006 = vpop.f32.mrf.mxu0
        %2007 = vdwg.mxu0
        %2008 = vmatpush.bf16.msra.mxu0 %v1961
        %2009 = vmatpush.bf16.msra.mxu0 %v1959
        %2010 = vmatpush.bf16.msra.mxu0 %v1957
        %2011 = vmatpush.bf16.msra.mxu0 %v1955
        %2012 = vmatpush.bf16.msra.mxu0 %v1953
        %2013 = vmatpush.bf16.msra.mxu0 %v1951
        %2014 = vmatpush.bf16.msra.mxu0 %v1949
        %2015 = vmatpush.bf16.msra.mxu0 %v1947
        %2016 = vmatmul.bf16.gmra.mxu0 %v1796
        %v2017 = vpop.f32.mrf.mxu0
        %v2018 = vadd.f32 %v2005, %v2017
        %v2019 = vpop.f32.mrf.mxu0
        %2020 = vdwg.mxu0
        %2021 = vmatpush.bf16.msra.mxu0 %v1946
        %2022 = vmatpush.bf16.msra.mxu0 %v1944
        %2023 = vmatpush.bf16.msra.mxu0 %v1942
        %2024 = vmatpush.bf16.msra.mxu0 %v1940
        %2025 = vmatpush.bf16.msra.mxu0 %v1938
        %2026 = vmatpush.bf16.msra.mxu0 %v1936
        %2027 = vmatpush.bf16.msra.mxu0 %v1934
        %2028 = vmatpush.bf16.msra.mxu0 %v1932
        %2029 = vmatmul.bf16.gmra.mxu0 %v1795
        %v2030 = vpop.f32.mrf.mxu0
        %v2031 = vadd.f32 %v1832, %v2030
        %v2032 = vpop.f32.mrf.mxu0
        %2033 = vdwg.mxu0
        %2034 = vmatpush.bf16.msra.mxu0 %v1962
        %2035 = vmatpush.bf16.msra.mxu0 %v1960
        %2036 = vmatpush.bf16.msra.mxu0 %v1958
        %2037 = vmatpush.bf16.msra.mxu0 %v1956
        %2038 = vmatpush.bf16.msra.mxu0 %v1954
        %2039 = vmatpush.bf16.msra.mxu0 %v1952
        %2040 = vmatpush.bf16.msra.mxu0 %v1950
        %2041 = vmatpush.bf16.msra.mxu0 %v1948
        %2042 = vmatmul.bf16.gmra.mxu0 %v1796
        %v2043 = vpop.f32.mrf.mxu0
        %v2044 = vadd.f32 %v2031, %v2043
        %v2045 = vpop.f32.mrf.mxu0
        %2046 = vdwg.mxu0
        %v2047 = vadd.f32 %v566, %v2018
        %v2048 = vadd.f32 %v567, %v2044
        %v2049 = vld [vmem:[%s9] sm:$0x3]
        %v2050 = vld [vmem:[%s10] sm:$0x3]
        %v2051 = vadd.f32 %v2047, %v2048
        %2052 = vadd.xlane.f32.xlu0 %v2051
        %v2053 = vpop.xlane.xlu0 %2052
        %v2054 = vrcp.pop 256.0
        %v2055 = vmul.f32 256.0, %v2054
        %v2056 = vsub.f32 1.0, %v2055
        %v2057 = vmul.f32 %v2054, %v2056
        %v2058 = vadd.f32 %v2054, %v2057
        %vm2059 = vweird.f32 %v2054
        %v2060 = vsel %vm2059, %v2054, %v2058
        %v2061 = vmul.f32 %v2053, %v2060
        %v2062 = vsub.f32 %v2047, %v2061
        %v2063 = vsub.f32 %v2048, %v2061
        %v2064 = vmul.f32 %v2062, %v2062
        %v2065 = vmul.f32 %v2063, %v2063
        %v2066 = vadd.f32 %v2064, %v2065
        %2067 = vadd.xlane.f32.xlu0 %v2066
        %v2068 = vpop.xlane.xlu0 %2067
        %v2069 = vmul.f32 %v2068, %v2060
        %v2070 = vadd.f32 %v2069, 1e-05
        %v2071 = vrsqrt.pop %v2070
        %v2072 = vmul.f32 %v2071, %v2070
        %v2073 = vmul.f32 %v2072, %v2071
        %v2074 = vmul.f32 0.5, %v2073
        %v2075 = vsub.f32 1.5, %v2074
        %v2076 = vmul.f32 %v2071, %v2075
        %vm2077 = vweird.f32 %v2070
        %vm2078 = vweird.f32 %v2071
        %vm2079 = vmor %vm2077, %vm2078
        %v2080 = vsel %vm2079, %v2071, %v2076
        %v2081 = vmul.f32 %v2062, %v2080
        %v2082 = vmul.f32 %v2063, %v2080
        %v2084 = vperm.slane %v2049, 0
        %v2085 = vperm.slane %v2049, 1
        %v2088 = vmul.f32 %v2081, %v2084
        %v2089 = vmul.f32 %v2082, %v2085
        %v2091 = vperm.slane %v2050, 0
        %v2092 = vperm.slane %v2050, 1
        %v2095 = vadd.f32 %v2088, %v2091
        %v2096 = vadd.f32 %v2089, %v2092
        %v2097 = vpack.c.bf16 %v2095, %v2095
        %v2098 = vpack.c.bf16 %v2096, %v2096
        %v2099 = vld [vmem:[#allocation6] sm:$0xff]
        %v2100 = vld [vmem:[#allocation6 + $0x8] sm:$0xff]
        %v2101 = vld [vmem:[#allocation6 + $0x10] sm:$0xff]
        %v2102 = vld [vmem:[#allocation6 + $0x18] sm:$0xff]
        %v2103 = vld [vmem:[#allocation6 + $0x20] sm:$0xff]
        %v2104 = vld [vmem:[#allocation6 + $0x28] sm:$0xff]
        %v2105 = vld [vmem:[#allocation6 + $0x30] sm:$0xff]
        %v2106 = vld [vmem:[#allocation6 + $0x38] sm:$0xff]
        %v2107 = vld [vmem:[#allocation6 + $0x40] sm:$0xff]
        %v2108 = vld [vmem:[#allocation6 + $0x48] sm:$0xff]
        %v2109 = vld [vmem:[#allocation6 + $0x50] sm:$0xff]
        %v2110 = vld [vmem:[#allocation6 + $0x58] sm:$0xff]
        %v2111 = vld [vmem:[#allocation6 + $0x60] sm:$0xff]
        %v2112 = vld [vmem:[#allocation6 + $0x68] sm:$0xff]
        %v2113 = vld [vmem:[#allocation6 + $0x70] sm:$0xff]
        %v2114 = vld [vmem:[#allocation6 + $0x78] sm:$0xff]
        %v2115 = vld [vmem:[#allocation6 + $0x80] sm:$0xff]
        %v2116 = vld [vmem:[#allocation6 + $0x88] sm:$0xff]
        %v2117 = vld [vmem:[#allocation6 + $0x90] sm:$0xff]
        %v2118 = vld [vmem:[#allocation6 + $0x98] sm:$0xff]
        %v2119 = vld [vmem:[#allocation6 + $0xa0] sm:$0xff]
        %v2120 = vld [vmem:[#allocation6 + $0xa8] sm:$0xff]
        %v2121 = vld [vmem:[#allocation6 + $0xb0] sm:$0xff]
        %v2122 = vld [vmem:[#allocation6 + $0xb8] sm:$0xff]
        %v2123 = vld [vmem:[#allocation6 + $0xc0] sm:$0xff]
        %v2124 = vld [vmem:[#allocation6 + $0xc8] sm:$0xff]
        %v2125 = vld [vmem:[#allocation6 + $0xd0] sm:$0xff]
        %v2126 = vld [vmem:[#allocation6 + $0xd8] sm:$0xff]
        %v2127 = vld [vmem:[#allocation6 + $0xe0] sm:$0xff]
        %v2128 = vld [vmem:[#allocation6 + $0xe8] sm:$0xff]
        %v2129 = vld [vmem:[#allocation6 + $0xf0] sm:$0xff]
        %v2130 = vld [vmem:[#allocation6 + $0xf8] sm:$0xff]
        %v2131 = vld [vmem:[#allocation6 + $0x100] sm:$0xff]
        %v2132 = vld [vmem:[#allocation6 + $0x108] sm:$0xff]
        %v2133 = vld [vmem:[#allocation6 + $0x110] sm:$0xff]
        %v2134 = vld [vmem:[#allocation6 + $0x118] sm:$0xff]
        %v2135 = vld [vmem:[#allocation6 + $0x120] sm:$0xff]
        %v2136 = vld [vmem:[#allocation6 + $0x128] sm:$0xff]
        %v2137 = vld [vmem:[#allocation6 + $0x130] sm:$0xff]
        %v2138 = vld [vmem:[#allocation6 + $0x138] sm:$0xff]
        %v2139 = vld [vmem:[#allocation6 + $0x140] sm:$0xff]
        %v2140 = vld [vmem:[#allocation6 + $0x148] sm:$0xff]
        %v2141 = vld [vmem:[#allocation6 + $0x150] sm:$0xff]
        %v2142 = vld [vmem:[#allocation6 + $0x158] sm:$0xff]
        %v2143 = vld [vmem:[#allocation6 + $0x160] sm:$0xff]
        %v2144 = vld [vmem:[#allocation6 + $0x168] sm:$0xff]
        %v2145 = vld [vmem:[#allocation6 + $0x170] sm:$0xff]
        %v2146 = vld [vmem:[#allocation6 + $0x178] sm:$0xff]
        %v2147 = vld [vmem:[#allocation6 + $0x180] sm:$0xff]
        %v2148 = vld [vmem:[#allocation6 + $0x188] sm:$0xff]
        %v2149 = vld [vmem:[#allocation6 + $0x190] sm:$0xff]
        %v2150 = vld [vmem:[#allocation6 + $0x198] sm:$0xff]
        %v2151 = vld [vmem:[#allocation6 + $0x1a0] sm:$0xff]
        %v2152 = vld [vmem:[#allocation6 + $0x1a8] sm:$0xff]
        %v2153 = vld [vmem:[#allocation6 + $0x1b0] sm:$0xff]
        %v2154 = vld [vmem:[#allocation6 + $0x1b8] sm:$0xff]
        %v2155 = vld [vmem:[#allocation6 + $0x1c0] sm:$0xff]
        %v2156 = vld [vmem:[#allocation6 + $0x1c8] sm:$0xff]
        %v2157 = vld [vmem:[#allocation6 + $0x1d0] sm:$0xff]
        %v2158 = vld [vmem:[#allocation6 + $0x1d8] sm:$0xff]
        %v2159 = vld [vmem:[#allocation6 + $0x1e0] sm:$0xff]
        %v2160 = vld [vmem:[#allocation6 + $0x1e8] sm:$0xff]
        %v2161 = vld [vmem:[#allocation6 + $0x1f0] sm:$0xff]
        %v2162 = vld [vmem:[#allocation6 + $0x1f8] sm:$0xff]
        %v2163 = vld [vmem:[#allocation6 + $0x200] sm:$0xff]
        %v2164 = vld [vmem:[#allocation6 + $0x208] sm:$0xff]
        %v2165 = vld [vmem:[#allocation6 + $0x210] sm:$0xff]
        %v2166 = vld [vmem:[#allocation6 + $0x218] sm:$0xff]
        %v2167 = vld [vmem:[#allocation6 + $0x220] sm:$0xff]
        %v2168 = vld [vmem:[#allocation6 + $0x228] sm:$0xff]
        %v2169 = vld [vmem:[#allocation6 + $0x230] sm:$0xff]
        %v2170 = vld [vmem:[#allocation6 + $0x238] sm:$0xff]
        %v2171 = vld [vmem:[#allocation6 + $0x240] sm:$0xff]
        %v2172 = vld [vmem:[#allocation6 + $0x248] sm:$0xff]
        %v2173 = vld [vmem:[#allocation6 + $0x250] sm:$0xff]
        %v2174 = vld [vmem:[#allocation6 + $0x258] sm:$0xff]
        %v2175 = vld [vmem:[#allocation6 + $0x260] sm:$0xff]
        %v2176 = vld [vmem:[#allocation6 + $0x268] sm:$0xff]
        %v2177 = vld [vmem:[#allocation6 + $0x270] sm:$0xff]
        %v2178 = vld [vmem:[#allocation6 + $0x278] sm:$0xff]
        %v2179 = vld [vmem:[#allocation6 + $0x280] sm:$0xff]
        %v2180 = vld [vmem:[#allocation6 + $0x288] sm:$0xff]
        %v2181 = vld [vmem:[#allocation6 + $0x290] sm:$0xff]
        %v2182 = vld [vmem:[#allocation6 + $0x298] sm:$0xff]
        %v2183 = vld [vmem:[#allocation6 + $0x2a0] sm:$0xff]
        %v2184 = vld [vmem:[#allocation6 + $0x2a8] sm:$0xff]
        %v2185 = vld [vmem:[#allocation6 + $0x2b0] sm:$0xff]
        %v2186 = vld [vmem:[#allocation6 + $0x2b8] sm:$0xff]
        %v2187 = vld [vmem:[#allocation6 + $0x2c0] sm:$0xff]
        %v2188 = vld [vmem:[#allocation6 + $0x2c8] sm:$0xff]
        %v2189 = vld [vmem:[#allocation6 + $0x2d0] sm:$0xff]
        %v2190 = vld [vmem:[#allocation6 + $0x2d8] sm:$0xff]
        %v2191 = vld [vmem:[#allocation6 + $0x2e0] sm:$0xff]
        %v2192 = vld [vmem:[#allocation6 + $0x2e8] sm:$0xff]
        %v2193 = vld [vmem:[#allocation6 + $0x2f0] sm:$0xff]
        %v2194 = vld [vmem:[#allocation6 + $0x2f8] sm:$0xff]
        %v2195 = vld [vmem:[#allocation6 + $0x300] sm:$0xff]
        %v2196 = vld [vmem:[#allocation6 + $0x308] sm:$0xff]
        %v2197 = vld [vmem:[#allocation6 + $0x310] sm:$0xff]
        %v2198 = vld [vmem:[#allocation6 + $0x318] sm:$0xff]
        %v2199 = vld [vmem:[#allocation6 + $0x320] sm:$0xff]
        %v2200 = vld [vmem:[#allocation6 + $0x328] sm:$0xff]
        %v2201 = vld [vmem:[#allocation6 + $0x330] sm:$0xff]
        %v2202 = vld [vmem:[#allocation6 + $0x338] sm:$0xff]
        %v2203 = vld [vmem:[#allocation6 + $0x340] sm:$0xff]
        %v2204 = vld [vmem:[#allocation6 + $0x348] sm:$0xff]
        %v2205 = vld [vmem:[#allocation6 + $0x350] sm:$0xff]
        %v2206 = vld [vmem:[#allocation6 + $0x358] sm:$0xff]
        %v2207 = vld [vmem:[#allocation6 + $0x360] sm:$0xff]
        %v2208 = vld [vmem:[#allocation6 + $0x368] sm:$0xff]
        %v2209 = vld [vmem:[#allocation6 + $0x370] sm:$0xff]
        %v2210 = vld [vmem:[#allocation6 + $0x378] sm:$0xff]
        %v2211 = vld [vmem:[#allocation6 + $0x380] sm:$0xff]
        %v2212 = vld [vmem:[#allocation6 + $0x388] sm:$0xff]
        %v2213 = vld [vmem:[#allocation6 + $0x390] sm:$0xff]
        %v2214 = vld [vmem:[#allocation6 + $0x398] sm:$0xff]
        %v2215 = vld [vmem:[#allocation6 + $0x3a0] sm:$0xff]
        %v2216 = vld [vmem:[#allocation6 + $0x3a8] sm:$0xff]
        %v2217 = vld [vmem:[#allocation6 + $0x3b0] sm:$0xff]
        %v2218 = vld [vmem:[#allocation6 + $0x3b8] sm:$0xff]
        %v2219 = vld [vmem:[#allocation6 + $0x3c0] sm:$0xff]
        %v2220 = vld [vmem:[#allocation6 + $0x3c8] sm:$0xff]
        %v2221 = vld [vmem:[#allocation6 + $0x3d0] sm:$0xff]
        %v2222 = vld [vmem:[#allocation6 + $0x3d8] sm:$0xff]
        %v2223 = vld [vmem:[#allocation6 + $0x3e0] sm:$0xff]
        %v2224 = vld [vmem:[#allocation6 + $0x3e8] sm:$0xff]
        %v2225 = vld [vmem:[#allocation6 + $0x3f0] sm:$0xff]
        %v2226 = vld [vmem:[#allocation6 + $0x3f8] sm:$0xff]
        %v2227 = vld [vmem:[%s6] sm:$0xff]
        %v2229 = vperm.slane %v2227, 0
        %v2230 = vperm.slane %v2227, 1
        %v2231 = vperm.slane %v2227, 2
        %v2232 = vperm.slane %v2227, 3
        %v2233 = vperm.slane %v2227, 4
        %v2234 = vperm.slane %v2227, 5
        %v2235 = vperm.slane %v2227, 6
        %v2236 = vperm.slane %v2227, 7
        %v2373 = vunpack.c.l.b16 %v2099
        %v2374 = vunpack.c.h.b16 %v2099
        %v2375 = vunpack.c.l.b16 %v2100
        %v2376 = vunpack.c.h.b16 %v2100
        %v2377 = vunpack.c.l.b16 %v2101
        %v2378 = vunpack.c.h.b16 %v2101
        %v2379 = vunpack.c.l.b16 %v2102
        %v2380 = vunpack.c.h.b16 %v2102
        %v2381 = vunpack.c.l.b16 %v2103
        %v2382 = vunpack.c.h.b16 %v2103
        %v2383 = vunpack.c.l.b16 %v2104
        %v2384 = vunpack.c.h.b16 %v2104
        %v2385 = vunpack.c.l.b16 %v2105
        %v2386 = vunpack.c.h.b16 %v2105
        %v2387 = vunpack.c.l.b16 %v2106
        %v2388 = vunpack.c.h.b16 %v2106
        %v2389 = vunpack.c.l.b16 %v2107
        %v2390 = vunpack.c.h.b16 %v2107
        %v2391 = vunpack.c.l.b16 %v2108
        %v2392 = vunpack.c.h.b16 %v2108
        %v2393 = vunpack.c.l.b16 %v2109
        %v2394 = vunpack.c.h.b16 %v2109
        %v2395 = vunpack.c.l.b16 %v2110
        %v2396 = vunpack.c.h.b16 %v2110
        %v2397 = vunpack.c.l.b16 %v2111
        %v2398 = vunpack.c.h.b16 %v2111
        %v2399 = vunpack.c.l.b16 %v2112
        %v2400 = vunpack.c.h.b16 %v2112
        %v2401 = vunpack.c.l.b16 %v2113
        %v2402 = vunpack.c.h.b16 %v2113
        %v2403 = vunpack.c.l.b16 %v2114
        %v2404 = vunpack.c.h.b16 %v2114
        %v2405 = vunpack.c.l.b16 %v2115
        %v2406 = vunpack.c.h.b16 %v2115
        %v2407 = vunpack.c.l.b16 %v2116
        %v2408 = vunpack.c.h.b16 %v2116
        %v2409 = vunpack.c.l.b16 %v2117
        %v2410 = vunpack.c.h.b16 %v2117
        %v2411 = vunpack.c.l.b16 %v2118
        %v2412 = vunpack.c.h.b16 %v2118
        %v2413 = vunpack.c.l.b16 %v2119
        %v2414 = vunpack.c.h.b16 %v2119
        %v2415 = vunpack.c.l.b16 %v2120
        %v2416 = vunpack.c.h.b16 %v2120
        %v2417 = vunpack.c.l.b16 %v2121
        %v2418 = vunpack.c.h.b16 %v2121
        %v2419 = vunpack.c.l.b16 %v2122
        %v2420 = vunpack.c.h.b16 %v2122
        %v2421 = vunpack.c.l.b16 %v2123
        %v2422 = vunpack.c.h.b16 %v2123
        %v2423 = vunpack.c.l.b16 %v2124
        %v2424 = vunpack.c.h.b16 %v2124
        %v2425 = vunpack.c.l.b16 %v2125
        %v2426 = vunpack.c.h.b16 %v2125
        %v2427 = vunpack.c.l.b16 %v2126
        %v2428 = vunpack.c.h.b16 %v2126
        %v2429 = vunpack.c.l.b16 %v2127
        %v2430 = vunpack.c.h.b16 %v2127
        %v2431 = vunpack.c.l.b16 %v2128
        %v2432 = vunpack.c.h.b16 %v2128
        %v2433 = vunpack.c.l.b16 %v2129
        %v2434 = vunpack.c.h.b16 %v2129
        %v2435 = vunpack.c.l.b16 %v2130
        %v2436 = vunpack.c.h.b16 %v2130
        %v2437 = vunpack.c.l.b16 %v2131
        %v2438 = vunpack.c.h.b16 %v2131
        %v2439 = vunpack.c.l.b16 %v2132
        %v2440 = vunpack.c.h.b16 %v2132
        %v2441 = vunpack.c.l.b16 %v2133
        %v2442 = vunpack.c.h.b16 %v2133
        %v2443 = vunpack.c.l.b16 %v2134
        %v2444 = vunpack.c.h.b16 %v2134
        %v2445 = vunpack.c.l.b16 %v2135
        %v2446 = vunpack.c.h.b16 %v2135
        %v2447 = vunpack.c.l.b16 %v2136
        %v2448 = vunpack.c.h.b16 %v2136
        %v2449 = vunpack.c.l.b16 %v2137
        %v2450 = vunpack.c.h.b16 %v2137
        %v2451 = vunpack.c.l.b16 %v2138
        %v2452 = vunpack.c.h.b16 %v2138
        %v2453 = vunpack.c.l.b16 %v2139
        %v2454 = vunpack.c.h.b16 %v2139
        %v2455 = vunpack.c.l.b16 %v2140
        %v2456 = vunpack.c.h.b16 %v2140
        %v2457 = vunpack.c.l.b16 %v2141
        %v2458 = vunpack.c.h.b16 %v2141
        %v2459 = vunpack.c.l.b16 %v2142
        %v2460 = vunpack.c.h.b16 %v2142
        %v2461 = vunpack.c.l.b16 %v2143
        %v2462 = vunpack.c.h.b16 %v2143
        %v2463 = vunpack.c.l.b16 %v2144
        %v2464 = vunpack.c.h.b16 %v2144
        %v2465 = vunpack.c.l.b16 %v2145
        %v2466 = vunpack.c.h.b16 %v2145
        %v2467 = vunpack.c.l.b16 %v2146
        %v2468 = vunpack.c.h.b16 %v2146
        %v2469 = vunpack.c.l.b16 %v2147
        %v2470 = vunpack.c.h.b16 %v2147
        %v2471 = vunpack.c.l.b16 %v2148
        %v2472 = vunpack.c.h.b16 %v2148
        %v2473 = vunpack.c.l.b16 %v2149
        %v2474 = vunpack.c.h.b16 %v2149
        %v2475 = vunpack.c.l.b16 %v2150
        %v2476 = vunpack.c.h.b16 %v2150
        %v2477 = vunpack.c.l.b16 %v2151
        %v2478 = vunpack.c.h.b16 %v2151
        %v2479 = vunpack.c.l.b16 %v2152
        %v2480 = vunpack.c.h.b16 %v2152
        %v2481 = vunpack.c.l.b16 %v2153
        %v2482 = vunpack.c.h.b16 %v2153
        %v2483 = vunpack.c.l.b16 %v2154
        %v2484 = vunpack.c.h.b16 %v2154
        %v2485 = vunpack.c.l.b16 %v2155
        %v2486 = vunpack.c.h.b16 %v2155
        %v2487 = vunpack.c.l.b16 %v2156
        %v2488 = vunpack.c.h.b16 %v2156
        %v2489 = vunpack.c.l.b16 %v2157
        %v2490 = vunpack.c.h.b16 %v2157
        %v2491 = vunpack.c.l.b16 %v2158
        %v2492 = vunpack.c.h.b16 %v2158
        %v2493 = vunpack.c.l.b16 %v2159
        %v2494 = vunpack.c.h.b16 %v2159
        %v2495 = vunpack.c.l.b16 %v2160
        %v2496 = vunpack.c.h.b16 %v2160
        %v2497 = vunpack.c.l.b16 %v2161
        %v2498 = vunpack.c.h.b16 %v2161
        %v2499 = vunpack.c.l.b16 %v2162
        %v2500 = vunpack.c.h.b16 %v2162
        %v2501 = vunpack.c.l.b16 %v2163
        %v2502 = vunpack.c.h.b16 %v2163
        %v2503 = vunpack.c.l.b16 %v2164
        %v2504 = vunpack.c.h.b16 %v2164
        %v2505 = vunpack.c.l.b16 %v2165
        %v2506 = vunpack.c.h.b16 %v2165
        %v2507 = vunpack.c.l.b16 %v2166
        %v2508 = vunpack.c.h.b16 %v2166
        %v2509 = vunpack.c.l.b16 %v2167
        %v2510 = vunpack.c.h.b16 %v2167
        %v2511 = vunpack.c.l.b16 %v2168
        %v2512 = vunpack.c.h.b16 %v2168
        %v2513 = vunpack.c.l.b16 %v2169
        %v2514 = vunpack.c.h.b16 %v2169
        %v2515 = vunpack.c.l.b16 %v2170
        %v2516 = vunpack.c.h.b16 %v2170
        %v2517 = vunpack.c.l.b16 %v2171
        %v2518 = vunpack.c.h.b16 %v2171
        %v2519 = vunpack.c.l.b16 %v2172
        %v2520 = vunpack.c.h.b16 %v2172
        %v2521 = vunpack.c.l.b16 %v2173
        %v2522 = vunpack.c.h.b16 %v2173
        %v2523 = vunpack.c.l.b16 %v2174
        %v2524 = vunpack.c.h.b16 %v2174
        %v2525 = vunpack.c.l.b16 %v2175
        %v2526 = vunpack.c.h.b16 %v2175
        %v2527 = vunpack.c.l.b16 %v2176
        %v2528 = vunpack.c.h.b16 %v2176
        %v2529 = vunpack.c.l.b16 %v2177
        %v2530 = vunpack.c.h.b16 %v2177
        %v2531 = vunpack.c.l.b16 %v2178
        %v2532 = vunpack.c.h.b16 %v2178
        %v2533 = vunpack.c.l.b16 %v2179
        %v2534 = vunpack.c.h.b16 %v2179
        %v2535 = vunpack.c.l.b16 %v2180
        %v2536 = vunpack.c.h.b16 %v2180
        %v2537 = vunpack.c.l.b16 %v2181
        %v2538 = vunpack.c.h.b16 %v2181
        %v2539 = vunpack.c.l.b16 %v2182
        %v2540 = vunpack.c.h.b16 %v2182
        %v2541 = vunpack.c.l.b16 %v2183
        %v2542 = vunpack.c.h.b16 %v2183
        %v2543 = vunpack.c.l.b16 %v2184
        %v2544 = vunpack.c.h.b16 %v2184
        %v2545 = vunpack.c.l.b16 %v2185
        %v2546 = vunpack.c.h.b16 %v2185
        %v2547 = vunpack.c.l.b16 %v2186
        %v2548 = vunpack.c.h.b16 %v2186
        %v2549 = vunpack.c.l.b16 %v2187
        %v2550 = vunpack.c.h.b16 %v2187
        %v2551 = vunpack.c.l.b16 %v2188
        %v2552 = vunpack.c.h.b16 %v2188
        %v2553 = vunpack.c.l.b16 %v2189
        %v2554 = vunpack.c.h.b16 %v2189
        %v2555 = vunpack.c.l.b16 %v2190
        %v2556 = vunpack.c.h.b16 %v2190
        %v2557 = vunpack.c.l.b16 %v2191
        %v2558 = vunpack.c.h.b16 %v2191
        %v2559 = vunpack.c.l.b16 %v2192
        %v2560 = vunpack.c.h.b16 %v2192
        %v2561 = vunpack.c.l.b16 %v2193
        %v2562 = vunpack.c.h.b16 %v2193
        %v2563 = vunpack.c.l.b16 %v2194
        %v2564 = vunpack.c.h.b16 %v2194
        %v2565 = vunpack.c.l.b16 %v2195
        %v2566 = vunpack.c.h.b16 %v2195
        %v2567 = vunpack.c.l.b16 %v2196
        %v2568 = vunpack.c.h.b16 %v2196
        %v2569 = vunpack.c.l.b16 %v2197
        %v2570 = vunpack.c.h.b16 %v2197
        %v2571 = vunpack.c.l.b16 %v2198
        %v2572 = vunpack.c.h.b16 %v2198
        %v2573 = vunpack.c.l.b16 %v2199
        %v2574 = vunpack.c.h.b16 %v2199
        %v2575 = vunpack.c.l.b16 %v2200
        %v2576 = vunpack.c.h.b16 %v2200
        %v2577 = vunpack.c.l.b16 %v2201
        %v2578 = vunpack.c.h.b16 %v2201
        %v2579 = vunpack.c.l.b16 %v2202
        %v2580 = vunpack.c.h.b16 %v2202
        %v2581 = vunpack.c.l.b16 %v2203
        %v2582 = vunpack.c.h.b16 %v2203
        %v2583 = vunpack.c.l.b16 %v2204
        %v2584 = vunpack.c.h.b16 %v2204
        %v2585 = vunpack.c.l.b16 %v2205
        %v2586 = vunpack.c.h.b16 %v2205
        %v2587 = vunpack.c.l.b16 %v2206
        %v2588 = vunpack.c.h.b16 %v2206
        %v2589 = vunpack.c.l.b16 %v2207
        %v2590 = vunpack.c.h.b16 %v2207
        %v2591 = vunpack.c.l.b16 %v2208
        %v2592 = vunpack.c.h.b16 %v2208
        %v2593 = vunpack.c.l.b16 %v2209
        %v2594 = vunpack.c.h.b16 %v2209
        %v2595 = vunpack.c.l.b16 %v2210
        %v2596 = vunpack.c.h.b16 %v2210
        %v2597 = vunpack.c.l.b16 %v2211
        %v2598 = vunpack.c.h.b16 %v2211
        %v2599 = vunpack.c.l.b16 %v2212
        %v2600 = vunpack.c.h.b16 %v2212
        %v2601 = vunpack.c.l.b16 %v2213
        %v2602 = vunpack.c.h.b16 %v2213
        %v2603 = vunpack.c.l.b16 %v2214
        %v2604 = vunpack.c.h.b16 %v2214
        %v2605 = vunpack.c.l.b16 %v2215
        %v2606 = vunpack.c.h.b16 %v2215
        %v2607 = vunpack.c.l.b16 %v2216
        %v2608 = vunpack.c.h.b16 %v2216
        %v2609 = vunpack.c.l.b16 %v2217
        %v2610 = vunpack.c.h.b16 %v2217
        %v2611 = vunpack.c.l.b16 %v2218
        %v2612 = vunpack.c.h.b16 %v2218
        %v2613 = vunpack.c.l.b16 %v2219
        %v2614 = vunpack.c.h.b16 %v2219
        %v2615 = vunpack.c.l.b16 %v2220
        %v2616 = vunpack.c.h.b16 %v2220
        %v2617 = vunpack.c.l.b16 %v2221
        %v2618 = vunpack.c.h.b16 %v2221
        %v2619 = vunpack.c.l.b16 %v2222
        %v2620 = vunpack.c.h.b16 %v2222
        %v2621 = vunpack.c.l.b16 %v2223
        %v2622 = vunpack.c.h.b16 %v2223
        %v2623 = vunpack.c.l.b16 %v2224
        %v2624 = vunpack.c.h.b16 %v2224
        %v2625 = vunpack.c.l.b16 %v2225
        %v2626 = vunpack.c.h.b16 %v2225
        %v2627 = vunpack.c.l.b16 %v2226
        %v2628 = vunpack.c.h.b16 %v2226
        %v2629 = vpack.c.b16 %v2381, %v2373
        %v2630 = vpack.c.b16 %v2382, %v2374
        %v2631 = vpack.c.b16 %v2383, %v2375
        %v2632 = vpack.c.b16 %v2384, %v2376
        %v2633 = vpack.c.b16 %v2385, %v2377
        %v2634 = vpack.c.b16 %v2386, %v2378
        %v2635 = vpack.c.b16 %v2387, %v2379
        %v2636 = vpack.c.b16 %v2388, %v2380
        %v2637 = vpack.c.b16 %v2397, %v2389
        %v2638 = vpack.c.b16 %v2398, %v2390
        %v2639 = vpack.c.b16 %v2399, %v2391
        %v2640 = vpack.c.b16 %v2400, %v2392
        %v2641 = vpack.c.b16 %v2401, %v2393
        %v2642 = vpack.c.b16 %v2402, %v2394
        %v2643 = vpack.c.b16 %v2403, %v2395
        %v2644 = vpack.c.b16 %v2404, %v2396
        %v2645 = vpack.c.b16 %v2413, %v2405
        %v2646 = vpack.c.b16 %v2414, %v2406
        %v2647 = vpack.c.b16 %v2415, %v2407
        %v2648 = vpack.c.b16 %v2416, %v2408
        %v2649 = vpack.c.b16 %v2417, %v2409
        %v2650 = vpack.c.b16 %v2418, %v2410
        %v2651 = vpack.c.b16 %v2419, %v2411
        %v2652 = vpack.c.b16 %v2420, %v2412
        %v2653 = vpack.c.b16 %v2429, %v2421
        %v2654 = vpack.c.b16 %v2430, %v2422
        %v2655 = vpack.c.b16 %v2431, %v2423
        %v2656 = vpack.c.b16 %v2432, %v2424
        %v2657 = vpack.c.b16 %v2433, %v2425
        %v2658 = vpack.c.b16 %v2434, %v2426
        %v2659 = vpack.c.b16 %v2435, %v2427
        %v2660 = vpack.c.b16 %v2436, %v2428
        %v2661 = vpack.c.b16 %v2445, %v2437
        %v2662 = vpack.c.b16 %v2446, %v2438
        %v2663 = vpack.c.b16 %v2447, %v2439
        %v2664 = vpack.c.b16 %v2448, %v2440
        %v2665 = vpack.c.b16 %v2449, %v2441
        %v2666 = vpack.c.b16 %v2450, %v2442
        %v2667 = vpack.c.b16 %v2451, %v2443
        %v2668 = vpack.c.b16 %v2452, %v2444
        %v2669 = vpack.c.b16 %v2461, %v2453
        %v2670 = vpack.c.b16 %v2462, %v2454
        %v2671 = vpack.c.b16 %v2463, %v2455
        %v2672 = vpack.c.b16 %v2464, %v2456
        %v2673 = vpack.c.b16 %v2465, %v2457
        %v2674 = vpack.c.b16 %v2466, %v2458
        %v2675 = vpack.c.b16 %v2467, %v2459
        %v2676 = vpack.c.b16 %v2468, %v2460
        %v2677 = vpack.c.b16 %v2477, %v2469
        %v2678 = vpack.c.b16 %v2478, %v2470
        %v2679 = vpack.c.b16 %v2479, %v2471
        %v2680 = vpack.c.b16 %v2480, %v2472
        %v2681 = vpack.c.b16 %v2481, %v2473
        %v2682 = vpack.c.b16 %v2482, %v2474
        %v2683 = vpack.c.b16 %v2483, %v2475
        %v2684 = vpack.c.b16 %v2484, %v2476
        %v2685 = vpack.c.b16 %v2493, %v2485
        %v2686 = vpack.c.b16 %v2494, %v2486
        %v2687 = vpack.c.b16 %v2495, %v2487
        %v2688 = vpack.c.b16 %v2496, %v2488
        %v2689 = vpack.c.b16 %v2497, %v2489
        %v2690 = vpack.c.b16 %v2498, %v2490
        %v2691 = vpack.c.b16 %v2499, %v2491
        %v2692 = vpack.c.b16 %v2500, %v2492
        %v2693 = vpack.c.b16 %v2509, %v2501
        %v2694 = vpack.c.b16 %v2510, %v2502
        %v2695 = vpack.c.b16 %v2511, %v2503
        %v2696 = vpack.c.b16 %v2512, %v2504
        %v2697 = vpack.c.b16 %v2513, %v2505
        %v2698 = vpack.c.b16 %v2514, %v2506
        %v2699 = vpack.c.b16 %v2515, %v2507
        %v2700 = vpack.c.b16 %v2516, %v2508
        %v2701 = vpack.c.b16 %v2525, %v2517
        %v2702 = vpack.c.b16 %v2526, %v2518
        %v2703 = vpack.c.b16 %v2527, %v2519
        %v2704 = vpack.c.b16 %v2528, %v2520
        %v2705 = vpack.c.b16 %v2529, %v2521
        %v2706 = vpack.c.b16 %v2530, %v2522
        %v2707 = vpack.c.b16 %v2531, %v2523
        %v2708 = vpack.c.b16 %v2532, %v2524
        %v2709 = vpack.c.b16 %v2541, %v2533
        %v2710 = vpack.c.b16 %v2542, %v2534
        %v2711 = vpack.c.b16 %v2543, %v2535
        %v2712 = vpack.c.b16 %v2544, %v2536
        %v2713 = vpack.c.b16 %v2545, %v2537
        %v2714 = vpack.c.b16 %v2546, %v2538
        %v2715 = vpack.c.b16 %v2547, %v2539
        %v2716 = vpack.c.b16 %v2548, %v2540
        %v2717 = vpack.c.b16 %v2557, %v2549
        %v2718 = vpack.c.b16 %v2558, %v2550
        %v2719 = vpack.c.b16 %v2559, %v2551
        %v2720 = vpack.c.b16 %v2560, %v2552
        %v2721 = vpack.c.b16 %v2561, %v2553
        %v2722 = vpack.c.b16 %v2562, %v2554
        %v2723 = vpack.c.b16 %v2563, %v2555
        %v2724 = vpack.c.b16 %v2564, %v2556
        %v2725 = vpack.c.b16 %v2573, %v2565
        %v2726 = vpack.c.b16 %v2574, %v2566
        %v2727 = vpack.c.b16 %v2575, %v2567
        %v2728 = vpack.c.b16 %v2576, %v2568
        %v2729 = vpack.c.b16 %v2577, %v2569
        %v2730 = vpack.c.b16 %v2578, %v2570
        %v2731 = vpack.c.b16 %v2579, %v2571
        %v2732 = vpack.c.b16 %v2580, %v2572
        %v2733 = vpack.c.b16 %v2589, %v2581
        %v2734 = vpack.c.b16 %v2590, %v2582
        %v2735 = vpack.c.b16 %v2591, %v2583
        %v2736 = vpack.c.b16 %v2592, %v2584
        %v2737 = vpack.c.b16 %v2593, %v2585
        %v2738 = vpack.c.b16 %v2594, %v2586
        %v2739 = vpack.c.b16 %v2595, %v2587
        %v2740 = vpack.c.b16 %v2596, %v2588
        %v2741 = vpack.c.b16 %v2605, %v2597
        %v2742 = vpack.c.b16 %v2606, %v2598
        %v2743 = vpack.c.b16 %v2607, %v2599
        %v2744 = vpack.c.b16 %v2608, %v2600
        %v2745 = vpack.c.b16 %v2609, %v2601
        %v2746 = vpack.c.b16 %v2610, %v2602
        %v2747 = vpack.c.b16 %v2611, %v2603
        %v2748 = vpack.c.b16 %v2612, %v2604
        %v2749 = vpack.c.b16 %v2621, %v2613
        %v2750 = vpack.c.b16 %v2622, %v2614
        %v2751 = vpack.c.b16 %v2623, %v2615
        %v2752 = vpack.c.b16 %v2624, %v2616
        %v2753 = vpack.c.b16 %v2625, %v2617
        %v2754 = vpack.c.b16 %v2626, %v2618
        %v2755 = vpack.c.b16 %v2627, %v2619
        %v2756 = vpack.c.b16 %v2628, %v2620
        %2885 = vmatpush.bf16.msra.mxu0 %v2685
        %2886 = vmatpush.bf16.msra.mxu0 %v2677
        %2887 = vmatpush.bf16.msra.mxu0 %v2669
        %2888 = vmatpush.bf16.msra.mxu0 %v2661
        %2889 = vmatpush.bf16.msra.mxu0 %v2653
        %2890 = vmatpush.bf16.msra.mxu0 %v2645
        %2891 = vmatpush.bf16.msra.mxu0 %v2637
        %2892 = vmatpush.bf16.msra.mxu0 %v2629
        %2893 = vmatmul.bf16.gmra.mxu0 %v2097
        %v2894 = vpop.f32.mrf.mxu0
        %v2895 = vadd.f32 %v2229, %v2894
        %v2896 = vpop.f32.mrf.mxu0
        %2897 = vdwg.mxu0
        %2898 = vmatpush.bf16.msra.mxu0 %v2749
        %2899 = vmatpush.bf16.msra.mxu0 %v2741
        %2900 = vmatpush.bf16.msra.mxu0 %v2733
        %2901 = vmatpush.bf16.msra.mxu0 %v2725
        %2902 = vmatpush.bf16.msra.mxu0 %v2717
        %2903 = vmatpush.bf16.msra.mxu0 %v2709
        %2904 = vmatpush.bf16.msra.mxu0 %v2701
        %2905 = vmatpush.bf16.msra.mxu0 %v2693
        %2906 = vmatmul.bf16.gmra.mxu0 %v2098
        %v2907 = vpop.f32.mrf.mxu0
        %v2908 = vadd.f32 %v2895, %v2907
        %v2909 = vpop.f32.mrf.mxu0
        %2910 = vdwg.mxu0
        %2911 = vmatpush.bf16.msra.mxu0 %v2686
        %2912 = vmatpush.bf16.msra.mxu0 %v2678
        %2913 = vmatpush.bf16.msra.mxu0 %v2670
        %2914 = vmatpush.bf16.msra.mxu0 %v2662
        %2915 = vmatpush.bf16.msra.mxu0 %v2654
        %2916 = vmatpush.bf16.msra.mxu0 %v2646
        %2917 = vmatpush.bf16.msra.mxu0 %v2638
        %2918 = vmatpush.bf16.msra.mxu0 %v2630
        %2919 = vmatmul.bf16.gmra.mxu0 %v2097
        %v2920 = vpop.f32.mrf.mxu0
        %v2921 = vadd.f32 %v2230, %v2920
        %v2922 = vpop.f32.mrf.mxu0
        %2923 = vdwg.mxu0
        %2924 = vmatpush.bf16.msra.mxu0 %v2750
        %2925 = vmatpush.bf16.msra.mxu0 %v2742
        %2926 = vmatpush.bf16.msra.mxu0 %v2734
        %2927 = vmatpush.bf16.msra.mxu0 %v2726
        %2928 = vmatpush.bf16.msra.mxu0 %v2718
        %2929 = vmatpush.bf16.msra.mxu0 %v2710
        %2930 = vmatpush.bf16.msra.mxu0 %v2702
        %2931 = vmatpush.bf16.msra.mxu0 %v2694
        %2932 = vmatmul.bf16.gmra.mxu0 %v2098
        %v2933 = vpop.f32.mrf.mxu0
        %v2934 = vadd.f32 %v2921, %v2933
        %v2935 = vpop.f32.mrf.mxu0
        %2936 = vdwg.mxu0
        %2937 = vmatpush.bf16.msra.mxu0 %v2687
        %2938 = vmatpush.bf16.msra.mxu0 %v2679
        %2939 = vmatpush.bf16.msra.mxu0 %v2671
        %2940 = vmatpush.bf16.msra.mxu0 %v2663
        %2941 = vmatpush.bf16.msra.mxu0 %v2655
        %2942 = vmatpush.bf16.msra.mxu0 %v2647
        %2943 = vmatpush.bf16.msra.mxu0 %v2639
        %2944 = vmatpush.bf16.msra.mxu0 %v2631
        %2945 = vmatmul.bf16.gmra.mxu0 %v2097
        %v2946 = vpop.f32.mrf.mxu0
        %v2947 = vadd.f32 %v2231, %v2946
        %v2948 = vpop.f32.mrf.mxu0
        %2949 = vdwg.mxu0
        %2950 = vmatpush.bf16.msra.mxu0 %v2751
        %2951 = vmatpush.bf16.msra.mxu0 %v2743
        %2952 = vmatpush.bf16.msra.mxu0 %v2735
        %2953 = vmatpush.bf16.msra.mxu0 %v2727
        %2954 = vmatpush.bf16.msra.mxu0 %v2719
        %2955 = vmatpush.bf16.msra.mxu0 %v2711
        %2956 = vmatpush.bf16.msra.mxu0 %v2703
        %2957 = vmatpush.bf16.msra.mxu0 %v2695
        %2958 = vmatmul.bf16.gmra.mxu0 %v2098
        %v2959 = vpop.f32.mrf.mxu0
        %v2960 = vadd.f32 %v2947, %v2959
        %v2961 = vpop.f32.mrf.mxu0
        %2962 = vdwg.mxu0
        %2963 = vmatpush.bf16.msra.mxu0 %v2688
        %2964 = vmatpush.bf16.msra.mxu0 %v2680
        %2965 = vmatpush.bf16.msra.mxu0 %v2672
        %2966 = vmatpush.bf16.msra.mxu0 %v2664
        %2967 = vmatpush.bf16.msra.mxu0 %v2656
        %2968 = vmatpush.bf16.msra.mxu0 %v2648
        %2969 = vmatpush.bf16.msra.mxu0 %v2640
        %2970 = vmatpush.bf16.msra.mxu0 %v2632
        %2971 = vmatmul.bf16.gmra.mxu0 %v2097
        %v2972 = vpop.f32.mrf.mxu0
        %v2973 = vadd.f32 %v2232, %v2972
        %v2974 = vpop.f32.mrf.mxu0
        %2975 = vdwg.mxu0
        %2976 = vmatpush.bf16.msra.mxu0 %v2752
        %2977 = vmatpush.bf16.msra.mxu0 %v2744
        %2978 = vmatpush.bf16.msra.mxu0 %v2736
        %2979 = vmatpush.bf16.msra.mxu0 %v2728
        %2980 = vmatpush.bf16.msra.mxu0 %v2720
        %2981 = vmatpush.bf16.msra.mxu0 %v2712
        %2982 = vmatpush.bf16.msra.mxu0 %v2704
        %2983 = vmatpush.bf16.msra.mxu0 %v2696
        %2984 = vmatmul.bf16.gmra.mxu0 %v2098
        %v2985 = vpop.f32.mrf.mxu0
        %v2986 = vadd.f32 %v2973, %v2985
        %v2987 = vpop.f32.mrf.mxu0
        %2988 = vdwg.mxu0
        %2989 = vmatpush.bf16.msra.mxu0 %v2689
        %2990 = vmatpush.bf16.msra.mxu0 %v2681
        %2991 = vmatpush.bf16.msra.mxu0 %v2673
        %2992 = vmatpush.bf16.msra.mxu0 %v2665
        %2993 = vmatpush.bf16.msra.mxu0 %v2657
        %2994 = vmatpush.bf16.msra.mxu0 %v2649
        %2995 = vmatpush.bf16.msra.mxu0 %v2641
        %2996 = vmatpush.bf16.msra.mxu0 %v2633
        %2997 = vmatmul.bf16.gmra.mxu0 %v2097
        %v2998 = vpop.f32.mrf.mxu0
        %v2999 = vadd.f32 %v2233, %v2998
        %v3000 = vpop.f32.mrf.mxu0
        %3001 = vdwg.mxu0
        %3002 = vmatpush.bf16.msra.mxu0 %v2753
        %3003 = vmatpush.bf16.msra.mxu0 %v2745
        %3004 = vmatpush.bf16.msra.mxu0 %v2737
        %3005 = vmatpush.bf16.msra.mxu0 %v2729
        %3006 = vmatpush.bf16.msra.mxu0 %v2721
        %3007 = vmatpush.bf16.msra.mxu0 %v2713
        %3008 = vmatpush.bf16.msra.mxu0 %v2705
        %3009 = vmatpush.bf16.msra.mxu0 %v2697
        %3010 = vmatmul.bf16.gmra.mxu0 %v2098
        %v3011 = vpop.f32.mrf.mxu0
        %v3012 = vadd.f32 %v2999, %v3011
        %v3013 = vpop.f32.mrf.mxu0
        %3014 = vdwg.mxu0
        %3015 = vmatpush.bf16.msra.mxu0 %v2690
        %3016 = vmatpush.bf16.msra.mxu0 %v2682
        %3017 = vmatpush.bf16.msra.mxu0 %v2674
        %3018 = vmatpush.bf16.msra.mxu0 %v2666
        %3019 = vmatpush.bf16.msra.mxu0 %v2658
        %3020 = vmatpush.bf16.msra.mxu0 %v2650
        %3021 = vmatpush.bf16.msra.mxu0 %v2642
        %3022 = vmatpush.bf16.msra.mxu0 %v2634
        %3023 = vmatmul.bf16.gmra.mxu0 %v2097
        %v3024 = vpop.f32.mrf.mxu0
        %v3025 = vadd.f32 %v2234, %v3024
        %v3026 = vpop.f32.mrf.mxu0
        %3027 = vdwg.mxu0
        %3028 = vmatpush.bf16.msra.mxu0 %v2754
        %3029 = vmatpush.bf16.msra.mxu0 %v2746
        %3030 = vmatpush.bf16.msra.mxu0 %v2738
        %3031 = vmatpush.bf16.msra.mxu0 %v2730
        %3032 = vmatpush.bf16.msra.mxu0 %v2722
        %3033 = vmatpush.bf16.msra.mxu0 %v2714
        %3034 = vmatpush.bf16.msra.mxu0 %v2706
        %3035 = vmatpush.bf16.msra.mxu0 %v2698
        %3036 = vmatmul.bf16.gmra.mxu0 %v2098
        %v3037 = vpop.f32.mrf.mxu0
        %v3038 = vadd.f32 %v3025, %v3037
        %v3039 = vpop.f32.mrf.mxu0
        %3040 = vdwg.mxu0
        %3041 = vmatpush.bf16.msra.mxu0 %v2691
        %3042 = vmatpush.bf16.msra.mxu0 %v2683
        %3043 = vmatpush.bf16.msra.mxu0 %v2675
        %3044 = vmatpush.bf16.msra.mxu0 %v2667
        %3045 = vmatpush.bf16.msra.mxu0 %v2659
        %3046 = vmatpush.bf16.msra.mxu0 %v2651
        %3047 = vmatpush.bf16.msra.mxu0 %v2643
        %3048 = vmatpush.bf16.msra.mxu0 %v2635
        %3049 = vmatmul.bf16.gmra.mxu0 %v2097
        %v3050 = vpop.f32.mrf.mxu0
        %v3051 = vadd.f32 %v2235, %v3050
        %v3052 = vpop.f32.mrf.mxu0
        %3053 = vdwg.mxu0
        %3054 = vmatpush.bf16.msra.mxu0 %v2755
        %3055 = vmatpush.bf16.msra.mxu0 %v2747
        %3056 = vmatpush.bf16.msra.mxu0 %v2739
        %3057 = vmatpush.bf16.msra.mxu0 %v2731
        %3058 = vmatpush.bf16.msra.mxu0 %v2723
        %3059 = vmatpush.bf16.msra.mxu0 %v2715
        %3060 = vmatpush.bf16.msra.mxu0 %v2707
        %3061 = vmatpush.bf16.msra.mxu0 %v2699
        %3062 = vmatmul.bf16.gmra.mxu0 %v2098
        %v3063 = vpop.f32.mrf.mxu0
        %v3064 = vadd.f32 %v3051, %v3063
        %v3065 = vpop.f32.mrf.mxu0
        %3066 = vdwg.mxu0
        %3067 = vmatpush.bf16.msra.mxu0 %v2692
        %3068 = vmatpush.bf16.msra.mxu0 %v2684
        %3069 = vmatpush.bf16.msra.mxu0 %v2676
        %3070 = vmatpush.bf16.msra.mxu0 %v2668
        %3071 = vmatpush.bf16.msra.mxu0 %v2660
        %3072 = vmatpush.bf16.msra.mxu0 %v2652
        %3073 = vmatpush.bf16.msra.mxu0 %v2644
        %3074 = vmatpush.bf16.msra.mxu0 %v2636
        %3075 = vmatmul.bf16.gmra.mxu0 %v2097
        %v3076 = vpop.f32.mrf.mxu0
        %v3077 = vadd.f32 %v2236, %v3076
        %v3078 = vpop.f32.mrf.mxu0
        %3079 = vdwg.mxu0
        %3080 = vmatpush.bf16.msra.mxu0 %v2756
        %3081 = vmatpush.bf16.msra.mxu0 %v2748
        %3082 = vmatpush.bf16.msra.mxu0 %v2740
        %3083 = vmatpush.bf16.msra.mxu0 %v2732
        %3084 = vmatpush.bf16.msra.mxu0 %v2724
        %3085 = vmatpush.bf16.msra.mxu0 %v2716
        %3086 = vmatpush.bf16.msra.mxu0 %v2708
        %3087 = vmatpush.bf16.msra.mxu0 %v2700
        %3088 = vmatmul.bf16.gmra.mxu0 %v2098
        %v3089 = vpop.f32.mrf.mxu0
        %v3090 = vadd.f32 %v3077, %v3089
        %v3091 = vpop.f32.mrf.mxu0
        %3092 = vdwg.mxu0
        %v3093 = vmax.f32 %v2908, 0.0
        %v3094 = vmax.f32 %v2934, 0.0
        %v3095 = vmax.f32 %v2960, 0.0
        %v3096 = vmax.f32 %v2986, 0.0
        %v3097 = vmax.f32 %v3012, 0.0
        %v3098 = vmax.f32 %v3038, 0.0
        %v3099 = vmax.f32 %v3064, 0.0
        %v3100 = vmax.f32 %v3090, 0.0
        %v3101 = vpack.c.bf16 %v3093, %v3093
        %v3102 = vpack.c.bf16 %v3094, %v3094
        %v3103 = vpack.c.bf16 %v3095, %v3095
        %v3104 = vpack.c.bf16 %v3096, %v3096
        %v3105 = vpack.c.bf16 %v3097, %v3097
        %v3106 = vpack.c.bf16 %v3098, %v3098
        %v3107 = vpack.c.bf16 %v3099, %v3099
        %v3108 = vpack.c.bf16 %v3100, %v3100
        %v3109 = vld [vmem:[#allocation7] sm:$0xff]
        %v3110 = vld [vmem:[#allocation7 + $0x8] sm:$0xff]
        %v3111 = vld [vmem:[#allocation7 + $0x10] sm:$0xff]
        %v3112 = vld [vmem:[#allocation7 + $0x18] sm:$0xff]
        %v3113 = vld [vmem:[#allocation7 + $0x20] sm:$0xff]
        %v3114 = vld [vmem:[#allocation7 + $0x28] sm:$0xff]
        %v3115 = vld [vmem:[#allocation7 + $0x30] sm:$0xff]
        %v3116 = vld [vmem:[#allocation7 + $0x38] sm:$0xff]
        %v3117 = vld [vmem:[#allocation7 + $0x40] sm:$0xff]
        %v3118 = vld [vmem:[#allocation7 + $0x48] sm:$0xff]
        %v3119 = vld [vmem:[#allocation7 + $0x50] sm:$0xff]
        %v3120 = vld [vmem:[#allocation7 + $0x58] sm:$0xff]
        %v3121 = vld [vmem:[#allocation7 + $0x60] sm:$0xff]
        %v3122 = vld [vmem:[#allocation7 + $0x68] sm:$0xff]
        %v3123 = vld [vmem:[#allocation7 + $0x70] sm:$0xff]
        %v3124 = vld [vmem:[#allocation7 + $0x78] sm:$0xff]
        %v3125 = vld [vmem:[#allocation7 + $0x80] sm:$0xff]
        %v3126 = vld [vmem:[#allocation7 + $0x88] sm:$0xff]
        %v3127 = vld [vmem:[#allocation7 + $0x90] sm:$0xff]
        %v3128 = vld [vmem:[#allocation7 + $0x98] sm:$0xff]
        %v3129 = vld [vmem:[#allocation7 + $0xa0] sm:$0xff]
        %v3130 = vld [vmem:[#allocation7 + $0xa8] sm:$0xff]
        %v3131 = vld [vmem:[#allocation7 + $0xb0] sm:$0xff]
        %v3132 = vld [vmem:[#allocation7 + $0xb8] sm:$0xff]
        %v3133 = vld [vmem:[#allocation7 + $0xc0] sm:$0xff]
        %v3134 = vld [vmem:[#allocation7 + $0xc8] sm:$0xff]
        %v3135 = vld [vmem:[#allocation7 + $0xd0] sm:$0xff]
        %v3136 = vld [vmem:[#allocation7 + $0xd8] sm:$0xff]
        %v3137 = vld [vmem:[#allocation7 + $0xe0] sm:$0xff]
        %v3138 = vld [vmem:[#allocation7 + $0xe8] sm:$0xff]
        %v3139 = vld [vmem:[#allocation7 + $0xf0] sm:$0xff]
        %v3140 = vld [vmem:[#allocation7 + $0xf8] sm:$0xff]
        %v3141 = vld [vmem:[#allocation7 + $0x100] sm:$0xff]
        %v3142 = vld [vmem:[#allocation7 + $0x108] sm:$0xff]
        %v3143 = vld [vmem:[#allocation7 + $0x110] sm:$0xff]
        %v3144 = vld [vmem:[#allocation7 + $0x118] sm:$0xff]
        %v3145 = vld [vmem:[#allocation7 + $0x120] sm:$0xff]
        %v3146 = vld [vmem:[#allocation7 + $0x128] sm:$0xff]
        %v3147 = vld [vmem:[#allocation7 + $0x130] sm:$0xff]
        %v3148 = vld [vmem:[#allocation7 + $0x138] sm:$0xff]
        %v3149 = vld [vmem:[#allocation7 + $0x140] sm:$0xff]
        %v3150 = vld [vmem:[#allocation7 + $0x148] sm:$0xff]
        %v3151 = vld [vmem:[#allocation7 + $0x150] sm:$0xff]
        %v3152 = vld [vmem:[#allocation7 + $0x158] sm:$0xff]
        %v3153 = vld [vmem:[#allocation7 + $0x160] sm:$0xff]
        %v3154 = vld [vmem:[#allocation7 + $0x168] sm:$0xff]
        %v3155 = vld [vmem:[#allocation7 + $0x170] sm:$0xff]
        %v3156 = vld [vmem:[#allocation7 + $0x178] sm:$0xff]
        %v3157 = vld [vmem:[#allocation7 + $0x180] sm:$0xff]
        %v3158 = vld [vmem:[#allocation7 + $0x188] sm:$0xff]
        %v3159 = vld [vmem:[#allocation7 + $0x190] sm:$0xff]
        %v3160 = vld [vmem:[#allocation7 + $0x198] sm:$0xff]
        %v3161 = vld [vmem:[#allocation7 + $0x1a0] sm:$0xff]
        %v3162 = vld [vmem:[#allocation7 + $0x1a8] sm:$0xff]
        %v3163 = vld [vmem:[#allocation7 + $0x1b0] sm:$0xff]
        %v3164 = vld [vmem:[#allocation7 + $0x1b8] sm:$0xff]
        %v3165 = vld [vmem:[#allocation7 + $0x1c0] sm:$0xff]
        %v3166 = vld [vmem:[#allocation7 + $0x1c8] sm:$0xff]
        %v3167 = vld [vmem:[#allocation7 + $0x1d0] sm:$0xff]
        %v3168 = vld [vmem:[#allocation7 + $0x1d8] sm:$0xff]
        %v3169 = vld [vmem:[#allocation7 + $0x1e0] sm:$0xff]
        %v3170 = vld [vmem:[#allocation7 + $0x1e8] sm:$0xff]
        %v3171 = vld [vmem:[#allocation7 + $0x1f0] sm:$0xff]
        %v3172 = vld [vmem:[#allocation7 + $0x1f8] sm:$0xff]
        %v3173 = vld [vmem:[#allocation7 + $0x200] sm:$0xff]
        %v3174 = vld [vmem:[#allocation7 + $0x208] sm:$0xff]
        %v3175 = vld [vmem:[#allocation7 + $0x210] sm:$0xff]
        %v3176 = vld [vmem:[#allocation7 + $0x218] sm:$0xff]
        %v3177 = vld [vmem:[#allocation7 + $0x220] sm:$0xff]
        %v3178 = vld [vmem:[#allocation7 + $0x228] sm:$0xff]
        %v3179 = vld [vmem:[#allocation7 + $0x230] sm:$0xff]
        %v3180 = vld [vmem:[#allocation7 + $0x238] sm:$0xff]
        %v3181 = vld [vmem:[#allocation7 + $0x240] sm:$0xff]
        %v3182 = vld [vmem:[#allocation7 + $0x248] sm:$0xff]
        %v3183 = vld [vmem:[#allocation7 + $0x250] sm:$0xff]
        %v3184 = vld [vmem:[#allocation7 + $0x258] sm:$0xff]
        %v3185 = vld [vmem:[#allocation7 + $0x260] sm:$0xff]
        %v3186 = vld [vmem:[#allocation7 + $0x268] sm:$0xff]
        %v3187 = vld [vmem:[#allocation7 + $0x270] sm:$0xff]
        %v3188 = vld [vmem:[#allocation7 + $0x278] sm:$0xff]
        %v3189 = vld [vmem:[#allocation7 + $0x280] sm:$0xff]
        %v3190 = vld [vmem:[#allocation7 + $0x288] sm:$0xff]
        %v3191 = vld [vmem:[#allocation7 + $0x290] sm:$0xff]
        %v3192 = vld [vmem:[#allocation7 + $0x298] sm:$0xff]
        %v3193 = vld [vmem:[#allocation7 + $0x2a0] sm:$0xff]
        %v3194 = vld [vmem:[#allocation7 + $0x2a8] sm:$0xff]
        %v3195 = vld [vmem:[#allocation7 + $0x2b0] sm:$0xff]
        %v3196 = vld [vmem:[#allocation7 + $0x2b8] sm:$0xff]
        %v3197 = vld [vmem:[#allocation7 + $0x2c0] sm:$0xff]
        %v3198 = vld [vmem:[#allocation7 + $0x2c8] sm:$0xff]
        %v3199 = vld [vmem:[#allocation7 + $0x2d0] sm:$0xff]
        %v3200 = vld [vmem:[#allocation7 + $0x2d8] sm:$0xff]
        %v3201 = vld [vmem:[#allocation7 + $0x2e0] sm:$0xff]
        %v3202 = vld [vmem:[#allocation7 + $0x2e8] sm:$0xff]
        %v3203 = vld [vmem:[#allocation7 + $0x2f0] sm:$0xff]
        %v3204 = vld [vmem:[#allocation7 + $0x2f8] sm:$0xff]
        %v3205 = vld [vmem:[#allocation7 + $0x300] sm:$0xff]
        %v3206 = vld [vmem:[#allocation7 + $0x308] sm:$0xff]
        %v3207 = vld [vmem:[#allocation7 + $0x310] sm:$0xff]
        %v3208 = vld [vmem:[#allocation7 + $0x318] sm:$0xff]
        %v3209 = vld [vmem:[#allocation7 + $0x320] sm:$0xff]
        %v3210 = vld [vmem:[#allocation7 + $0x328] sm:$0xff]
        %v3211 = vld [vmem:[#allocation7 + $0x330] sm:$0xff]
        %v3212 = vld [vmem:[#allocation7 + $0x338] sm:$0xff]
        %v3213 = vld [vmem:[#allocation7 + $0x340] sm:$0xff]
        %v3214 = vld [vmem:[#allocation7 + $0x348] sm:$0xff]
        %v3215 = vld [vmem:[#allocation7 + $0x350] sm:$0xff]
        %v3216 = vld [vmem:[#allocation7 + $0x358] sm:$0xff]
        %v3217 = vld [vmem:[#allocation7 + $0x360] sm:$0xff]
        %v3218 = vld [vmem:[#allocation7 + $0x368] sm:$0xff]
        %v3219 = vld [vmem:[#allocation7 + $0x370] sm:$0xff]
        %v3220 = vld [vmem:[#allocation7 + $0x378] sm:$0xff]
        %v3221 = vld [vmem:[#allocation7 + $0x380] sm:$0xff]
        %v3222 = vld [vmem:[#allocation7 + $0x388] sm:$0xff]
        %v3223 = vld [vmem:[#allocation7 + $0x390] sm:$0xff]
        %v3224 = vld [vmem:[#allocation7 + $0x398] sm:$0xff]
        %v3225 = vld [vmem:[#allocation7 + $0x3a0] sm:$0xff]
        %v3226 = vld [vmem:[#allocation7 + $0x3a8] sm:$0xff]
        %v3227 = vld [vmem:[#allocation7 + $0x3b0] sm:$0xff]
        %v3228 = vld [vmem:[#allocation7 + $0x3b8] sm:$0xff]
        %v3229 = vld [vmem:[#allocation7 + $0x3c0] sm:$0xff]
        %v3230 = vld [vmem:[#allocation7 + $0x3c8] sm:$0xff]
        %v3231 = vld [vmem:[#allocation7 + $0x3d0] sm:$0xff]
        %v3232 = vld [vmem:[#allocation7 + $0x3d8] sm:$0xff]
        %v3233 = vld [vmem:[#allocation7 + $0x3e0] sm:$0xff]
        %v3234 = vld [vmem:[#allocation7 + $0x3e8] sm:$0xff]
        %v3235 = vld [vmem:[#allocation7 + $0x3f0] sm:$0xff]
        %v3236 = vld [vmem:[#allocation7 + $0x3f8] sm:$0xff]
        %v3237 = vld [vmem:[%s8] sm:$0x3]
        %v3239 = vperm.slane %v3237, 0
        %v3240 = vperm.slane %v3237, 1
        %v3371 = vunpack.c.l.b16 %v3109
        %v3372 = vunpack.c.h.b16 %v3109
        %v3373 = vunpack.c.l.b16 %v3110
        %v3374 = vunpack.c.h.b16 %v3110
        %v3375 = vunpack.c.l.b16 %v3111
        %v3376 = vunpack.c.h.b16 %v3111
        %v3377 = vunpack.c.l.b16 %v3112
        %v3378 = vunpack.c.h.b16 %v3112
        %v3379 = vunpack.c.l.b16 %v3113
        %v3380 = vunpack.c.h.b16 %v3113
        %v3381 = vunpack.c.l.b16 %v3114
        %v3382 = vunpack.c.h.b16 %v3114
        %v3383 = vunpack.c.l.b16 %v3115
        %v3384 = vunpack.c.h.b16 %v3115
        %v3385 = vunpack.c.l.b16 %v3116
        %v3386 = vunpack.c.h.b16 %v3116
        %v3387 = vunpack.c.l.b16 %v3117
        %v3388 = vunpack.c.h.b16 %v3117
        %v3389 = vunpack.c.l.b16 %v3118
        %v3390 = vunpack.c.h.b16 %v3118
        %v3391 = vunpack.c.l.b16 %v3119
        %v3392 = vunpack.c.h.b16 %v3119
        %v3393 = vunpack.c.l.b16 %v3120
        %v3394 = vunpack.c.h.b16 %v3120
        %v3395 = vunpack.c.l.b16 %v3121
        %v3396 = vunpack.c.h.b16 %v3121
        %v3397 = vunpack.c.l.b16 %v3122
        %v3398 = vunpack.c.h.b16 %v3122
        %v3399 = vunpack.c.l.b16 %v3123
        %v3400 = vunpack.c.h.b16 %v3123
        %v3401 = vunpack.c.l.b16 %v3124
        %v3402 = vunpack.c.h.b16 %v3124
        %v3403 = vunpack.c.l.b16 %v3125
        %v3404 = vunpack.c.h.b16 %v3125
        %v3405 = vunpack.c.l.b16 %v3126
        %v3406 = vunpack.c.h.b16 %v3126
        %v3407 = vunpack.c.l.b16 %v3127
        %v3408 = vunpack.c.h.b16 %v3127
        %v3409 = vunpack.c.l.b16 %v3128
        %v3410 = vunpack.c.h.b16 %v3128
        %v3411 = vunpack.c.l.b16 %v3129
        %v3412 = vunpack.c.h.b16 %v3129
        %v3413 = vunpack.c.l.b16 %v3130
        %v3414 = vunpack.c.h.b16 %v3130
        %v3415 = vunpack.c.l.b16 %v3131
        %v3416 = vunpack.c.h.b16 %v3131
        %v3417 = vunpack.c.l.b16 %v3132
        %v3418 = vunpack.c.h.b16 %v3132
        %v3419 = vunpack.c.l.b16 %v3133
        %v3420 = vunpack.c.h.b16 %v3133
        %v3421 = vunpack.c.l.b16 %v3134
        %v3422 = vunpack.c.h.b16 %v3134
        %v3423 = vunpack.c.l.b16 %v3135
        %v3424 = vunpack.c.h.b16 %v3135
        %v3425 = vunpack.c.l.b16 %v3136
        %v3426 = vunpack.c.h.b16 %v3136
        %v3427 = vunpack.c.l.b16 %v3137
        %v3428 = vunpack.c.h.b16 %v3137
        %v3429 = vunpack.c.l.b16 %v3138
        %v3430 = vunpack.c.h.b16 %v3138
        %v3431 = vunpack.c.l.b16 %v3139
        %v3432 = vunpack.c.h.b16 %v3139
        %v3433 = vunpack.c.l.b16 %v3140
        %v3434 = vunpack.c.h.b16 %v3140
        %v3435 = vunpack.c.l.b16 %v3141
        %v3436 = vunpack.c.h.b16 %v3141
        %v3437 = vunpack.c.l.b16 %v3142
        %v3438 = vunpack.c.h.b16 %v3142
        %v3439 = vunpack.c.l.b16 %v3143
        %v3440 = vunpack.c.h.b16 %v3143
        %v3441 = vunpack.c.l.b16 %v3144
        %v3442 = vunpack.c.h.b16 %v3144
        %v3443 = vunpack.c.l.b16 %v3145
        %v3444 = vunpack.c.h.b16 %v3145
        %v3445 = vunpack.c.l.b16 %v3146
        %v3446 = vunpack.c.h.b16 %v3146
        %v3447 = vunpack.c.l.b16 %v3147
        %v3448 = vunpack.c.h.b16 %v3147
        %v3449 = vunpack.c.l.b16 %v3148
        %v3450 = vunpack.c.h.b16 %v3148
        %v3451 = vunpack.c.l.b16 %v3149
        %v3452 = vunpack.c.h.b16 %v3149
        %v3453 = vunpack.c.l.b16 %v3150
        %v3454 = vunpack.c.h.b16 %v3150
        %v3455 = vunpack.c.l.b16 %v3151
        %v3456 = vunpack.c.h.b16 %v3151
        %v3457 = vunpack.c.l.b16 %v3152
        %v3458 = vunpack.c.h.b16 %v3152
        %v3459 = vunpack.c.l.b16 %v3153
        %v3460 = vunpack.c.h.b16 %v3153
        %v3461 = vunpack.c.l.b16 %v3154
        %v3462 = vunpack.c.h.b16 %v3154
        %v3463 = vunpack.c.l.b16 %v3155
        %v3464 = vunpack.c.h.b16 %v3155
        %v3465 = vunpack.c.l.b16 %v3156
        %v3466 = vunpack.c.h.b16 %v3156
        %v3467 = vunpack.c.l.b16 %v3157
        %v3468 = vunpack.c.h.b16 %v3157
        %v3469 = vunpack.c.l.b16 %v3158
        %v3470 = vunpack.c.h.b16 %v3158
        %v3471 = vunpack.c.l.b16 %v3159
        %v3472 = vunpack.c.h.b16 %v3159
        %v3473 = vunpack.c.l.b16 %v3160
        %v3474 = vunpack.c.h.b16 %v3160
        %v3475 = vunpack.c.l.b16 %v3161
        %v3476 = vunpack.c.h.b16 %v3161
        %v3477 = vunpack.c.l.b16 %v3162
        %v3478 = vunpack.c.h.b16 %v3162
        %v3479 = vunpack.c.l.b16 %v3163
        %v3480 = vunpack.c.h.b16 %v3163
        %v3481 = vunpack.c.l.b16 %v3164
        %v3482 = vunpack.c.h.b16 %v3164
        %v3483 = vunpack.c.l.b16 %v3165
        %v3484 = vunpack.c.h.b16 %v3165
        %v3485 = vunpack.c.l.b16 %v3166
        %v3486 = vunpack.c.h.b16 %v3166
        %v3487 = vunpack.c.l.b16 %v3167
        %v3488 = vunpack.c.h.b16 %v3167
        %v3489 = vunpack.c.l.b16 %v3168
        %v3490 = vunpack.c.h.b16 %v3168
        %v3491 = vunpack.c.l.b16 %v3169
        %v3492 = vunpack.c.h.b16 %v3169
        %v3493 = vunpack.c.l.b16 %v3170
        %v3494 = vunpack.c.h.b16 %v3170
        %v3495 = vunpack.c.l.b16 %v3171
        %v3496 = vunpack.c.h.b16 %v3171
        %v3497 = vunpack.c.l.b16 %v3172
        %v3498 = vunpack.c.h.b16 %v3172
        %v3499 = vunpack.c.l.b16 %v3173
        %v3500 = vunpack.c.h.b16 %v3173
        %v3501 = vunpack.c.l.b16 %v3174
        %v3502 = vunpack.c.h.b16 %v3174
        %v3503 = vunpack.c.l.b16 %v3175
        %v3504 = vunpack.c.h.b16 %v3175
        %v3505 = vunpack.c.l.b16 %v3176
        %v3506 = vunpack.c.h.b16 %v3176
        %v3507 = vunpack.c.l.b16 %v3177
        %v3508 = vunpack.c.h.b16 %v3177
        %v3509 = vunpack.c.l.b16 %v3178
        %v3510 = vunpack.c.h.b16 %v3178
        %v3511 = vunpack.c.l.b16 %v3179
        %v3512 = vunpack.c.h.b16 %v3179
        %v3513 = vunpack.c.l.b16 %v3180
        %v3514 = vunpack.c.h.b16 %v3180
        %v3515 = vunpack.c.l.b16 %v3181
        %v3516 = vunpack.c.h.b16 %v3181
        %v3517 = vunpack.c.l.b16 %v3182
        %v3518 = vunpack.c.h.b16 %v3182
        %v3519 = vunpack.c.l.b16 %v3183
        %v3520 = vunpack.c.h.b16 %v3183
        %v3521 = vunpack.c.l.b16 %v3184
        %v3522 = vunpack.c.h.b16 %v3184
        %v3523 = vunpack.c.l.b16 %v3185
        %v3524 = vunpack.c.h.b16 %v3185
        %v3525 = vunpack.c.l.b16 %v3186
        %v3526 = vunpack.c.h.b16 %v3186
        %v3527 = vunpack.c.l.b16 %v3187
        %v3528 = vunpack.c.h.b16 %v3187
        %v3529 = vunpack.c.l.b16 %v3188
        %v3530 = vunpack.c.h.b16 %v3188
        %v3531 = vunpack.c.l.b16 %v3189
        %v3532 = vunpack.c.h.b16 %v3189
        %v3533 = vunpack.c.l.b16 %v3190
        %v3534 = vunpack.c.h.b16 %v3190
        %v3535 = vunpack.c.l.b16 %v3191
        %v3536 = vunpack.c.h.b16 %v3191
        %v3537 = vunpack.c.l.b16 %v3192
        %v3538 = vunpack.c.h.b16 %v3192
        %v3539 = vunpack.c.l.b16 %v3193
        %v3540 = vunpack.c.h.b16 %v3193
        %v3541 = vunpack.c.l.b16 %v3194
        %v3542 = vunpack.c.h.b16 %v3194
        %v3543 = vunpack.c.l.b16 %v3195
        %v3544 = vunpack.c.h.b16 %v3195
        %v3545 = vunpack.c.l.b16 %v3196
        %v3546 = vunpack.c.h.b16 %v3196
        %v3547 = vunpack.c.l.b16 %v3197
        %v3548 = vunpack.c.h.b16 %v3197
        %v3549 = vunpack.c.l.b16 %v3198
        %v3550 = vunpack.c.h.b16 %v3198
        %v3551 = vunpack.c.l.b16 %v3199
        %v3552 = vunpack.c.h.b16 %v3199
        %v3553 = vunpack.c.l.b16 %v3200
        %v3554 = vunpack.c.h.b16 %v3200
        %v3555 = vunpack.c.l.b16 %v3201
        %v3556 = vunpack.c.h.b16 %v3201
        %v3557 = vunpack.c.l.b16 %v3202
        %v3558 = vunpack.c.h.b16 %v3202
        %v3559 = vunpack.c.l.b16 %v3203
        %v3560 = vunpack.c.h.b16 %v3203
        %v3561 = vunpack.c.l.b16 %v3204
        %v3562 = vunpack.c.h.b16 %v3204
        %v3563 = vunpack.c.l.b16 %v3205
        %v3564 = vunpack.c.h.b16 %v3205
        %v3565 = vunpack.c.l.b16 %v3206
        %v3566 = vunpack.c.h.b16 %v3206
        %v3567 = vunpack.c.l.b16 %v3207
        %v3568 = vunpack.c.h.b16 %v3207
        %v3569 = vunpack.c.l.b16 %v3208
        %v3570 = vunpack.c.h.b16 %v3208
        %v3571 = vunpack.c.l.b16 %v3209
        %v3572 = vunpack.c.h.b16 %v3209
        %v3573 = vunpack.c.l.b16 %v3210
        %v3574 = vunpack.c.h.b16 %v3210
        %v3575 = vunpack.c.l.b16 %v3211
        %v3576 = vunpack.c.h.b16 %v3211
        %v3577 = vunpack.c.l.b16 %v3212
        %v3578 = vunpack.c.h.b16 %v3212
        %v3579 = vunpack.c.l.b16 %v3213
        %v3580 = vunpack.c.h.b16 %v3213
        %v3581 = vunpack.c.l.b16 %v3214
        %v3582 = vunpack.c.h.b16 %v3214
        %v3583 = vunpack.c.l.b16 %v3215
        %v3584 = vunpack.c.h.b16 %v3215
        %v3585 = vunpack.c.l.b16 %v3216
        %v3586 = vunpack.c.h.b16 %v3216
        %v3587 = vunpack.c.l.b16 %v3217
        %v3588 = vunpack.c.h.b16 %v3217
        %v3589 = vunpack.c.l.b16 %v3218
        %v3590 = vunpack.c.h.b16 %v3218
        %v3591 = vunpack.c.l.b16 %v3219
        %v3592 = vunpack.c.h.b16 %v3219
        %v3593 = vunpack.c.l.b16 %v3220
        %v3594 = vunpack.c.h.b16 %v3220
        %v3595 = vunpack.c.l.b16 %v3221
        %v3596 = vunpack.c.h.b16 %v3221
        %v3597 = vunpack.c.l.b16 %v3222
        %v3598 = vunpack.c.h.b16 %v3222
        %v3599 = vunpack.c.l.b16 %v3223
        %v3600 = vunpack.c.h.b16 %v3223
        %v3601 = vunpack.c.l.b16 %v3224
        %v3602 = vunpack.c.h.b16 %v3224
        %v3603 = vunpack.c.l.b16 %v3225
        %v3604 = vunpack.c.h.b16 %v3225
        %v3605 = vunpack.c.l.b16 %v3226
        %v3606 = vunpack.c.h.b16 %v3226
        %v3607 = vunpack.c.l.b16 %v3227
        %v3608 = vunpack.c.h.b16 %v3227
        %v3609 = vunpack.c.l.b16 %v3228
        %v3610 = vunpack.c.h.b16 %v3228
        %v3611 = vunpack.c.l.b16 %v3229
        %v3612 = vunpack.c.h.b16 %v3229
        %v3613 = vunpack.c.l.b16 %v3230
        %v3614 = vunpack.c.h.b16 %v3230
        %v3615 = vunpack.c.l.b16 %v3231
        %v3616 = vunpack.c.h.b16 %v3231
        %v3617 = vunpack.c.l.b16 %v3232
        %v3618 = vunpack.c.h.b16 %v3232
        %v3619 = vunpack.c.l.b16 %v3233
        %v3620 = vunpack.c.h.b16 %v3233
        %v3621 = vunpack.c.l.b16 %v3234
        %v3622 = vunpack.c.h.b16 %v3234
        %v3623 = vunpack.c.l.b16 %v3235
        %v3624 = vunpack.c.h.b16 %v3235
        %v3625 = vunpack.c.l.b16 %v3236
        %v3626 = vunpack.c.h.b16 %v3236
        %v3627 = vpack.c.b16 %v3373, %v3371
        %v3628 = vpack.c.b16 %v3374, %v3372
        %v3629 = vpack.c.b16 %v3377, %v3375
        %v3630 = vpack.c.b16 %v3378, %v3376
        %v3631 = vpack.c.b16 %v3381, %v3379
        %v3632 = vpack.c.b16 %v3382, %v3380
        %v3633 = vpack.c.b16 %v3385, %v3383
        %v3634 = vpack.c.b16 %v3386, %v3384
        %v3635 = vpack.c.b16 %v3389, %v3387
        %v3636 = vpack.c.b16 %v3390, %v3388
        %v3637 = vpack.c.b16 %v3393, %v3391
        %v3638 = vpack.c.b16 %v3394, %v3392
        %v3639 = vpack.c.b16 %v3397, %v3395
        %v3640 = vpack.c.b16 %v3398, %v3396
        %v3641 = vpack.c.b16 %v3401, %v3399
        %v3642 = vpack.c.b16 %v3402, %v3400
        %v3643 = vpack.c.b16 %v3405, %v3403
        %v3644 = vpack.c.b16 %v3406, %v3404
        %v3645 = vpack.c.b16 %v3409, %v3407
        %v3646 = vpack.c.b16 %v3410, %v3408
        %v3647 = vpack.c.b16 %v3413, %v3411
        %v3648 = vpack.c.b16 %v3414, %v3412
        %v3649 = vpack.c.b16 %v3417, %v3415
        %v3650 = vpack.c.b16 %v3418, %v3416
        %v3651 = vpack.c.b16 %v3421, %v3419
        %v3652 = vpack.c.b16 %v3422, %v3420
        %v3653 = vpack.c.b16 %v3425, %v3423
        %v3654 = vpack.c.b16 %v3426, %v3424
        %v3655 = vpack.c.b16 %v3429, %v3427
        %v3656 = vpack.c.b16 %v3430, %v3428
        %v3657 = vpack.c.b16 %v3433, %v3431
        %v3658 = vpack.c.b16 %v3434, %v3432
        %v3659 = vpack.c.b16 %v3437, %v3435
        %v3660 = vpack.c.b16 %v3438, %v3436
        %v3661 = vpack.c.b16 %v3441, %v3439
        %v3662 = vpack.c.b16 %v3442, %v3440
        %v3663 = vpack.c.b16 %v3445, %v3443
        %v3664 = vpack.c.b16 %v3446, %v3444
        %v3665 = vpack.c.b16 %v3449, %v3447
        %v3666 = vpack.c.b16 %v3450, %v3448
        %v3667 = vpack.c.b16 %v3453, %v3451
        %v3668 = vpack.c.b16 %v3454, %v3452
        %v3669 = vpack.c.b16 %v3457, %v3455
        %v3670 = vpack.c.b16 %v3458, %v3456
        %v3671 = vpack.c.b16 %v3461, %v3459
        %v3672 = vpack.c.b16 %v3462, %v3460
        %v3673 = vpack.c.b16 %v3465, %v3463
        %v3674 = vpack.c.b16 %v3466, %v3464
        %v3675 = vpack.c.b16 %v3469, %v3467
        %v3676 = vpack.c.b16 %v3470, %v3468
        %v3677 = vpack.c.b16 %v3473, %v3471
        %v3678 = vpack.c.b16 %v3474, %v3472
        %v3679 = vpack.c.b16 %v3477, %v3475
        %v3680 = vpack.c.b16 %v3478, %v3476
        %v3681 = vpack.c.b16 %v3481, %v3479
        %v3682 = vpack.c.b16 %v3482, %v3480
        %v3683 = vpack.c.b16 %v3485, %v3483
        %v3684 = vpack.c.b16 %v3486, %v3484
        %v3685 = vpack.c.b16 %v3489, %v3487
        %v3686 = vpack.c.b16 %v3490, %v3488
        %v3687 = vpack.c.b16 %v3493, %v3491
        %v3688 = vpack.c.b16 %v3494, %v3492
        %v3689 = vpack.c.b16 %v3497, %v3495
        %v3690 = vpack.c.b16 %v3498, %v3496
        %v3691 = vpack.c.b16 %v3501, %v3499
        %v3692 = vpack.c.b16 %v3502, %v3500
        %v3693 = vpack.c.b16 %v3505, %v3503
        %v3694 = vpack.c.b16 %v3506, %v3504
        %v3695 = vpack.c.b16 %v3509, %v3507
        %v3696 = vpack.c.b16 %v3510, %v3508
        %v3697 = vpack.c.b16 %v3513, %v3511
        %v3698 = vpack.c.b16 %v3514, %v3512
        %v3699 = vpack.c.b16 %v3517, %v3515
        %v3700 = vpack.c.b16 %v3518, %v3516
        %v3701 = vpack.c.b16 %v3521, %v3519
        %v3702 = vpack.c.b16 %v3522, %v3520
        %v3703 = vpack.c.b16 %v3525, %v3523
        %v3704 = vpack.c.b16 %v3526, %v3524
        %v3705 = vpack.c.b16 %v3529, %v3527
        %v3706 = vpack.c.b16 %v3530, %v3528
        %v3707 = vpack.c.b16 %v3533, %v3531
        %v3708 = vpack.c.b16 %v3534, %v3532
        %v3709 = vpack.c.b16 %v3537, %v3535
        %v3710 = vpack.c.b16 %v3538, %v3536
        %v3711 = vpack.c.b16 %v3541, %v3539
        %v3712 = vpack.c.b16 %v3542, %v3540
        %v3713 = vpack.c.b16 %v3545, %v3543
        %v3714 = vpack.c.b16 %v3546, %v3544
        %v3715 = vpack.c.b16 %v3549, %v3547
        %v3716 = vpack.c.b16 %v3550, %v3548
        %v3717 = vpack.c.b16 %v3553, %v3551
        %v3718 = vpack.c.b16 %v3554, %v3552
        %v3719 = vpack.c.b16 %v3557, %v3555
        %v3720 = vpack.c.b16 %v3558, %v3556
        %v3721 = vpack.c.b16 %v3561, %v3559
        %v3722 = vpack.c.b16 %v3562, %v3560
        %v3723 = vpack.c.b16 %v3565, %v3563
        %v3724 = vpack.c.b16 %v3566, %v3564
        %v3725 = vpack.c.b16 %v3569, %v3567
        %v3726 = vpack.c.b16 %v3570, %v3568
        %v3727 = vpack.c.b16 %v3573, %v3571
        %v3728 = vpack.c.b16 %v3574, %v3572
        %v3729 = vpack.c.b16 %v3577, %v3575
        %v3730 = vpack.c.b16 %v3578, %v3576
        %v3731 = vpack.c.b16 %v3581, %v3579
        %v3732 = vpack.c.b16 %v3582, %v3580
        %v3733 = vpack.c.b16 %v3585, %v3583
        %v3734 = vpack.c.b16 %v3586, %v3584
        %v3735 = vpack.c.b16 %v3589, %v3587
        %v3736 = vpack.c.b16 %v3590, %v3588
        %v3737 = vpack.c.b16 %v3593, %v3591
        %v3738 = vpack.c.b16 %v3594, %v3592
        %v3739 = vpack.c.b16 %v3597, %v3595
        %v3740 = vpack.c.b16 %v3598, %v3596
        %v3741 = vpack.c.b16 %v3601, %v3599
        %v3742 = vpack.c.b16 %v3602, %v3600
        %v3743 = vpack.c.b16 %v3605, %v3603
        %v3744 = vpack.c.b16 %v3606, %v3604
        %v3745 = vpack.c.b16 %v3609, %v3607
        %v3746 = vpack.c.b16 %v3610, %v3608
        %v3747 = vpack.c.b16 %v3613, %v3611
        %v3748 = vpack.c.b16 %v3614, %v3612
        %v3749 = vpack.c.b16 %v3617, %v3615
        %v3750 = vpack.c.b16 %v3618, %v3616
        %v3751 = vpack.c.b16 %v3621, %v3619
        %v3752 = vpack.c.b16 %v3622, %v3620
        %v3753 = vpack.c.b16 %v3625, %v3623
        %v3754 = vpack.c.b16 %v3626, %v3624
        %3883 = vmatpush.bf16.msra.mxu0 %v3641
        %3884 = vmatpush.bf16.msra.mxu0 %v3639
        %3885 = vmatpush.bf16.msra.mxu0 %v3637
        %3886 = vmatpush.bf16.msra.mxu0 %v3635
        %3887 = vmatpush.bf16.msra.mxu0 %v3633
        %3888 = vmatpush.bf16.msra.mxu0 %v3631
        %3889 = vmatpush.bf16.msra.mxu0 %v3629
        %3890 = vmatpush.bf16.msra.mxu0 %v3627
        %3891 = vmatmul.bf16.gmra.mxu0 %v3101
        %v3892 = vpop.f32.mrf.mxu0
        %v3893 = vadd.f32 %v3239, %v3892
        %v3894 = vpop.f32.mrf.mxu0
        %3895 = vdwg.mxu0
        %3896 = vmatpush.bf16.msra.mxu0 %v3657
        %3897 = vmatpush.bf16.msra.mxu0 %v3655
        %3898 = vmatpush.bf16.msra.mxu0 %v3653
        %3899 = vmatpush.bf16.msra.mxu0 %v3651
        %3900 = vmatpush.bf16.msra.mxu0 %v3649
        %3901 = vmatpush.bf16.msra.mxu0 %v3647
        %3902 = vmatpush.bf16.msra.mxu0 %v3645
        %3903 = vmatpush.bf16.msra.mxu0 %v3643
        %3904 = vmatmul.bf16.gmra.mxu0 %v3102
        %v3905 = vpop.f32.mrf.mxu0
        %v3906 = vadd.f32 %v3893, %v3905
        %v3907 = vpop.f32.mrf.mxu0
        %3908 = vdwg.mxu0
        %3909 = vmatpush.bf16.msra.mxu0 %v3673
        %3910 = vmatpush.bf16.msra.mxu0 %v3671
        %3911 = vmatpush.bf16.msra.mxu0 %v3669
        %3912 = vmatpush.bf16.msra.mxu0 %v3667
        %3913 = vmatpush.bf16.msra.mxu0 %v3665
        %3914 = vmatpush.bf16.msra.mxu0 %v3663
        %3915 = vmatpush.bf16.msra.mxu0 %v3661
        %3916 = vmatpush.bf16.msra.mxu0 %v3659
        %3917 = vmatmul.bf16.gmra.mxu0 %v3103
        %v3918 = vpop.f32.mrf.mxu0
        %v3919 = vadd.f32 %v3906, %v3918
        %v3920 = vpop.f32.mrf.mxu0
        %3921 = vdwg.mxu0
        %3922 = vmatpush.bf16.msra.mxu0 %v3689
        %3923 = vmatpush.bf16.msra.mxu0 %v3687
        %3924 = vmatpush.bf16.msra.mxu0 %v3685
        %3925 = vmatpush.bf16.msra.mxu0 %v3683
        %3926 = vmatpush.bf16.msra.mxu0 %v3681
        %3927 = vmatpush.bf16.msra.mxu0 %v3679
        %3928 = vmatpush.bf16.msra.mxu0 %v3677
        %3929 = vmatpush.bf16.msra.mxu0 %v3675
        %3930 = vmatmul.bf16.gmra.mxu0 %v3104
        %v3931 = vpop.f32.mrf.mxu0
        %v3932 = vadd.f32 %v3919, %v3931
        %v3933 = vpop.f32.mrf.mxu0
        %3934 = vdwg.mxu0
        %3935 = vmatpush.bf16.msra.mxu0 %v3705
        %3936 = vmatpush.bf16.msra.mxu0 %v3703
        %3937 = vmatpush.bf16.msra.mxu0 %v3701
        %3938 = vmatpush.bf16.msra.mxu0 %v3699
        %3939 = vmatpush.bf16.msra.mxu0 %v3697
        %3940 = vmatpush.bf16.msra.mxu0 %v3695
        %3941 = vmatpush.bf16.msra.mxu0 %v3693
        %3942 = vmatpush.bf16.msra.mxu0 %v3691
        %3943 = vmatmul.bf16.gmra.mxu0 %v3105
        %v3944 = vpop.f32.mrf.mxu0
        %v3945 = vadd.f32 %v3932, %v3944
        %v3946 = vpop.f32.mrf.mxu0
        %3947 = vdwg.mxu0
        %3948 = vmatpush.bf16.msra.mxu0 %v3721
        %3949 = vmatpush.bf16.msra.mxu0 %v3719
        %3950 = vmatpush.bf16.msra.mxu0 %v3717
        %3951 = vmatpush.bf16.msra.mxu0 %v3715
        %3952 = vmatpush.bf16.msra.mxu0 %v3713
        %3953 = vmatpush.bf16.msra.mxu0 %v3711
        %3954 = vmatpush.bf16.msra.mxu0 %v3709
        %3955 = vmatpush.bf16.msra.mxu0 %v3707
        %3956 = vmatmul.bf16.gmra.mxu0 %v3106
        %v3957 = vpop.f32.mrf.mxu0
        %v3958 = vadd.f32 %v3945, %v3957
        %v3959 = vpop.f32.mrf.mxu0
        %3960 = vdwg.mxu0
        %3961 = vmatpush.bf16.msra.mxu0 %v3737
        %3962 = vmatpush.bf16.msra.mxu0 %v3735
        %3963 = vmatpush.bf16.msra.mxu0 %v3733
        %3964 = vmatpush.bf16.msra.mxu0 %v3731
        %3965 = vmatpush.bf16.msra.mxu0 %v3729
        %3966 = vmatpush.bf16.msra.mxu0 %v3727
        %3967 = vmatpush.bf16.msra.mxu0 %v3725
        %3968 = vmatpush.bf16.msra.mxu0 %v3723
        %3969 = vmatmul.bf16.gmra.mxu0 %v3107
        %v3970 = vpop.f32.mrf.mxu0
        %v3971 = vadd.f32 %v3958, %v3970
        %v3972 = vpop.f32.mrf.mxu0
        %3973 = vdwg.mxu0
        %3974 = vmatpush.bf16.msra.mxu0 %v3753
        %3975 = vmatpush.bf16.msra.mxu0 %v3751
        %3976 = vmatpush.bf16.msra.mxu0 %v3749
        %3977 = vmatpush.bf16.msra.mxu0 %v3747
        %3978 = vmatpush.bf16.msra.mxu0 %v3745
        %3979 = vmatpush.bf16.msra.mxu0 %v3743
        %3980 = vmatpush.bf16.msra.mxu0 %v3741
        %3981 = vmatpush.bf16.msra.mxu0 %v3739
        %3982 = vmatmul.bf16.gmra.mxu0 %v3108
        %v3983 = vpop.f32.mrf.mxu0
        %v3984 = vadd.f32 %v3971, %v3983
        %v3985 = vpop.f32.mrf.mxu0
        %3986 = vdwg.mxu0
        %3987 = vmatpush.bf16.msra.mxu0 %v3642
        %3988 = vmatpush.bf16.msra.mxu0 %v3640
        %3989 = vmatpush.bf16.msra.mxu0 %v3638
        %3990 = vmatpush.bf16.msra.mxu0 %v3636
        %3991 = vmatpush.bf16.msra.mxu0 %v3634
        %3992 = vmatpush.bf16.msra.mxu0 %v3632
        %3993 = vmatpush.bf16.msra.mxu0 %v3630
        %3994 = vmatpush.bf16.msra.mxu0 %v3628
        %3995 = vmatmul.bf16.gmra.mxu0 %v3101
        %v3996 = vpop.f32.mrf.mxu0
        %v3997 = vadd.f32 %v3240, %v3996
        %v3998 = vpop.f32.mrf.mxu0
        %3999 = vdwg.mxu0
        %4000 = vmatpush.bf16.msra.mxu0 %v3658
        %4001 = vmatpush.bf16.msra.mxu0 %v3656
        %4002 = vmatpush.bf16.msra.mxu0 %v3654
        %4003 = vmatpush.bf16.msra.mxu0 %v3652
        %4004 = vmatpush.bf16.msra.mxu0 %v3650
        %4005 = vmatpush.bf16.msra.mxu0 %v3648
        %4006 = vmatpush.bf16.msra.mxu0 %v3646
        %4007 = vmatpush.bf16.msra.mxu0 %v3644
        %4008 = vmatmul.bf16.gmra.mxu0 %v3102
        %v4009 = vpop.f32.mrf.mxu0
        %v4010 = vadd.f32 %v3997, %v4009
        %v4011 = vpop.f32.mrf.mxu0
        %4012 = vdwg.mxu0
        %4013 = vmatpush.bf16.msra.mxu0 %v3674
        %4014 = vmatpush.bf16.msra.mxu0 %v3672
        %4015 = vmatpush.bf16.msra.mxu0 %v3670
        %4016 = vmatpush.bf16.msra.mxu0 %v3668
        %4017 = vmatpush.bf16.msra.mxu0 %v3666
        %4018 = vmatpush.bf16.msra.mxu0 %v3664
        %4019 = vmatpush.bf16.msra.mxu0 %v3662
        %4020 = vmatpush.bf16.msra.mxu0 %v3660
        %4021 = vmatmul.bf16.gmra.mxu0 %v3103
        %v4022 = vpop.f32.mrf.mxu0
        %v4023 = vadd.f32 %v4010, %v4022
        %v4024 = vpop.f32.mrf.mxu0
        %4025 = vdwg.mxu0
        %4026 = vmatpush.bf16.msra.mxu0 %v3690
        %4027 = vmatpush.bf16.msra.mxu0 %v3688
        %4028 = vmatpush.bf16.msra.mxu0 %v3686
        %4029 = vmatpush.bf16.msra.mxu0 %v3684
        %4030 = vmatpush.bf16.msra.mxu0 %v3682
        %4031 = vmatpush.bf16.msra.mxu0 %v3680
        %4032 = vmatpush.bf16.msra.mxu0 %v3678
        %4033 = vmatpush.bf16.msra.mxu0 %v3676
        %4034 = vmatmul.bf16.gmra.mxu0 %v3104
        %v4035 = vpop.f32.mrf.mxu0
        %v4036 = vadd.f32 %v4023, %v4035
        %v4037 = vpop.f32.mrf.mxu0
        %4038 = vdwg.mxu0
        %4039 = vmatpush.bf16.msra.mxu0 %v3706
        %4040 = vmatpush.bf16.msra.mxu0 %v3704
        %4041 = vmatpush.bf16.msra.mxu0 %v3702
        %4042 = vmatpush.bf16.msra.mxu0 %v3700
        %4043 = vmatpush.bf16.msra.mxu0 %v3698
        %4044 = vmatpush.bf16.msra.mxu0 %v3696
        %4045 = vmatpush.bf16.msra.mxu0 %v3694
        %4046 = vmatpush.bf16.msra.mxu0 %v3692
        %4047 = vmatmul.bf16.gmra.mxu0 %v3105
        %v4048 = vpop.f32.mrf.mxu0
        %v4049 = vadd.f32 %v4036, %v4048
        %v4050 = vpop.f32.mrf.mxu0
        %4051 = vdwg.mxu0
        %4052 = vmatpush.bf16.msra.mxu0 %v3722
        %4053 = vmatpush.bf16.msra.mxu0 %v3720
        %4054 = vmatpush.bf16.msra.mxu0 %v3718
        %4055 = vmatpush.bf16.msra.mxu0 %v3716
        %4056 = vmatpush.bf16.msra.mxu0 %v3714
        %4057 = vmatpush.bf16.msra.mxu0 %v3712
        %4058 = vmatpush.bf16.msra.mxu0 %v3710
        %4059 = vmatpush.bf16.msra.mxu0 %v3708
        %4060 = vmatmul.bf16.gmra.mxu0 %v3106
        %v4061 = vpop.f32.mrf.mxu0
        %v4062 = vadd.f32 %v4049, %v4061
        %v4063 = vpop.f32.mrf.mxu0
        %4064 = vdwg.mxu0
        %4065 = vmatpush.bf16.msra.mxu0 %v3738
        %4066 = vmatpush.bf16.msra.mxu0 %v3736
        %4067 = vmatpush.bf16.msra.mxu0 %v3734
        %4068 = vmatpush.bf16.msra.mxu0 %v3732
        %4069 = vmatpush.bf16.msra.mxu0 %v3730
        %4070 = vmatpush.bf16.msra.mxu0 %v3728
        %4071 = vmatpush.bf16.msra.mxu0 %v3726
        %4072 = vmatpush.bf16.msra.mxu0 %v3724
        %4073 = vmatmul.bf16.gmra.mxu0 %v3107
        %v4074 = vpop.f32.mrf.mxu0
        %v4075 = vadd.f32 %v4062, %v4074
        %v4076 = vpop.f32.mrf.mxu0
        %4077 = vdwg.mxu0
        %4078 = vmatpush.bf16.msra.mxu0 %v3754
        %4079 = vmatpush.bf16.msra.mxu0 %v3752
        %4080 = vmatpush.bf16.msra.mxu0 %v3750
        %4081 = vmatpush.bf16.msra.mxu0 %v3748
        %4082 = vmatpush.bf16.msra.mxu0 %v3746
        %4083 = vmatpush.bf16.msra.mxu0 %v3744
        %4084 = vmatpush.bf16.msra.mxu0 %v3742
        %4085 = vmatpush.bf16.msra.mxu0 %v3740
        %4086 = vmatmul.bf16.gmra.mxu0 %v3108
        %v4087 = vpop.f32.mrf.mxu0
        %v4088 = vadd.f32 %v4075, %v4087
        %v4089 = vpop.f32.mrf.mxu0
        %4090 = vdwg.mxu0
        %v4091 = vadd.f32 %v2095, %v3984
        %v4092 = vadd.f32 %v2096, %v4088
        %v4093 = vld [vmem:[%s11] sm:$0x3]
        %v4094 = vld [vmem:[%s12] sm:$0x3]
        %v4095 = vadd.f32 %v4091, %v4092
        %4096 = vadd.xlane.f32.xlu0 %v4095
        %v4097 = vpop.xlane.xlu0 %4096
        %v4098 = vmul.f32 %v4097, %v2060
        %v4099 = vsub.f32 %v4091, %v4098
        %v4100 = vsub.f32 %v4092, %v4098
        %v4101 = vmul.f32 %v4099, %v4099
        %v4102 = vmul.f32 %v4100, %v4100
        %v4103 = vadd.f32 %v4101, %v4102
        %4104 = vadd.xlane.f32.xlu0 %v4103
        %v4105 = vpop.xlane.xlu0 %4104
        %v4106 = vmul.f32 %v4105, %v2060
        %v4107 = vadd.f32 %v4106, 1e-05
        %v4108 = vrsqrt.pop %v4107
        %v4109 = vmul.f32 %v4108, %v4107
        %v4110 = vmul.f32 %v4109, %v4108
        %v4111 = vmul.f32 0.5, %v4110
        %v4112 = vsub.f32 1.5, %v4111
        %v4113 = vmul.f32 %v4108, %v4112
        %vm4114 = vweird.f32 %v4107
        %vm4115 = vweird.f32 %v4108
        %vm4116 = vmor %vm4114, %vm4115
        %v4117 = vsel %vm4116, %v4108, %v4113
        %v4118 = vmul.f32 %v4099, %v4117
        %v4119 = vmul.f32 %v4100, %v4117
        %v4121 = vperm.slane %v4093, 0
        %v4122 = vperm.slane %v4093, 1
        %v4125 = vmul.f32 %v4118, %v4121
        %v4126 = vmul.f32 %v4119, %v4122
        %v4128 = vperm.slane %v4094, 0
        %v4129 = vperm.slane %v4094, 1
        %v4132 = vadd.f32 %v4125, %v4128
        %v4133 = vadd.f32 %v4126, %v4129
        %v4134 = vpack.c.bf16 %v4132, %v4132
        %v4135 = vpack.c.bf16 %v4133, %v4133
        %s4136 = scalar_lea.vmem [#allocation2], 768
        %v4137 = vld [vmem:[%s4136] sm:$0xff]
        %v4138 = vld [vmem:[%s4136 + $0x8] sm:$0xff]
        %v4139 = vld [vmem:[%s4136 + $0x10] sm:$0xff]
        %v4140 = vld [vmem:[%s4136 + $0x18] sm:$0xff]
        %v4141 = vld [vmem:[%s4136 + $0x20] sm:$0xff]
        %v4142 = vld [vmem:[%s4136 + $0x28] sm:$0xff]
        %v4143 = vld [vmem:[%s4136 + $0x30] sm:$0xff]
        %v4144 = vld [vmem:[%s4136 + $0x38] sm:$0xff]
        %v4145 = vld [vmem:[%s4136 + $0x40] sm:$0xff]
        %v4146 = vld [vmem:[%s4136 + $0x48] sm:$0xff]
        %v4147 = vld [vmem:[%s4136 + $0x50] sm:$0xff]
        %v4148 = vld [vmem:[%s4136 + $0x58] sm:$0xff]
        %v4149 = vld [vmem:[%s4136 + $0x60] sm:$0xff]
        %v4150 = vld [vmem:[%s4136 + $0x68] sm:$0xff]
        %v4151 = vld [vmem:[%s4136 + $0x70] sm:$0xff]
        %v4152 = vld [vmem:[%s4136 + $0x78] sm:$0xff]
        %v4153 = vld [vmem:[%s4136 + $0x80] sm:$0xff]
        %v4154 = vld [vmem:[%s4136 + $0x88] sm:$0xff]
        %v4155 = vld [vmem:[%s4136 + $0x90] sm:$0xff]
        %v4156 = vld [vmem:[%s4136 + $0x98] sm:$0xff]
        %v4157 = vld [vmem:[%s4136 + $0xa0] sm:$0xff]
        %v4158 = vld [vmem:[%s4136 + $0xa8] sm:$0xff]
        %v4159 = vld [vmem:[%s4136 + $0xb0] sm:$0xff]
        %v4160 = vld [vmem:[%s4136 + $0xb8] sm:$0xff]
        %v4161 = vld [vmem:[%s4136 + $0xc0] sm:$0xff]
        %v4162 = vld [vmem:[%s4136 + $0xc8] sm:$0xff]
        %v4163 = vld [vmem:[%s4136 + $0xd0] sm:$0xff]
        %v4164 = vld [vmem:[%s4136 + $0xd8] sm:$0xff]
        %v4165 = vld [vmem:[%s4136 + $0xe0] sm:$0xff]
        %v4166 = vld [vmem:[%s4136 + $0xe8] sm:$0xff]
        %v4167 = vld [vmem:[%s4136 + $0xf0] sm:$0xff]
        %v4168 = vld [vmem:[%s4136 + $0xf8] sm:$0xff]
        %v4169 = vld [vmem:[%s4136 + $0x100] sm:$0xff]
        %v4170 = vld [vmem:[%s4136 + $0x108] sm:$0xff]
        %v4171 = vld [vmem:[%s4136 + $0x110] sm:$0xff]
        %v4172 = vld [vmem:[%s4136 + $0x118] sm:$0xff]
        %v4173 = vld [vmem:[%s4136 + $0x120] sm:$0xff]
        %v4174 = vld [vmem:[%s4136 + $0x128] sm:$0xff]
        %v4175 = vld [vmem:[%s4136 + $0x130] sm:$0xff]
        %v4176 = vld [vmem:[%s4136 + $0x138] sm:$0xff]
        %v4177 = vld [vmem:[%s4136 + $0x140] sm:$0xff]
        %v4178 = vld [vmem:[%s4136 + $0x148] sm:$0xff]
        %v4179 = vld [vmem:[%s4136 + $0x150] sm:$0xff]
        %v4180 = vld [vmem:[%s4136 + $0x158] sm:$0xff]
        %v4181 = vld [vmem:[%s4136 + $0x160] sm:$0xff]
        %v4182 = vld [vmem:[%s4136 + $0x168] sm:$0xff]
        %v4183 = vld [vmem:[%s4136 + $0x170] sm:$0xff]
        %v4184 = vld [vmem:[%s4136 + $0x178] sm:$0xff]
        %v4185 = vld [vmem:[%s4136 + $0x180] sm:$0xff]
        %v4186 = vld [vmem:[%s4136 + $0x188] sm:$0xff]
        %v4187 = vld [vmem:[%s4136 + $0x190] sm:$0xff]
        %v4188 = vld [vmem:[%s4136 + $0x198] sm:$0xff]
        %v4189 = vld [vmem:[%s4136 + $0x1a0] sm:$0xff]
        %v4190 = vld [vmem:[%s4136 + $0x1a8] sm:$0xff]
        %v4191 = vld [vmem:[%s4136 + $0x1b0] sm:$0xff]
        %v4192 = vld [vmem:[%s4136 + $0x1b8] sm:$0xff]
        %v4193 = vld [vmem:[%s4136 + $0x1c0] sm:$0xff]
        %v4194 = vld [vmem:[%s4136 + $0x1c8] sm:$0xff]
        %v4195 = vld [vmem:[%s4136 + $0x1d0] sm:$0xff]
        %v4196 = vld [vmem:[%s4136 + $0x1d8] sm:$0xff]
        %v4197 = vld [vmem:[%s4136 + $0x1e0] sm:$0xff]
        %v4198 = vld [vmem:[%s4136 + $0x1e8] sm:$0xff]
        %v4199 = vld [vmem:[%s4136 + $0x1f0] sm:$0xff]
        %v4200 = vld [vmem:[%s4136 + $0x1f8] sm:$0xff]
        %v4201 = vld [vmem:[%s4136 + $0x200] sm:$0xff]
        %v4202 = vld [vmem:[%s4136 + $0x208] sm:$0xff]
        %v4203 = vld [vmem:[%s4136 + $0x210] sm:$0xff]
        %v4204 = vld [vmem:[%s4136 + $0x218] sm:$0xff]
        %v4205 = vld [vmem:[%s4136 + $0x220] sm:$0xff]
        %v4206 = vld [vmem:[%s4136 + $0x228] sm:$0xff]
        %v4207 = vld [vmem:[%s4136 + $0x230] sm:$0xff]
        %v4208 = vld [vmem:[%s4136 + $0x238] sm:$0xff]
        %v4209 = vld [vmem:[%s4136 + $0x240] sm:$0xff]
        %v4210 = vld [vmem:[%s4136 + $0x248] sm:$0xff]
        %v4211 = vld [vmem:[%s4136 + $0x250] sm:$0xff]
        %v4212 = vld [vmem:[%s4136 + $0x258] sm:$0xff]
        %v4213 = vld [vmem:[%s4136 + $0x260] sm:$0xff]
        %v4214 = vld [vmem:[%s4136 + $0x268] sm:$0xff]
        %v4215 = vld [vmem:[%s4136 + $0x270] sm:$0xff]
        %v4216 = vld [vmem:[%s4136 + $0x278] sm:$0xff]
        %v4217 = vld [vmem:[%s4136 + $0x280] sm:$0xff]
        %v4218 = vld [vmem:[%s4136 + $0x288] sm:$0xff]
        %v4219 = vld [vmem:[%s4136 + $0x290] sm:$0xff]
        %v4220 = vld [vmem:[%s4136 + $0x298] sm:$0xff]
        %v4221 = vld [vmem:[%s4136 + $0x2a0] sm:$0xff]
        %v4222 = vld [vmem:[%s4136 + $0x2a8] sm:$0xff]
        %v4223 = vld [vmem:[%s4136 + $0x2b0] sm:$0xff]
        %v4224 = vld [vmem:[%s4136 + $0x2b8] sm:$0xff]
        %v4225 = vld [vmem:[%s4136 + $0x2c0] sm:$0xff]
        %v4226 = vld [vmem:[%s4136 + $0x2c8] sm:$0xff]
        %v4227 = vld [vmem:[%s4136 + $0x2d0] sm:$0xff]
        %v4228 = vld [vmem:[%s4136 + $0x2d8] sm:$0xff]
        %v4229 = vld [vmem:[%s4136 + $0x2e0] sm:$0xff]
        %v4230 = vld [vmem:[%s4136 + $0x2e8] sm:$0xff]
        %v4231 = vld [vmem:[%s4136 + $0x2f0] sm:$0xff]
        %v4232 = vld [vmem:[%s4136 + $0x2f8] sm:$0xff]
        %s4233 = scalar_lea.vmem %s2, 6
        %v4234 = vld [vmem:[%s4233] sm:$0x3f]
        %v4236 = vperm.slane %v4234, 0
        %v4237 = vperm.slane %v4234, 1
        %v4238 = vperm.slane %v4234, 2
        %v4239 = vperm.slane %v4234, 3
        %v4240 = vperm.slane %v4234, 4
        %v4241 = vperm.slane %v4234, 5
        %v4344 = vunpack.c.l.b16 %v4137
        %v4345 = vunpack.c.h.b16 %v4137
        %v4346 = vunpack.c.l.b16 %v4138
        %v4347 = vunpack.c.h.b16 %v4138
        %v4348 = vunpack.c.l.b16 %v4139
        %v4349 = vunpack.c.h.b16 %v4139
        %v4350 = vunpack.c.l.b16 %v4140
        %v4351 = vunpack.c.h.b16 %v4140
        %v4352 = vunpack.c.l.b16 %v4141
        %v4353 = vunpack.c.h.b16 %v4141
        %v4354 = vunpack.c.l.b16 %v4142
        %v4355 = vunpack.c.h.b16 %v4142
        %v4356 = vunpack.c.l.b16 %v4143
        %v4357 = vunpack.c.h.b16 %v4143
        %v4358 = vunpack.c.l.b16 %v4144
        %v4359 = vunpack.c.h.b16 %v4144
        %v4360 = vunpack.c.l.b16 %v4145
        %v4361 = vunpack.c.h.b16 %v4145
        %v4362 = vunpack.c.l.b16 %v4146
        %v4363 = vunpack.c.h.b16 %v4146
        %v4364 = vunpack.c.l.b16 %v4147
        %v4365 = vunpack.c.h.b16 %v4147
        %v4366 = vunpack.c.l.b16 %v4148
        %v4367 = vunpack.c.h.b16 %v4148
        %v4368 = vunpack.c.l.b16 %v4149
        %v4369 = vunpack.c.h.b16 %v4149
        %v4370 = vunpack.c.l.b16 %v4150
        %v4371 = vunpack.c.h.b16 %v4150
        %v4372 = vunpack.c.l.b16 %v4151
        %v4373 = vunpack.c.h.b16 %v4151
        %v4374 = vunpack.c.l.b16 %v4152
        %v4375 = vunpack.c.h.b16 %v4152
        %v4376 = vunpack.c.l.b16 %v4153
        %v4377 = vunpack.c.h.b16 %v4153
        %v4378 = vunpack.c.l.b16 %v4154
        %v4379 = vunpack.c.h.b16 %v4154
        %v4380 = vunpack.c.l.b16 %v4155
        %v4381 = vunpack.c.h.b16 %v4155
        %v4382 = vunpack.c.l.b16 %v4156
        %v4383 = vunpack.c.h.b16 %v4156
        %v4384 = vunpack.c.l.b16 %v4157
        %v4385 = vunpack.c.h.b16 %v4157
        %v4386 = vunpack.c.l.b16 %v4158
        %v4387 = vunpack.c.h.b16 %v4158
        %v4388 = vunpack.c.l.b16 %v4159
        %v4389 = vunpack.c.h.b16 %v4159
        %v4390 = vunpack.c.l.b16 %v4160
        %v4391 = vunpack.c.h.b16 %v4160
        %v4392 = vunpack.c.l.b16 %v4161
        %v4393 = vunpack.c.h.b16 %v4161
        %v4394 = vunpack.c.l.b16 %v4162
        %v4395 = vunpack.c.h.b16 %v4162
        %v4396 = vunpack.c.l.b16 %v4163
        %v4397 = vunpack.c.h.b16 %v4163
        %v4398 = vunpack.c.l.b16 %v4164
        %v4399 = vunpack.c.h.b16 %v4164
        %v4400 = vunpack.c.l.b16 %v4165
        %v4401 = vunpack.c.h.b16 %v4165
        %v4402 = vunpack.c.l.b16 %v4166
        %v4403 = vunpack.c.h.b16 %v4166
        %v4404 = vunpack.c.l.b16 %v4167
        %v4405 = vunpack.c.h.b16 %v4167
        %v4406 = vunpack.c.l.b16 %v4168
        %v4407 = vunpack.c.h.b16 %v4168
        %v4408 = vunpack.c.l.b16 %v4169
        %v4409 = vunpack.c.h.b16 %v4169
        %v4410 = vunpack.c.l.b16 %v4170
        %v4411 = vunpack.c.h.b16 %v4170
        %v4412 = vunpack.c.l.b16 %v4171
        %v4413 = vunpack.c.h.b16 %v4171
        %v4414 = vunpack.c.l.b16 %v4172
        %v4415 = vunpack.c.h.b16 %v4172
        %v4416 = vunpack.c.l.b16 %v4173
        %v4417 = vunpack.c.h.b16 %v4173
        %v4418 = vunpack.c.l.b16 %v4174
        %v4419 = vunpack.c.h.b16 %v4174
        %v4420 = vunpack.c.l.b16 %v4175
        %v4421 = vunpack.c.h.b16 %v4175
        %v4422 = vunpack.c.l.b16 %v4176
        %v4423 = vunpack.c.h.b16 %v4176
        %v4424 = vunpack.c.l.b16 %v4177
        %v4425 = vunpack.c.h.b16 %v4177
        %v4426 = vunpack.c.l.b16 %v4178
        %v4427 = vunpack.c.h.b16 %v4178
        %v4428 = vunpack.c.l.b16 %v4179
        %v4429 = vunpack.c.h.b16 %v4179
        %v4430 = vunpack.c.l.b16 %v4180
        %v4431 = vunpack.c.h.b16 %v4180
        %v4432 = vunpack.c.l.b16 %v4181
        %v4433 = vunpack.c.h.b16 %v4181
        %v4434 = vunpack.c.l.b16 %v4182
        %v4435 = vunpack.c.h.b16 %v4182
        %v4436 = vunpack.c.l.b16 %v4183
        %v4437 = vunpack.c.h.b16 %v4183
        %v4438 = vunpack.c.l.b16 %v4184
        %v4439 = vunpack.c.h.b16 %v4184
        %v4440 = vunpack.c.l.b16 %v4185
        %v4441 = vunpack.c.h.b16 %v4185
        %v4442 = vunpack.c.l.b16 %v4186
        %v4443 = vunpack.c.h.b16 %v4186
        %v4444 = vunpack.c.l.b16 %v4187
        %v4445 = vunpack.c.h.b16 %v4187
        %v4446 = vunpack.c.l.b16 %v4188
        %v4447 = vunpack.c.h.b16 %v4188
        %v4448 = vunpack.c.l.b16 %v4189
        %v4449 = vunpack.c.h.b16 %v4189
        %v4450 = vunpack.c.l.b16 %v4190
        %v4451 = vunpack.c.h.b16 %v4190
        %v4452 = vunpack.c.l.b16 %v4191
        %v4453 = vunpack.c.h.b16 %v4191
        %v4454 = vunpack.c.l.b16 %v4192
        %v4455 = vunpack.c.h.b16 %v4192
        %v4456 = vunpack.c.l.b16 %v4193
        %v4457 = vunpack.c.h.b16 %v4193
        %v4458 = vunpack.c.l.b16 %v4194
        %v4459 = vunpack.c.h.b16 %v4194
        %v4460 = vunpack.c.l.b16 %v4195
        %v4461 = vunpack.c.h.b16 %v4195
        %v4462 = vunpack.c.l.b16 %v4196
        %v4463 = vunpack.c.h.b16 %v4196
        %v4464 = vunpack.c.l.b16 %v4197
        %v4465 = vunpack.c.h.b16 %v4197
        %v4466 = vunpack.c.l.b16 %v4198
        %v4467 = vunpack.c.h.b16 %v4198
        %v4468 = vunpack.c.l.b16 %v4199
        %v4469 = vunpack.c.h.b16 %v4199
        %v4470 = vunpack.c.l.b16 %v4200
        %v4471 = vunpack.c.h.b16 %v4200
        %v4472 = vunpack.c.l.b16 %v4201
        %v4473 = vunpack.c.h.b16 %v4201
        %v4474 = vunpack.c.l.b16 %v4202
        %v4475 = vunpack.c.h.b16 %v4202
        %v4476 = vunpack.c.l.b16 %v4203
        %v4477 = vunpack.c.h.b16 %v4203
        %v4478 = vunpack.c.l.b16 %v4204
        %v4479 = vunpack.c.h.b16 %v4204
        %v4480 = vunpack.c.l.b16 %v4205
        %v4481 = vunpack.c.h.b16 %v4205
        %v4482 = vunpack.c.l.b16 %v4206
        %v4483 = vunpack.c.h.b16 %v4206
        %v4484 = vunpack.c.l.b16 %v4207
        %v4485 = vunpack.c.h.b16 %v4207
        %v4486 = vunpack.c.l.b16 %v4208
        %v4487 = vunpack.c.h.b16 %v4208
        %v4488 = vunpack.c.l.b16 %v4209
        %v4489 = vunpack.c.h.b16 %v4209
        %v4490 = vunpack.c.l.b16 %v4210
        %v4491 = vunpack.c.h.b16 %v4210
        %v4492 = vunpack.c.l.b16 %v4211
        %v4493 = vunpack.c.h.b16 %v4211
        %v4494 = vunpack.c.l.b16 %v4212
        %v4495 = vunpack.c.h.b16 %v4212
        %v4496 = vunpack.c.l.b16 %v4213
        %v4497 = vunpack.c.h.b16 %v4213
        %v4498 = vunpack.c.l.b16 %v4214
        %v4499 = vunpack.c.h.b16 %v4214
        %v4500 = vunpack.c.l.b16 %v4215
        %v4501 = vunpack.c.h.b16 %v4215
        %v4502 = vunpack.c.l.b16 %v4216
        %v4503 = vunpack.c.h.b16 %v4216
        %v4504 = vunpack.c.l.b16 %v4217
        %v4505 = vunpack.c.h.b16 %v4217
        %v4506 = vunpack.c.l.b16 %v4218
        %v4507 = vunpack.c.h.b16 %v4218
        %v4508 = vunpack.c.l.b16 %v4219
        %v4509 = vunpack.c.h.b16 %v4219
        %v4510 = vunpack.c.l.b16 %v4220
        %v4511 = vunpack.c.h.b16 %v4220
        %v4512 = vunpack.c.l.b16 %v4221
        %v4513 = vunpack.c.h.b16 %v4221
        %v4514 = vunpack.c.l.b16 %v4222
        %v4515 = vunpack.c.h.b16 %v4222
        %v4516 = vunpack.c.l.b16 %v4223
        %v4517 = vunpack.c.h.b16 %v4223
        %v4518 = vunpack.c.l.b16 %v4224
        %v4519 = vunpack.c.h.b16 %v4224
        %v4520 = vunpack.c.l.b16 %v4225
        %v4521 = vunpack.c.h.b16 %v4225
        %v4522 = vunpack.c.l.b16 %v4226
        %v4523 = vunpack.c.h.b16 %v4226
        %v4524 = vunpack.c.l.b16 %v4227
        %v4525 = vunpack.c.h.b16 %v4227
        %v4526 = vunpack.c.l.b16 %v4228
        %v4527 = vunpack.c.h.b16 %v4228
        %v4528 = vunpack.c.l.b16 %v4229
        %v4529 = vunpack.c.h.b16 %v4229
        %v4530 = vunpack.c.l.b16 %v4230
        %v4531 = vunpack.c.h.b16 %v4230
        %v4532 = vunpack.c.l.b16 %v4231
        %v4533 = vunpack.c.h.b16 %v4231
        %v4534 = vunpack.c.l.b16 %v4232
        %v4535 = vunpack.c.h.b16 %v4232
        %v4536 = vpack.c.b16 %v4350, %v4344
        %v4537 = vpack.c.b16 %v4351, %v4345
        %v4538 = vpack.c.b16 %v4352, %v4346
        %v4539 = vpack.c.b16 %v4353, %v4347
        %v4540 = vpack.c.b16 %v4354, %v4348
        %v4541 = vpack.c.b16 %v4355, %v4349
        %v4542 = vpack.c.b16 %v4362, %v4356
        %v4543 = vpack.c.b16 %v4363, %v4357
        %v4544 = vpack.c.b16 %v4364, %v4358
        %v4545 = vpack.c.b16 %v4365, %v4359
        %v4546 = vpack.c.b16 %v4366, %v4360
        %v4547 = vpack.c.b16 %v4367, %v4361
        %v4548 = vpack.c.b16 %v4374, %v4368
        %v4549 = vpack.c.b16 %v4375, %v4369
        %v4550 = vpack.c.b16 %v4376, %v4370
        %v4551 = vpack.c.b16 %v4377, %v4371
        %v4552 = vpack.c.b16 %v4378, %v4372
        %v4553 = vpack.c.b16 %v4379, %v4373
        %v4554 = vpack.c.b16 %v4386, %v4380
        %v4555 = vpack.c.b16 %v4387, %v4381
        %v4556 = vpack.c.b16 %v4388, %v4382
        %v4557 = vpack.c.b16 %v4389, %v4383
        %v4558 = vpack.c.b16 %v4390, %v4384
        %v4559 = vpack.c.b16 %v4391, %v4385
        %v4560 = vpack.c.b16 %v4398, %v4392
        %v4561 = vpack.c.b16 %v4399, %v4393
        %v4562 = vpack.c.b16 %v4400, %v4394
        %v4563 = vpack.c.b16 %v4401, %v4395
        %v4564 = vpack.c.b16 %v4402, %v4396
        %v4565 = vpack.c.b16 %v4403, %v4397
        %v4566 = vpack.c.b16 %v4410, %v4404
        %v4567 = vpack.c.b16 %v4411, %v4405
        %v4568 = vpack.c.b16 %v4412, %v4406
        %v4569 = vpack.c.b16 %v4413, %v4407
        %v4570 = vpack.c.b16 %v4414, %v4408
        %v4571 = vpack.c.b16 %v4415, %v4409
        %v4572 = vpack.c.b16 %v4422, %v4416
        %v4573 = vpack.c.b16 %v4423, %v4417
        %v4574 = vpack.c.b16 %v4424, %v4418
        %v4575 = vpack.c.b16 %v4425, %v4419
        %v4576 = vpack.c.b16 %v4426, %v4420
        %v4577 = vpack.c.b16 %v4427, %v4421
        %v4578 = vpack.c.b16 %v4434, %v4428
        %v4579 = vpack.c.b16 %v4435, %v4429
        %v4580 = vpack.c.b16 %v4436, %v4430
        %v4581 = vpack.c.b16 %v4437, %v4431
        %v4582 = vpack.c.b16 %v4438, %v4432
        %v4583 = vpack.c.b16 %v4439, %v4433
        %v4584 = vpack.c.b16 %v4446, %v4440
        %v4585 = vpack.c.b16 %v4447, %v4441
        %v4586 = vpack.c.b16 %v4448, %v4442
        %v4587 = vpack.c.b16 %v4449, %v4443
        %v4588 = vpack.c.b16 %v4450, %v4444
        %v4589 = vpack.c.b16 %v4451, %v4445
        %v4590 = vpack.c.b16 %v4458, %v4452
        %v4591 = vpack.c.b16 %v4459, %v4453
        %v4592 = vpack.c.b16 %v4460, %v4454
        %v4593 = vpack.c.b16 %v4461, %v4455
        %v4594 = vpack.c.b16 %v4462, %v4456
        %v4595 = vpack.c.b16 %v4463, %v4457
        %v4596 = vpack.c.b16 %v4470, %v4464
        %v4597 = vpack.c.b16 %v4471, %v4465
        %v4598 = vpack.c.b16 %v4472, %v4466
        %v4599 = vpack.c.b16 %v4473, %v4467
        %v4600 = vpack.c.b16 %v4474, %v4468
        %v4601 = vpack.c.b16 %v4475, %v4469
        %v4602 = vpack.c.b16 %v4482, %v4476
        %v4603 = vpack.c.b16 %v4483, %v4477
        %v4604 = vpack.c.b16 %v4484, %v4478
        %v4605 = vpack.c.b16 %v4485, %v4479
        %v4606 = vpack.c.b16 %v4486, %v4480
        %v4607 = vpack.c.b16 %v4487, %v4481
        %v4608 = vpack.c.b16 %v4494, %v4488
        %v4609 = vpack.c.b16 %v4495, %v4489
        %v4610 = vpack.c.b16 %v4496, %v4490
        %v4611 = vpack.c.b16 %v4497, %v4491
        %v4612 = vpack.c.b16 %v4498, %v4492
        %v4613 = vpack.c.b16 %v4499, %v4493
        %v4614 = vpack.c.b16 %v4506, %v4500
        %v4615 = vpack.c.b16 %v4507, %v4501
        %v4616 = vpack.c.b16 %v4508, %v4502
        %v4617 = vpack.c.b16 %v4509, %v4503
        %v4618 = vpack.c.b16 %v4510, %v4504
        %v4619 = vpack.c.b16 %v4511, %v4505
        %v4620 = vpack.c.b16 %v4518, %v4512
        %v4621 = vpack.c.b16 %v4519, %v4513
        %v4622 = vpack.c.b16 %v4520, %v4514
        %v4623 = vpack.c.b16 %v4521, %v4515
        %v4624 = vpack.c.b16 %v4522, %v4516
        %v4625 = vpack.c.b16 %v4523, %v4517
        %v4626 = vpack.c.b16 %v4530, %v4524
        %v4627 = vpack.c.b16 %v4531, %v4525
        %v4628 = vpack.c.b16 %v4532, %v4526
        %v4629 = vpack.c.b16 %v4533, %v4527
        %v4630 = vpack.c.b16 %v4534, %v4528
        %v4631 = vpack.c.b16 %v4535, %v4529
        %4728 = vmatpush.bf16.msra.mxu0 %v4578
        %4729 = vmatpush.bf16.msra.mxu0 %v4572
        %4730 = vmatpush.bf16.msra.mxu0 %v4566
        %4731 = vmatpush.bf16.msra.mxu0 %v4560
        %4732 = vmatpush.bf16.msra.mxu0 %v4554
        %4733 = vmatpush.bf16.msra.mxu0 %v4548
        %4734 = vmatpush.bf16.msra.mxu0 %v4542
        %4735 = vmatpush.bf16.msra.mxu0 %v4536
        %4736 = vmatmul.bf16.gmra.mxu0 %v4134
        %v4737 = vpop.f32.mrf.mxu0
        %v4738 = vadd.f32 %v4236, %v4737
        %v4739 = vpop.f32.mrf.mxu0
        %4740 = vdwg.mxu0
        %4741 = vmatpush.bf16.msra.mxu0 %v4626
        %4742 = vmatpush.bf16.msra.mxu0 %v4620
        %4743 = vmatpush.bf16.msra.mxu0 %v4614
        %4744 = vmatpush.bf16.msra.mxu0 %v4608
        %4745 = vmatpush.bf16.msra.mxu0 %v4602
        %4746 = vmatpush.bf16.msra.mxu0 %v4596
        %4747 = vmatpush.bf16.msra.mxu0 %v4590
        %4748 = vmatpush.bf16.msra.mxu0 %v4584
        %4749 = vmatmul.bf16.gmra.mxu0 %v4135
        %v4750 = vpop.f32.mrf.mxu0
        %v4751 = vadd.f32 %v4738, %v4750
        %v4752 = vpop.f32.mrf.mxu0
        %4753 = vdwg.mxu0
        %4754 = vmatpush.bf16.msra.mxu0 %v4579
        %4755 = vmatpush.bf16.msra.mxu0 %v4573
        %4756 = vmatpush.bf16.msra.mxu0 %v4567
        %4757 = vmatpush.bf16.msra.mxu0 %v4561
        %4758 = vmatpush.bf16.msra.mxu0 %v4555
        %4759 = vmatpush.bf16.msra.mxu0 %v4549
        %4760 = vmatpush.bf16.msra.mxu0 %v4543
        %4761 = vmatpush.bf16.msra.mxu0 %v4537
        %4762 = vmatmul.bf16.gmra.mxu0 %v4134
        %v4763 = vpop.f32.mrf.mxu0
        %v4764 = vadd.f32 %v4237, %v4763
        %v4765 = vpop.f32.mrf.mxu0
        %4766 = vdwg.mxu0
        %4767 = vmatpush.bf16.msra.mxu0 %v4627
        %4768 = vmatpush.bf16.msra.mxu0 %v4621
        %4769 = vmatpush.bf16.msra.mxu0 %v4615
        %4770 = vmatpush.bf16.msra.mxu0 %v4609
        %4771 = vmatpush.bf16.msra.mxu0 %v4603
        %4772 = vmatpush.bf16.msra.mxu0 %v4597
        %4773 = vmatpush.bf16.msra.mxu0 %v4591
        %4774 = vmatpush.bf16.msra.mxu0 %v4585
        %4775 = vmatmul.bf16.gmra.mxu0 %v4135
        %v4776 = vpop.f32.mrf.mxu0
        %v4777 = vadd.f32 %v4764, %v4776
        %v4778 = vpop.f32.mrf.mxu0
        %4779 = vdwg.mxu0
        %4780 = vmatpush.bf16.msra.mxu0 %v4580
        %4781 = vmatpush.bf16.msra.mxu0 %v4574
        %4782 = vmatpush.bf16.msra.mxu0 %v4568
        %4783 = vmatpush.bf16.msra.mxu0 %v4562
        %4784 = vmatpush.bf16.msra.mxu0 %v4556
        %4785 = vmatpush.bf16.msra.mxu0 %v4550
        %4786 = vmatpush.bf16.msra.mxu0 %v4544
        %4787 = vmatpush.bf16.msra.mxu0 %v4538
        %4788 = vmatmul.bf16.gmra.mxu0 %v4134
        %v4789 = vpop.f32.mrf.mxu0
        %v4790 = vadd.f32 %v4238, %v4789
        %v4791 = vpop.f32.mrf.mxu0
        %4792 = vdwg.mxu0
        %4793 = vmatpush.bf16.msra.mxu0 %v4628
        %4794 = vmatpush.bf16.msra.mxu0 %v4622
        %4795 = vmatpush.bf16.msra.mxu0 %v4616
        %4796 = vmatpush.bf16.msra.mxu0 %v4610
        %4797 = vmatpush.bf16.msra.mxu0 %v4604
        %4798 = vmatpush.bf16.msra.mxu0 %v4598
        %4799 = vmatpush.bf16.msra.mxu0 %v4592
        %4800 = vmatpush.bf16.msra.mxu0 %v4586
        %4801 = vmatmul.bf16.gmra.mxu0 %v4135
        %v4802 = vpop.f32.mrf.mxu0
        %v4803 = vadd.f32 %v4790, %v4802
        %v4804 = vpop.f32.mrf.mxu0
        %4805 = vdwg.mxu0
        %4806 = vmatpush.bf16.msra.mxu0 %v4581
        %4807 = vmatpush.bf16.msra.mxu0 %v4575
        %4808 = vmatpush.bf16.msra.mxu0 %v4569
        %4809 = vmatpush.bf16.msra.mxu0 %v4563
        %4810 = vmatpush.bf16.msra.mxu0 %v4557
        %4811 = vmatpush.bf16.msra.mxu0 %v4551
        %4812 = vmatpush.bf16.msra.mxu0 %v4545
        %4813 = vmatpush.bf16.msra.mxu0 %v4539
        %4814 = vmatmul.bf16.gmra.mxu0 %v4134
        %v4815 = vpop.f32.mrf.mxu0
        %v4816 = vadd.f32 %v4239, %v4815
        %v4817 = vpop.f32.mrf.mxu0
        %4818 = vdwg.mxu0
        %4819 = vmatpush.bf16.msra.mxu0 %v4629
        %4820 = vmatpush.bf16.msra.mxu0 %v4623
        %4821 = vmatpush.bf16.msra.mxu0 %v4617
        %4822 = vmatpush.bf16.msra.mxu0 %v4611
        %4823 = vmatpush.bf16.msra.mxu0 %v4605
        %4824 = vmatpush.bf16.msra.mxu0 %v4599
        %4825 = vmatpush.bf16.msra.mxu0 %v4593
        %4826 = vmatpush.bf16.msra.mxu0 %v4587
        %4827 = vmatmul.bf16.gmra.mxu0 %v4135
        %v4828 = vpop.f32.mrf.mxu0
        %v4829 = vadd.f32 %v4816, %v4828
        %v4830 = vpop.f32.mrf.mxu0
        %4831 = vdwg.mxu0
        %4832 = vmatpush.bf16.msra.mxu0 %v4582
        %4833 = vmatpush.bf16.msra.mxu0 %v4576
        %4834 = vmatpush.bf16.msra.mxu0 %v4570
        %4835 = vmatpush.bf16.msra.mxu0 %v4564
        %4836 = vmatpush.bf16.msra.mxu0 %v4558
        %4837 = vmatpush.bf16.msra.mxu0 %v4552
        %4838 = vmatpush.bf16.msra.mxu0 %v4546
        %4839 = vmatpush.bf16.msra.mxu0 %v4540
        %4840 = vmatmul.bf16.gmra.mxu0 %v4134
        %v4841 = vpop.f32.mrf.mxu0
        %v4842 = vadd.f32 %v4240, %v4841
        %v4843 = vpop.f32.mrf.mxu0
        %4844 = vdwg.mxu0
        %4845 = vmatpush.bf16.msra.mxu0 %v4630
        %4846 = vmatpush.bf16.msra.mxu0 %v4624
        %4847 = vmatpush.bf16.msra.mxu0 %v4618
        %4848 = vmatpush.bf16.msra.mxu0 %v4612
        %4849 = vmatpush.bf16.msra.mxu0 %v4606
        %4850 = vmatpush.bf16.msra.mxu0 %v4600
        %4851 = vmatpush.bf16.msra.mxu0 %v4594
        %4852 = vmatpush.bf16.msra.mxu0 %v4588
        %4853 = vmatmul.bf16.gmra.mxu0 %v4135
        %v4854 = vpop.f32.mrf.mxu0
        %v4855 = vadd.f32 %v4842, %v4854
        %v4856 = vpop.f32.mrf.mxu0
        %4857 = vdwg.mxu0
        %4858 = vmatpush.bf16.msra.mxu0 %v4583
        %4859 = vmatpush.bf16.msra.mxu0 %v4577
        %4860 = vmatpush.bf16.msra.mxu0 %v4571
        %4861 = vmatpush.bf16.msra.mxu0 %v4565
        %4862 = vmatpush.bf16.msra.mxu0 %v4559
        %4863 = vmatpush.bf16.msra.mxu0 %v4553
        %4864 = vmatpush.bf16.msra.mxu0 %v4547
        %4865 = vmatpush.bf16.msra.mxu0 %v4541
        %4866 = vmatmul.bf16.gmra.mxu0 %v4134
        %v4867 = vpop.f32.mrf.mxu0
        %v4868 = vadd.f32 %v4241, %v4867
        %v4869 = vpop.f32.mrf.mxu0
        %4870 = vdwg.mxu0
        %4871 = vmatpush.bf16.msra.mxu0 %v4631
        %4872 = vmatpush.bf16.msra.mxu0 %v4625
        %4873 = vmatpush.bf16.msra.mxu0 %v4619
        %4874 = vmatpush.bf16.msra.mxu0 %v4613
        %4875 = vmatpush.bf16.msra.mxu0 %v4607
        %4876 = vmatpush.bf16.msra.mxu0 %v4601
        %4877 = vmatpush.bf16.msra.mxu0 %v4595
        %4878 = vmatpush.bf16.msra.mxu0 %v4589
        %4879 = vmatmul.bf16.gmra.mxu0 %v4135
        %v4880 = vpop.f32.mrf.mxu0
        %v4881 = vadd.f32 %v4868, %v4880
        %v4882 = vpop.f32.mrf.mxu0
        %4883 = vdwg.mxu0
        %v4884 = vpack.c.bf16 %v4777, %v4751
        %v4885 = vpack.c.bf16 %v4829, %v4803
        %v4886 = vpack.c.bf16 %v4881, %v4855
        %v4888 = vrot.slane %v4884, 4
        %4889 = vrot.lane.b32.xlu0 %v4884, 96
        %v4890 = vpop.permute.xlu0 %4889
        %v4891 = vrot.slane %v4890, 4
        %4892 = vrot.lane.b32.xlu0 %v4884, 64
        %v4893 = vpop.permute.xlu0 %4892
        %v4894 = vrot.slane %v4893, 4
        %4895 = vrot.lane.b32.xlu0 %v4884, 32
        %v4896 = vpop.permute.xlu0 %4895
        %v4897 = vrot.slane %v4896, 4
        %v4899 = vrot.slane %v4885, 4
        %4900 = vrot.lane.b32.xlu0 %v4885, 96
        %v4901 = vpop.permute.xlu0 %4900
        %v4902 = vrot.slane %v4901, 4
        %4903 = vrot.lane.b32.xlu0 %v4885, 64
        %v4904 = vpop.permute.xlu0 %4903
        %v4905 = vrot.slane %v4904, 4
        %4906 = vrot.lane.b32.xlu0 %v4885, 32
        %v4907 = vpop.permute.xlu0 %4906
        %v4908 = vrot.slane %v4907, 4
        %v4910 = vrot.slane %v4886, 4
        %4911 = vrot.lane.b32.xlu0 %v4886, 96
        %v4912 = vpop.permute.xlu0 %4911
        %v4913 = vrot.slane %v4912, 4
        %4914 = vrot.lane.b32.xlu0 %v4886, 64
        %v4915 = vpop.permute.xlu0 %4914
        %v4916 = vrot.slane %v4915, 4
        %4917 = vrot.lane.b32.xlu0 %v4886, 32
        %v4918 = vpop.permute.xlu0 %4917
        %v4919 = vrot.slane %v4918, 4
        %v4921 = vsel %vm1352, %v4884, 0
        %v4924 = vsel %vm1352, %v4885, 0
        %4926 = vmatpush.bf16.xpose.msra.mxu0 0
        %4927 = vmatpush.bf16.xpose.msra.mxu0 0
        %4928 = vmatpush.bf16.xpose.msra.mxu0 0
        %4929 = vmatpush.bf16.xpose.msra.mxu0 0
        %4930 = vmatpush.bf16.xpose.msra.mxu0 0
        %4931 = vmatpush.bf16.xpose.msra.mxu0 0
        %4932 = vmatpush.bf16.xpose.msra.mxu0 0
        %4933 = vmatpush.bf16.xpose.msra.mxu0 %v4924
        %4934 = vmatmul.bf16.gmra.mxu0 %v4921
        %v4935 = vpop.f32.mrf.mxu0
        %v4936 = vadd.f32 0.0, %v4935
        %v4937 = vpop.f32.mrf.mxu0
        %4938 = vdwg.mxu0
        %v4940 = vsel %vm1352, %v4890, 0
        %v4943 = vsel %vm1352, %v4901, 0
        %4945 = vmatpush.bf16.xpose.msra.mxu0 0
        %4946 = vmatpush.bf16.xpose.msra.mxu0 0
        %4947 = vmatpush.bf16.xpose.msra.mxu0 0
        %4948 = vmatpush.bf16.xpose.msra.mxu0 0
        %4949 = vmatpush.bf16.xpose.msra.mxu0 0
        %4950 = vmatpush.bf16.xpose.msra.mxu0 0
        %4951 = vmatpush.bf16.xpose.msra.mxu0 0
        %4952 = vmatpush.bf16.xpose.msra.mxu0 %v4943
        %4953 = vmatmul.bf16.gmra.mxu0 %v4940
        %v4954 = vpop.f32.mrf.mxu0
        %v4955 = vadd.f32 0.0, %v4954
        %v4956 = vpop.f32.mrf.mxu0
        %4957 = vdwg.mxu0
        %v4959 = vsel %vm1352, %v4893, 0
        %v4962 = vsel %vm1352, %v4904, 0
        %4964 = vmatpush.bf16.xpose.msra.mxu0 0
        %4965 = vmatpush.bf16.xpose.msra.mxu0 0
        %4966 = vmatpush.bf16.xpose.msra.mxu0 0
        %4967 = vmatpush.bf16.xpose.msra.mxu0 0
        %4968 = vmatpush.bf16.xpose.msra.mxu0 0
        %4969 = vmatpush.bf16.xpose.msra.mxu0 0
        %4970 = vmatpush.bf16.xpose.msra.mxu0 0
        %4971 = vmatpush.bf16.xpose.msra.mxu0 %v4962
        %4972 = vmatmul.bf16.gmra.mxu0 %v4959
        %v4973 = vpop.f32.mrf.mxu0
        %v4974 = vadd.f32 0.0, %v4973
        %v4975 = vpop.f32.mrf.mxu0
        %4976 = vdwg.mxu0
        %v4978 = vsel %vm1352, %v4896, 0
        %v4981 = vsel %vm1352, %v4907, 0
        %4983 = vmatpush.bf16.xpose.msra.mxu0 0
        %4984 = vmatpush.bf16.xpose.msra.mxu0 0
        %4985 = vmatpush.bf16.xpose.msra.mxu0 0
        %4986 = vmatpush.bf16.xpose.msra.mxu0 0
        %4987 = vmatpush.bf16.xpose.msra.mxu0 0
        %4988 = vmatpush.bf16.xpose.msra.mxu0 0
        %4989 = vmatpush.bf16.xpose.msra.mxu0 0
        %4990 = vmatpush.bf16.xpose.msra.mxu0 %v4981
        %4991 = vmatmul.bf16.gmra.mxu0 %v4978
        %v4992 = vpop.f32.mrf.mxu0
        %v4993 = vadd.f32 0.0, %v4992
        %v4994 = vpop.f32.mrf.mxu0
        %4995 = vdwg.mxu0
        %v4997 = vsel %vm1352, %v4888, 0
        %v5000 = vsel %vm1352, %v4899, 0
        %5002 = vmatpush.bf16.xpose.msra.mxu0 0
        %5003 = vmatpush.bf16.xpose.msra.mxu0 0
        %5004 = vmatpush.bf16.xpose.msra.mxu0 0
        %5005 = vmatpush.bf16.xpose.msra.mxu0 0
        %5006 = vmatpush.bf16.xpose.msra.mxu0 0
        %5007 = vmatpush.bf16.xpose.msra.mxu0 0
        %5008 = vmatpush.bf16.xpose.msra.mxu0 0
        %5009 = vmatpush.bf16.xpose.msra.mxu0 %v5000
        %5010 = vmatmul.bf16.gmra.mxu0 %v4997
        %v5011 = vpop.f32.mrf.mxu0
        %v5012 = vadd.f32 0.0, %v5011
        %v5013 = vpop.f32.mrf.mxu0
        %5014 = vdwg.mxu0
        %v5016 = vsel %vm1352, %v4891, 0
        %v5019 = vsel %vm1352, %v4902, 0
        %5021 = vmatpush.bf16.xpose.msra.mxu0 0
        %5022 = vmatpush.bf16.xpose.msra.mxu0 0
        %5023 = vmatpush.bf16.xpose.msra.mxu0 0
        %5024 = vmatpush.bf16.xpose.msra.mxu0 0
        %5025 = vmatpush.bf16.xpose.msra.mxu0 0
        %5026 = vmatpush.bf16.xpose.msra.mxu0 0
        %5027 = vmatpush.bf16.xpose.msra.mxu0 0
        %5028 = vmatpush.bf16.xpose.msra.mxu0 %v5019
        %5029 = vmatmul.bf16.gmra.mxu0 %v5016
        %v5030 = vpop.f32.mrf.mxu0
        %v5031 = vadd.f32 0.0, %v5030
        %v5032 = vpop.f32.mrf.mxu0
        %5033 = vdwg.mxu0
        %v5035 = vsel %vm1352, %v4894, 0
        %v5038 = vsel %vm1352, %v4905, 0
        %5040 = vmatpush.bf16.xpose.msra.mxu0 0
        %5041 = vmatpush.bf16.xpose.msra.mxu0 0
        %5042 = vmatpush.bf16.xpose.msra.mxu0 0
        %5043 = vmatpush.bf16.xpose.msra.mxu0 0
        %5044 = vmatpush.bf16.xpose.msra.mxu0 0
        %5045 = vmatpush.bf16.xpose.msra.mxu0 0
        %5046 = vmatpush.bf16.xpose.msra.mxu0 0
        %5047 = vmatpush.bf16.xpose.msra.mxu0 %v5038
        %5048 = vmatmul.bf16.gmra.mxu0 %v5035
        %v5049 = vpop.f32.mrf.mxu0
        %v5050 = vadd.f32 0.0, %v5049
        %v5051 = vpop.f32.mrf.mxu0
        %5052 = vdwg.mxu0
        %v5054 = vsel %vm1352, %v4897, 0
        %v5057 = vsel %vm1352, %v4908, 0
        %5059 = vmatpush.bf16.xpose.msra.mxu0 0
        %5060 = vmatpush.bf16.xpose.msra.mxu0 0
        %5061 = vmatpush.bf16.xpose.msra.mxu0 0
        %5062 = vmatpush.bf16.xpose.msra.mxu0 0
        %5063 = vmatpush.bf16.xpose.msra.mxu0 0
        %5064 = vmatpush.bf16.xpose.msra.mxu0 0
        %5065 = vmatpush.bf16.xpose.msra.mxu0 0
        %5066 = vmatpush.bf16.xpose.msra.mxu0 %v5057
        %5067 = vmatmul.bf16.gmra.mxu0 %v5054
        %v5068 = vpop.f32.mrf.mxu0
        %v5069 = vadd.f32 0.0, %v5068
        %v5070 = vpop.f32.mrf.mxu0
        %5071 = vdwg.mxu0
        %v5072 = vmul.f32 %v4936, 0.17677669
        %v5073 = vmul.f32 %v4955, 0.17677669
        %v5074 = vmul.f32 %v4974, 0.17677669
        %v5075 = vmul.f32 %v4993, 0.17677669
        %v5076 = vmul.f32 %v5012, 0.17677669
        %v5077 = vmul.f32 %v5031, 0.17677669
        %v5078 = vmul.f32 %v5050, 0.17677669
        %v5079 = vmul.f32 %v5069, 0.17677669
        %v5080 = vsel %vm1513, %v5072, -inf
        %5081 = vmax.xlane.f32.xlu0 %v5080
        %v5082 = vpop.xlane.xlu0 %5081
        %v5083 = vsel %vm1513, %v5073, -inf
        %5084 = vmax.xlane.f32.xlu0 %v5083
        %v5085 = vpop.xlane.xlu0 %5084
        %v5086 = vsel %vm1513, %v5074, -inf
        %5087 = vmax.xlane.f32.xlu0 %v5086
        %v5088 = vpop.xlane.xlu0 %5087
        %v5089 = vsel %vm1513, %v5075, -inf
        %5090 = vmax.xlane.f32.xlu0 %v5089
        %v5091 = vpop.xlane.xlu0 %5090
        %v5092 = vsel %vm1513, %v5076, -inf
        %5093 = vmax.xlane.f32.xlu0 %v5092
        %v5094 = vpop.xlane.xlu0 %5093
        %v5095 = vsel %vm1513, %v5077, -inf
        %5096 = vmax.xlane.f32.xlu0 %v5095
        %v5097 = vpop.xlane.xlu0 %5096
        %v5098 = vsel %vm1513, %v5078, -inf
        %5099 = vmax.xlane.f32.xlu0 %v5098
        %v5100 = vpop.xlane.xlu0 %5099
        %v5101 = vsel %vm1513, %v5079, -inf
        %5102 = vmax.xlane.f32.xlu0 %v5101
        %v5103 = vpop.xlane.xlu0 %5102
        %v5104 = vsub.f32 %v5072, %v5082
        %v5105 = vsub.f32 %v5073, %v5085
        %v5106 = vsub.f32 %v5074, %v5088
        %v5107 = vsub.f32 %v5075, %v5091
        %v5108 = vsub.f32 %v5076, %v5094
        %v5109 = vsub.f32 %v5077, %v5097
        %v5110 = vsub.f32 %v5078, %v5100
        %v5111 = vsub.f32 %v5079, %v5103
        %v5112 = vmul.f32 %v5104, 1.442695
        %v5113 = vpow.pop %v5112
        %v5114 = vmul.f32 %v5105, 1.442695
        %v5115 = vpow.pop %v5114
        %v5116 = vmul.f32 %v5106, 1.442695
        %v5117 = vpow.pop %v5116
        %v5118 = vmul.f32 %v5107, 1.442695
        %v5119 = vpow.pop %v5118
        %v5120 = vmul.f32 %v5108, 1.442695
        %v5121 = vpow.pop %v5120
        %v5122 = vmul.f32 %v5109, 1.442695
        %v5123 = vpow.pop %v5122
        %v5124 = vmul.f32 %v5110, 1.442695
        %v5125 = vpow.pop %v5124
        %v5126 = vmul.f32 %v5111, 1.442695
        %v5127 = vpow.pop %v5126
        %v5128 = vsel %vm1513, %v5113, 0.0
        %5129 = vadd.xlane.f32.xlu0 %v5128
        %v5130 = vpop.xlane.xlu0 %5129
        %v5131 = vsel %vm1513, %v5115, 0.0
        %5132 = vadd.xlane.f32.xlu0 %v5131
        %v5133 = vpop.xlane.xlu0 %5132
        %v5134 = vsel %vm1513, %v5117, 0.0
        %5135 = vadd.xlane.f32.xlu0 %v5134
        %v5136 = vpop.xlane.xlu0 %5135
        %v5137 = vsel %vm1513, %v5119, 0.0
        %5138 = vadd.xlane.f32.xlu0 %v5137
        %v5139 = vpop.xlane.xlu0 %5138
        %v5140 = vsel %vm1513, %v5121, 0.0
        %5141 = vadd.xlane.f32.xlu0 %v5140
        %v5142 = vpop.xlane.xlu0 %5141
        %v5143 = vsel %vm1513, %v5123, 0.0
        %5144 = vadd.xlane.f32.xlu0 %v5143
        %v5145 = vpop.xlane.xlu0 %5144
        %v5146 = vsel %vm1513, %v5125, 0.0
        %5147 = vadd.xlane.f32.xlu0 %v5146
        %v5148 = vpop.xlane.xlu0 %5147
        %v5149 = vsel %vm1513, %v5127, 0.0
        %5150 = vadd.xlane.f32.xlu0 %v5149
        %v5151 = vpop.xlane.xlu0 %5150
        %v5152 = vrcp.pop %v5130
        %v5153 = vrcp.pop %v5133
        %v5154 = vrcp.pop %v5136
        %v5155 = vrcp.pop %v5139
        %v5156 = vrcp.pop %v5142
        %v5157 = vrcp.pop %v5145
        %v5158 = vrcp.pop %v5148
        %v5159 = vrcp.pop %v5151
        %v5160 = vmul.f32 %v5113, %v5152
        %v5161 = vmul.f32 %v5115, %v5153
        %v5162 = vmul.f32 %v5117, %v5154
        %v5163 = vmul.f32 %v5119, %v5155
        %v5164 = vmul.f32 %v5121, %v5156
        %v5165 = vmul.f32 %v5123, %v5157
        %v5166 = vmul.f32 %v5125, %v5158
        %v5167 = vmul.f32 %v5127, %v5159
        %v5168 = vpack.c.bf16 %v5160, %v5160
        %v5169 = vpack.c.bf16 %v5161, %v5161
        %v5170 = vpack.c.bf16 %v5162, %v5162
        %v5171 = vpack.c.bf16 %v5163, %v5163
        %v5172 = vpack.c.bf16 %v5164, %v5164
        %v5173 = vpack.c.bf16 %v5165, %v5165
        %v5174 = vpack.c.bf16 %v5166, %v5166
        %v5175 = vpack.c.bf16 %v5167, %v5167
        %v5177 = vsel %vm1513, %v5168, 0
        %v5180 = vsel %vm1613, %v4886, 0
        %5182 = vmatpush.bf16.msra.mxu0 0
        %5183 = vmatpush.bf16.msra.mxu0 0
        %5184 = vmatpush.bf16.msra.mxu0 0
        %5185 = vmatpush.bf16.msra.mxu0 0
        %5186 = vmatpush.bf16.msra.mxu0 0
        %5187 = vmatpush.bf16.msra.mxu0 0
        %5188 = vmatpush.bf16.msra.mxu0 0
        %5189 = vmatpush.bf16.msra.mxu0 %v5180
        %5190 = vmatmul.bf16.gmra.mxu0 %v5177
        %v5191 = vpop.f32.mrf.mxu0
        %v5192 = vadd.f32 0.0, %v5191
        %v5193 = vpop.f32.mrf.mxu0
        %5194 = vdwg.mxu0
        %v5196 = vsel %vm1513, %v5169, 0
        %v5199 = vsel %vm1613, %v4912, 0
        %5201 = vmatpush.bf16.msra.mxu0 0
        %5202 = vmatpush.bf16.msra.mxu0 0
        %5203 = vmatpush.bf16.msra.mxu0 0
        %5204 = vmatpush.bf16.msra.mxu0 0
        %5205 = vmatpush.bf16.msra.mxu0 0
        %5206 = vmatpush.bf16.msra.mxu0 0
        %5207 = vmatpush.bf16.msra.mxu0 0
        %5208 = vmatpush.bf16.msra.mxu0 %v5199
        %5209 = vmatmul.bf16.gmra.mxu0 %v5196
        %v5210 = vpop.f32.mrf.mxu0
        %v5211 = vadd.f32 0.0, %v5210
        %v5212 = vpop.f32.mrf.mxu0
        %5213 = vdwg.mxu0
        %v5215 = vsel %vm1513, %v5170, 0
        %v5218 = vsel %vm1613, %v4915, 0
        %5220 = vmatpush.bf16.msra.mxu0 0
        %5221 = vmatpush.bf16.msra.mxu0 0
        %5222 = vmatpush.bf16.msra.mxu0 0
        %5223 = vmatpush.bf16.msra.mxu0 0
        %5224 = vmatpush.bf16.msra.mxu0 0
        %5225 = vmatpush.bf16.msra.mxu0 0
        %5226 = vmatpush.bf16.msra.mxu0 0
        %5227 = vmatpush.bf16.msra.mxu0 %v5218
        %5228 = vmatmul.bf16.gmra.mxu0 %v5215
        %v5229 = vpop.f32.mrf.mxu0
        %v5230 = vadd.f32 0.0, %v5229
        %v5231 = vpop.f32.mrf.mxu0
        %5232 = vdwg.mxu0
        %v5234 = vsel %vm1513, %v5171, 0
        %v5237 = vsel %vm1613, %v4918, 0
        %5239 = vmatpush.bf16.msra.mxu0 0
        %5240 = vmatpush.bf16.msra.mxu0 0
        %5241 = vmatpush.bf16.msra.mxu0 0
        %5242 = vmatpush.bf16.msra.mxu0 0
        %5243 = vmatpush.bf16.msra.mxu0 0
        %5244 = vmatpush.bf16.msra.mxu0 0
        %5245 = vmatpush.bf16.msra.mxu0 0
        %5246 = vmatpush.bf16.msra.mxu0 %v5237
        %5247 = vmatmul.bf16.gmra.mxu0 %v5234
        %v5248 = vpop.f32.mrf.mxu0
        %v5249 = vadd.f32 0.0, %v5248
        %v5250 = vpop.f32.mrf.mxu0
        %5251 = vdwg.mxu0
        %v5253 = vsel %vm1513, %v5172, 0
        %v5256 = vsel %vm1613, %v4910, 0
        %5258 = vmatpush.bf16.msra.mxu0 0
        %5259 = vmatpush.bf16.msra.mxu0 0
        %5260 = vmatpush.bf16.msra.mxu0 0
        %5261 = vmatpush.bf16.msra.mxu0 0
        %5262 = vmatpush.bf16.msra.mxu0 0
        %5263 = vmatpush.bf16.msra.mxu0 0
        %5264 = vmatpush.bf16.msra.mxu0 0
        %5265 = vmatpush.bf16.msra.mxu0 %v5256
        %5266 = vmatmul.bf16.gmra.mxu0 %v5253
        %v5267 = vpop.f32.mrf.mxu0
        %v5268 = vadd.f32 0.0, %v5267
        %v5269 = vpop.f32.mrf.mxu0
        %5270 = vdwg.mxu0
        %v5272 = vsel %vm1513, %v5173, 0
        %v5275 = vsel %vm1613, %v4913, 0
        %5277 = vmatpush.bf16.msra.mxu0 0
        %5278 = vmatpush.bf16.msra.mxu0 0
        %5279 = vmatpush.bf16.msra.mxu0 0
        %5280 = vmatpush.bf16.msra.mxu0 0
        %5281 = vmatpush.bf16.msra.mxu0 0
        %5282 = vmatpush.bf16.msra.mxu0 0
        %5283 = vmatpush.bf16.msra.mxu0 0
        %5284 = vmatpush.bf16.msra.mxu0 %v5275
        %5285 = vmatmul.bf16.gmra.mxu0 %v5272
        %v5286 = vpop.f32.mrf.mxu0
        %v5287 = vadd.f32 0.0, %v5286
        %v5288 = vpop.f32.mrf.mxu0
        %5289 = vdwg.mxu0
        %v5291 = vsel %vm1513, %v5174, 0
        %v5294 = vsel %vm1613, %v4916, 0
        %5296 = vmatpush.bf16.msra.mxu0 0
        %5297 = vmatpush.bf16.msra.mxu0 0
        %5298 = vmatpush.bf16.msra.mxu0 0
        %5299 = vmatpush.bf16.msra.mxu0 0
        %5300 = vmatpush.bf16.msra.mxu0 0
        %5301 = vmatpush.bf16.msra.mxu0 0
        %5302 = vmatpush.bf16.msra.mxu0 0
        %5303 = vmatpush.bf16.msra.mxu0 %v5294
        %5304 = vmatmul.bf16.gmra.mxu0 %v5291
        %v5305 = vpop.f32.mrf.mxu0
        %v5306 = vadd.f32 0.0, %v5305
        %v5307 = vpop.f32.mrf.mxu0
        %5308 = vdwg.mxu0
        %v5310 = vsel %vm1513, %v5175, 0
        %v5313 = vsel %vm1613, %v4919, 0
        %5315 = vmatpush.bf16.msra.mxu0 0
        %5316 = vmatpush.bf16.msra.mxu0 0
        %5317 = vmatpush.bf16.msra.mxu0 0
        %5318 = vmatpush.bf16.msra.mxu0 0
        %5319 = vmatpush.bf16.msra.mxu0 0
        %5320 = vmatpush.bf16.msra.mxu0 0
        %5321 = vmatpush.bf16.msra.mxu0 0
        %5322 = vmatpush.bf16.msra.mxu0 %v5313
        %5323 = vmatmul.bf16.gmra.mxu0 %v5310
        %v5324 = vpop.f32.mrf.mxu0
        %v5325 = vadd.f32 0.0, %v5324
        %v5326 = vpop.f32.mrf.mxu0
        %5327 = vdwg.mxu0
        %5329 = vrot.lane.b32.xlu0 %v5211, 32
        %v5330 = vpop.permute.xlu0 %5329
        %5333 = vrot.lane.b32.xlu0 %v5230, 64
        %v5334 = vpop.permute.xlu0 %5333
        %5337 = vrot.lane.b32.xlu0 %v5249, 96
        %v5338 = vpop.permute.xlu0 %5337
        %5341 = vrot.lane.b32.xlu0 %v5287, 32
        %v5342 = vpop.permute.xlu0 %5341
        %5345 = vrot.lane.b32.xlu0 %v5306, 64
        %v5346 = vpop.permute.xlu0 %5345
        %5349 = vrot.lane.b32.xlu0 %v5325, 96
        %v5350 = vpop.permute.xlu0 %5349
        %v5352 = vsel %vm1352, %v5192, %v5330
        %v5353 = vsel %vm1788, %v5352, %v5334
        %v5354 = vsel %vm1790, %v5353, %v5338
        %v5355 = vsel %vm1352, %v5268, %v5342
        %v5356 = vsel %vm1788, %v5355, %v5346
        %v5357 = vsel %vm1790, %v5356, %v5350
        %v5358 = vpack.c.bf16 %v5354, %v5354
        %v5359 = vpack.c.bf16 %v5357, %v5357
        %s5360 = scalar_lea.vmem [#allocation4], 256
        %v5361 = vld [vmem:[%s5360] sm:$0xff]
        %v5362 = vld [vmem:[%s5360 + $0x8] sm:$0xff]
        %v5363 = vld [vmem:[%s5360 + $0x10] sm:$0xff]
        %v5364 = vld [vmem:[%s5360 + $0x18] sm:$0xff]
        %v5365 = vld [vmem:[%s5360 + $0x20] sm:$0xff]
        %v5366 = vld [vmem:[%s5360 + $0x28] sm:$0xff]
        %v5367 = vld [vmem:[%s5360 + $0x30] sm:$0xff]
        %v5368 = vld [vmem:[%s5360 + $0x38] sm:$0xff]
        %v5369 = vld [vmem:[%s5360 + $0x40] sm:$0xff]
        %v5370 = vld [vmem:[%s5360 + $0x48] sm:$0xff]
        %v5371 = vld [vmem:[%s5360 + $0x50] sm:$0xff]
        %v5372 = vld [vmem:[%s5360 + $0x58] sm:$0xff]
        %v5373 = vld [vmem:[%s5360 + $0x60] sm:$0xff]
        %v5374 = vld [vmem:[%s5360 + $0x68] sm:$0xff]
        %v5375 = vld [vmem:[%s5360 + $0x70] sm:$0xff]
        %v5376 = vld [vmem:[%s5360 + $0x78] sm:$0xff]
        %v5377 = vld [vmem:[%s5360 + $0x80] sm:$0xff]
        %v5378 = vld [vmem:[%s5360 + $0x88] sm:$0xff]
        %v5379 = vld [vmem:[%s5360 + $0x90] sm:$0xff]
        %v5380 = vld [vmem:[%s5360 + $0x98] sm:$0xff]
        %v5381 = vld [vmem:[%s5360 + $0xa0] sm:$0xff]
        %v5382 = vld [vmem:[%s5360 + $0xa8] sm:$0xff]
        %v5383 = vld [vmem:[%s5360 + $0xb0] sm:$0xff]
        %v5384 = vld [vmem:[%s5360 + $0xb8] sm:$0xff]
        %v5385 = vld [vmem:[%s5360 + $0xc0] sm:$0xff]
        %v5386 = vld [vmem:[%s5360 + $0xc8] sm:$0xff]
        %v5387 = vld [vmem:[%s5360 + $0xd0] sm:$0xff]
        %v5388 = vld [vmem:[%s5360 + $0xd8] sm:$0xff]
        %v5389 = vld [vmem:[%s5360 + $0xe0] sm:$0xff]
        %v5390 = vld [vmem:[%s5360 + $0xe8] sm:$0xff]
        %v5391 = vld [vmem:[%s5360 + $0xf0] sm:$0xff]
        %v5392 = vld [vmem:[%s5360 + $0xf8] sm:$0xff]
        %s5393 = scalar_lea.vmem %s4, 2
        %v5394 = vld [vmem:[%s5393] sm:$0x3]
        %v5396 = vperm.slane %v5394, 0
        %v5397 = vperm.slane %v5394, 1
        %v5432 = vunpack.c.l.b16 %v5361
        %v5433 = vunpack.c.h.b16 %v5361
        %v5434 = vunpack.c.l.b16 %v5362
        %v5435 = vunpack.c.h.b16 %v5362
        %v5436 = vunpack.c.l.b16 %v5363
        %v5437 = vunpack.c.h.b16 %v5363
        %v5438 = vunpack.c.l.b16 %v5364
        %v5439 = vunpack.c.h.b16 %v5364
        %v5440 = vunpack.c.l.b16 %v5365
        %v5441 = vunpack.c.h.b16 %v5365
        %v5442 = vunpack.c.l.b16 %v5366
        %v5443 = vunpack.c.h.b16 %v5366
        %v5444 = vunpack.c.l.b16 %v5367
        %v5445 = vunpack.c.h.b16 %v5367
        %v5446 = vunpack.c.l.b16 %v5368
        %v5447 = vunpack.c.h.b16 %v5368
        %v5448 = vunpack.c.l.b16 %v5369
        %v5449 = vunpack.c.h.b16 %v5369
        %v5450 = vunpack.c.l.b16 %v5370
        %v5451 = vunpack.c.h.b16 %v5370
        %v5452 = vunpack.c.l.b16 %v5371
        %v5453 = vunpack.c.h.b16 %v5371
        %v5454 = vunpack.c.l.b16 %v5372
        %v5455 = vunpack.c.h.b16 %v5372
        %v5456 = vunpack.c.l.b16 %v5373
        %v5457 = vunpack.c.h.b16 %v5373
        %v5458 = vunpack.c.l.b16 %v5374
        %v5459 = vunpack.c.h.b16 %v5374
        %v5460 = vunpack.c.l.b16 %v5375
        %v5461 = vunpack.c.h.b16 %v5375
        %v5462 = vunpack.c.l.b16 %v5376
        %v5463 = vunpack.c.h.b16 %v5376
        %v5464 = vunpack.c.l.b16 %v5377
        %v5465 = vunpack.c.h.b16 %v5377
        %v5466 = vunpack.c.l.b16 %v5378
        %v5467 = vunpack.c.h.b16 %v5378
        %v5468 = vunpack.c.l.b16 %v5379
        %v5469 = vunpack.c.h.b16 %v5379
        %v5470 = vunpack.c.l.b16 %v5380
        %v5471 = vunpack.c.h.b16 %v5380
        %v5472 = vunpack.c.l.b16 %v5381
        %v5473 = vunpack.c.h.b16 %v5381
        %v5474 = vunpack.c.l.b16 %v5382
        %v5475 = vunpack.c.h.b16 %v5382
        %v5476 = vunpack.c.l.b16 %v5383
        %v5477 = vunpack.c.h.b16 %v5383
        %v5478 = vunpack.c.l.b16 %v5384
        %v5479 = vunpack.c.h.b16 %v5384
        %v5480 = vunpack.c.l.b16 %v5385
        %v5481 = vunpack.c.h.b16 %v5385
        %v5482 = vunpack.c.l.b16 %v5386
        %v5483 = vunpack.c.h.b16 %v5386
        %v5484 = vunpack.c.l.b16 %v5387
        %v5485 = vunpack.c.h.b16 %v5387
        %v5486 = vunpack.c.l.b16 %v5388
        %v5487 = vunpack.c.h.b16 %v5388
        %v5488 = vunpack.c.l.b16 %v5389
        %v5489 = vunpack.c.h.b16 %v5389
        %v5490 = vunpack.c.l.b16 %v5390
        %v5491 = vunpack.c.h.b16 %v5390
        %v5492 = vunpack.c.l.b16 %v5391
        %v5493 = vunpack.c.h.b16 %v5391
        %v5494 = vunpack.c.l.b16 %v5392
        %v5495 = vunpack.c.h.b16 %v5392
        %v5496 = vpack.c.b16 %v5434, %v5432
        %v5497 = vpack.c.b16 %v5435, %v5433
        %v5498 = vpack.c.b16 %v5438, %v5436
        %v5499 = vpack.c.b16 %v5439, %v5437
        %v5500 = vpack.c.b16 %v5442, %v5440
        %v5501 = vpack.c.b16 %v5443, %v5441
        %v5502 = vpack.c.b16 %v5446, %v5444
        %v5503 = vpack.c.b16 %v5447, %v5445
        %v5504 = vpack.c.b16 %v5450, %v5448
        %v5505 = vpack.c.b16 %v5451, %v5449
        %v5506 = vpack.c.b16 %v5454, %v5452
        %v5507 = vpack.c.b16 %v5455, %v5453
        %v5508 = vpack.c.b16 %v5458, %v5456
        %v5509 = vpack.c.b16 %v5459, %v5457
        %v5510 = vpack.c.b16 %v5462, %v5460
        %v5511 = vpack.c.b16 %v5463, %v5461
        %v5512 = vpack.c.b16 %v5466, %v5464
        %v5513 = vpack.c.b16 %v5467, %v5465
        %v5514 = vpack.c.b16 %v5470, %v5468
        %v5515 = vpack.c.b16 %v5471, %v5469
        %v5516 = vpack.c.b16 %v5474, %v5472
        %v5517 = vpack.c.b16 %v5475, %v5473
        %v5518 = vpack.c.b16 %v5478, %v5476
        %v5519 = vpack.c.b16 %v5479, %v5477
        %v5520 = vpack.c.b16 %v5482, %v5480
        %v5521 = vpack.c.b16 %v5483, %v5481
        %v5522 = vpack.c.b16 %v5486, %v5484
        %v5523 = vpack.c.b16 %v5487, %v5485
        %v5524 = vpack.c.b16 %v5490, %v5488
        %v5525 = vpack.c.b16 %v5491, %v5489
        %v5526 = vpack.c.b16 %v5494, %v5492
        %v5527 = vpack.c.b16 %v5495, %v5493
        %5560 = vmatpush.bf16.msra.mxu0 %v5510
        %5561 = vmatpush.bf16.msra.mxu0 %v5508
        %5562 = vmatpush.bf16.msra.mxu0 %v5506
        %5563 = vmatpush.bf16.msra.mxu0 %v5504
        %5564 = vmatpush.bf16.msra.mxu0 %v5502
        %5565 = vmatpush.bf16.msra.mxu0 %v5500
        %5566 = vmatpush.bf16.msra.mxu0 %v5498
        %5567 = vmatpush.bf16.msra.mxu0 %v5496
        %5568 = vmatmul.bf16.gmra.mxu0 %v5358
        %v5569 = vpop.f32.mrf.mxu0
        %v5570 = vadd.f32 %v5396, %v5569
        %v5571 = vpop.f32.mrf.mxu0
        %5572 = vdwg.mxu0
        %5573 = vmatpush.bf16.msra.mxu0 %v5526
        %5574 = vmatpush.bf16.msra.mxu0 %v5524
        %5575 = vmatpush.bf16.msra.mxu0 %v5522
        %5576 = vmatpush.bf16.msra.mxu0 %v5520
        %5577 = vmatpush.bf16.msra.mxu0 %v5518
        %5578 = vmatpush.bf16.msra.mxu0 %v5516
        %5579 = vmatpush.bf16.msra.mxu0 %v5514
        %5580 = vmatpush.bf16.msra.mxu0 %v5512
        %5581 = vmatmul.bf16.gmra.mxu0 %v5359
        %v5582 = vpop.f32.mrf.mxu0
        %v5583 = vadd.f32 %v5570, %v5582
        %v5584 = vpop.f32.mrf.mxu0
        %5585 = vdwg.mxu0
        %5586 = vmatpush.bf16.msra.mxu0 %v5511
        %5587 = vmatpush.bf16.msra.mxu0 %v5509
        %5588 = vmatpush.bf16.msra.mxu0 %v5507
        %5589 = vmatpush.bf16.msra.mxu0 %v5505
        %5590 = vmatpush.bf16.msra.mxu0 %v5503
        %5591 = vmatpush.bf16.msra.mxu0 %v5501
        %5592 = vmatpush.bf16.msra.mxu0 %v5499
        %5593 = vmatpush.bf16.msra.mxu0 %v5497
        %5594 = vmatmul.bf16.gmra.mxu0 %v5358
        %v5595 = vpop.f32.mrf.mxu0
        %v5596 = vadd.f32 %v5397, %v5595
        %v5597 = vpop.f32.mrf.mxu0
        %5598 = vdwg.mxu0
        %5599 = vmatpush.bf16.msra.mxu0 %v5527
        %5600 = vmatpush.bf16.msra.mxu0 %v5525
        %5601 = vmatpush.bf16.msra.mxu0 %v5523
        %5602 = vmatpush.bf16.msra.mxu0 %v5521
        %5603 = vmatpush.bf16.msra.mxu0 %v5519
        %5604 = vmatpush.bf16.msra.mxu0 %v5517
        %5605 = vmatpush.bf16.msra.mxu0 %v5515
        %5606 = vmatpush.bf16.msra.mxu0 %v5513
        %5607 = vmatmul.bf16.gmra.mxu0 %v5359
        %v5608 = vpop.f32.mrf.mxu0
        %v5609 = vadd.f32 %v5596, %v5608
        %v5610 = vpop.f32.mrf.mxu0
        %5611 = vdwg.mxu0
        %v5612 = vadd.f32 %v4132, %v5583
        %v5613 = vadd.f32 %v4133, %v5609
        %s5614 = scalar_lea.vmem %s9, 2
        %v5615 = vld [vmem:[%s5614] sm:$0x3]
        %s5616 = scalar_lea.vmem %s10, 2
        %v5617 = vld [vmem:[%s5616] sm:$0x3]
        %v5618 = vadd.f32 %v5612, %v5613
        %5619 = vadd.xlane.f32.xlu0 %v5618
        %v5620 = vpop.xlane.xlu0 %5619
        %v5621 = vmul.f32 %v5620, %v2060
        %v5622 = vsub.f32 %v5612, %v5621
        %v5623 = vsub.f32 %v5613, %v5621
        %v5624 = vmul.f32 %v5622, %v5622
        %v5625 = vmul.f32 %v5623, %v5623
        %v5626 = vadd.f32 %v5624, %v5625
        %5627 = vadd.xlane.f32.xlu0 %v5626
        %v5628 = vpop.xlane.xlu0 %5627
        %v5629 = vmul.f32 %v5628, %v2060
        %v5630 = vadd.f32 %v5629, 1e-05
        %v5631 = vrsqrt.pop %v5630
        %v5632 = vmul.f32 %v5631, %v5630
        %v5633 = vmul.f32 %v5632, %v5631
        %v5634 = vmul.f32 0.5, %v5633
        %v5635 = vsub.f32 1.5, %v5634
        %v5636 = vmul.f32 %v5631, %v5635
        %vm5637 = vweird.f32 %v5630
        %vm5638 = vweird.f32 %v5631
        %vm5639 = vmor %vm5637, %vm5638
        %v5640 = vsel %vm5639, %v5631, %v5636
        %v5641 = vmul.f32 %v5622, %v5640
        %v5642 = vmul.f32 %v5623, %v5640
        %v5644 = vperm.slane %v5615, 0
        %v5645 = vperm.slane %v5615, 1
        %v5648 = vmul.f32 %v5641, %v5644
        %v5649 = vmul.f32 %v5642, %v5645
        %v5651 = vperm.slane %v5617, 0
        %v5652 = vperm.slane %v5617, 1
        %v5655 = vadd.f32 %v5648, %v5651
        %v5656 = vadd.f32 %v5649, %v5652
        %v5657 = vpack.c.bf16 %v5655, %v5655
        %v5658 = vpack.c.bf16 %v5656, %v5656
        %s5659 = scalar_lea.vmem [#allocation6], 1024
        %v5660 = vld [vmem:[%s5659] sm:$0xff]
        %v5661 = vld [vmem:[%s5659 + $0x8] sm:$0xff]
        %v5662 = vld [vmem:[%s5659 + $0x10] sm:$0xff]
        %v5663 = vld [vmem:[%s5659 + $0x18] sm:$0xff]
        %v5664 = vld [vmem:[%s5659 + $0x20] sm:$0xff]
        %v5665 = vld [vmem:[%s5659 + $0x28] sm:$0xff]
        %v5666 = vld [vmem:[%s5659 + $0x30] sm:$0xff]
        %v5667 = vld [vmem:[%s5659 + $0x38] sm:$0xff]
        %v5668 = vld [vmem:[%s5659 + $0x40] sm:$0xff]
        %v5669 = vld [vmem:[%s5659 + $0x48] sm:$0xff]
        %v5670 = vld [vmem:[%s5659 + $0x50] sm:$0xff]
        %v5671 = vld [vmem:[%s5659 + $0x58] sm:$0xff]
        %v5672 = vld [vmem:[%s5659 + $0x60] sm:$0xff]
        %v5673 = vld [vmem:[%s5659 + $0x68] sm:$0xff]
        %v5674 = vld [vmem:[%s5659 + $0x70] sm:$0xff]
        %v5675 = vld [vmem:[%s5659 + $0x78] sm:$0xff]
        %v5676 = vld [vmem:[%s5659 + $0x80] sm:$0xff]
        %v5677 = vld [vmem:[%s5659 + $0x88] sm:$0xff]
        %v5678 = vld [vmem:[%s5659 + $0x90] sm:$0xff]
        %v5679 = vld [vmem:[%s5659 + $0x98] sm:$0xff]
        %v5680 = vld [vmem:[%s5659 + $0xa0] sm:$0xff]
        %v5681 = vld [vmem:[%s5659 + $0xa8] sm:$0xff]
        %v5682 = vld [vmem:[%s5659 + $0xb0] sm:$0xff]
        %v5683 = vld [vmem:[%s5659 + $0xb8] sm:$0xff]
        %v5684 = vld [vmem:[%s5659 + $0xc0] sm:$0xff]
        %v5685 = vld [vmem:[%s5659 + $0xc8] sm:$0xff]
        %v5686 = vld [vmem:[%s5659 + $0xd0] sm:$0xff]
        %v5687 = vld [vmem:[%s5659 + $0xd8] sm:$0xff]
        %v5688 = vld [vmem:[%s5659 + $0xe0] sm:$0xff]
        %v5689 = vld [vmem:[%s5659 + $0xe8] sm:$0xff]
        %v5690 = vld [vmem:[%s5659 + $0xf0] sm:$0xff]
        %v5691 = vld [vmem:[%s5659 + $0xf8] sm:$0xff]
        %v5692 = vld [vmem:[%s5659 + $0x100] sm:$0xff]
        %v5693 = vld [vmem:[%s5659 + $0x108] sm:$0xff]
        %v5694 = vld [vmem:[%s5659 + $0x110] sm:$0xff]
        %v5695 = vld [vmem:[%s5659 + $0x118] sm:$0xff]
        %v5696 = vld [vmem:[%s5659 + $0x120] sm:$0xff]
        %v5697 = vld [vmem:[%s5659 + $0x128] sm:$0xff]
        %v5698 = vld [vmem:[%s5659 + $0x130] sm:$0xff]
        %v5699 = vld [vmem:[%s5659 + $0x138] sm:$0xff]
        %v5700 = vld [vmem:[%s5659 + $0x140] sm:$0xff]
        %v5701 = vld [vmem:[%s5659 + $0x148] sm:$0xff]
        %v5702 = vld [vmem:[%s5659 + $0x150] sm:$0xff]
        %v5703 = vld [vmem:[%s5659 + $0x158] sm:$0xff]
        %v5704 = vld [vmem:[%s5659 + $0x160] sm:$0xff]
        %v5705 = vld [vmem:[%s5659 + $0x168] sm:$0xff]
        %v5706 = vld [vmem:[%s5659 + $0x170] sm:$0xff]
        %v5707 = vld [vmem:[%s5659 + $0x178] sm:$0xff]
        %v5708 = vld [vmem:[%s5659 + $0x180] sm:$0xff]
        %v5709 = vld [vmem:[%s5659 + $0x188] sm:$0xff]
        %v5710 = vld [vmem:[%s5659 + $0x190] sm:$0xff]
        %v5711 = vld [vmem:[%s5659 + $0x198] sm:$0xff]
        %v5712 = vld [vmem:[%s5659 + $0x1a0] sm:$0xff]
        %v5713 = vld [vmem:[%s5659 + $0x1a8] sm:$0xff]
        %v5714 = vld [vmem:[%s5659 + $0x1b0] sm:$0xff]
        %v5715 = vld [vmem:[%s5659 + $0x1b8] sm:$0xff]
        %v5716 = vld [vmem:[%s5659 + $0x1c0] sm:$0xff]
        %v5717 = vld [vmem:[%s5659 + $0x1c8] sm:$0xff]
        %v5718 = vld [vmem:[%s5659 + $0x1d0] sm:$0xff]
        %v5719 = vld [vmem:[%s5659 + $0x1d8] sm:$0xff]
        %v5720 = vld [vmem:[%s5659 + $0x1e0] sm:$0xff]
        %v5721 = vld [vmem:[%s5659 + $0x1e8] sm:$0xff]
        %v5722 = vld [vmem:[%s5659 + $0x1f0] sm:$0xff]
        %v5723 = vld [vmem:[%s5659 + $0x1f8] sm:$0xff]
        %v5724 = vld [vmem:[%s5659 + $0x200] sm:$0xff]
        %v5725 = vld [vmem:[%s5659 + $0x208] sm:$0xff]
        %v5726 = vld [vmem:[%s5659 + $0x210] sm:$0xff]
        %v5727 = vld [vmem:[%s5659 + $0x218] sm:$0xff]
        %v5728 = vld [vmem:[%s5659 + $0x220] sm:$0xff]
        %v5729 = vld [vmem:[%s5659 + $0x228] sm:$0xff]
        %v5730 = vld [vmem:[%s5659 + $0x230] sm:$0xff]
        %v5731 = vld [vmem:[%s5659 + $0x238] sm:$0xff]
        %v5732 = vld [vmem:[%s5659 + $0x240] sm:$0xff]
        %v5733 = vld [vmem:[%s5659 + $0x248] sm:$0xff]
        %v5734 = vld [vmem:[%s5659 + $0x250] sm:$0xff]
        %v5735 = vld [vmem:[%s5659 + $0x258] sm:$0xff]
        %v5736 = vld [vmem:[%s5659 + $0x260] sm:$0xff]
        %v5737 = vld [vmem:[%s5659 + $0x268] sm:$0xff]
        %v5738 = vld [vmem:[%s5659 + $0x270] sm:$0xff]
        %v5739 = vld [vmem:[%s5659 + $0x278] sm:$0xff]
        %v5740 = vld [vmem:[%s5659 + $0x280] sm:$0xff]
        %v5741 = vld [vmem:[%s5659 + $0x288] sm:$0xff]
        %v5742 = vld [vmem:[%s5659 + $0x290] sm:$0xff]
        %v5743 = vld [vmem:[%s5659 + $0x298] sm:$0xff]
        %v5744 = vld [vmem:[%s5659 + $0x2a0] sm:$0xff]
        %v5745 = vld [vmem:[%s5659 + $0x2a8] sm:$0xff]
        %v5746 = vld [vmem:[%s5659 + $0x2b0] sm:$0xff]
        %v5747 = vld [vmem:[%s5659 + $0x2b8] sm:$0xff]
        %v5748 = vld [vmem:[%s5659 + $0x2c0] sm:$0xff]
        %v5749 = vld [vmem:[%s5659 + $0x2c8] sm:$0xff]
        %v5750 = vld [vmem:[%s5659 + $0x2d0] sm:$0xff]
        %v5751 = vld [vmem:[%s5659 + $0x2d8] sm:$0xff]
        %v5752 = vld [vmem:[%s5659 + $0x2e0] sm:$0xff]
        %v5753 = vld [vmem:[%s5659 + $0x2e8] sm:$0xff]
        %v5754 = vld [vmem:[%s5659 + $0x2f0] sm:$0xff]
        %v5755 = vld [vmem:[%s5659 + $0x2f8] sm:$0xff]
        %v5756 = vld [vmem:[%s5659 + $0x300] sm:$0xff]
        %v5757 = vld [vmem:[%s5659 + $0x308] sm:$0xff]
        %v5758 = vld [vmem:[%s5659 + $0x310] sm:$0xff]
        %v5759 = vld [vmem:[%s5659 + $0x318] sm:$0xff]
        %v5760 = vld [vmem:[%s5659 + $0x320] sm:$0xff]
        %v5761 = vld [vmem:[%s5659 + $0x328] sm:$0xff]
        %v5762 = vld [vmem:[%s5659 + $0x330] sm:$0xff]
        %v5763 = vld [vmem:[%s5659 + $0x338] sm:$0xff]
        %v5764 = vld [vmem:[%s5659 + $0x340] sm:$0xff]
        %v5765 = vld [vmem:[%s5659 + $0x348] sm:$0xff]
        %v5766 = vld [vmem:[%s5659 + $0x350] sm:$0xff]
        %v5767 = vld [vmem:[%s5659 + $0x358] sm:$0xff]
        %v5768 = vld [vmem:[%s5659 + $0x360] sm:$0xff]
        %v5769 = vld [vmem:[%s5659 + $0x368] sm:$0xff]
        %v5770 = vld [vmem:[%s5659 + $0x370] sm:$0xff]
        %v5771 = vld [vmem:[%s5659 + $0x378] sm:$0xff]
        %v5772 = vld [vmem:[%s5659 + $0x380] sm:$0xff]
        %v5773 = vld [vmem:[%s5659 + $0x388] sm:$0xff]
        %v5774 = vld [vmem:[%s5659 + $0x390] sm:$0xff]
        %v5775 = vld [vmem:[%s5659 + $0x398] sm:$0xff]
        %v5776 = vld [vmem:[%s5659 + $0x3a0] sm:$0xff]
        %v5777 = vld [vmem:[%s5659 + $0x3a8] sm:$0xff]
        %v5778 = vld [vmem:[%s5659 + $0x3b0] sm:$0xff]
        %v5779 = vld [vmem:[%s5659 + $0x3b8] sm:$0xff]
        %v5780 = vld [vmem:[%s5659 + $0x3c0] sm:$0xff]
        %v5781 = vld [vmem:[%s5659 + $0x3c8] sm:$0xff]
        %v5782 = vld [vmem:[%s5659 + $0x3d0] sm:$0xff]
        %v5783 = vld [vmem:[%s5659 + $0x3d8] sm:$0xff]
        %v5784 = vld [vmem:[%s5659 + $0x3e0] sm:$0xff]
        %v5785 = vld [vmem:[%s5659 + $0x3e8] sm:$0xff]
        %v5786 = vld [vmem:[%s5659 + $0x3f0] sm:$0xff]
        %v5787 = vld [vmem:[%s5659 + $0x3f8] sm:$0xff]
        %s5788 = scalar_lea.vmem %s6, 8
        %v5789 = vld [vmem:[%s5788] sm:$0xff]
        %v5791 = vperm.slane %v5789, 0
        %v5792 = vperm.slane %v5789, 1
        %v5793 = vperm.slane %v5789, 2
        %v5794 = vperm.slane %v5789, 3
        %v5795 = vperm.slane %v5789, 4
        %v5796 = vperm.slane %v5789, 5
        %v5797 = vperm.slane %v5789, 6
        %v5798 = vperm.slane %v5789, 7
        %v5935 = vunpack.c.l.b16 %v5660
        %v5936 = vunpack.c.h.b16 %v5660
        %v5937 = vunpack.c.l.b16 %v5661
        %v5938 = vunpack.c.h.b16 %v5661
        %v5939 = vunpack.c.l.b16 %v5662
        %v5940 = vunpack.c.h.b16 %v5662
        %v5941 = vunpack.c.l.b16 %v5663
        %v5942 = vunpack.c.h.b16 %v5663
        %v5943 = vunpack.c.l.b16 %v5664
        %v5944 = vunpack.c.h.b16 %v5664
        %v5945 = vunpack.c.l.b16 %v5665
        %v5946 = vunpack.c.h.b16 %v5665
        %v5947 = vunpack.c.l.b16 %v5666
        %v5948 = vunpack.c.h.b16 %v5666
        %v5949 = vunpack.c.l.b16 %v5667
        %v5950 = vunpack.c.h.b16 %v5667
        %v5951 = vunpack.c.l.b16 %v5668
        %v5952 = vunpack.c.h.b16 %v5668
        %v5953 = vunpack.c.l.b16 %v5669
        %v5954 = vunpack.c.h.b16 %v5669
        %v5955 = vunpack.c.l.b16 %v5670
        %v5956 = vunpack.c.h.b16 %v5670
        %v5957 = vunpack.c.l.b16 %v5671
        %v5958 = vunpack.c.h.b16 %v5671
        %v5959 = vunpack.c.l.b16 %v5672
        %v5960 = vunpack.c.h.b16 %v5672
        %v5961 = vunpack.c.l.b16 %v5673
        %v5962 = vunpack.c.h.b16 %v5673
        %v5963 = vunpack.c.l.b16 %v5674
        %v5964 = vunpack.c.h.b16 %v5674
        %v5965 = vunpack.c.l.b16 %v5675
        %v5966 = vunpack.c.h.b16 %v5675
        %v5967 = vunpack.c.l.b16 %v5676
        %v5968 = vunpack.c.h.b16 %v5676
        %v5969 = vunpack.c.l.b16 %v5677
        %v5970 = vunpack.c.h.b16 %v5677
        %v5971 = vunpack.c.l.b16 %v5678
        %v5972 = vunpack.c.h.b16 %v5678
        %v5973 = vunpack.c.l.b16 %v5679
        %v5974 = vunpack.c.h.b16 %v5679
        %v5975 = vunpack.c.l.b16 %v5680
        %v5976 = vunpack.c.h.b16 %v5680
        %v5977 = vunpack.c.l.b16 %v5681
        %v5978 = vunpack.c.h.b16 %v5681
        %v5979 = vunpack.c.l.b16 %v5682
        %v5980 = vunpack.c.h.b16 %v5682
        %v5981 = vunpack.c.l.b16 %v5683
        %v5982 = vunpack.c.h.b16 %v5683
        %v5983 = vunpack.c.l.b16 %v5684
        %v5984 = vunpack.c.h.b16 %v5684
        %v5985 = vunpack.c.l.b16 %v5685
        %v5986 = vunpack.c.h.b16 %v5685
        %v5987 = vunpack.c.l.b16 %v5686
        %v5988 = vunpack.c.h.b16 %v5686
        %v5989 = vunpack.c.l.b16 %v5687
        %v5990 = vunpack.c.h.b16 %v5687
        %v5991 = vunpack.c.l.b16 %v5688
        %v5992 = vunpack.c.h.b16 %v5688
        %v5993 = vunpack.c.l.b16 %v5689
        %v5994 = vunpack.c.h.b16 %v5689
        %v5995 = vunpack.c.l.b16 %v5690
        %v5996 = vunpack.c.h.b16 %v5690
        %v5997 = vunpack.c.l.b16 %v5691
        %v5998 = vunpack.c.h.b16 %v5691
        %v5999 = vunpack.c.l.b16 %v5692
        %v6000 = vunpack.c.h.b16 %v5692
        %v6001 = vunpack.c.l.b16 %v5693
        %v6002 = vunpack.c.h.b16 %v5693
        %v6003 = vunpack.c.l.b16 %v5694
        %v6004 = vunpack.c.h.b16 %v5694
        %v6005 = vunpack.c.l.b16 %v5695
        %v6006 = vunpack.c.h.b16 %v5695
        %v6007 = vunpack.c.l.b16 %v5696
        %v6008 = vunpack.c.h.b16 %v5696
        %v6009 = vunpack.c.l.b16 %v5697
        %v6010 = vunpack.c.h.b16 %v5697
        %v6011 = vunpack.c.l.b16 %v5698
        %v6012 = vunpack.c.h.b16 %v5698
        %v6013 = vunpack.c.l.b16 %v5699
        %v6014 = vunpack.c.h.b16 %v5699
        %v6015 = vunpack.c.l.b16 %v5700
        %v6016 = vunpack.c.h.b16 %v5700
        %v6017 = vunpack.c.l.b16 %v5701
        %v6018 = vunpack.c.h.b16 %v5701
        %v6019 = vunpack.c.l.b16 %v5702
        %v6020 = vunpack.c.h.b16 %v5702
        %v6021 = vunpack.c.l.b16 %v5703
        %v6022 = vunpack.c.h.b16 %v5703
        %v6023 = vunpack.c.l.b16 %v5704
        %v6024 = vunpack.c.h.b16 %v5704
        %v6025 = vunpack.c.l.b16 %v5705
        %v6026 = vunpack.c.h.b16 %v5705
        %v6027 = vunpack.c.l.b16 %v5706
        %v6028 = vunpack.c.h.b16 %v5706
        %v6029 = vunpack.c.l.b16 %v5707
        %v6030 = vunpack.c.h.b16 %v5707
        %v6031 = vunpack.c.l.b16 %v5708
        %v6032 = vunpack.c.h.b16 %v5708
        %v6033 = vunpack.c.l.b16 %v5709
        %v6034 = vunpack.c.h.b16 %v5709
        %v6035 = vunpack.c.l.b16 %v5710
        %v6036 = vunpack.c.h.b16 %v5710
        %v6037 = vunpack.c.l.b16 %v5711
        %v6038 = vunpack.c.h.b16 %v5711
        %v6039 = vunpack.c.l.b16 %v5712
        %v6040 = vunpack.c.h.b16 %v5712
        %v6041 = vunpack.c.l.b16 %v5713
        %v6042 = vunpack.c.h.b16 %v5713
        %v6043 = vunpack.c.l.b16 %v5714
        %v6044 = vunpack.c.h.b16 %v5714
        %v6045 = vunpack.c.l.b16 %v5715
        %v6046 = vunpack.c.h.b16 %v5715
        %v6047 = vunpack.c.l.b16 %v5716
        %v6048 = vunpack.c.h.b16 %v5716
        %v6049 = vunpack.c.l.b16 %v5717
        %v6050 = vunpack.c.h.b16 %v5717
        %v6051 = vunpack.c.l.b16 %v5718
        %v6052 = vunpack.c.h.b16 %v5718
        %v6053 = vunpack.c.l.b16 %v5719
        %v6054 = vunpack.c.h.b16 %v5719
        %v6055 = vunpack.c.l.b16 %v5720
        %v6056 = vunpack.c.h.b16 %v5720
        %v6057 = vunpack.c.l.b16 %v5721
        %v6058 = vunpack.c.h.b16 %v5721
        %v6059 = vunpack.c.l.b16 %v5722
        %v6060 = vunpack.c.h.b16 %v5722
        %v6061 = vunpack.c.l.b16 %v5723
        %v6062 = vunpack.c.h.b16 %v5723
        %v6063 = vunpack.c.l.b16 %v5724
        %v6064 = vunpack.c.h.b16 %v5724
        %v6065 = vunpack.c.l.b16 %v5725
        %v6066 = vunpack.c.h.b16 %v5725
        %v6067 = vunpack.c.l.b16 %v5726
        %v6068 = vunpack.c.h.b16 %v5726
        %v6069 = vunpack.c.l.b16 %v5727
        %v6070 = vunpack.c.h.b16 %v5727
        %v6071 = vunpack.c.l.b16 %v5728
        %v6072 = vunpack.c.h.b16 %v5728
        %v6073 = vunpack.c.l.b16 %v5729
        %v6074 = vunpack.c.h.b16 %v5729
        %v6075 = vunpack.c.l.b16 %v5730
        %v6076 = vunpack.c.h.b16 %v5730
        %v6077 = vunpack.c.l.b16 %v5731
        %v6078 = vunpack.c.h.b16 %v5731
        %v6079 = vunpack.c.l.b16 %v5732
        %v6080 = vunpack.c.h.b16 %v5732
        %v6081 = vunpack.c.l.b16 %v5733
        %v6082 = vunpack.c.h.b16 %v5733
        %v6083 = vunpack.c.l.b16 %v5734
        %v6084 = vunpack.c.h.b16 %v5734
        %v6085 = vunpack.c.l.b16 %v5735
        %v6086 = vunpack.c.h.b16 %v5735
        %v6087 = vunpack.c.l.b16 %v5736
        %v6088 = vunpack.c.h.b16 %v5736
        %v6089 = vunpack.c.l.b16 %v5737
        %v6090 = vunpack.c.h.b16 %v5737
        %v6091 = vunpack.c.l.b16 %v5738
        %v6092 = vunpack.c.h.b16 %v5738
        %v6093 = vunpack.c.l.b16 %v5739
        %v6094 = vunpack.c.h.b16 %v5739
        %v6095 = vunpack.c.l.b16 %v5740
        %v6096 = vunpack.c.h.b16 %v5740
        %v6097 = vunpack.c.l.b16 %v5741
        %v6098 = vunpack.c.h.b16 %v5741
        %v6099 = vunpack.c.l.b16 %v5742
        %v6100 = vunpack.c.h.b16 %v5742
        %v6101 = vunpack.c.l.b16 %v5743
        %v6102 = vunpack.c.h.b16 %v5743
        %v6103 = vunpack.c.l.b16 %v5744
        %v6104 = vunpack.c.h.b16 %v5744
        %v6105 = vunpack.c.l.b16 %v5745
        %v6106 = vunpack.c.h.b16 %v5745
        %v6107 = vunpack.c.l.b16 %v5746
        %v6108 = vunpack.c.h.b16 %v5746
        %v6109 = vunpack.c.l.b16 %v5747
        %v6110 = vunpack.c.h.b16 %v5747
        %v6111 = vunpack.c.l.b16 %v5748
        %v6112 = vunpack.c.h.b16 %v5748
        %v6113 = vunpack.c.l.b16 %v5749
        %v6114 = vunpack.c.h.b16 %v5749
        %v6115 = vunpack.c.l.b16 %v5750
        %v6116 = vunpack.c.h.b16 %v5750
        %v6117 = vunpack.c.l.b16 %v5751
        %v6118 = vunpack.c.h.b16 %v5751
        %v6119 = vunpack.c.l.b16 %v5752
        %v6120 = vunpack.c.h.b16 %v5752
        %v6121 = vunpack.c.l.b16 %v5753
        %v6122 = vunpack.c.h.b16 %v5753
        %v6123 = vunpack.c.l.b16 %v5754
        %v6124 = vunpack.c.h.b16 %v5754
        %v6125 = vunpack.c.l.b16 %v5755
        %v6126 = vunpack.c.h.b16 %v5755
        %v6127 = vunpack.c.l.b16 %v5756
        %v6128 = vunpack.c.h.b16 %v5756
        %v6129 = vunpack.c.l.b16 %v5757
        %v6130 = vunpack.c.h.b16 %v5757
        %v6131 = vunpack.c.l.b16 %v5758
        %v6132 = vunpack.c.h.b16 %v5758
        %v6133 = vunpack.c.l.b16 %v5759
        %v6134 = vunpack.c.h.b16 %v5759
        %v6135 = vunpack.c.l.b16 %v5760
        %v6136 = vunpack.c.h.b16 %v5760
        %v6137 = vunpack.c.l.b16 %v5761
        %v6138 = vunpack.c.h.b16 %v5761
        %v6139 = vunpack.c.l.b16 %v5762
        %v6140 = vunpack.c.h.b16 %v5762
        %v6141 = vunpack.c.l.b16 %v5763
        %v6142 = vunpack.c.h.b16 %v5763
        %v6143 = vunpack.c.l.b16 %v5764
        %v6144 = vunpack.c.h.b16 %v5764
        %v6145 = vunpack.c.l.b16 %v5765
        %v6146 = vunpack.c.h.b16 %v5765
        %v6147 = vunpack.c.l.b16 %v5766
        %v6148 = vunpack.c.h.b16 %v5766
        %v6149 = vunpack.c.l.b16 %v5767
        %v6150 = vunpack.c.h.b16 %v5767
        %v6151 = vunpack.c.l.b16 %v5768
        %v6152 = vunpack.c.h.b16 %v5768
        %v6153 = vunpack.c.l.b16 %v5769
        %v6154 = vunpack.c.h.b16 %v5769
        %v6155 = vunpack.c.l.b16 %v5770
        %v6156 = vunpack.c.h.b16 %v5770
        %v6157 = vunpack.c.l.b16 %v5771
        %v6158 = vunpack.c.h.b16 %v5771
        %v6159 = vunpack.c.l.b16 %v5772
        %v6160 = vunpack.c.h.b16 %v5772
        %v6161 = vunpack.c.l.b16 %v5773
        %v6162 = vunpack.c.h.b16 %v5773
        %v6163 = vunpack.c.l.b16 %v5774
        %v6164 = vunpack.c.h.b16 %v5774
        %v6165 = vunpack.c.l.b16 %v5775
        %v6166 = vunpack.c.h.b16 %v5775
        %v6167 = vunpack.c.l.b16 %v5776
        %v6168 = vunpack.c.h.b16 %v5776
        %v6169 = vunpack.c.l.b16 %v5777
        %v6170 = vunpack.c.h.b16 %v5777
        %v6171 = vunpack.c.l.b16 %v5778
        %v6172 = vunpack.c.h.b16 %v5778
        %v6173 = vunpack.c.l.b16 %v5779
        %v6174 = vunpack.c.h.b16 %v5779
        %v6175 = vunpack.c.l.b16 %v5780
        %v6176 = vunpack.c.h.b16 %v5780
        %v6177 = vunpack.c.l.b16 %v5781
        %v6178 = vunpack.c.h.b16 %v5781
        %v6179 = vunpack.c.l.b16 %v5782
        %v6180 = vunpack.c.h.b16 %v5782
        %v6181 = vunpack.c.l.b16 %v5783
        %v6182 = vunpack.c.h.b16 %v5783
        %v6183 = vunpack.c.l.b16 %v5784
        %v6184 = vunpack.c.h.b16 %v5784
        %v6185 = vunpack.c.l.b16 %v5785
        %v6186 = vunpack.c.h.b16 %v5785
        %v6187 = vunpack.c.l.b16 %v5786
        %v6188 = vunpack.c.h.b16 %v5786
        %v6189 = vunpack.c.l.b16 %v5787
        %v6190 = vunpack.c.h.b16 %v5787
        %v6191 = vpack.c.b16 %v5943, %v5935
        %v6192 = vpack.c.b16 %v5944, %v5936
        %v6193 = vpack.c.b16 %v5945, %v5937
        %v6194 = vpack.c.b16 %v5946, %v5938
        %v6195 = vpack.c.b16 %v5947, %v5939
        %v6196 = vpack.c.b16 %v5948, %v5940
        %v6197 = vpack.c.b16 %v5949, %v5941
        %v6198 = vpack.c.b16 %v5950, %v5942
        %v6199 = vpack.c.b16 %v5959, %v5951
        %v6200 = vpack.c.b16 %v5960, %v5952
        %v6201 = vpack.c.b16 %v5961, %v5953
        %v6202 = vpack.c.b16 %v5962, %v5954
        %v6203 = vpack.c.b16 %v5963, %v5955
        %v6204 = vpack.c.b16 %v5964, %v5956
        %v6205 = vpack.c.b16 %v5965, %v5957
        %v6206 = vpack.c.b16 %v5966, %v5958
        %v6207 = vpack.c.b16 %v5975, %v5967
        %v6208 = vpack.c.b16 %v5976, %v5968
        %v6209 = vpack.c.b16 %v5977, %v5969
        %v6210 = vpack.c.b16 %v5978, %v5970
        %v6211 = vpack.c.b16 %v5979, %v5971
        %v6212 = vpack.c.b16 %v5980, %v5972
        %v6213 = vpack.c.b16 %v5981, %v5973
        %v6214 = vpack.c.b16 %v5982, %v5974
        %v6215 = vpack.c.b16 %v5991, %v5983
        %v6216 = vpack.c.b16 %v5992, %v5984
        %v6217 = vpack.c.b16 %v5993, %v5985
        %v6218 = vpack.c.b16 %v5994, %v5986
        %v6219 = vpack.c.b16 %v5995, %v5987
        %v6220 = vpack.c.b16 %v5996, %v5988
        %v6221 = vpack.c.b16 %v5997, %v5989
        %v6222 = vpack.c.b16 %v5998, %v5990
        %v6223 = vpack.c.b16 %v6007, %v5999
        %v6224 = vpack.c.b16 %v6008, %v6000
        %v6225 = vpack.c.b16 %v6009, %v6001
        %v6226 = vpack.c.b16 %v6010, %v6002
        %v6227 = vpack.c.b16 %v6011, %v6003
        %v6228 = vpack.c.b16 %v6012, %v6004
        %v6229 = vpack.c.b16 %v6013, %v6005
        %v6230 = vpack.c.b16 %v6014, %v6006
        %v6231 = vpack.c.b16 %v6023, %v6015
        %v6232 = vpack.c.b16 %v6024, %v6016
        %v6233 = vpack.c.b16 %v6025, %v6017
        %v6234 = vpack.c.b16 %v6026, %v6018
        %v6235 = vpack.c.b16 %v6027, %v6019
        %v6236 = vpack.c.b16 %v6028, %v6020
        %v6237 = vpack.c.b16 %v6029, %v6021
        %v6238 = vpack.c.b16 %v6030, %v6022
        %v6239 = vpack.c.b16 %v6039, %v6031
        %v6240 = vpack.c.b16 %v6040, %v6032
        %v6241 = vpack.c.b16 %v6041, %v6033
        %v6242 = vpack.c.b16 %v6042, %v6034
        %v6243 = vpack.c.b16 %v6043, %v6035
        %v6244 = vpack.c.b16 %v6044, %v6036
        %v6245 = vpack.c.b16 %v6045, %v6037
        %v6246 = vpack.c.b16 %v6046, %v6038
        %v6247 = vpack.c.b16 %v6055, %v6047
        %v6248 = vpack.c.b16 %v6056, %v6048
        %v6249 = vpack.c.b16 %v6057, %v6049
        %v6250 = vpack.c.b16 %v6058, %v6050
        %v6251 = vpack.c.b16 %v6059, %v6051
        %v6252 = vpack.c.b16 %v6060, %v6052
        %v6253 = vpack.c.b16 %v6061, %v6053
        %v6254 = vpack.c.b16 %v6062, %v6054
        %v6255 = vpack.c.b16 %v6071, %v6063
        %v6256 = vpack.c.b16 %v6072, %v6064
        %v6257 = vpack.c.b16 %v6073, %v6065
        %v6258 = vpack.c.b16 %v6074, %v6066
        %v6259 = vpack.c.b16 %v6075, %v6067
        %v6260 = vpack.c.b16 %v6076, %v6068
        %v6261 = vpack.c.b16 %v6077, %v6069
        %v6262 = vpack.c.b16 %v6078, %v6070
        %v6263 = vpack.c.b16 %v6087, %v6079
        %v6264 = vpack.c.b16 %v6088, %v6080
        %v6265 = vpack.c.b16 %v6089, %v6081
        %v6266 = vpack.c.b16 %v6090, %v6082
        %v6267 = vpack.c.b16 %v6091, %v6083
        %v6268 = vpack.c.b16 %v6092, %v6084
        %v6269 = vpack.c.b16 %v6093, %v6085
        %v6270 = vpack.c.b16 %v6094, %v6086
        %v6271 = vpack.c.b16 %v6103, %v6095
        %v6272 = vpack.c.b16 %v6104, %v6096
        %v6273 = vpack.c.b16 %v6105, %v6097
        %v6274 = vpack.c.b16 %v6106, %v6098
        %v6275 = vpack.c.b16 %v6107, %v6099
        %v6276 = vpack.c.b16 %v6108, %v6100
        %v6277 = vpack.c.b16 %v6109, %v6101
        %v6278 = vpack.c.b16 %v6110, %v6102
        %v6279 = vpack.c.b16 %v6119, %v6111
        %v6280 = vpack.c.b16 %v6120, %v6112
        %v6281 = vpack.c.b16 %v6121, %v6113
        %v6282 = vpack.c.b16 %v6122, %v6114
        %v6283 = vpack.c.b16 %v6123, %v6115
        %v6284 = vpack.c.b16 %v6124, %v6116
        %v6285 = vpack.c.b16 %v6125, %v6117
        %v6286 = vpack.c.b16 %v6126, %v6118
        %v6287 = vpack.c.b16 %v6135, %v6127
        %v6288 = vpack.c.b16 %v6136, %v6128
        %v6289 = vpack.c.b16 %v6137, %v6129
        %v6290 = vpack.c.b16 %v6138, %v6130
        %v6291 = vpack.c.b16 %v6139, %v6131
        %v6292 = vpack.c.b16 %v6140, %v6132
        %v6293 = vpack.c.b16 %v6141, %v6133
        %v6294 = vpack.c.b16 %v6142, %v6134
        %v6295 = vpack.c.b16 %v6151, %v6143
        %v6296 = vpack.c.b16 %v6152, %v6144
        %v6297 = vpack.c.b16 %v6153, %v6145
        %v6298 = vpack.c.b16 %v6154, %v6146
        %v6299 = vpack.c.b16 %v6155, %v6147
        %v6300 = vpack.c.b16 %v6156, %v6148
        %v6301 = vpack.c.b16 %v6157, %v6149
        %v6302 = vpack.c.b16 %v6158, %v6150
        %v6303 = vpack.c.b16 %v6167, %v6159
        %v6304 = vpack.c.b16 %v6168, %v6160
        %v6305 = vpack.c.b16 %v6169, %v6161
        %v6306 = vpack.c.b16 %v6170, %v6162
        %v6307 = vpack.c.b16 %v6171, %v6163
        %v6308 = vpack.c.b16 %v6172, %v6164
        %v6309 = vpack.c.b16 %v6173, %v6165
        %v6310 = vpack.c.b16 %v6174, %v6166
        %v6311 = vpack.c.b16 %v6183, %v6175
        %v6312 = vpack.c.b16 %v6184, %v6176
        %v6313 = vpack.c.b16 %v6185, %v6177
        %v6314 = vpack.c.b16 %v6186, %v6178
        %v6315 = vpack.c.b16 %v6187, %v6179
        %v6316 = vpack.c.b16 %v6188, %v6180
        %v6317 = vpack.c.b16 %v6189, %v6181
        %v6318 = vpack.c.b16 %v6190, %v6182
        %6447 = vmatpush.bf16.msra.mxu0 %v6247
        %6448 = vmatpush.bf16.msra.mxu0 %v6239
        %6449 = vmatpush.bf16.msra.mxu0 %v6231
        %6450 = vmatpush.bf16.msra.mxu0 %v6223
        %6451 = vmatpush.bf16.msra.mxu0 %v6215
        %6452 = vmatpush.bf16.msra.mxu0 %v6207
        %6453 = vmatpush.bf16.msra.mxu0 %v6199
        %6454 = vmatpush.bf16.msra.mxu0 %v6191
        %6455 = vmatmul.bf16.gmra.mxu0 %v5657
        %v6456 = vpop.f32.mrf.mxu0
        %v6457 = vadd.f32 %v5791, %v6456
        %v6458 = vpop.f32.mrf.mxu0
        %6459 = vdwg.mxu0
        %6460 = vmatpush.bf16.msra.mxu0 %v6311
        %6461 = vmatpush.bf16.msra.mxu0 %v6303
        %6462 = vmatpush.bf16.msra.mxu0 %v6295
        %6463 = vmatpush.bf16.msra.mxu0 %v6287
        %6464 = vmatpush.bf16.msra.mxu0 %v6279
        %6465 = vmatpush.bf16.msra.mxu0 %v6271
        %6466 = vmatpush.bf16.msra.mxu0 %v6263
        %6467 = vmatpush.bf16.msra.mxu0 %v6255
        %6468 = vmatmul.bf16.gmra.mxu0 %v5658
        %v6469 = vpop.f32.mrf.mxu0
        %v6470 = vadd.f32 %v6457, %v6469
        %v6471 = vpop.f32.mrf.mxu0
        %6472 = vdwg.mxu0
        %6473 = vmatpush.bf16.msra.mxu0 %v6248
        %6474 = vmatpush.bf16.msra.mxu0 %v6240
        %6475 = vmatpush.bf16.msra.mxu0 %v6232
        %6476 = vmatpush.bf16.msra.mxu0 %v6224
        %6477 = vmatpush.bf16.msra.mxu0 %v6216
        %6478 = vmatpush.bf16.msra.mxu0 %v6208
        %6479 = vmatpush.bf16.msra.mxu0 %v6200
        %6480 = vmatpush.bf16.msra.mxu0 %v6192
        %6481 = vmatmul.bf16.gmra.mxu0 %v5657
        %v6482 = vpop.f32.mrf.mxu0
        %v6483 = vadd.f32 %v5792, %v6482
        %v6484 = vpop.f32.mrf.mxu0
        %6485 = vdwg.mxu0
        %6486 = vmatpush.bf16.msra.mxu0 %v6312
        %6487 = vmatpush.bf16.msra.mxu0 %v6304
        %6488 = vmatpush.bf16.msra.mxu0 %v6296
        %6489 = vmatpush.bf16.msra.mxu0 %v6288
        %6490 = vmatpush.bf16.msra.mxu0 %v6280
        %6491 = vmatpush.bf16.msra.mxu0 %v6272
        %6492 = vmatpush.bf16.msra.mxu0 %v6264
        %6493 = vmatpush.bf16.msra.mxu0 %v6256
        %6494 = vmatmul.bf16.gmra.mxu0 %v5658
        %v6495 = vpop.f32.mrf.mxu0
        %v6496 = vadd.f32 %v6483, %v6495
        %v6497 = vpop.f32.mrf.mxu0
        %6498 = vdwg.mxu0
        %6499 = vmatpush.bf16.msra.mxu0 %v6249
        %6500 = vmatpush.bf16.msra.mxu0 %v6241
        %6501 = vmatpush.bf16.msra.mxu0 %v6233
        %6502 = vmatpush.bf16.msra.mxu0 %v6225
        %6503 = vmatpush.bf16.msra.mxu0 %v6217
        %6504 = vmatpush.bf16.msra.mxu0 %v6209
        %6505 = vmatpush.bf16.msra.mxu0 %v6201
        %6506 = vmatpush.bf16.msra.mxu0 %v6193
        %6507 = vmatmul.bf16.gmra.mxu0 %v5657
        %v6508 = vpop.f32.mrf.mxu0
        %v6509 = vadd.f32 %v5793, %v6508
        %v6510 = vpop.f32.mrf.mxu0
        %6511 = vdwg.mxu0
        %6512 = vmatpush.bf16.msra.mxu0 %v6313
        %6513 = vmatpush.bf16.msra.mxu0 %v6305
        %6514 = vmatpush.bf16.msra.mxu0 %v6297
        %6515 = vmatpush.bf16.msra.mxu0 %v6289
        %6516 = vmatpush.bf16.msra.mxu0 %v6281
        %6517 = vmatpush.bf16.msra.mxu0 %v6273
        %6518 = vmatpush.bf16.msra.mxu0 %v6265
        %6519 = vmatpush.bf16.msra.mxu0 %v6257
        %6520 = vmatmul.bf16.gmra.mxu0 %v5658
        %v6521 = vpop.f32.mrf.mxu0
        %v6522 = vadd.f32 %v6509, %v6521
        %v6523 = vpop.f32.mrf.mxu0
        %6524 = vdwg.mxu0
        %6525 = vmatpush.bf16.msra.mxu0 %v6250
        %6526 = vmatpush.bf16.msra.mxu0 %v6242
        %6527 = vmatpush.bf16.msra.mxu0 %v6234
        %6528 = vmatpush.bf16.msra.mxu0 %v6226
        %6529 = vmatpush.bf16.msra.mxu0 %v6218
        %6530 = vmatpush.bf16.msra.mxu0 %v6210
        %6531 = vmatpush.bf16.msra.mxu0 %v6202
        %6532 = vmatpush.bf16.msra.mxu0 %v6194
        %6533 = vmatmul.bf16.gmra.mxu0 %v5657
        %v6534 = vpop.f32.mrf.mxu0
        %v6535 = vadd.f32 %v5794, %v6534
        %v6536 = vpop.f32.mrf.mxu0
        %6537 = vdwg.mxu0
        %6538 = vmatpush.bf16.msra.mxu0 %v6314
        %6539 = vmatpush.bf16.msra.mxu0 %v6306
        %6540 = vmatpush.bf16.msra.mxu0 %v6298
        %6541 = vmatpush.bf16.msra.mxu0 %v6290
        %6542 = vmatpush.bf16.msra.mxu0 %v6282
        %6543 = vmatpush.bf16.msra.mxu0 %v6274
        %6544 = vmatpush.bf16.msra.mxu0 %v6266
        %6545 = vmatpush.bf16.msra.mxu0 %v6258
        %6546 = vmatmul.bf16.gmra.mxu0 %v5658
        %v6547 = vpop.f32.mrf.mxu0
        %v6548 = vadd.f32 %v6535, %v6547
        %v6549 = vpop.f32.mrf.mxu0
        %6550 = vdwg.mxu0
        %6551 = vmatpush.bf16.msra.mxu0 %v6251
        %6552 = vmatpush.bf16.msra.mxu0 %v6243
        %6553 = vmatpush.bf16.msra.mxu0 %v6235
        %6554 = vmatpush.bf16.msra.mxu0 %v6227
        %6555 = vmatpush.bf16.msra.mxu0 %v6219
        %6556 = vmatpush.bf16.msra.mxu0 %v6211
        %6557 = vmatpush.bf16.msra.mxu0 %v6203
        %6558 = vmatpush.bf16.msra.mxu0 %v6195
        %6559 = vmatmul.bf16.gmra.mxu0 %v5657
        %v6560 = vpop.f32.mrf.mxu0
        %v6561 = vadd.f32 %v5795, %v6560
        %v6562 = vpop.f32.mrf.mxu0
        %6563 = vdwg.mxu0
        %6564 = vmatpush.bf16.msra.mxu0 %v6315
        %6565 = vmatpush.bf16.msra.mxu0 %v6307
        %6566 = vmatpush.bf16.msra.mxu0 %v6299
        %6567 = vmatpush.bf16.msra.mxu0 %v6291
        %6568 = vmatpush.bf16.msra.mxu0 %v6283
        %6569 = vmatpush.bf16.msra.mxu0 %v6275
        %6570 = vmatpush.bf16.msra.mxu0 %v6267
        %6571 = vmatpush.bf16.msra.mxu0 %v6259
        %6572 = vmatmul.bf16.gmra.mxu0 %v5658
        %v6573 = vpop.f32.mrf.mxu0
        %v6574 = vadd.f32 %v6561, %v6573
        %v6575 = vpop.f32.mrf.mxu0
        %6576 = vdwg.mxu0
        %6577 = vmatpush.bf16.msra.mxu0 %v6252
        %6578 = vmatpush.bf16.msra.mxu0 %v6244
        %6579 = vmatpush.bf16.msra.mxu0 %v6236
        %6580 = vmatpush.bf16.msra.mxu0 %v6228
        %6581 = vmatpush.bf16.msra.mxu0 %v6220
        %6582 = vmatpush.bf16.msra.mxu0 %v6212
        %6583 = vmatpush.bf16.msra.mxu0 %v6204
        %6584 = vmatpush.bf16.msra.mxu0 %v6196
        %6585 = vmatmul.bf16.gmra.mxu0 %v5657
        %v6586 = vpop.f32.mrf.mxu0
        %v6587 = vadd.f32 %v5796, %v6586
        %v6588 = vpop.f32.mrf.mxu0
        %6589 = vdwg.mxu0
        %6590 = vmatpush.bf16.msra.mxu0 %v6316
        %6591 = vmatpush.bf16.msra.mxu0 %v6308
        %6592 = vmatpush.bf16.msra.mxu0 %v6300
        %6593 = vmatpush.bf16.msra.mxu0 %v6292
        %6594 = vmatpush.bf16.msra.mxu0 %v6284
        %6595 = vmatpush.bf16.msra.mxu0 %v6276
        %6596 = vmatpush.bf16.msra.mxu0 %v6268
        %6597 = vmatpush.bf16.msra.mxu0 %v6260
        %6598 = vmatmul.bf16.gmra.mxu0 %v5658
        %v6599 = vpop.f32.mrf.mxu0
        %v6600 = vadd.f32 %v6587, %v6599
        %v6601 = vpop.f32.mrf.mxu0
        %6602 = vdwg.mxu0
        %6603 = vmatpush.bf16.msra.mxu0 %v6253
        %6604 = vmatpush.bf16.msra.mxu0 %v6245
        %6605 = vmatpush.bf16.msra.mxu0 %v6237
        %6606 = vmatpush.bf16.msra.mxu0 %v6229
        %6607 = vmatpush.bf16.msra.mxu0 %v6221
        %6608 = vmatpush.bf16.msra.mxu0 %v6213
        %6609 = vmatpush.bf16.msra.mxu0 %v6205
        %6610 = vmatpush.bf16.msra.mxu0 %v6197
        %6611 = vmatmul.bf16.gmra.mxu0 %v5657
        %v6612 = vpop.f32.mrf.mxu0
        %v6613 = vadd.f32 %v5797, %v6612
        %v6614 = vpop.f32.mrf.mxu0
        %6615 = vdwg.mxu0
        %6616 = vmatpush.bf16.msra.mxu0 %v6317
        %6617 = vmatpush.bf16.msra.mxu0 %v6309
        %6618 = vmatpush.bf16.msra.mxu0 %v6301
        %6619 = vmatpush.bf16.msra.mxu0 %v6293
        %6620 = vmatpush.bf16.msra.mxu0 %v6285
        %6621 = vmatpush.bf16.msra.mxu0 %v6277
        %6622 = vmatpush.bf16.msra.mxu0 %v6269
        %6623 = vmatpush.bf16.msra.mxu0 %v6261
        %6624 = vmatmul.bf16.gmra.mxu0 %v5658
        %v6625 = vpop.f32.mrf.mxu0
        %v6626 = vadd.f32 %v6613, %v6625
        %v6627 = vpop.f32.mrf.mxu0
        %6628 = vdwg.mxu0
        %6629 = vmatpush.bf16.msra.mxu0 %v6254
        %6630 = vmatpush.bf16.msra.mxu0 %v6246
        %6631 = vmatpush.bf16.msra.mxu0 %v6238
        %6632 = vmatpush.bf16.msra.mxu0 %v6230
        %6633 = vmatpush.bf16.msra.mxu0 %v6222
        %6634 = vmatpush.bf16.msra.mxu0 %v6214
        %6635 = vmatpush.bf16.msra.mxu0 %v6206
        %6636 = vmatpush.bf16.msra.mxu0 %v6198
        %6637 = vmatmul.bf16.gmra.mxu0 %v5657
        %v6638 = vpop.f32.mrf.mxu0
        %v6639 = vadd.f32 %v5798, %v6638
        %v6640 = vpop.f32.mrf.mxu0
        %6641 = vdwg.mxu0
        %6642 = vmatpush.bf16.msra.mxu0 %v6318
        %6643 = vmatpush.bf16.msra.mxu0 %v6310
        %6644 = vmatpush.bf16.msra.mxu0 %v6302
        %6645 = vmatpush.bf16.msra.mxu0 %v6294
        %6646 = vmatpush.bf16.msra.mxu0 %v6286
        %6647 = vmatpush.bf16.msra.mxu0 %v6278
        %6648 = vmatpush.bf16.msra.mxu0 %v6270
        %6649 = vmatpush.bf16.msra.mxu0 %v6262
        %6650 = vmatmul.bf16.gmra.mxu0 %v5658
        %v6651 = vpop.f32.mrf.mxu0
        %v6652 = vadd.f32 %v6639, %v6651
        %v6653 = vpop.f32.mrf.mxu0
        %6654 = vdwg.mxu0
        %v6655 = vmax.f32 %v6470, 0.0
        %v6656 = vmax.f32 %v6496, 0.0
        %v6657 = vmax.f32 %v6522, 0.0
        %v6658 = vmax.f32 %v6548, 0.0
        %v6659 = vmax.f32 %v6574, 0.0
        %v6660 = vmax.f32 %v6600, 0.0
        %v6661 = vmax.f32 %v6626, 0.0
        %v6662 = vmax.f32 %v6652, 0.0
        %v6663 = vpack.c.bf16 %v6655, %v6655
        %v6664 = vpack.c.bf16 %v6656, %v6656
        %v6665 = vpack.c.bf16 %v6657, %v6657
        %v6666 = vpack.c.bf16 %v6658, %v6658
        %v6667 = vpack.c.bf16 %v6659, %v6659
        %v6668 = vpack.c.bf16 %v6660, %v6660
        %v6669 = vpack.c.bf16 %v6661, %v6661
        %v6670 = vpack.c.bf16 %v6662, %v6662
        %s6671 = scalar_lea.vmem [#allocation7], 1024
        %v6672 = vld [vmem:[%s6671] sm:$0xff]
        %v6673 = vld [vmem:[%s6671 + $0x8] sm:$0xff]
        %v6674 = vld [vmem:[%s6671 + $0x10] sm:$0xff]
        %v6675 = vld [vmem:[%s6671 + $0x18] sm:$0xff]
        %v6676 = vld [vmem:[%s6671 + $0x20] sm:$0xff]
        %v6677 = vld [vmem:[%s6671 + $0x28] sm:$0xff]
        %v6678 = vld [vmem:[%s6671 + $0x30] sm:$0xff]
        %v6679 = vld [vmem:[%s6671 + $0x38] sm:$0xff]
        %v6680 = vld [vmem:[%s6671 + $0x40] sm:$0xff]
        %v6681 = vld [vmem:[%s6671 + $0x48] sm:$0xff]
        %v6682 = vld [vmem:[%s6671 + $0x50] sm:$0xff]
        %v6683 = vld [vmem:[%s6671 + $0x58] sm:$0xff]
        %v6684 = vld [vmem:[%s6671 + $0x60] sm:$0xff]
        %v6685 = vld [vmem:[%s6671 + $0x68] sm:$0xff]
        %v6686 = vld [vmem:[%s6671 + $0x70] sm:$0xff]
        %v6687 = vld [vmem:[%s6671 + $0x78] sm:$0xff]
        %v6688 = vld [vmem:[%s6671 + $0x80] sm:$0xff]
        %v6689 = vld [vmem:[%s6671 + $0x88] sm:$0xff]
        %v6690 = vld [vmem:[%s6671 + $0x90] sm:$0xff]
        %v6691 = vld [vmem:[%s6671 + $0x98] sm:$0xff]
        %v6692 = vld [vmem:[%s6671 + $0xa0] sm:$0xff]
        %v6693 = vld [vmem:[%s6671 + $0xa8] sm:$0xff]
        %v6694 = vld [vmem:[%s6671 + $0xb0] sm:$0xff]
        %v6695 = vld [vmem:[%s6671 + $0xb8] sm:$0xff]
        %v6696 = vld [vmem:[%s6671 + $0xc0] sm:$0xff]
        %v6697 = vld [vmem:[%s6671 + $0xc8] sm:$0xff]
        %v6698 = vld [vmem:[%s6671 + $0xd0] sm:$0xff]
        %v6699 = vld [vmem:[%s6671 + $0xd8] sm:$0xff]
        %v6700 = vld [vmem:[%s6671 + $0xe0] sm:$0xff]
        %v6701 = vld [vmem:[%s6671 + $0xe8] sm:$0xff]
        %v6702 = vld [vmem:[%s6671 + $0xf0] sm:$0xff]
        %v6703 = vld [vmem:[%s6671 + $0xf8] sm:$0xff]
        %v6704 = vld [vmem:[%s6671 + $0x100] sm:$0xff]
        %v6705 = vld [vmem:[%s6671 + $0x108] sm:$0xff]
        %v6706 = vld [vmem:[%s6671 + $0x110] sm:$0xff]
        %v6707 = vld [vmem:[%s6671 + $0x118] sm:$0xff]
        %v6708 = vld [vmem:[%s6671 + $0x120] sm:$0xff]
        %v6709 = vld [vmem:[%s6671 + $0x128] sm:$0xff]
        %v6710 = vld [vmem:[%s6671 + $0x130] sm:$0xff]
        %v6711 = vld [vmem:[%s6671 + $0x138] sm:$0xff]
        %v6712 = vld [vmem:[%s6671 + $0x140] sm:$0xff]
        %v6713 = vld [vmem:[%s6671 + $0x148] sm:$0xff]
        %v6714 = vld [vmem:[%s6671 + $0x150] sm:$0xff]
        %v6715 = vld [vmem:[%s6671 + $0x158] sm:$0xff]
        %v6716 = vld [vmem:[%s6671 + $0x160] sm:$0xff]
        %v6717 = vld [vmem:[%s6671 + $0x168] sm:$0xff]
        %v6718 = vld [vmem:[%s6671 + $0x170] sm:$0xff]
        %v6719 = vld [vmem:[%s6671 + $0x178] sm:$0xff]
        %v6720 = vld [vmem:[%s6671 + $0x180] sm:$0xff]
        %v6721 = vld [vmem:[%s6671 + $0x188] sm:$0xff]
        %v6722 = vld [vmem:[%s6671 + $0x190] sm:$0xff]
        %v6723 = vld [vmem:[%s6671 + $0x198] sm:$0xff]
        %v6724 = vld [vmem:[%s6671 + $0x1a0] sm:$0xff]
        %v6725 = vld [vmem:[%s6671 + $0x1a8] sm:$0xff]
        %v6726 = vld [vmem:[%s6671 + $0x1b0] sm:$0xff]
        %v6727 = vld [vmem:[%s6671 + $0x1b8] sm:$0xff]
        %v6728 = vld [vmem:[%s6671 + $0x1c0] sm:$0xff]
        %v6729 = vld [vmem:[%s6671 + $0x1c8] sm:$0xff]
        %v6730 = vld [vmem:[%s6671 + $0x1d0] sm:$0xff]
        %v6731 = vld [vmem:[%s6671 + $0x1d8] sm:$0xff]
        %v6732 = vld [vmem:[%s6671 + $0x1e0] sm:$0xff]
        %v6733 = vld [vmem:[%s6671 + $0x1e8] sm:$0xff]
        %v6734 = vld [vmem:[%s6671 + $0x1f0] sm:$0xff]
        %v6735 = vld [vmem:[%s6671 + $0x1f8] sm:$0xff]
        %v6736 = vld [vmem:[%s6671 + $0x200] sm:$0xff]
        %v6737 = vld [vmem:[%s6671 + $0x208] sm:$0xff]
        %v6738 = vld [vmem:[%s6671 + $0x210] sm:$0xff]
        %v6739 = vld [vmem:[%s6671 + $0x218] sm:$0xff]
        %v6740 = vld [vmem:[%s6671 + $0x220] sm:$0xff]
        %v6741 = vld [vmem:[%s6671 + $0x228] sm:$0xff]
        %v6742 = vld [vmem:[%s6671 + $0x230] sm:$0xff]
        %v6743 = vld [vmem:[%s6671 + $0x238] sm:$0xff]
        %v6744 = vld [vmem:[%s6671 + $0x240] sm:$0xff]
        %v6745 = vld [vmem:[%s6671 + $0x248] sm:$0xff]
        %v6746 = vld [vmem:[%s6671 + $0x250] sm:$0xff]
        %v6747 = vld [vmem:[%s6671 + $0x258] sm:$0xff]
        %v6748 = vld [vmem:[%s6671 + $0x260] sm:$0xff]
        %v6749 = vld [vmem:[%s6671 + $0x268] sm:$0xff]
        %v6750 = vld [vmem:[%s6671 + $0x270] sm:$0xff]
        %v6751 = vld [vmem:[%s6671 + $0x278] sm:$0xff]
        %v6752 = vld [vmem:[%s6671 + $0x280] sm:$0xff]
        %v6753 = vld [vmem:[%s6671 + $0x288] sm:$0xff]
        %v6754 = vld [vmem:[%s6671 + $0x290] sm:$0xff]
        %v6755 = vld [vmem:[%s6671 + $0x298] sm:$0xff]
        %v6756 = vld [vmem:[%s6671 + $0x2a0] sm:$0xff]
        %v6757 = vld [vmem:[%s6671 + $0x2a8] sm:$0xff]
        %v6758 = vld [vmem:[%s6671 + $0x2b0] sm:$0xff]
        %v6759 = vld [vmem:[%s6671 + $0x2b8] sm:$0xff]
        %v6760 = vld [vmem:[%s6671 + $0x2c0] sm:$0xff]
        %v6761 = vld [vmem:[%s6671 + $0x2c8] sm:$0xff]
        %v6762 = vld [vmem:[%s6671 + $0x2d0] sm:$0xff]
        %v6763 = vld [vmem:[%s6671 + $0x2d8] sm:$0xff]
        %v6764 = vld [vmem:[%s6671 + $0x2e0] sm:$0xff]
        %v6765 = vld [vmem:[%s6671 + $0x2e8] sm:$0xff]
        %v6766 = vld [vmem:[%s6671 + $0x2f0] sm:$0xff]
        %v6767 = vld [vmem:[%s6671 + $0x2f8] sm:$0xff]
        %v6768 = vld [vmem:[%s6671 + $0x300] sm:$0xff]
        %v6769 = vld [vmem:[%s6671 + $0x308] sm:$0xff]
        %v6770 = vld [vmem:[%s6671 + $0x310] sm:$0xff]
        %v6771 = vld [vmem:[%s6671 + $0x318] sm:$0xff]
        %v6772 = vld [vmem:[%s6671 + $0x320] sm:$0xff]
        %v6773 = vld [vmem:[%s6671 + $0x328] sm:$0xff]
        %v6774 = vld [vmem:[%s6671 + $0x330] sm:$0xff]
        %v6775 = vld [vmem:[%s6671 + $0x338] sm:$0xff]
        %v6776 = vld [vmem:[%s6671 + $0x340] sm:$0xff]
        %v6777 = vld [vmem:[%s6671 + $0x348] sm:$0xff]
        %v6778 = vld [vmem:[%s6671 + $0x350] sm:$0xff]
        %v6779 = vld [vmem:[%s6671 + $0x358] sm:$0xff]
        %v6780 = vld [vmem:[%s6671 + $0x360] sm:$0xff]
        %v6781 = vld [vmem:[%s6671 + $0x368] sm:$0xff]
        %v6782 = vld [vmem:[%s6671 + $0x370] sm:$0xff]
        %v6783 = vld [vmem:[%s6671 + $0x378] sm:$0xff]
        %v6784 = vld [vmem:[%s6671 + $0x380] sm:$0xff]
        %v6785 = vld [vmem:[%s6671 + $0x388] sm:$0xff]
        %v6786 = vld [vmem:[%s6671 + $0x390] sm:$0xff]
        %v6787 = vld [vmem:[%s6671 + $0x398] sm:$0xff]
        %v6788 = vld [vmem:[%s6671 + $0x3a0] sm:$0xff]
        %v6789 = vld [vmem:[%s6671 + $0x3a8] sm:$0xff]
        %v6790 = vld [vmem:[%s6671 + $0x3b0] sm:$0xff]
        %v6791 = vld [vmem:[%s6671 + $0x3b8] sm:$0xff]
        %v6792 = vld [vmem:[%s6671 + $0x3c0] sm:$0xff]
        %v6793 = vld [vmem:[%s6671 + $0x3c8] sm:$0xff]
        %v6794 = vld [vmem:[%s6671 + $0x3d0] sm:$0xff]
        %v6795 = vld [vmem:[%s6671 + $0x3d8] sm:$0xff]
        %v6796 = vld [vmem:[%s6671 + $0x3e0] sm:$0xff]
        %v6797 = vld [vmem:[%s6671 + $0x3e8] sm:$0xff]
        %v6798 = vld [vmem:[%s6671 + $0x3f0] sm:$0xff]
        %v6799 = vld [vmem:[%s6671 + $0x3f8] sm:$0xff]
        %s6800 = scalar_lea.vmem %s8, 2
        %v6801 = vld [vmem:[%s6800] sm:$0x3]
        %v6803 = vperm.slane %v6801, 0
        %v6804 = vperm.slane %v6801, 1
        %v6935 = vunpack.c.l.b16 %v6672
        %v6936 = vunpack.c.h.b16 %v6672
        %v6937 = vunpack.c.l.b16 %v6673
        %v6938 = vunpack.c.h.b16 %v6673
        %v6939 = vunpack.c.l.b16 %v6674
        %v6940 = vunpack.c.h.b16 %v6674
        %v6941 = vunpack.c.l.b16 %v6675
        %v6942 = vunpack.c.h.b16 %v6675
        %v6943 = vunpack.c.l.b16 %v6676
        %v6944 = vunpack.c.h.b16 %v6676
        %v6945 = vunpack.c.l.b16 %v6677
        %v6946 = vunpack.c.h.b16 %v6677
        %v6947 = vunpack.c.l.b16 %v6678
        %v6948 = vunpack.c.h.b16 %v6678
        %v6949 = vunpack.c.l.b16 %v6679
        %v6950 = vunpack.c.h.b16 %v6679
        %v6951 = vunpack.c.l.b16 %v6680
        %v6952 = vunpack.c.h.b16 %v6680
        %v6953 = vunpack.c.l.b16 %v6681
        %v6954 = vunpack.c.h.b16 %v6681
        %v6955 = vunpack.c.l.b16 %v6682
        %v6956 = vunpack.c.h.b16 %v6682
        %v6957 = vunpack.c.l.b16 %v6683
        %v6958 = vunpack.c.h.b16 %v6683
        %v6959 = vunpack.c.l.b16 %v6684
        %v6960 = vunpack.c.h.b16 %v6684
        %v6961 = vunpack.c.l.b16 %v6685
        %v6962 = vunpack.c.h.b16 %v6685
        %v6963 = vunpack.c.l.b16 %v6686
        %v6964 = vunpack.c.h.b16 %v6686
        %v6965 = vunpack.c.l.b16 %v6687
        %v6966 = vunpack.c.h.b16 %v6687
        %v6967 = vunpack.c.l.b16 %v6688
        %v6968 = vunpack.c.h.b16 %v6688
        %v6969 = vunpack.c.l.b16 %v6689
        %v6970 = vunpack.c.h.b16 %v6689
        %v6971 = vunpack.c.l.b16 %v6690
        %v6972 = vunpack.c.h.b16 %v6690
        %v6973 = vunpack.c.l.b16 %v6691
        %v6974 = vunpack.c.h.b16 %v6691
        %v6975 = vunpack.c.l.b16 %v6692
        %v6976 = vunpack.c.h.b16 %v6692
        %v6977 = vunpack.c.l.b16 %v6693
        %v6978 = vunpack.c.h.b16 %v6693
        %v6979 = vunpack.c.l.b16 %v6694
        %v6980 = vunpack.c.h.b16 %v6694
        %v6981 = vunpack.c.l.b16 %v6695
        %v6982 = vunpack.c.h.b16 %v6695
        %v6983 = vunpack.c.l.b16 %v6696
        %v6984 = vunpack.c.h.b16 %v6696
        %v6985 = vunpack.c.l.b16 %v6697
        %v6986 = vunpack.c.h.b16 %v6697
        %v6987 = vunpack.c.l.b16 %v6698
        %v6988 = vunpack.c.h.b16 %v6698
        %v6989 = vunpack.c.l.b16 %v6699
        %v6990 = vunpack.c.h.b16 %v6699
        %v6991 = vunpack.c.l.b16 %v6700
        %v6992 = vunpack.c.h.b16 %v6700
        %v6993 = vunpack.c.l.b16 %v6701
        %v6994 = vunpack.c.h.b16 %v6701
        %v6995 = vunpack.c.l.b16 %v6702
        %v6996 = vunpack.c.h.b16 %v6702
        %v6997 = vunpack.c.l.b16 %v6703
        %v6998 = vunpack.c.h.b16 %v6703
        %v6999 = vunpack.c.l.b16 %v6704
        %v7000 = vunpack.c.h.b16 %v6704
        %v7001 = vunpack.c.l.b16 %v6705
        %v7002 = vunpack.c.h.b16 %v6705
        %v7003 = vunpack.c.l.b16 %v6706
        %v7004 = vunpack.c.h.b16 %v6706
        %v7005 = vunpack.c.l.b16 %v6707
        %v7006 = vunpack.c.h.b16 %v6707
        %v7007 = vunpack.c.l.b16 %v6708
        %v7008 = vunpack.c.h.b16 %v6708
        %v7009 = vunpack.c.l.b16 %v6709
        %v7010 = vunpack.c.h.b16 %v6709
        %v7011 = vunpack.c.l.b16 %v6710
        %v7012 = vunpack.c.h.b16 %v6710
        %v7013 = vunpack.c.l.b16 %v6711
        %v7014 = vunpack.c.h.b16 %v6711
        %v7015 = vunpack.c.l.b16 %v6712
        %v7016 = vunpack.c.h.b16 %v6712
        %v7017 = vunpack.c.l.b16 %v6713
        %v7018 = vunpack.c.h.b16 %v6713
        %v7019 = vunpack.c.l.b16 %v6714
        %v7020 = vunpack.c.h.b16 %v6714
        %v7021 = vunpack.c.l.b16 %v6715
        %v7022 = vunpack.c.h.b16 %v6715
        %v7023 = vunpack.c.l.b16 %v6716
        %v7024 = vunpack.c.h.b16 %v6716
        %v7025 = vunpack.c.l.b16 %v6717
        %v7026 = vunpack.c.h.b16 %v6717
        %v7027 = vunpack.c.l.b16 %v6718
        %v7028 = vunpack.c.h.b16 %v6718
        %v7029 = vunpack.c.l.b16 %v6719
        %v7030 = vunpack.c.h.b16 %v6719
        %v7031 = vunpack.c.l.b16 %v6720
        %v7032 = vunpack.c.h.b16 %v6720
        %v7033 = vunpack.c.l.b16 %v6721
        %v7034 = vunpack.c.h.b16 %v6721
        %v7035 = vunpack.c.l.b16 %v6722
        %v7036 = vunpack.c.h.b16 %v6722
        %v7037 = vunpack.c.l.b16 %v6723
        %v7038 = vunpack.c.h.b16 %v6723
        %v7039 = vunpack.c.l.b16 %v6724
        %v7040 = vunpack.c.h.b16 %v6724
        %v7041 = vunpack.c.l.b16 %v6725
        %v7042 = vunpack.c.h.b16 %v6725
        %v7043 = vunpack.c.l.b16 %v6726
        %v7044 = vunpack.c.h.b16 %v6726
        %v7045 = vunpack.c.l.b16 %v6727
        %v7046 = vunpack.c.h.b16 %v6727
        %v7047 = vunpack.c.l.b16 %v6728
        %v7048 = vunpack.c.h.b16 %v6728
        %v7049 = vunpack.c.l.b16 %v6729
        %v7050 = vunpack.c.h.b16 %v6729
        %v7051 = vunpack.c.l.b16 %v6730
        %v7052 = vunpack.c.h.b16 %v6730
        %v7053 = vunpack.c.l.b16 %v6731
        %v7054 = vunpack.c.h.b16 %v6731
        %v7055 = vunpack.c.l.b16 %v6732
        %v7056 = vunpack.c.h.b16 %v6732
        %v7057 = vunpack.c.l.b16 %v6733
        %v7058 = vunpack.c.h.b16 %v6733
        %v7059 = vunpack.c.l.b16 %v6734
        %v7060 = vunpack.c.h.b16 %v6734
        %v7061 = vunpack.c.l.b16 %v6735
        %v7062 = vunpack.c.h.b16 %v6735
        %v7063 = vunpack.c.l.b16 %v6736
        %v7064 = vunpack.c.h.b16 %v6736
        %v7065 = vunpack.c.l.b16 %v6737
        %v7066 = vunpack.c.h.b16 %v6737
        %v7067 = vunpack.c.l.b16 %v6738
        %v7068 = vunpack.c.h.b16 %v6738
        %v7069 = vunpack.c.l.b16 %v6739
        %v7070 = vunpack.c.h.b16 %v6739
        %v7071 = vunpack.c.l.b16 %v6740
        %v7072 = vunpack.c.h.b16 %v6740
        %v7073 = vunpack.c.l.b16 %v6741
        %v7074 = vunpack.c.h.b16 %v6741
        %v7075 = vunpack.c.l.b16 %v6742
        %v7076 = vunpack.c.h.b16 %v6742
        %v7077 = vunpack.c.l.b16 %v6743
        %v7078 = vunpack.c.h.b16 %v6743
        %v7079 = vunpack.c.l.b16 %v6744
        %v7080 = vunpack.c.h.b16 %v6744
        %v7081 = vunpack.c.l.b16 %v6745
        %v7082 = vunpack.c.h.b16 %v6745
        %v7083 = vunpack.c.l.b16 %v6746
        %v7084 = vunpack.c.h.b16 %v6746
        %v7085 = vunpack.c.l.b16 %v6747
        %v7086 = vunpack.c.h.b16 %v6747
        %v7087 = vunpack.c.l.b16 %v6748
        %v7088 = vunpack.c.h.b16 %v6748
        %v7089 = vunpack.c.l.b16 %v6749
        %v7090 = vunpack.c.h.b16 %v6749
        %v7091 = vunpack.c.l.b16 %v6750
        %v7092 = vunpack.c.h.b16 %v6750
        %v7093 = vunpack.c.l.b16 %v6751
        %v7094 = vunpack.c.h.b16 %v6751
        %v7095 = vunpack.c.l.b16 %v6752
        %v7096 = vunpack.c.h.b16 %v6752
        %v7097 = vunpack.c.l.b16 %v6753
        %v7098 = vunpack.c.h.b16 %v6753
        %v7099 = vunpack.c.l.b16 %v6754
        %v7100 = vunpack.c.h.b16 %v6754
        %v7101 = vunpack.c.l.b16 %v6755
        %v7102 = vunpack.c.h.b16 %v6755
        %v7103 = vunpack.c.l.b16 %v6756
        %v7104 = vunpack.c.h.b16 %v6756
        %v7105 = vunpack.c.l.b16 %v6757
        %v7106 = vunpack.c.h.b16 %v6757
        %v7107 = vunpack.c.l.b16 %v6758
        %v7108 = vunpack.c.h.b16 %v6758
        %v7109 = vunpack.c.l.b16 %v6759
        %v7110 = vunpack.c.h.b16 %v6759
        %v7111 = vunpack.c.l.b16 %v6760
        %v7112 = vunpack.c.h.b16 %v6760
        %v7113 = vunpack.c.l.b16 %v6761
        %v7114 = vunpack.c.h.b16 %v6761
        %v7115 = vunpack.c.l.b16 %v6762
        %v7116 = vunpack.c.h.b16 %v6762
        %v7117 = vunpack.c.l.b16 %v6763
        %v7118 = vunpack.c.h.b16 %v6763
        %v7119 = vunpack.c.l.b16 %v6764
        %v7120 = vunpack.c.h.b16 %v6764
        %v7121 = vunpack.c.l.b16 %v6765
        %v7122 = vunpack.c.h.b16 %v6765
        %v7123 = vunpack.c.l.b16 %v6766
        %v7124 = vunpack.c.h.b16 %v6766
        %v7125 = vunpack.c.l.b16 %v6767
        %v7126 = vunpack.c.h.b16 %v6767
        %v7127 = vunpack.c.l.b16 %v6768
        %v7128 = vunpack.c.h.b16 %v6768
        %v7129 = vunpack.c.l.b16 %v6769
        %v7130 = vunpack.c.h.b16 %v6769
        %v7131 = vunpack.c.l.b16 %v6770
        %v7132 = vunpack.c.h.b16 %v6770
        %v7133 = vunpack.c.l.b16 %v6771
        %v7134 = vunpack.c.h.b16 %v6771
        %v7135 = vunpack.c.l.b16 %v6772
        %v7136 = vunpack.c.h.b16 %v6772
        %v7137 = vunpack.c.l.b16 %v6773
        %v7138 = vunpack.c.h.b16 %v6773
        %v7139 = vunpack.c.l.b16 %v6774
        %v7140 = vunpack.c.h.b16 %v6774
        %v7141 = vunpack.c.l.b16 %v6775
        %v7142 = vunpack.c.h.b16 %v6775
        %v7143 = vunpack.c.l.b16 %v6776
        %v7144 = vunpack.c.h.b16 %v6776
        %v7145 = vunpack.c.l.b16 %v6777
        %v7146 = vunpack.c.h.b16 %v6777
        %v7147 = vunpack.c.l.b16 %v6778
        %v7148 = vunpack.c.h.b16 %v6778
        %v7149 = vunpack.c.l.b16 %v6779
        %v7150 = vunpack.c.h.b16 %v6779
        %v7151 = vunpack.c.l.b16 %v6780
        %v7152 = vunpack.c.h.b16 %v6780
        %v7153 = vunpack.c.l.b16 %v6781
        %v7154 = vunpack.c.h.b16 %v6781
        %v7155 = vunpack.c.l.b16 %v6782
        %v7156 = vunpack.c.h.b16 %v6782
        %v7157 = vunpack.c.l.b16 %v6783
        %v7158 = vunpack.c.h.b16 %v6783
        %v7159 = vunpack.c.l.b16 %v6784
        %v7160 = vunpack.c.h.b16 %v6784
        %v7161 = vunpack.c.l.b16 %v6785
        %v7162 = vunpack.c.h.b16 %v6785
        %v7163 = vunpack.c.l.b16 %v6786
        %v7164 = vunpack.c.h.b16 %v6786
        %v7165 = vunpack.c.l.b16 %v6787
        %v7166 = vunpack.c.h.b16 %v6787
        %v7167 = vunpack.c.l.b16 %v6788
        %v7168 = vunpack.c.h.b16 %v6788
        %v7169 = vunpack.c.l.b16 %v6789
        %v7170 = vunpack.c.h.b16 %v6789
        %v7171 = vunpack.c.l.b16 %v6790
        %v7172 = vunpack.c.h.b16 %v6790
        %v7173 = vunpack.c.l.b16 %v6791
        %v7174 = vunpack.c.h.b16 %v6791
        %v7175 = vunpack.c.l.b16 %v6792
        %v7176 = vunpack.c.h.b16 %v6792
        %v7177 = vunpack.c.l.b16 %v6793
        %v7178 = vunpack.c.h.b16 %v6793
        %v7179 = vunpack.c.l.b16 %v6794
        %v7180 = vunpack.c.h.b16 %v6794
        %v7181 = vunpack.c.l.b16 %v6795
        %v7182 = vunpack.c.h.b16 %v6795
        %v7183 = vunpack.c.l.b16 %v6796
        %v7184 = vunpack.c.h.b16 %v6796
        %v7185 = vunpack.c.l.b16 %v6797
        %v7186 = vunpack.c.h.b16 %v6797
        %v7187 = vunpack.c.l.b16 %v6798
        %v7188 = vunpack.c.h.b16 %v6798
        %v7189 = vunpack.c.l.b16 %v6799
        %v7190 = vunpack.c.h.b16 %v6799
        %v7191 = vpack.c.b16 %v6937, %v6935
        %v7192 = vpack.c.b16 %v6938, %v6936
        %v7193 = vpack.c.b16 %v6941, %v6939
        %v7194 = vpack.c.b16 %v6942, %v6940
        %v7195 = vpack.c.b16 %v6945, %v6943
        %v7196 = vpack.c.b16 %v6946, %v6944
        %v7197 = vpack.c.b16 %v6949, %v6947
        %v7198 = vpack.c.b16 %v6950, %v6948
        %v7199 = vpack.c.b16 %v6953, %v6951
        %v7200 = vpack.c.b16 %v6954, %v6952
        %v7201 = vpack.c.b16 %v6957, %v6955
        %v7202 = vpack.c.b16 %v6958, %v6956
        %v7203 = vpack.c.b16 %v6961, %v6959
        %v7204 = vpack.c.b16 %v6962, %v6960
        %v7205 = vpack.c.b16 %v6965, %v6963
        %v7206 = vpack.c.b16 %v6966, %v6964
        %v7207 = vpack.c.b16 %v6969, %v6967
        %v7208 = vpack.c.b16 %v6970, %v6968
        %v7209 = vpack.c.b16 %v6973, %v6971
        %v7210 = vpack.c.b16 %v6974, %v6972
        %v7211 = vpack.c.b16 %v6977, %v6975
        %v7212 = vpack.c.b16 %v6978, %v6976
        %v7213 = vpack.c.b16 %v6981, %v6979
        %v7214 = vpack.c.b16 %v6982, %v6980
        %v7215 = vpack.c.b16 %v6985, %v6983
        %v7216 = vpack.c.b16 %v6986, %v6984
        %v7217 = vpack.c.b16 %v6989, %v6987
        %v7218 = vpack.c.b16 %v6990, %v6988
        %v7219 = vpack.c.b16 %v6993, %v6991
        %v7220 = vpack.c.b16 %v6994, %v6992
        %v7221 = vpack.c.b16 %v6997, %v6995
        %v7222 = vpack.c.b16 %v6998, %v6996
        %v7223 = vpack.c.b16 %v7001, %v6999
        %v7224 = vpack.c.b16 %v7002, %v7000
        %v7225 = vpack.c.b16 %v7005, %v7003
        %v7226 = vpack.c.b16 %v7006, %v7004
        %v7227 = vpack.c.b16 %v7009, %v7007
        %v7228 = vpack.c.b16 %v7010, %v7008
        %v7229 = vpack.c.b16 %v7013, %v7011
        %v7230 = vpack.c.b16 %v7014, %v7012
        %v7231 = vpack.c.b16 %v7017, %v7015
        %v7232 = vpack.c.b16 %v7018, %v7016
        %v7233 = vpack.c.b16 %v7021, %v7019
        %v7234 = vpack.c.b16 %v7022, %v7020
        %v7235 = vpack.c.b16 %v7025, %v7023
        %v7236 = vpack.c.b16 %v7026, %v7024
        %v7237 = vpack.c.b16 %v7029, %v7027
        %v7238 = vpack.c.b16 %v7030, %v7028
        %v7239 = vpack.c.b16 %v7033, %v7031
        %v7240 = vpack.c.b16 %v7034, %v7032
        %v7241 = vpack.c.b16 %v7037, %v7035
        %v7242 = vpack.c.b16 %v7038, %v7036
        %v7243 = vpack.c.b16 %v7041, %v7039
        %v7244 = vpack.c.b16 %v7042, %v7040
        %v7245 = vpack.c.b16 %v7045, %v7043
        %v7246 = vpack.c.b16 %v7046, %v7044
        %v7247 = vpack.c.b16 %v7049, %v7047
        %v7248 = vpack.c.b16 %v7050, %v7048
        %v7249 = vpack.c.b16 %v7053, %v7051
        %v7250 = vpack.c.b16 %v7054, %v7052
        %v7251 = vpack.c.b16 %v7057, %v7055
        %v7252 = vpack.c.b16 %v7058, %v7056
        %v7253 = vpack.c.b16 %v7061, %v7059
        %v7254 = vpack.c.b16 %v7062, %v7060
        %v7255 = vpack.c.b16 %v7065, %v7063
        %v7256 = vpack.c.b16 %v7066, %v7064
        %v7257 = vpack.c.b16 %v7069, %v7067
        %v7258 = vpack.c.b16 %v7070, %v7068
        %v7259 = vpack.c.b16 %v7073, %v7071
        %v7260 = vpack.c.b16 %v7074, %v7072
        %v7261 = vpack.c.b16 %v7077, %v7075
        %v7262 = vpack.c.b16 %v7078, %v7076
        %v7263 = vpack.c.b16 %v7081, %v7079
        %v7264 = vpack.c.b16 %v7082, %v7080
        %v7265 = vpack.c.b16 %v7085, %v7083
        %v7266 = vpack.c.b16 %v7086, %v7084
        %v7267 = vpack.c.b16 %v7089, %v7087
        %v7268 = vpack.c.b16 %v7090, %v7088
        %v7269 = vpack.c.b16 %v7093, %v7091
        %v7270 = vpack.c.b16 %v7094, %v7092
        %v7271 = vpack.c.b16 %v7097, %v7095
        %v7272 = vpack.c.b16 %v7098, %v7096
        %v7273 = vpack.c.b16 %v7101, %v7099
        %v7274 = vpack.c.b16 %v7102, %v7100
        %v7275 = vpack.c.b16 %v7105, %v7103
        %v7276 = vpack.c.b16 %v7106, %v7104
        %v7277 = vpack.c.b16 %v7109, %v7107
        %v7278 = vpack.c.b16 %v7110, %v7108
        %v7279 = vpack.c.b16 %v7113, %v7111
        %v7280 = vpack.c.b16 %v7114, %v7112
        %v7281 = vpack.c.b16 %v7117, %v7115
        %v7282 = vpack.c.b16 %v7118, %v7116
        %v7283 = vpack.c.b16 %v7121, %v7119
        %v7284 = vpack.c.b16 %v7122, %v7120
        %v7285 = vpack.c.b16 %v7125, %v7123
        %v7286 = vpack.c.b16 %v7126, %v7124
        %v7287 = vpack.c.b16 %v7129, %v7127
        %v7288 = vpack.c.b16 %v7130, %v7128
        %v7289 = vpack.c.b16 %v7133, %v7131
        %v7290 = vpack.c.b16 %v7134, %v7132
        %v7291 = vpack.c.b16 %v7137, %v7135
        %v7292 = vpack.c.b16 %v7138, %v7136
        %v7293 = vpack.c.b16 %v7141, %v7139
        %v7294 = vpack.c.b16 %v7142, %v7140
        %v7295 = vpack.c.b16 %v7145, %v7143
        %v7296 = vpack.c.b16 %v7146, %v7144
        %v7297 = vpack.c.b16 %v7149, %v7147
        %v7298 = vpack.c.b16 %v7150, %v7148
        %v7299 = vpack.c.b16 %v7153, %v7151
        %v7300 = vpack.c.b16 %v7154, %v7152
        %v7301 = vpack.c.b16 %v7157, %v7155
        %v7302 = vpack.c.b16 %v7158, %v7156
        %v7303 = vpack.c.b16 %v7161, %v7159
        %v7304 = vpack.c.b16 %v7162, %v7160
        %v7305 = vpack.c.b16 %v7165, %v7163
        %v7306 = vpack.c.b16 %v7166, %v7164
        %v7307 = vpack.c.b16 %v7169, %v7167
        %v7308 = vpack.c.b16 %v7170, %v7168
        %v7309 = vpack.c.b16 %v7173, %v7171
        %v7310 = vpack.c.b16 %v7174, %v7172
        %v7311 = vpack.c.b16 %v7177, %v7175
        %v7312 = vpack.c.b16 %v7178, %v7176
        %v7313 = vpack.c.b16 %v7181, %v7179
        %v7314 = vpack.c.b16 %v7182, %v7180
        %v7315 = vpack.c.b16 %v7185, %v7183
        %v7316 = vpack.c.b16 %v7186, %v7184
        %v7317 = vpack.c.b16 %v7189, %v7187
        %v7318 = vpack.c.b16 %v7190, %v7188
        %7447 = vmatpush.bf16.msra.mxu0 %v7205
        %7448 = vmatpush.bf16.msra.mxu0 %v7203
        %7449 = vmatpush.bf16.msra.mxu0 %v7201
        %7450 = vmatpush.bf16.msra.mxu0 %v7199
        %7451 = vmatpush.bf16.msra.mxu0 %v7197
        %7452 = vmatpush.bf16.msra.mxu0 %v7195
        %7453 = vmatpush.bf16.msra.mxu0 %v7193
        %7454 = vmatpush.bf16.msra.mxu0 %v7191
        %7455 = vmatmul.bf16.gmra.mxu0 %v6663
        %v7456 = vpop.f32.mrf.mxu0
        %v7457 = vadd.f32 %v6803, %v7456
        %v7458 = vpop.f32.mrf.mxu0
        %7459 = vdwg.mxu0
        %7460 = vmatpush.bf16.msra.mxu0 %v7221
        %7461 = vmatpush.bf16.msra.mxu0 %v7219
        %7462 = vmatpush.bf16.msra.mxu0 %v7217
        %7463 = vmatpush.bf16.msra.mxu0 %v7215
        %7464 = vmatpush.bf16.msra.mxu0 %v7213
        %7465 = vmatpush.bf16.msra.mxu0 %v7211
        %7466 = vmatpush.bf16.msra.mxu0 %v7209
        %7467 = vmatpush.bf16.msra.mxu0 %v7207
        %7468 = vmatmul.bf16.gmra.mxu0 %v6664
        %v7469 = vpop.f32.mrf.mxu0
        %v7470 = vadd.f32 %v7457, %v7469
        %v7471 = vpop.f32.mrf.mxu0
        %7472 = vdwg.mxu0
        %7473 = vmatpush.bf16.msra.mxu0 %v7237
        %7474 = vmatpush.bf16.msra.mxu0 %v7235
        %7475 = vmatpush.bf16.msra.mxu0 %v7233
        %7476 = vmatpush.bf16.msra.mxu0 %v7231
        %7477 = vmatpush.bf16.msra.mxu0 %v7229
        %7478 = vmatpush.bf16.msra.mxu0 %v7227
        %7479 = vmatpush.bf16.msra.mxu0 %v7225
        %7480 = vmatpush.bf16.msra.mxu0 %v7223
        %7481 = vmatmul.bf16.gmra.mxu0 %v6665
        %v7482 = vpop.f32.mrf.mxu0
        %v7483 = vadd.f32 %v7470, %v7482
        %v7484 = vpop.f32.mrf.mxu0
        %7485 = vdwg.mxu0
        %7486 = vmatpush.bf16.msra.mxu0 %v7253
        %7487 = vmatpush.bf16.msra.mxu0 %v7251
        %7488 = vmatpush.bf16.msra.mxu0 %v7249
        %7489 = vmatpush.bf16.msra.mxu0 %v7247
        %7490 = vmatpush.bf16.msra.mxu0 %v7245
        %7491 = vmatpush.bf16.msra.mxu0 %v7243
        %7492 = vmatpush.bf16.msra.mxu0 %v7241
        %7493 = vmatpush.bf16.msra.mxu0 %v7239
        %7494 = vmatmul.bf16.gmra.mxu0 %v6666
        %v7495 = vpop.f32.mrf.mxu0
        %v7496 = vadd.f32 %v7483, %v7495
        %v7497 = vpop.f32.mrf.mxu0
        %7498 = vdwg.mxu0
        %7499 = vmatpush.bf16.msra.mxu0 %v7269
        %7500 = vmatpush.bf16.msra.mxu0 %v7267
        %7501 = vmatpush.bf16.msra.mxu0 %v7265
        %7502 = vmatpush.bf16.msra.mxu0 %v7263
        %7503 = vmatpush.bf16.msra.mxu0 %v7261
        %7504 = vmatpush.bf16.msra.mxu0 %v7259
        %7505 = vmatpush.bf16.msra.mxu0 %v7257
        %7506 = vmatpush.bf16.msra.mxu0 %v7255
        %7507 = vmatmul.bf16.gmra.mxu0 %v6667
        %v7508 = vpop.f32.mrf.mxu0
        %v7509 = vadd.f32 %v7496, %v7508
        %v7510 = vpop.f32.mrf.mxu0
        %7511 = vdwg.mxu0
        %7512 = vmatpush.bf16.msra.mxu0 %v7285
        %7513 = vmatpush.bf16.msra.mxu0 %v7283
        %7514 = vmatpush.bf16.msra.mxu0 %v7281
        %7515 = vmatpush.bf16.msra.mxu0 %v7279
        %7516 = vmatpush.bf16.msra.mxu0 %v7277
        %7517 = vmatpush.bf16.msra.mxu0 %v7275
        %7518 = vmatpush.bf16.msra.mxu0 %v7273
        %7519 = vmatpush.bf16.msra.mxu0 %v7271
        %7520 = vmatmul.bf16.gmra.mxu0 %v6668
        %v7521 = vpop.f32.mrf.mxu0
        %v7522 = vadd.f32 %v7509, %v7521
        %v7523 = vpop.f32.mrf.mxu0
        %7524 = vdwg.mxu0
        %7525 = vmatpush.bf16.msra.mxu0 %v7301
        %7526 = vmatpush.bf16.msra.mxu0 %v7299
        %7527 = vmatpush.bf16.msra.mxu0 %v7297
        %7528 = vmatpush.bf16.msra.mxu0 %v7295
        %7529 = vmatpush.bf16.msra.mxu0 %v7293
        %7530 = vmatpush.bf16.msra.mxu0 %v7291
        %7531 = vmatpush.bf16.msra.mxu0 %v7289
        %7532 = vmatpush.bf16.msra.mxu0 %v7287
        %7533 = vmatmul.bf16.gmra.mxu0 %v6669
        %v7534 = vpop.f32.mrf.mxu0
        %v7535 = vadd.f32 %v7522, %v7534
        %v7536 = vpop.f32.mrf.mxu0
        %7537 = vdwg.mxu0
        %7538 = vmatpush.bf16.msra.mxu0 %v7317
        %7539 = vmatpush.bf16.msra.mxu0 %v7315
        %7540 = vmatpush.bf16.msra.mxu0 %v7313
        %7541 = vmatpush.bf16.msra.mxu0 %v7311
        %7542 = vmatpush.bf16.msra.mxu0 %v7309
        %7543 = vmatpush.bf16.msra.mxu0 %v7307
        %7544 = vmatpush.bf16.msra.mxu0 %v7305
        %7545 = vmatpush.bf16.msra.mxu0 %v7303
        %7546 = vmatmul.bf16.gmra.mxu0 %v6670
        %v7547 = vpop.f32.mrf.mxu0
        %v7548 = vadd.f32 %v7535, %v7547
        %v7549 = vpop.f32.mrf.mxu0
        %7550 = vdwg.mxu0
        %7551 = vmatpush.bf16.msra.mxu0 %v7206
        %7552 = vmatpush.bf16.msra.mxu0 %v7204
        %7553 = vmatpush.bf16.msra.mxu0 %v7202
        %7554 = vmatpush.bf16.msra.mxu0 %v7200
        %7555 = vmatpush.bf16.msra.mxu0 %v7198
        %7556 = vmatpush.bf16.msra.mxu0 %v7196
        %7557 = vmatpush.bf16.msra.mxu0 %v7194
        %7558 = vmatpush.bf16.msra.mxu0 %v7192
        %7559 = vmatmul.bf16.gmra.mxu0 %v6663
        %v7560 = vpop.f32.mrf.mxu0
        %v7561 = vadd.f32 %v6804, %v7560
        %v7562 = vpop.f32.mrf.mxu0
        %7563 = vdwg.mxu0
        %7564 = vmatpush.bf16.msra.mxu0 %v7222
        %7565 = vmatpush.bf16.msra.mxu0 %v7220
        %7566 = vmatpush.bf16.msra.mxu0 %v7218
        %7567 = vmatpush.bf16.msra.mxu0 %v7216
        %7568 = vmatpush.bf16.msra.mxu0 %v7214
        %7569 = vmatpush.bf16.msra.mxu0 %v7212
        %7570 = vmatpush.bf16.msra.mxu0 %v7210
        %7571 = vmatpush.bf16.msra.mxu0 %v7208
        %7572 = vmatmul.bf16.gmra.mxu0 %v6664
        %v7573 = vpop.f32.mrf.mxu0
        %v7574 = vadd.f32 %v7561, %v7573
        %v7575 = vpop.f32.mrf.mxu0
        %7576 = vdwg.mxu0
        %7577 = vmatpush.bf16.msra.mxu0 %v7238
        %7578 = vmatpush.bf16.msra.mxu0 %v7236
        %7579 = vmatpush.bf16.msra.mxu0 %v7234
        %7580 = vmatpush.bf16.msra.mxu0 %v7232
        %7581 = vmatpush.bf16.msra.mxu0 %v7230
        %7582 = vmatpush.bf16.msra.mxu0 %v7228
        %7583 = vmatpush.bf16.msra.mxu0 %v7226
        %7584 = vmatpush.bf16.msra.mxu0 %v7224
        %7585 = vmatmul.bf16.gmra.mxu0 %v6665
        %v7586 = vpop.f32.mrf.mxu0
        %v7587 = vadd.f32 %v7574, %v7586
        %v7588 = vpop.f32.mrf.mxu0
        %7589 = vdwg.mxu0
        %7590 = vmatpush.bf16.msra.mxu0 %v7254
        %7591 = vmatpush.bf16.msra.mxu0 %v7252
        %7592 = vmatpush.bf16.msra.mxu0 %v7250
        %7593 = vmatpush.bf16.msra.mxu0 %v7248
        %7594 = vmatpush.bf16.msra.mxu0 %v7246
        %7595 = vmatpush.bf16.msra.mxu0 %v7244
        %7596 = vmatpush.bf16.msra.mxu0 %v7242
        %7597 = vmatpush.bf16.msra.mxu0 %v7240
        %7598 = vmatmul.bf16.gmra.mxu0 %v6666
        %v7599 = vpop.f32.mrf.mxu0
        %v7600 = vadd.f32 %v7587, %v7599
        %v7601 = vpop.f32.mrf.mxu0
        %7602 = vdwg.mxu0
        %7603 = vmatpush.bf16.msra.mxu0 %v7270
        %7604 = vmatpush.bf16.msra.mxu0 %v7268
        %7605 = vmatpush.bf16.msra.mxu0 %v7266
        %7606 = vmatpush.bf16.msra.mxu0 %v7264
        %7607 = vmatpush.bf16.msra.mxu0 %v7262
        %7608 = vmatpush.bf16.msra.mxu0 %v7260
        %7609 = vmatpush.bf16.msra.mxu0 %v7258
        %7610 = vmatpush.bf16.msra.mxu0 %v7256
        %7611 = vmatmul.bf16.gmra.mxu0 %v6667
        %v7612 = vpop.f32.mrf.mxu0
        %v7613 = vadd.f32 %v7600, %v7612
        %v7614 = vpop.f32.mrf.mxu0
        %7615 = vdwg.mxu0
        %7616 = vmatpush.bf16.msra.mxu0 %v7286
        %7617 = vmatpush.bf16.msra.mxu0 %v7284
        %7618 = vmatpush.bf16.msra.mxu0 %v7282
        %7619 = vmatpush.bf16.msra.mxu0 %v7280
        %7620 = vmatpush.bf16.msra.mxu0 %v7278
        %7621 = vmatpush.bf16.msra.mxu0 %v7276
        %7622 = vmatpush.bf16.msra.mxu0 %v7274
        %7623 = vmatpush.bf16.msra.mxu0 %v7272
        %7624 = vmatmul.bf16.gmra.mxu0 %v6668
        %v7625 = vpop.f32.mrf.mxu0
        %v7626 = vadd.f32 %v7613, %v7625
        %v7627 = vpop.f32.mrf.mxu0
        %7628 = vdwg.mxu0
        %7629 = vmatpush.bf16.msra.mxu0 %v7302
        %7630 = vmatpush.bf16.msra.mxu0 %v7300
        %7631 = vmatpush.bf16.msra.mxu0 %v7298
        %7632 = vmatpush.bf16.msra.mxu0 %v7296
        %7633 = vmatpush.bf16.msra.mxu0 %v7294
        %7634 = vmatpush.bf16.msra.mxu0 %v7292
        %7635 = vmatpush.bf16.msra.mxu0 %v7290
        %7636 = vmatpush.bf16.msra.mxu0 %v7288
        %7637 = vmatmul.bf16.gmra.mxu0 %v6669
        %v7638 = vpop.f32.mrf.mxu0
        %v7639 = vadd.f32 %v7626, %v7638
        %v7640 = vpop.f32.mrf.mxu0
        %7641 = vdwg.mxu0
        %7642 = vmatpush.bf16.msra.mxu0 %v7318
        %7643 = vmatpush.bf16.msra.mxu0 %v7316
        %7644 = vmatpush.bf16.msra.mxu0 %v7314
        %7645 = vmatpush.bf16.msra.mxu0 %v7312
        %7646 = vmatpush.bf16.msra.mxu0 %v7310
        %7647 = vmatpush.bf16.msra.mxu0 %v7308
        %7648 = vmatpush.bf16.msra.mxu0 %v7306
        %7649 = vmatpush.bf16.msra.mxu0 %v7304
        %7650 = vmatmul.bf16.gmra.mxu0 %v6670
        %v7651 = vpop.f32.mrf.mxu0
        %v7652 = vadd.f32 %v7639, %v7651
        %v7653 = vpop.f32.mrf.mxu0
        %7654 = vdwg.mxu0
        %v7655 = vadd.f32 %v5655, %v7548
        %v7656 = vadd.f32 %v5656, %v7652
        %s7657 = scalar_lea.vmem %s11, 2
        %v7658 = vld [vmem:[%s7657] sm:$0x3]
        %s7659 = scalar_lea.vmem %s12, 2
        %v7660 = vld [vmem:[%s7659] sm:$0x3]
        %v7661 = vadd.f32 %v7655, %v7656
        %7662 = vadd.xlane.f32.xlu0 %v7661
        %v7663 = vpop.xlane.xlu0 %7662
        %v7664 = vmul.f32 %v7663, %v2060
        %v7665 = vsub.f32 %v7655, %v7664
        %v7666 = vsub.f32 %v7656, %v7664
        %v7667 = vmul.f32 %v7665, %v7665
        %v7668 = vmul.f32 %v7666, %v7666
        %v7669 = vadd.f32 %v7667, %v7668
        %7670 = vadd.xlane.f32.xlu0 %v7669
        %v7671 = vpop.xlane.xlu0 %7670
        %v7672 = vmul.f32 %v7671, %v2060
        %v7673 = vadd.f32 %v7672, 1e-05
        %v7674 = vrsqrt.pop %v7673
        %v7675 = vmul.f32 %v7674, %v7673
        %v7676 = vmul.f32 %v7675, %v7674
        %v7677 = vmul.f32 0.5, %v7676
        %v7678 = vsub.f32 1.5, %v7677
        %v7679 = vmul.f32 %v7674, %v7678
        %vm7680 = vweird.f32 %v7673
        %vm7681 = vweird.f32 %v7674
        %vm7682 = vmor %vm7680, %vm7681
        %v7683 = vsel %vm7682, %v7674, %v7679
        %v7684 = vmul.f32 %v7665, %v7683
        %v7685 = vmul.f32 %v7666, %v7683
        %v7687 = vperm.slane %v7658, 0
        %v7688 = vperm.slane %v7658, 1
        %v7691 = vmul.f32 %v7684, %v7687
        %v7692 = vmul.f32 %v7685, %v7688
        %v7694 = vperm.slane %v7660, 0
        %v7695 = vperm.slane %v7660, 1
        %v7698 = vadd.f32 %v7691, %v7694
        %v7699 = vadd.f32 %v7692, %v7695
        %v7700 = vld [vmem:[%s13] sm:$0x3]
        %v7701 = vld [vmem:[%s14] sm:$0x3]
        %v7702 = vadd.f32 %v7698, %v7699
        %7703 = vadd.xlane.f32.xlu0 %v7702
        %v7704 = vpop.xlane.xlu0 %7703
        %v7705 = vmul.f32 %v7704, %v2060
        %v7706 = vsub.f32 %v7698, %v7705
        %v7707 = vsub.f32 %v7699, %v7705
        %v7708 = vmul.f32 %v7706, %v7706
        %v7709 = vmul.f32 %v7707, %v7707
        %v7710 = vadd.f32 %v7708, %v7709
        %7711 = vadd.xlane.f32.xlu0 %v7710
        %v7712 = vpop.xlane.xlu0 %7711
        %v7713 = vmul.f32 %v7712, %v2060
        %v7714 = vadd.f32 %v7713, 1e-05
        %v7715 = vrsqrt.pop %v7714
        %v7716 = vmul.f32 %v7715, %v7714
        %v7717 = vmul.f32 %v7716, %v7715
        %v7718 = vmul.f32 0.5, %v7717
        %v7719 = vsub.f32 1.5, %v7718
        %v7720 = vmul.f32 %v7715, %v7719
        %vm7721 = vweird.f32 %v7714
        %vm7722 = vweird.f32 %v7715
        %vm7723 = vmor %vm7721, %vm7722
        %v7724 = vsel %vm7723, %v7715, %v7720
        %v7725 = vmul.f32 %v7706, %v7724
        %v7726 = vmul.f32 %v7707, %v7724
        %v7728 = vperm.slane %v7700, 0
        %v7729 = vperm.slane %v7700, 1
        %v7732 = vmul.f32 %v7725, %v7728
        %v7733 = vmul.f32 %v7726, %v7729
        %v7735 = vperm.slane %v7701, 0
        %v7736 = vperm.slane %v7701, 1
        %v7739 = vadd.f32 %v7732, %v7735
        %v7740 = vadd.f32 %v7733, %v7736
        %7741 = vst [vmem:[%s563] sm:$0xff] %v7739
        %7742 = vst [vmem:[%s563 + $0x8] sm:$0xff] %v7740
        %s7743 = smul.u32 2, %s29
        %p7744 = scmp.lt.s32.totalorder %s7743, 3
        %s7745 = scalar_select %p7744, %s7743, 3
        %s7746 = smul.addr %s7745, 8
        %s7747 = scalar_lea.vmem %s15, %s7746
        // Predicated region
        $region97: #{encoder_forward.1} parent=79 // pred_check
          %p7748 = pneg %p367
        $region98: #{encoder_forward.1} parent=79 // pred_check_branch
          %7750 = sbr.rel (%p7748) target = $region100
        $region99: #{encoder_forward.1} parent=79 // pred_region
          %s7751 = smul.u32 2, %s29
        $region100: #{encoder_forward.1} parent=79 // pred_fallthru
          _
      $region80: #{encoder_forward.1} parent=5 // pred_fallthru
        _
      %p7752 = scmp.le.s32.totalorder 2, %s24
      // Predicated region
      $region101: #{encoder_forward.1} parent=5 // pred_check
        %p7753 = pneg %p7752
      $region102: #{encoder_forward.1} parent=5 // pred_check_branch
        %7755 = sbr.rel (%p7753) target = $region104
      $region103: #{encoder_forward.1} parent=5 // pred_region
        %s7756 = ssub.s32 %s24, 2
        // Predicated region
        $region105: #{encoder_forward.1} parent=103 // pred_check
          %p7757 = pneg %p373
        $region106: #{encoder_forward.1} parent=103 // pred_check_branch
          %7759 = sbr.rel (%p7757) target = $region108
        $region107: #{encoder_forward.1} parent=103 // pred_region
          %s7760 = smul.u32 2, %s30
          %p7761 = scmp.lt.s32.totalorder %s7760, 3
          %s7762 = scalar_select %p7761, %s7760, 3
          %s7763 = smul.addr %s7762, 8
          %s7764 = scalar_lea.vmem %s15, %s7763
        $region108: #{encoder_forward.1} parent=103 // pred_fallthru
          _
      $region104: #{encoder_forward.1} parent=5 // pred_fallthru
        _
    $region6: #{encoder_forward.1} parent=1 // loop_footer
      %s28 = sadd.s32 1, %s24
    $region7: #{encoder_forward.1} parent=1 // loop_footer_branch
      %23 = sbr.rel target = $region3
    $region8: #{encoder_forward.1} parent=1 // loop_exit
      _
    %7765 = vsyncpa [#allocation3], 1
    %s7766 = scalar_lea.sflag [#allocation3], 1
    %7767 = vsyncpa %s7766, 1
    %7768 = vsyncpa [#allocation5], 1
    %7769 = vsyncpa [#allocation8], 1

</llo_original>
